<compile_context>
chip_gen: v7x
topology: tpu7x:2x2x1
jax: 0.10.0
libtpu: 0.0.40
codegen_flags: <defaults>
</compile_context>

<pallas_src>
import numpy as np
import jax
import jax.numpy as jnp
from jax.experimental import pallas as pl
from jax.experimental.pallas import tpu as pltpu

# ----- synthetic configuration (dims chosen small; consistent with the module) -----
DIM = 2        # trajectory dims (x, y)       -> config.dim
CTX = 4        # context feature dims
B   = 4        # batch size
T   = 8        # history length
NT  = T - 1    # recurrence steps
HSM = 16       # hidden width of f_x / f_c / f_z MLPs
FX  = 16       # f_x out_size
FC  = 16       # f_c out_size
FZ  = 16       # f_z out_size
Z   = 16       # z_dim = enc_out_size // 2
HID = 64       # hidden width of enc / prior / dec MLPs
H   = 32       # rnn hidden_size (num_layers = 1)
GRU_IN = FX + FZ + FC
LOG2PI = float(np.log(2.0 * np.pi))

# 128-lane-aligned packed column layout (consumer segments)
SEG_ENC = 0          # enc first-layer preact   (64 used)
SEG_PRI = 128        # prior first-layer preact (64 used)
SEG_DEC = 256        # dec first-layer preact   (64 used)
SEG_GI  = 384        # GRU gi = x @ W_ih + b_ih (96 used)
SEG_GH  = 512        # GRU gh = h @ W_hh + b_hh (96 used)
PW      = 640        # total packed width (5 x 128)

# packed-weight ordering passed to the kernel
PACKED_KEYS = [
    "xc_w1", "xc_b1", "pre_w", "pre_b",
    "h_pw", "h_pb", "ep_w2", "ep_b2",
    "fz_w1", "fz_b1", "fz_pw", "fz_pb",
    "dec_w2", "dec_b2",
]


# ------------------------------- Pallas kernel --------------------------------
def vrnn_kernel(xc_ref, x_ref, eps_ref,
                xc_w1, xc_b1, pre_w, pre_b,
                h_pw, h_pb, ep_w2, ep_b2,
                fz_w1, fz_b1, fz_pw, fz_pb,
                dec_w2, dec_b2,
                out_ref, pre_scr):
    def dot(a, b):
        return jnp.dot(a, b, preferred_element_type=jnp.float32)

    # ---- hoisted, non-recurrent precompute: batched over all (T-1)*B rows ----
    # h1 = [relu(x@fx_w1+b) | relu(c@fc_w1+b)]        (28, 2*HSM)
    h1 = jnp.maximum(dot(xc_ref[...], xc_w1[...]) + xc_b1[...], 0.0)
    # PRE = f_x @ Wfx_cons + f_c @ Wfc_cons + first-layer biases (folded)
    pre_scr[...] = dot(h1, pre_w[...]) + pre_b[...]   # (28, PW), parked in VMEM

    h = jnp.zeros((B, H), jnp.float32)
    kld_acc = jnp.zeros((B, Z), jnp.float32)
    nll_acc = jnp.zeros((B, DIM), jnp.float32)

    # Static (fully unrolled) recurrence: NT = 7 steps, all indices static.
    for t in range(NT):
        pre_t = pre_scr[pl.ds(t * B, B), :]                      # (B, PW)

        # recurrent projection of h (gru_bhh folded into h_pb)
        s = pre_t + dot(h, h_pw[...]) + h_pb[...]                # (B, PW)

        # fused encoder + prior second layer on the aligned [enc | pri] slab
        ep = dot(jnp.maximum(s[:, :SEG_DEC], 0.0), ep_w2[...]) + ep_b2[...]   # (B, 4Z)
        em, el = ep[:, 0:Z], ep[:, Z:2 * Z]
        pm, plv = ep[:, 2 * Z:3 * Z], ep[:, 3 * Z:4 * Z]

        # reparameterize: z = eps * exp(0.5*logvar) + mean   (eps ~ U[0,1))
        z_t = eps_ref[t] * jnp.exp(0.5 * el) + em
        fzh = jnp.maximum(dot(z_t, fz_w1[...]) + fz_b1[...], 0.0)
        # f_z consumers (dec first layer + GRU W_ih), fz second layer folded in
        s2 = s + dot(fzh, fz_pw[...]) + fz_pb[...]               # (B, PW)

        # decoder p(x|z) — off the h-recurrence critical chain
        dec = dot(jnp.maximum(s2[:, SEG_DEC:SEG_DEC + HID], 0.0), dec_w2[...]) + dec_b2[...]
        dm, dl = dec[:, :DIM], dec[:, DIM:]

        # GRU cell (single layer), PyTorch gate order [r | z | n]
        gi = s2[:, SEG_GI:SEG_GI + 3 * H]
        gh = s2[:, SEG_GH:SEG_GH + 3 * H]
        r_g = jax.nn.sigmoid(gi[:, :H] + gh[:, :H])
        z_g = jax.nn.sigmoid(gi[:, H:2 * H] + gh[:, H:2 * H])
        n_g = jnp.tanh(gi[:, 2 * H:] + r_g * gh[:, 2 * H:])
        h = (1.0 - z_g) * n_g + z_g * h

        # loss element terms; reductions deferred to after the loop
        kld_acc = kld_acc + (plv - el) + jnp.exp(el - plv) + (em - pm) ** 2 * jnp.exp(-plv)
        x_t = x_ref[t]
        nll_acc = nll_acc + (x_t - dm) ** 2 * jnp.exp(-dl) + dl

    kld = 0.5 * (jnp.sum(kld_acc) / float(B)) - 0.5 * Z * NT
    nll = 0.5 * (jnp.sum(nll_acc) / float(B)) + 0.5 * DIM * LOG2PI * NT
    out_ref[0] = kld
    out_ref[1] = nll


# -------------------------- host-side weight packing ---------------------------
def pack_params(p):
    """One-time (init-time) repacking of the per-layer weights into the fused,
    128-lane-aligned layouts consumed by the kernel."""

    def bdiag(a, b):
        ra, ca = a.shape
        rb, cb = b.shape
        m = jnp.zeros((ra + rb, ca + cb), jnp.float32)
        return m.at[:ra, :ca].set(a).at[ra:, ca:].set(b)

    def placed(nrows, blocks):
        m = jnp.zeros((nrows, PW), jnp.float32)
        for col, blk in blocks:
            m = m.at[:, col:col + blk.shape[1]].set(blk)
        return m

    # consumer maps (columns are the aligned packed layout)
    # enc input order: [f_x | f_c | h]; pri: [f_c | h]; dec: [f_z | f_c | h];
    # gru input order: [f_x | f_z | f_c]
    wfx_c = placed(FX, [(SEG_ENC, p["enc_w1"][:FX]),
                        (SEG_GI, p["gru_wih"][:FX])])
    wfc_c = placed(FC, [(SEG_ENC, p["enc_w1"][FX:FX + FC]),
                        (SEG_PRI, p["pri_w1"][:FC]),
                        (SEG_DEC, p["dec_w1"][FZ:FZ + FC]),
                        (SEG_GI, p["gru_wih"][FX + FZ:])])
    wfz_c = placed(FZ, [(SEG_DEC, p["dec_w1"][:FZ]),
                        (SEG_GI, p["gru_wih"][FX:FX + FZ])])
    wh_c = placed(H, [(SEG_ENC, p["enc_w1"][FX + FC:]),
                      (SEG_PRI, p["pri_w1"][FC:]),
                      (SEG_DEC, p["dec_w1"][FZ + FC:]),
                      (SEG_GH, p["gru_whh"])])
    b1_c = placed(1, [(SEG_ENC, p["enc_b1"]),
                      (SEG_PRI, p["pri_b1"]),
                      (SEG_DEC, p["dec_b1"]),
                      (SEG_GI, p["gru_bih"])])

    packed = {}
    # f_x / f_c fused block-diagonal first layer (input = [x_t | c_t])
    packed["xc_w1"] = bdiag(p["fx_w1"], p["fc_w1"])                        # (DIM+CTX, 2*HSM)
    packed["xc_b1"] = jnp.concatenate([p["fx_b1"], p["fc_b1"]], axis=1)
    # fold fx_w2 / fc_w2 into all their consumers -> one precompute matmul
    packed["pre_w"] = jnp.concatenate([p["fx_w2"] @ wfx_c,
                                       p["fc_w2"] @ wfc_c], axis=0)        # (2*HSM, PW)
    packed["pre_b"] = p["fx_b2"] @ wfx_c + p["fc_b2"] @ wfc_c + b1_c       # (1, PW)
    # h consumers (enc/pri/dec first layers + GRU W_hh), b_hh folded
    packed["h_pw"] = wh_c                                                  # (H, PW)
    packed["h_pb"] = placed(1, [(SEG_GH, p["gru_bhh"])])
    # fused encoder + prior second layer (block-diagonal over aligned slab)
    ep = jnp.zeros((SEG_DEC, 4 * Z), jnp.float32)
    ep = ep.at[:HID, :2 * Z].set(p["enc_w2"])
    ep = ep.at[SEG_PRI:SEG_PRI + HID, 2 * Z:].set(p["pri_w2"])
    packed["ep_w2"] = ep                                                   # (256, 4Z)
    packed["ep_b2"] = jnp.concatenate([p["enc_b2"], p["pri_b2"]], axis=1)
    # f_z first layer; second layer folded into its consumers
    packed["fz_w1"] = p["fz_w1"]
    packed["fz_b1"] = p["fz_b1"]
    packed["fz_pw"] = p["fz_w2"] @ wfz_c                                   # (HSM, PW)
    packed["fz_pb"] = p["fz_b2"] @ wfz_c                                   # (1, PW)
    # decoder second layer (unfused)
    packed["dec_w2"] = p["dec_w2"]
    packed["dec_b2"] = p["dec_b2"]
    return packed


def vrnn_forward(hist, context, eps, packed):
    # flatten the non-recurrent inputs over time on the host: one fused
    # precompute matmul with M = (T-1)*B rows inside the kernel.
    xc = jnp.concatenate([hist[1:], context[1:]], axis=-1).reshape(NT * B, DIM + CTX)
    x_steps = hist[1:]                                       # (NT, B, DIM), for NLL
    weights = [packed[k] for k in PACKED_KEYS]
    # Single invocation, no grid: every input is whole-array VMEM resident.
    # The two loss scalars go out through a single SMEM output.
    out = pl.pallas_call(
        vrnn_kernel,
        out_shape=jax.ShapeDtypeStruct((2,), jnp.float32),
        out_specs=pl.BlockSpec(memory_space=pltpu.MemorySpace.SMEM),
        scratch_shapes=[pltpu.VMEM((NT * B, PW), jnp.float32)],
    )(xc, x_steps, eps, *weights)
    return out[0:1], out[1:2]


# ----- deterministic parameter initialization (synthetic; no checkpoint load) -----
def init_params(key):
    def lin(k, fan_in, fan_out):
        k1, k2 = jax.random.split(k)
        s = 1.0 / np.sqrt(fan_in)
        w = jax.random.uniform(k1, (fan_in, fan_out), jnp.float32, -s, s)
        b = jax.random.uniform(k2, (1, fan_out), jnp.float32, -s, s)
        return w, b

    keys = jax.random.split(key, 14)
    p = {}
    p["fx_w1"], p["fx_b1"] = lin(keys[0], DIM, HSM)
    p["fx_w2"], p["fx_b2"] = lin(keys[1], HSM, FX)
    p["fc_w1"], p["fc_b1"] = lin(keys[2], CTX, HSM)
    p["fc_w2"], p["fc_b2"] = lin(keys[3], HSM, FC)
    p["enc_w1"], p["enc_b1"] = lin(keys[4], FX + FC + H, HID)
    p["enc_w2"], p["enc_b2"] = lin(keys[5], HID, 2 * Z)
    p["pri_w1"], p["pri_b1"] = lin(keys[6], FC + H, HID)
    p["pri_w2"], p["pri_b2"] = lin(keys[7], HID, 2 * Z)
    p["fz_w1"], p["fz_b1"] = lin(keys[8], Z, HSM)
    p["fz_w2"], p["fz_b2"] = lin(keys[9], HSM, FZ)
    p["dec_w1"], p["dec_b1"] = lin(keys[10], FZ + FC + H, HID)
    p["dec_w2"], p["dec_b2"] = lin(keys[11], HID, 2 * DIM)
    p["gru_wih"], p["gru_bih"] = lin(keys[12], GRU_IN, 3 * H)
    p["gru_whh"], p["gru_bhh"] = lin(keys[13], H, 3 * H)
    return p


# ----- pure-JAX reference (mirrors the PyTorch forward) -----
def ref_forward(hist, context, eps, p):
    def mlp(x, w1, b1, w2, b2):
        return jnp.maximum(x @ w1 + b1, 0.0) @ w2 + b2

    Tn, Bn, _ = hist.shape
    h = jnp.zeros((Bn, H), jnp.float32)
    KLD, NLL = 0.0, 0.0
    for t in range(1, Tn):
        x_t, c_t, e = hist[t], context[t], eps[t - 1]
        f_x = mlp(x_t, p["fx_w1"], p["fx_b1"], p["fx_w2"], p["fx_b2"])
        f_c = mlp(c_t, p["fc_w1"], p["fc_b1"], p["fc_w2"], p["fc_b2"])
        enc = mlp(jnp.concatenate([f_x, f_c, h], 1),
                  p["enc_w1"], p["enc_b1"], p["enc_w2"], p["enc_b2"])
        em, el = enc[:, :Z], enc[:, Z:]
        pri = mlp(jnp.concatenate([f_c, h], 1),
                  p["pri_w1"], p["pri_b1"], p["pri_w2"], p["pri_b2"])
        pm, plv = pri[:, :Z], pri[:, Z:]
        z_t = e * jnp.exp(0.5 * el) + em
        f_z = mlp(z_t, p["fz_w1"], p["fz_b1"], p["fz_w2"], p["fz_b2"])
        dec = mlp(jnp.concatenate([f_z, f_c, h], 1),
                  p["dec_w1"], p["dec_b1"], p["dec_w2"], p["dec_b2"])
        dm, dl = dec[:, :DIM], dec[:, DIM:]
        gi = jnp.concatenate([f_x, f_z, f_c], 1) @ p["gru_wih"] + p["gru_bih"]
        gh = h @ p["gru_whh"] + p["gru_bhh"]
        r = jax.nn.sigmoid(gi[:, :H] + gh[:, :H])
        zg = jax.nn.sigmoid(gi[:, H:2 * H] + gh[:, H:2 * H])
        n = jnp.tanh(gi[:, 2 * H:] + r * gh[:, 2 * H:])
        h = (1.0 - zg) * n + zg * h
        k1 = jnp.sum(plv - el, 1)
        k2 = jnp.sum(jnp.exp(el - plv), 1)
        k3 = jnp.sum((em - pm) ** 2 / jnp.exp(plv), 1)
        KLD = KLD + jnp.mean(0.5 * (k1 - Z + k2 + k3))
        n1 = jnp.sum((x_t - dm) ** 2 / jnp.exp(dl), 1)
        n3 = jnp.sum(dl, 1)
        NLL = NLL + jnp.mean(0.5 * (n1 + DIM * LOG2PI + n3))
    return jnp.reshape(KLD, (1,)), jnp.reshape(NLL, (1,))


if __name__ == "__main__":
    root = jax.random.PRNGKey(0)
    k_hist, k_ctx, k_eps, k_param = jax.random.split(root, 4)

    hist = jax.random.normal(k_hist, (T, B, DIM), jnp.float32)
    context = jax.random.normal(k_ctx, (T, B, CTX), jnp.float32)
    eps = jax.random.uniform(k_eps, (NT, B, Z), jnp.float32)   # torch.rand_like -> U[0,1)
    params = init_params(k_param)
    packed = pack_params(params)   # one-time weight repacking (init-time cost)

    kld, nll = vrnn_forward(hist, context, eps, packed)
    jax.block_until_ready((kld, nll))

    kld_ref, nll_ref = ref_forward(hist, context, eps, params)
    np.testing.assert_allclose(np.asarray(kld), np.asarray(kld_ref), rtol=1e-3, atol=1e-3)
    np.testing.assert_allclose(np.asarray(nll), np.asarray(nll_ref), rtol=1e-3, atol=1e-3)

    print("KERNEL_OK")
</pallas_src>

<mosaic_0001>
module attributes {stable_mosaic.version = 11 : i64} {
  func.func @vrnn_kernel(%arg0: memref<28x6xf32, #tpu.memory_space<vmem>>, %arg1: memref<7x4x2xf32, #tpu.memory_space<vmem>>, %arg2: memref<7x4x16xf32, #tpu.memory_space<vmem>>, %arg3: memref<6x32xf32, #tpu.memory_space<vmem>>, %arg4: memref<1x32xf32, #tpu.memory_space<vmem>>, %arg5: memref<32x640xf32, #tpu.memory_space<vmem>>, %arg6: memref<1x640xf32, #tpu.memory_space<vmem>>, %arg7: memref<32x640xf32, #tpu.memory_space<vmem>>, %arg8: memref<1x640xf32, #tpu.memory_space<vmem>>, %arg9: memref<256x64xf32, #tpu.memory_space<vmem>>, %arg10: memref<1x64xf32, #tpu.memory_space<vmem>>, %arg11: memref<16x16xf32, #tpu.memory_space<vmem>>, %arg12: memref<1x16xf32, #tpu.memory_space<vmem>>, %arg13: memref<16x640xf32, #tpu.memory_space<vmem>>, %arg14: memref<1x640xf32, #tpu.memory_space<vmem>>, %arg15: memref<64x4xf32, #tpu.memory_space<vmem>>, %arg16: memref<1x4xf32, #tpu.memory_space<vmem>>, %arg17: memref<2xf32, #tpu.memory_space<smem>>, %arg18: memref<28x640xf32, #tpu.memory_space<vmem>>) attributes {dimension_semantics = [], scalar_prefetch = 0 : i64, scratch_operands = 1 : i64, tpu.core_type = #tpu.core_type<tc>} {
    %c0 = arith.constant 0 : index
    %c0_0 = arith.constant 0 : index
    %0 = vector.load %arg0[%c0, %c0_0] : memref<28x6xf32, #tpu.memory_space<vmem>>, vector<28x6xf32>
    %c0_1 = arith.constant 0 : index
    %c0_2 = arith.constant 0 : index
    %1 = vector.load %arg3[%c0_1, %c0_2] : memref<6x32xf32, #tpu.memory_space<vmem>>, vector<6x32xf32>
    %cst = arith.constant dense<0.000000e+00> : vector<28x32xf32>
    %2 = tpu.matmul %0, %1, %cst {dimension_numbers = #tpu.dot_dimension_numbers<[1], [0], [0], [1], [0, 0, 1, 1], [], []>} : vector<28x6xf32>, vector<6x32xf32>, vector<28x32xf32> -> vector<28x32xf32>
    %c0_3 = arith.constant 0 : index
    %c0_4 = arith.constant 0 : index
    %3 = vector.load %arg4[%c0_3, %c0_4] : memref<1x32xf32, #tpu.memory_space<vmem>>, vector<1x32xf32>
    %4 = vector.broadcast %3 : vector<1x32xf32> to vector<28x32xf32>
    %5 = arith.addf %2, %4 : vector<28x32xf32>
    %cst_5 = arith.constant 0.000000e+00 : f32
    %6 = vector.broadcast %cst_5 : f32 to vector<28x32xf32>
    %7 = arith.maximumf %5, %6 : vector<28x32xf32>
    %c0_6 = arith.constant 0 : index
    %c0_7 = arith.constant 0 : index
    %8 = vector.load %arg5[%c0_6, %c0_7] : memref<32x640xf32, #tpu.memory_space<vmem>>, vector<32x640xf32>
    %cst_8 = arith.constant dense<0.000000e+00> : vector<28x640xf32>
    %9 = tpu.matmul %7, %8, %cst_8 {dimension_numbers = #tpu.dot_dimension_numbers<[1], [0], [0], [1], [0, 0, 1, 1], [], []>} : vector<28x32xf32>, vector<32x640xf32>, vector<28x640xf32> -> vector<28x640xf32>
    %c0_9 = arith.constant 0 : index
    %c0_10 = arith.constant 0 : index
    %10 = vector.load %arg6[%c0_9, %c0_10] : memref<1x640xf32, #tpu.memory_space<vmem>>, vector<1x640xf32>
    %11 = vector.broadcast %10 : vector<1x640xf32> to vector<28x640xf32>
    %12 = arith.addf %9, %11 : vector<28x640xf32>
    %c0_11 = arith.constant 0 : index
    %c0_12 = arith.constant 0 : index
    %13 = vector.load %arg18[%c0_11, %c0_12] : memref<28x640xf32, #tpu.memory_space<vmem>>, vector<28x640xf32>
    tpu.vector_store %arg18[%c0_11, %c0_12], %12 {strides = array<i32>} : memref<28x640xf32, #tpu.memory_space<vmem>>, vector<28x640xf32>,
    %cst_13 = arith.constant 0.000000e+00 : f32
    %14 = vector.broadcast %cst_13 : f32 to vector<4x32xf32>
    %cst_14 = arith.constant 0.000000e+00 : f32
    %15 = vector.broadcast %cst_14 : f32 to vector<4x16xf32>
    %cst_15 = arith.constant 0.000000e+00 : f32
    %16 = vector.broadcast %cst_15 : f32 to vector<4x2xf32>
    %c0_16 = arith.constant 0 : index
    %c0_17 = arith.constant 0 : index
    %17 = vector.load %arg18[%c0_16, %c0_17] : memref<28x640xf32, #tpu.memory_space<vmem>>, vector<4x640xf32>
    %c0_18 = arith.constant 0 : index
    %c0_19 = arith.constant 0 : index
    %18 = vector.load %arg7[%c0_18, %c0_19] : memref<32x640xf32, #tpu.memory_space<vmem>>, vector<32x640xf32>
    %cst_20 = arith.constant dense<0.000000e+00> : vector<4x640xf32>
    %19 = tpu.matmul %14, %18, %cst_20 {dimension_numbers = #tpu.dot_dimension_numbers<[1], [0], [0], [1], [0, 0, 1, 1], [], []>} : vector<4x32xf32>, vector<32x640xf32>, vector<4x640xf32> -> vector<4x640xf32>
    %20 = arith.addf %17, %19 : vector<4x640xf32>
    %c0_21 = arith.constant 0 : index
    %c0_22 = arith.constant 0 : index
    %21 = vector.load %arg8[%c0_21, %c0_22] : memref<1x640xf32, #tpu.memory_space<vmem>>, vector<1x640xf32>
    %22 = vector.broadcast %21 : vector<1x640xf32> to vector<4x640xf32>
    %23 = arith.addf %20, %22 : vector<4x640xf32>
    %24 = vector.extract_strided_slice %23 {offsets = [0, 0], sizes = [4, 256], strides = [1, 1]} : vector<4x640xf32> to vector<4x256xf32>
    %cst_23 = arith.constant 0.000000e+00 : f32
    %25 = vector.broadcast %cst_23 : f32 to vector<4x256xf32>
    %26 = arith.maximumf %24, %25 : vector<4x256xf32>
    %c0_24 = arith.constant 0 : index
    %c0_25 = arith.constant 0 : index
    %27 = vector.load %arg9[%c0_24, %c0_25] : memref<256x64xf32, #tpu.memory_space<vmem>>, vector<256x64xf32>
    %cst_26 = arith.constant dense<0.000000e+00> : vector<4x64xf32>
    %28 = tpu.matmul %26, %27, %cst_26 {dimension_numbers = #tpu.dot_dimension_numbers<[1], [0], [0], [1], [0, 0, 1, 1], [], []>} : vector<4x256xf32>, vector<256x64xf32>, vector<4x64xf32> -> vector<4x64xf32>
    %c0_27 = arith.constant 0 : index
    %c0_28 = arith.constant 0 : index
    %29 = vector.load %arg10[%c0_27, %c0_28] : memref<1x64xf32, #tpu.memory_space<vmem>>, vector<1x64xf32>
    %30 = vector.broadcast %29 : vector<1x64xf32> to vector<4x64xf32>
    %31 = arith.addf %28, %30 : vector<4x64xf32>
    %32 = vector.extract_strided_slice %31 {offsets = [0, 0], sizes = [4, 16], strides = [1, 1]} : vector<4x64xf32> to vector<4x16xf32>
    %33 = vector.extract_strided_slice %31 {offsets = [0, 16], sizes = [4, 16], strides = [1, 1]} : vector<4x64xf32> to vector<4x16xf32>
    %34 = vector.extract_strided_slice %31 {offsets = [0, 32], sizes = [4, 16], strides = [1, 1]} : vector<4x64xf32> to vector<4x16xf32>
    %35 = vector.extract_strided_slice %31 {offsets = [0, 48], sizes = [4, 16], strides = [1, 1]} : vector<4x64xf32> to vector<4x16xf32>
    %c0_29 = arith.constant 0 : index
    %c0_30 = arith.constant 0 : index
    %c0_31 = arith.constant 0 : index
    %36 = vector.load %arg2[%c0_29, %c0_30, %c0_31] : memref<7x4x16xf32, #tpu.memory_space<vmem>>, vector<1x4x16xf32>
    %37 = vector.shape_cast %36 : vector<1x4x16xf32> to vector<4x16xf32>
    %cst_32 = arith.constant 5.000000e-01 : f32
    %38 = vector.broadcast %cst_32 : f32 to vector<4x16xf32>
    %39 = arith.mulf %38, %33 : vector<4x16xf32>
    %40 = math.exp %39 : vector<4x16xf32>
    %41 = arith.mulf %37, %40 : vector<4x16xf32>
    %42 = arith.addf %41, %32 : vector<4x16xf32>
    %c0_33 = arith.constant 0 : index
    %c0_34 = arith.constant 0 : index
    %43 = vector.load %arg11[%c0_33, %c0_34] : memref<16x16xf32, #tpu.memory_space<vmem>>, vector<16x16xf32>
    %cst_35 = arith.constant dense<0.000000e+00> : vector<4x16xf32>
    %44 = tpu.matmul %42, %43, %cst_35 {dimension_numbers = #tpu.dot_dimension_numbers<[1], [0], [0], [1], [0, 0, 1, 1], [], []>} : vector<4x16xf32>, vector<16x16xf32>, vector<4x16xf32> -> vector<4x16xf32>
    %c0_36 = arith.constant 0 : index
    %c0_37 = arith.constant 0 : index
    %45 = vector.load %arg12[%c0_36, %c0_37] : memref<1x16xf32, #tpu.memory_space<vmem>>, vector<1x16xf32>
    %46 = vector.broadcast %45 : vector<1x16xf32> to vector<4x16xf32>
    %47 = arith.addf %44, %46 : vector<4x16xf32>
    %cst_38 = arith.constant 0.000000e+00 : f32
    %48 = vector.broadcast %cst_38 : f32 to vector<4x16xf32>
    %49 = arith.maximumf %47, %48 : vector<4x16xf32>
    %c0_39 = arith.constant 0 : index
    %c0_40 = arith.constant 0 : index
    %50 = vector.load %arg13[%c0_39, %c0_40] : memref<16x640xf32, #tpu.memory_space<vmem>>, vector<16x640xf32>
    %cst_41 = arith.constant dense<0.000000e+00> : vector<4x640xf32>
    %51 = tpu.matmul %49, %50, %cst_41 {dimension_numbers = #tpu.dot_dimension_numbers<[1], [0], [0], [1], [0, 0, 1, 1], [], []>} : vector<4x16xf32>, vector<16x640xf32>, vector<4x640xf32> -> vector<4x640xf32>
    %52 = arith.addf %23, %51 : vector<4x640xf32>
    %c0_42 = arith.constant 0 : index
    %c0_43 = arith.constant 0 : index
    %53 = vector.load %arg14[%c0_42, %c0_43] : memref<1x640xf32, #tpu.memory_space<vmem>>, vector<1x640xf32>
    %54 = vector.broadcast %53 : vector<1x640xf32> to vector<4x640xf32>
    %55 = arith.addf %52, %54 : vector<4x640xf32>
    %56 = vector.extract_strided_slice %55 {offsets = [0, 256], sizes = [4, 64], strides = [1, 1]} : vector<4x640xf32> to vector<4x64xf32>
    %cst_44 = arith.constant 0.000000e+00 : f32
    %57 = vector.broadcast %cst_44 : f32 to vector<4x64xf32>
    %58 = arith.maximumf %56, %57 : vector<4x64xf32>
    %c0_45 = arith.constant 0 : index
    %c0_46 = arith.constant 0 : index
    %59 = vector.load %arg15[%c0_45, %c0_46] : memref<64x4xf32, #tpu.memory_space<vmem>>, vector<64x4xf32>
    %cst_47 = arith.constant dense<0.000000e+00> : vector<4x4xf32>
    %60 = tpu.matmul %58, %59, %cst_47 {dimension_numbers = #tpu.dot_dimension_numbers<[1], [0], [0], [1], [0, 0, 1, 1], [], []>} : vector<4x64xf32>, vector<64x4xf32>, vector<4x4xf32> -> vector<4x4xf32>
    %c0_48 = arith.constant 0 : index
    %c0_49 = arith.constant 0 : index
    %61 = vector.load %arg16[%c0_48, %c0_49] : memref<1x4xf32, #tpu.memory_space<vmem>>, vector<1x4xf32>
    %62 = vector.broadcast %61 : vector<1x4xf32> to vector<4x4xf32>
    %63 = arith.addf %60, %62 : vector<4x4xf32>
    %64 = vector.extract_strided_slice %63 {offsets = [0, 0], sizes = [4, 2], strides = [1, 1]} : vector<4x4xf32> to vector<4x2xf32>
    %65 = vector.extract_strided_slice %63 {offsets = [0, 2], sizes = [4, 2], strides = [1, 1]} : vector<4x4xf32> to vector<4x2xf32>
    %66 = vector.extract_strided_slice %55 {offsets = [0, 384], sizes = [4, 96], strides = [1, 1]} : vector<4x640xf32> to vector<4x96xf32>
    %67 = vector.extract_strided_slice %55 {offsets = [0, 512], sizes = [4, 96], strides = [1, 1]} : vector<4x640xf32> to vector<4x96xf32>
    %68 = vector.extract_strided_slice %66 {offsets = [0, 0], sizes = [4, 32], strides = [1, 1]} : vector<4x96xf32> to vector<4x32xf32>
    %69 = vector.extract_strided_slice %67 {offsets = [0, 0], sizes = [4, 32], strides = [1, 1]} : vector<4x96xf32> to vector<4x32xf32>
    %70 = arith.addf %68, %69 : vector<4x32xf32>
    %71 = arith.negf %70 : vector<4x32xf32>
    %72 = math.exp %71 : vector<4x32xf32>
    %cst_50 = arith.constant 1.000000e+00 : f32
    %73 = vector.broadcast %cst_50 : f32 to vector<4x32xf32>
    %74 = arith.addf %73, %72 : vector<4x32xf32>
    %75 = arith.divf %73, %74 : vector<4x32xf32>
    %76 = vector.extract_strided_slice %66 {offsets = [0, 32], sizes = [4, 32], strides = [1, 1]} : vector<4x96xf32> to vector<4x32xf32>
    %77 = vector.extract_strided_slice %67 {offsets = [0, 32], sizes = [4, 32], strides = [1, 1]} : vector<4x96xf32> to vector<4x32xf32>
    %78 = arith.addf %76, %77 : vector<4x32xf32>
    %79 = arith.negf %78 : vector<4x32xf32>
    %80 = math.exp %79 : vector<4x32xf32>
    %cst_51 = arith.constant 1.000000e+00 : f32
    %81 = vector.broadcast %cst_51 : f32 to vector<4x32xf32>
    %82 = arith.addf %81, %80 : vector<4x32xf32>
    %83 = arith.divf %81, %82 : vector<4x32xf32>
    %84 = vector.extract_strided_slice %66 {offsets = [0, 64], sizes = [4, 32], strides = [1, 1]} : vector<4x96xf32> to vector<4x32xf32>
    %85 = vector.extract_strided_slice %67 {offsets = [0, 64], sizes = [4, 32], strides = [1, 1]} : vector<4x96xf32> to vector<4x32xf32>
    %86 = arith.mulf %75, %85 : vector<4x32xf32>
    %87 = arith.addf %84, %86 : vector<4x32xf32>
    %88 = math.tanh %87 : vector<4x32xf32>
    %cst_52 = arith.constant 1.000000e+00 : f32
    %89 = vector.broadcast %cst_52 : f32 to vector<4x32xf32>
    %90 = arith.subf %89, %83 : vector<4x32xf32>
    %91 = arith.mulf %90, %88 : vector<4x32xf32>
    %92 = arith.mulf %83, %14 : vector<4x32xf32>
    %93 = arith.addf %91, %92 : vector<4x32xf32>
    %94 = arith.subf %35, %33 : vector<4x16xf32>
    %95 = arith.addf %15, %94 : vector<4x16xf32>
    %96 = arith.subf %33, %35 : vector<4x16xf32>
    %97 = math.exp %96 : vector<4x16xf32>
    %98 = arith.addf %95, %97 : vector<4x16xf32>
    %99 = arith.subf %32, %34 : vector<4x16xf32>
    %100 = arith.mulf %99, %99 : vector<4x16xf32>
    %cst_53 = arith.constant 0.000000e+00 : f32
    %101 = vector.broadcast %cst_53 : f32 to vector<4x16xf32>
    %102 = arith.subf %101, %35 : vector<4x16xf32>
    %103 = math.exp %102 : vector<4x16xf32>
    %104 = arith.mulf %100, %103 : vector<4x16xf32>
    %105 = arith.addf %98, %104 : vector<4x16xf32>
    %c0_54 = arith.constant 0 : index
    %c0_55 = arith.constant 0 : index
    %c0_56 = arith.constant 0 : index
    %106 = vector.load %arg1[%c0_54, %c0_55, %c0_56] : memref<7x4x2xf32, #tpu.memory_space<vmem>>, vector<1x4x2xf32>
    %107 = vector.shape_cast %106 : vector<1x4x2xf32> to vector<4x2xf32>
    %108 = arith.subf %107, %64 : vector<4x2xf32>
    %109 = arith.mulf %108, %108 : vector<4x2xf32>
    %cst_57 = arith.constant 0.000000e+00 : f32
    %110 = vector.broadcast %cst_57 : f32 to vector<4x2xf32>
    %111 = arith.subf %110, %65 : vector<4x2xf32>
    %112 = math.exp %111 : vector<4x2xf32>
    %113 = arith.mulf %109, %112 : vector<4x2xf32>
    %114 = arith.addf %16, %113 : vector<4x2xf32>
    %115 = arith.addf %114, %65 : vector<4x2xf32>
    %c4 = arith.constant 4 : index
    %c0_58 = arith.constant 0 : index
    %116 = vector.load %arg18[%c4, %c0_58] : memref<28x640xf32, #tpu.memory_space<vmem>>, vector<4x640xf32>
    %c0_59 = arith.constant 0 : index
    %c0_60 = arith.constant 0 : index
    %117 = vector.load %arg7[%c0_59, %c0_60] : memref<32x640xf32, #tpu.memory_space<vmem>>, vector<32x640xf32>
    %cst_61 = arith.constant dense<0.000000e+00> : vector<4x640xf32>
    %118 = tpu.matmul %93, %117, %cst_61 {dimension_numbers = #tpu.dot_dimension_numbers<[1], [0], [0], [1], [0, 0, 1, 1], [], []>} : vector<4x32xf32>, vector<32x640xf32>, vector<4x640xf32> -> vector<4x640xf32>
    %119 = arith.addf %116, %118 : vector<4x640xf32>
    %c0_62 = arith.constant 0 : index
    %c0_63 = arith.constant 0 : index
    %120 = vector.load %arg8[%c0_62, %c0_63] : memref<1x640xf32, #tpu.memory_space<vmem>>, vector<1x640xf32>
    %121 = vector.broadcast %120 : vector<1x640xf32> to vector<4x640xf32>
    %122 = arith.addf %119, %121 : vector<4x640xf32>
    %123 = vector.extract_strided_slice %122 {offsets = [0, 0], sizes = [4, 256], strides = [1, 1]} : vector<4x640xf32> to vector<4x256xf32>
    %cst_64 = arith.constant 0.000000e+00 : f32
    %124 = vector.broadcast %cst_64 : f32 to vector<4x256xf32>
    %125 = arith.maximumf %123, %124 : vector<4x256xf32>
    %c0_65 = arith.constant 0 : index
    %c0_66 = arith.constant 0 : index
    %126 = vector.load %arg9[%c0_65, %c0_66] : memref<256x64xf32, #tpu.memory_space<vmem>>, vector<256x64xf32>
    %cst_67 = arith.constant dense<0.000000e+00> : vector<4x64xf32>
    %127 = tpu.matmul %125, %126, %cst_67 {dimension_numbers = #tpu.dot_dimension_numbers<[1], [0], [0], [1], [0, 0, 1, 1], [], []>} : vector<4x256xf32>, vector<256x64xf32>, vector<4x64xf32> -> vector<4x64xf32>
    %c0_68 = arith.constant 0 : index
    %c0_69 = arith.constant 0 : index
    %128 = vector.load %arg10[%c0_68, %c0_69] : memref<1x64xf32, #tpu.memory_space<vmem>>, vector<1x64xf32>
    %129 = vector.broadcast %128 : vector<1x64xf32> to vector<4x64xf32>
    %130 = arith.addf %127, %129 : vector<4x64xf32>
    %131 = vector.extract_strided_slice %130 {offsets = [0, 0], sizes = [4, 16], strides = [1, 1]} : vector<4x64xf32> to vector<4x16xf32>
    %132 = vector.extract_strided_slice %130 {offsets = [0, 16], sizes = [4, 16], strides = [1, 1]} : vector<4x64xf32> to vector<4x16xf32>
    %133 = vector.extract_strided_slice %130 {offsets = [0, 32], sizes = [4, 16], strides = [1, 1]} : vector<4x64xf32> to vector<4x16xf32>
    %134 = vector.extract_strided_slice %130 {offsets = [0, 48], sizes = [4, 16], strides = [1, 1]} : vector<4x64xf32> to vector<4x16xf32>
    %c1 = arith.constant 1 : index
    %c0_70 = arith.constant 0 : index
    %c0_71 = arith.constant 0 : index
    %135 = vector.load %arg2[%c1, %c0_70, %c0_71] : memref<7x4x16xf32, #tpu.memory_space<vmem>>, vector<1x4x16xf32>
    %136 = vector.shape_cast %135 : vector<1x4x16xf32> to vector<4x16xf32>
    %cst_72 = arith.constant 5.000000e-01 : f32
    %137 = vector.broadcast %cst_72 : f32 to vector<4x16xf32>
    %138 = arith.mulf %137, %132 : vector<4x16xf32>
    %139 = math.exp %138 : vector<4x16xf32>
    %140 = arith.mulf %136, %139 : vector<4x16xf32>
    %141 = arith.addf %140, %131 : vector<4x16xf32>
    %c0_73 = arith.constant 0 : index
    %c0_74 = arith.constant 0 : index
    %142 = vector.load %arg11[%c0_73, %c0_74] : memref<16x16xf32, #tpu.memory_space<vmem>>, vector<16x16xf32>
    %cst_75 = arith.constant dense<0.000000e+00> : vector<4x16xf32>
    %143 = tpu.matmul %141, %142, %cst_75 {dimension_numbers = #tpu.dot_dimension_numbers<[1], [0], [0], [1], [0, 0, 1, 1], [], []>} : vector<4x16xf32>, vector<16x16xf32>, vector<4x16xf32> -> vector<4x16xf32>
    %c0_76 = arith.constant 0 : index
    %c0_77 = arith.constant 0 : index
    %144 = vector.load %arg12[%c0_76, %c0_77] : memref<1x16xf32, #tpu.memory_space<vmem>>, vector<1x16xf32>
    %145 = vector.broadcast %144 : vector<1x16xf32> to vector<4x16xf32>
    %146 = arith.addf %143, %145 : vector<4x16xf32>
    %cst_78 = arith.constant 0.000000e+00 : f32
    %147 = vector.broadcast %cst_78 : f32 to vector<4x16xf32>
    %148 = arith.maximumf %146, %147 : vector<4x16xf32>
    %c0_79 = arith.constant 0 : index
    %c0_80 = arith.constant 0 : index
    %149 = vector.load %arg13[%c0_79, %c0_80] : memref<16x640xf32, #tpu.memory_space<vmem>>, vector<16x640xf32>
    %cst_81 = arith.constant dense<0.000000e+00> : vector<4x640xf32>
    %150 = tpu.matmul %148, %149, %cst_81 {dimension_numbers = #tpu.dot_dimension_numbers<[1], [0], [0], [1], [0, 0, 1, 1], [], []>} : vector<4x16xf32>, vector<16x640xf32>, vector<4x640xf32> -> vector<4x640xf32>
    %151 = arith.addf %122, %150 : vector<4x640xf32>
    %c0_82 = arith.constant 0 : index
    %c0_83 = arith.constant 0 : index
    %152 = vector.load %arg14[%c0_82, %c0_83] : memref<1x640xf32, #tpu.memory_space<vmem>>, vector<1x640xf32>
    %153 = vector.broadcast %152 : vector<1x640xf32> to vector<4x640xf32>
    %154 = arith.addf %151, %153 : vector<4x640xf32>
    %155 = vector.extract_strided_slice %154 {offsets = [0, 256], sizes = [4, 64], strides = [1, 1]} : vector<4x640xf32> to vector<4x64xf32>
    %cst_84 = arith.constant 0.000000e+00 : f32
    %156 = vector.broadcast %cst_84 : f32 to vector<4x64xf32>
    %157 = arith.maximumf %155, %156 : vector<4x64xf32>
    %c0_85 = arith.constant 0 : index
    %c0_86 = arith.constant 0 : index
    %158 = vector.load %arg15[%c0_85, %c0_86] : memref<64x4xf32, #tpu.memory_space<vmem>>, vector<64x4xf32>
    %cst_87 = arith.constant dense<0.000000e+00> : vector<4x4xf32>
    %159 = tpu.matmul %157, %158, %cst_87 {dimension_numbers = #tpu.dot_dimension_numbers<[1], [0], [0], [1], [0, 0, 1, 1], [], []>} : vector<4x64xf32>, vector<64x4xf32>, vector<4x4xf32> -> vector<4x4xf32>
    %c0_88 = arith.constant 0 : index
    %c0_89 = arith.constant 0 : index
    %160 = vector.load %arg16[%c0_88, %c0_89] : memref<1x4xf32, #tpu.memory_space<vmem>>, vector<1x4xf32>
    %161 = vector.broadcast %160 : vector<1x4xf32> to vector<4x4xf32>
    %162 = arith.addf %159, %161 : vector<4x4xf32>
    %163 = vector.extract_strided_slice %162 {offsets = [0, 0], sizes = [4, 2], strides = [1, 1]} : vector<4x4xf32> to vector<4x2xf32>
    %164 = vector.extract_strided_slice %162 {offsets = [0, 2], sizes = [4, 2], strides = [1, 1]} : vector<4x4xf32> to vector<4x2xf32>
    %165 = vector.extract_strided_slice %154 {offsets = [0, 384], sizes = [4, 96], strides = [1, 1]} : vector<4x640xf32> to vector<4x96xf32>
    %166 = vector.extract_strided_slice %154 {offsets = [0, 512], sizes = [4, 96], strides = [1, 1]} : vector<4x640xf32> to vector<4x96xf32>
    %167 = vector.extract_strided_slice %165 {offsets = [0, 0], sizes = [4, 32], strides = [1, 1]} : vector<4x96xf32> to vector<4x32xf32>
    %168 = vector.extract_strided_slice %166 {offsets = [0, 0], sizes = [4, 32], strides = [1, 1]} : vector<4x96xf32> to vector<4x32xf32>
    %169 = arith.addf %167, %168 : vector<4x32xf32>
    %170 = arith.negf %169 : vector<4x32xf32>
    %171 = math.exp %170 : vector<4x32xf32>
    %cst_90 = arith.constant 1.000000e+00 : f32
    %172 = vector.broadcast %cst_90 : f32 to vector<4x32xf32>
    %173 = arith.addf %172, %171 : vector<4x32xf32>
    %174 = arith.divf %172, %173 : vector<4x32xf32>
    %175 = vector.extract_strided_slice %165 {offsets = [0, 32], sizes = [4, 32], strides = [1, 1]} : vector<4x96xf32> to vector<4x32xf32>
    %176 = vector.extract_strided_slice %166 {offsets = [0, 32], sizes = [4, 32], strides = [1, 1]} : vector<4x96xf32> to vector<4x32xf32>
    %177 = arith.addf %175, %176 : vector<4x32xf32>
    %178 = arith.negf %177 : vector<4x32xf32>
    %179 = math.exp %178 : vector<4x32xf32>
    %cst_91 = arith.constant 1.000000e+00 : f32
    %180 = vector.broadcast %cst_91 : f32 to vector<4x32xf32>
    %181 = arith.addf %180, %179 : vector<4x32xf32>
    %182 = arith.divf %180, %181 : vector<4x32xf32>
    %183 = vector.extract_strided_slice %165 {offsets = [0, 64], sizes = [4, 32], strides = [1, 1]} : vector<4x96xf32> to vector<4x32xf32>
    %184 = vector.extract_strided_slice %166 {offsets = [0, 64], sizes = [4, 32], strides = [1, 1]} : vector<4x96xf32> to vector<4x32xf32>
    %185 = arith.mulf %174, %184 : vector<4x32xf32>
    %186 = arith.addf %183, %185 : vector<4x32xf32>
    %187 = math.tanh %186 : vector<4x32xf32>
    %cst_92 = arith.constant 1.000000e+00 : f32
    %188 = vector.broadcast %cst_92 : f32 to vector<4x32xf32>
    %189 = arith.subf %188, %182 : vector<4x32xf32>
    %190 = arith.mulf %189, %187 : vector<4x32xf32>
    %191 = arith.mulf %182, %93 : vector<4x32xf32>
    %192 = arith.addf %190, %191 : vector<4x32xf32>
    %193 = arith.subf %134, %132 : vector<4x16xf32>
    %194 = arith.addf %105, %193 : vector<4x16xf32>
    %195 = arith.subf %132, %134 : vector<4x16xf32>
    %196 = math.exp %195 : vector<4x16xf32>
    %197 = arith.addf %194, %196 : vector<4x16xf32>
    %198 = arith.subf %131, %133 : vector<4x16xf32>
    %199 = arith.mulf %198, %198 : vector<4x16xf32>
    %cst_93 = arith.constant 0.000000e+00 : f32
    %200 = vector.broadcast %cst_93 : f32 to vector<4x16xf32>
    %201 = arith.subf %200, %134 : vector<4x16xf32>
    %202 = math.exp %201 : vector<4x16xf32>
    %203 = arith.mulf %199, %202 : vector<4x16xf32>
    %204 = arith.addf %197, %203 : vector<4x16xf32>
    %c1_94 = arith.constant 1 : index
    %c0_95 = arith.constant 0 : index
    %c0_96 = arith.constant 0 : index
    %205 = vector.load %arg1[%c1_94, %c0_95, %c0_96] : memref<7x4x2xf32, #tpu.memory_space<vmem>>, vector<1x4x2xf32>
    %206 = vector.shape_cast %205 : vector<1x4x2xf32> to vector<4x2xf32>
    %207 = arith.subf %206, %163 : vector<4x2xf32>
    %208 = arith.mulf %207, %207 : vector<4x2xf32>
    %cst_97 = arith.constant 0.000000e+00 : f32
    %209 = vector.broadcast %cst_97 : f32 to vector<4x2xf32>
    %210 = arith.subf %209, %164 : vector<4x2xf32>
    %211 = math.exp %210 : vector<4x2xf32>
    %212 = arith.mulf %208, %211 : vector<4x2xf32>
    %213 = arith.addf %115, %212 : vector<4x2xf32>
    %214 = arith.addf %213, %164 : vector<4x2xf32>
    %c8 = arith.constant 8 : index
    %c0_98 = arith.constant 0 : index
    %215 = vector.load %arg18[%c8, %c0_98] : memref<28x640xf32, #tpu.memory_space<vmem>>, vector<4x640xf32>
    %c0_99 = arith.constant 0 : index
    %c0_100 = arith.constant 0 : index
    %216 = vector.load %arg7[%c0_99, %c0_100] : memref<32x640xf32, #tpu.memory_space<vmem>>, vector<32x640xf32>
    %cst_101 = arith.constant dense<0.000000e+00> : vector<4x640xf32>
    %217 = tpu.matmul %192, %216, %cst_101 {dimension_numbers = #tpu.dot_dimension_numbers<[1], [0], [0], [1], [0, 0, 1, 1], [], []>} : vector<4x32xf32>, vector<32x640xf32>, vector<4x640xf32> -> vector<4x640xf32>
    %218 = arith.addf %215, %217 : vector<4x640xf32>
    %c0_102 = arith.constant 0 : index
    %c0_103 = arith.constant 0 : index
    %219 = vector.load %arg8[%c0_102, %c0_103] : memref<1x640xf32, #tpu.memory_space<vmem>>, vector<1x640xf32>
    %220 = vector.broadcast %219 : vector<1x640xf32> to vector<4x640xf32>
    %221 = arith.addf %218, %220 : vector<4x640xf32>
    %222 = vector.extract_strided_slice %221 {offsets = [0, 0], sizes = [4, 256], strides = [1, 1]} : vector<4x640xf32> to vector<4x256xf32>
    %cst_104 = arith.constant 0.000000e+00 : f32
    %223 = vector.broadcast %cst_104 : f32 to vector<4x256xf32>
    %224 = arith.maximumf %222, %223 : vector<4x256xf32>
    %c0_105 = arith.constant 0 : index
    %c0_106 = arith.constant 0 : index
    %225 = vector.load %arg9[%c0_105, %c0_106] : memref<256x64xf32, #tpu.memory_space<vmem>>, vector<256x64xf32>
    %cst_107 = arith.constant dense<0.000000e+00> : vector<4x64xf32>
    %226 = tpu.matmul %224, %225, %cst_107 {dimension_numbers = #tpu.dot_dimension_numbers<[1], [0], [0], [1], [0, 0, 1, 1], [], []>} : vector<4x256xf32>, vector<256x64xf32>, vector<4x64xf32> -> vector<4x64xf32>
    %c0_108 = arith.constant 0 : index
    %c0_109 = arith.constant 0 : index
    %227 = vector.load %arg10[%c0_108, %c0_109] : memref<1x64xf32, #tpu.memory_space<vmem>>, vector<1x64xf32>
    %228 = vector.broadcast %227 : vector<1x64xf32> to vector<4x64xf32>
    %229 = arith.addf %226, %228 : vector<4x64xf32>
    %230 = vector.extract_strided_slice %229 {offsets = [0, 0], sizes = [4, 16], strides = [1, 1]} : vector<4x64xf32> to vector<4x16xf32>
    %231 = vector.extract_strided_slice %229 {offsets = [0, 16], sizes = [4, 16], strides = [1, 1]} : vector<4x64xf32> to vector<4x16xf32>
    %232 = vector.extract_strided_slice %229 {offsets = [0, 32], sizes = [4, 16], strides = [1, 1]} : vector<4x64xf32> to vector<4x16xf32>
    %233 = vector.extract_strided_slice %229 {offsets = [0, 48], sizes = [4, 16], strides = [1, 1]} : vector<4x64xf32> to vector<4x16xf32>
    %c2 = arith.constant 2 : index
    %c0_110 = arith.constant 0 : index
    %c0_111 = arith.constant 0 : index
    %234 = vector.load %arg2[%c2, %c0_110, %c0_111] : memref<7x4x16xf32, #tpu.memory_space<vmem>>, vector<1x4x16xf32>
    %235 = vector.shape_cast %234 : vector<1x4x16xf32> to vector<4x16xf32>
    %cst_112 = arith.constant 5.000000e-01 : f32
    %236 = vector.broadcast %cst_112 : f32 to vector<4x16xf32>
    %237 = arith.mulf %236, %231 : vector<4x16xf32>
    %238 = math.exp %237 : vector<4x16xf32>
    %239 = arith.mulf %235, %238 : vector<4x16xf32>
    %240 = arith.addf %239, %230 : vector<4x16xf32>
    %c0_113 = arith.constant 0 : index
    %c0_114 = arith.constant 0 : index
    %241 = vector.load %arg11[%c0_113, %c0_114] : memref<16x16xf32, #tpu.memory_space<vmem>>, vector<16x16xf32>
    %cst_115 = arith.constant dense<0.000000e+00> : vector<4x16xf32>
    %242 = tpu.matmul %240, %241, %cst_115 {dimension_numbers = #tpu.dot_dimension_numbers<[1], [0], [0], [1], [0, 0, 1, 1], [], []>} : vector<4x16xf32>, vector<16x16xf32>, vector<4x16xf32> -> vector<4x16xf32>
    %c0_116 = arith.constant 0 : index
    %c0_117 = arith.constant 0 : index
    %243 = vector.load %arg12[%c0_116, %c0_117] : memref<1x16xf32, #tpu.memory_space<vmem>>, vector<1x16xf32>
    %244 = vector.broadcast %243 : vector<1x16xf32> to vector<4x16xf32>
    %245 = arith.addf %242, %244 : vector<4x16xf32>
    %cst_118 = arith.constant 0.000000e+00 : f32
    %246 = vector.broadcast %cst_118 : f32 to vector<4x16xf32>
    %247 = arith.maximumf %245, %246 : vector<4x16xf32>
    %c0_119 = arith.constant 0 : index
    %c0_120 = arith.constant 0 : index
    %248 = vector.load %arg13[%c0_119, %c0_120] : memref<16x640xf32, #tpu.memory_space<vmem>>, vector<16x640xf32>
    %cst_121 = arith.constant dense<0.000000e+00> : vector<4x640xf32>
    %249 = tpu.matmul %247, %248, %cst_121 {dimension_numbers = #tpu.dot_dimension_numbers<[1], [0], [0], [1], [0, 0, 1, 1], [], []>} : vector<4x16xf32>, vector<16x640xf32>, vector<4x640xf32> -> vector<4x640xf32>
    %250 = arith.addf %221, %249 : vector<4x640xf32>
    %c0_122 = arith.constant 0 : index
    %c0_123 = arith.constant 0 : index
    %251 = vector.load %arg14[%c0_122, %c0_123] : memref<1x640xf32, #tpu.memory_space<vmem>>, vector<1x640xf32>
    %252 = vector.broadcast %251 : vector<1x640xf32> to vector<4x640xf32>
    %253 = arith.addf %250, %252 : vector<4x640xf32>
    %254 = vector.extract_strided_slice %253 {offsets = [0, 256], sizes = [4, 64], strides = [1, 1]} : vector<4x640xf32> to vector<4x64xf32>
    %cst_124 = arith.constant 0.000000e+00 : f32
    %255 = vector.broadcast %cst_124 : f32 to vector<4x64xf32>
    %256 = arith.maximumf %254, %255 : vector<4x64xf32>
    %c0_125 = arith.constant 0 : index
    %c0_126 = arith.constant 0 : index
    %257 = vector.load %arg15[%c0_125, %c0_126] : memref<64x4xf32, #tpu.memory_space<vmem>>, vector<64x4xf32>
    %cst_127 = arith.constant dense<0.000000e+00> : vector<4x4xf32>
    %258 = tpu.matmul %256, %257, %cst_127 {dimension_numbers = #tpu.dot_dimension_numbers<[1], [0], [0], [1], [0, 0, 1, 1], [], []>} : vector<4x64xf32>, vector<64x4xf32>, vector<4x4xf32> -> vector<4x4xf32>
    %c0_128 = arith.constant 0 : index
    %c0_129 = arith.constant 0 : index
    %259 = vector.load %arg16[%c0_128, %c0_129] : memref<1x4xf32, #tpu.memory_space<vmem>>, vector<1x4xf32>
    %260 = vector.broadcast %259 : vector<1x4xf32> to vector<4x4xf32>
    %261 = arith.addf %258, %260 : vector<4x4xf32>
    %262 = vector.extract_strided_slice %261 {offsets = [0, 0], sizes = [4, 2], strides = [1, 1]} : vector<4x4xf32> to vector<4x2xf32>
    %263 = vector.extract_strided_slice %261 {offsets = [0, 2], sizes = [4, 2], strides = [1, 1]} : vector<4x4xf32> to vector<4x2xf32>
    %264 = vector.extract_strided_slice %253 {offsets = [0, 384], sizes = [4, 96], strides = [1, 1]} : vector<4x640xf32> to vector<4x96xf32>
    %265 = vector.extract_strided_slice %253 {offsets = [0, 512], sizes = [4, 96], strides = [1, 1]} : vector<4x640xf32> to vector<4x96xf32>
    %266 = vector.extract_strided_slice %264 {offsets = [0, 0], sizes = [4, 32], strides = [1, 1]} : vector<4x96xf32> to vector<4x32xf32>
    %267 = vector.extract_strided_slice %265 {offsets = [0, 0], sizes = [4, 32], strides = [1, 1]} : vector<4x96xf32> to vector<4x32xf32>
    %268 = arith.addf %266, %267 : vector<4x32xf32>
    %269 = arith.negf %268 : vector<4x32xf32>
    %270 = math.exp %269 : vector<4x32xf32>
    %cst_130 = arith.constant 1.000000e+00 : f32
    %271 = vector.broadcast %cst_130 : f32 to vector<4x32xf32>
    %272 = arith.addf %271, %270 : vector<4x32xf32>
    %273 = arith.divf %271, %272 : vector<4x32xf32>
    %274 = vector.extract_strided_slice %264 {offsets = [0, 32], sizes = [4, 32], strides = [1, 1]} : vector<4x96xf32> to vector<4x32xf32>
    %275 = vector.extract_strided_slice %265 {offsets = [0, 32], sizes = [4, 32], strides = [1, 1]} : vector<4x96xf32> to vector<4x32xf32>
    %276 = arith.addf %274, %275 : vector<4x32xf32>
    %277 = arith.negf %276 : vector<4x32xf32>
    %278 = math.exp %277 : vector<4x32xf32>
    %cst_131 = arith.constant 1.000000e+00 : f32
    %279 = vector.broadcast %cst_131 : f32 to vector<4x32xf32>
    %280 = arith.addf %279, %278 : vector<4x32xf32>
    %281 = arith.divf %279, %280 : vector<4x32xf32>
    %282 = vector.extract_strided_slice %264 {offsets = [0, 64], sizes = [4, 32], strides = [1, 1]} : vector<4x96xf32> to vector<4x32xf32>
    %283 = vector.extract_strided_slice %265 {offsets = [0, 64], sizes = [4, 32], strides = [1, 1]} : vector<4x96xf32> to vector<4x32xf32>
    %284 = arith.mulf %273, %283 : vector<4x32xf32>
    %285 = arith.addf %282, %284 : vector<4x32xf32>
    %286 = math.tanh %285 : vector<4x32xf32>
    %cst_132 = arith.constant 1.000000e+00 : f32
    %287 = vector.broadcast %cst_132 : f32 to vector<4x32xf32>
    %288 = arith.subf %287, %281 : vector<4x32xf32>
    %289 = arith.mulf %288, %286 : vector<4x32xf32>
    %290 = arith.mulf %281, %192 : vector<4x32xf32>
    %291 = arith.addf %289, %290 : vector<4x32xf32>
    %292 = arith.subf %233, %231 : vector<4x16xf32>
    %293 = arith.addf %204, %292 : vector<4x16xf32>
    %294 = arith.subf %231, %233 : vector<4x16xf32>
    %295 = math.exp %294 : vector<4x16xf32>
    %296 = arith.addf %293, %295 : vector<4x16xf32>
    %297 = arith.subf %230, %232 : vector<4x16xf32>
    %298 = arith.mulf %297, %297 : vector<4x16xf32>
    %cst_133 = arith.constant 0.000000e+00 : f32
    %299 = vector.broadcast %cst_133 : f32 to vector<4x16xf32>
    %300 = arith.subf %299, %233 : vector<4x16xf32>
    %301 = math.exp %300 : vector<4x16xf32>
    %302 = arith.mulf %298, %301 : vector<4x16xf32>
    %303 = arith.addf %296, %302 : vector<4x16xf32>
    %c2_134 = arith.constant 2 : index
    %c0_135 = arith.constant 0 : index
    %c0_136 = arith.constant 0 : index
    %304 = vector.load %arg1[%c2_134, %c0_135, %c0_136] : memref<7x4x2xf32, #tpu.memory_space<vmem>>, vector<1x4x2xf32>
    %305 = vector.shape_cast %304 : vector<1x4x2xf32> to vector<4x2xf32>
    %306 = arith.subf %305, %262 : vector<4x2xf32>
    %307 = arith.mulf %306, %306 : vector<4x2xf32>
    %cst_137 = arith.constant 0.000000e+00 : f32
    %308 = vector.broadcast %cst_137 : f32 to vector<4x2xf32>
    %309 = arith.subf %308, %263 : vector<4x2xf32>
    %310 = math.exp %309 : vector<4x2xf32>
    %311 = arith.mulf %307, %310 : vector<4x2xf32>
    %312 = arith.addf %214, %311 : vector<4x2xf32>
    %313 = arith.addf %312, %263 : vector<4x2xf32>
    %c12 = arith.constant 12 : index
    %c0_138 = arith.constant 0 : index
    %314 = vector.load %arg18[%c12, %c0_138] : memref<28x640xf32, #tpu.memory_space<vmem>>, vector<4x640xf32>
    %c0_139 = arith.constant 0 : index
    %c0_140 = arith.constant 0 : index
    %315 = vector.load %arg7[%c0_139, %c0_140] : memref<32x640xf32, #tpu.memory_space<vmem>>, vector<32x640xf32>
    %cst_141 = arith.constant dense<0.000000e+00> : vector<4x640xf32>
    %316 = tpu.matmul %291, %315, %cst_141 {dimension_numbers = #tpu.dot_dimension_numbers<[1], [0], [0], [1], [0, 0, 1, 1], [], []>} : vector<4x32xf32>, vector<32x640xf32>, vector<4x640xf32> -> vector<4x640xf32>
    %317 = arith.addf %314, %316 : vector<4x640xf32>
    %c0_142 = arith.constant 0 : index
    %c0_143 = arith.constant 0 : index
    %318 = vector.load %arg8[%c0_142, %c0_143] : memref<1x640xf32, #tpu.memory_space<vmem>>, vector<1x640xf32>
    %319 = vector.broadcast %318 : vector<1x640xf32> to vector<4x640xf32>
    %320 = arith.addf %317, %319 : vector<4x640xf32>
    %321 = vector.extract_strided_slice %320 {offsets = [0, 0], sizes = [4, 256], strides = [1, 1]} : vector<4x640xf32> to vector<4x256xf32>
    %cst_144 = arith.constant 0.000000e+00 : f32
    %322 = vector.broadcast %cst_144 : f32 to vector<4x256xf32>
    %323 = arith.maximumf %321, %322 : vector<4x256xf32>
    %c0_145 = arith.constant 0 : index
    %c0_146 = arith.constant 0 : index
    %324 = vector.load %arg9[%c0_145, %c0_146] : memref<256x64xf32, #tpu.memory_space<vmem>>, vector<256x64xf32>
    %cst_147 = arith.constant dense<0.000000e+00> : vector<4x64xf32>
    %325 = tpu.matmul %323, %324, %cst_147 {dimension_numbers = #tpu.dot_dimension_numbers<[1], [0], [0], [1], [0, 0, 1, 1], [], []>} : vector<4x256xf32>, vector<256x64xf32>, vector<4x64xf32> -> vector<4x64xf32>
    %c0_148 = arith.constant 0 : index
    %c0_149 = arith.constant 0 : index
    %326 = vector.load %arg10[%c0_148, %c0_149] : memref<1x64xf32, #tpu.memory_space<vmem>>, vector<1x64xf32>
    %327 = vector.broadcast %326 : vector<1x64xf32> to vector<4x64xf32>
    %328 = arith.addf %325, %327 : vector<4x64xf32>
    %329 = vector.extract_strided_slice %328 {offsets = [0, 0], sizes = [4, 16], strides = [1, 1]} : vector<4x64xf32> to vector<4x16xf32>
    %330 = vector.extract_strided_slice %328 {offsets = [0, 16], sizes = [4, 16], strides = [1, 1]} : vector<4x64xf32> to vector<4x16xf32>
    %331 = vector.extract_strided_slice %328 {offsets = [0, 32], sizes = [4, 16], strides = [1, 1]} : vector<4x64xf32> to vector<4x16xf32>
    %332 = vector.extract_strided_slice %328 {offsets = [0, 48], sizes = [4, 16], strides = [1, 1]} : vector<4x64xf32> to vector<4x16xf32>
    %c3 = arith.constant 3 : index
    %c0_150 = arith.constant 0 : index
    %c0_151 = arith.constant 0 : index
    %333 = vector.load %arg2[%c3, %c0_150, %c0_151] : memref<7x4x16xf32, #tpu.memory_space<vmem>>, vector<1x4x16xf32>
    %334 = vector.shape_cast %333 : vector<1x4x16xf32> to vector<4x16xf32>
    %cst_152 = arith.constant 5.000000e-01 : f32
    %335 = vector.broadcast %cst_152 : f32 to vector<4x16xf32>
    %336 = arith.mulf %335, %330 : vector<4x16xf32>
    %337 = math.exp %336 : vector<4x16xf32>
    %338 = arith.mulf %334, %337 : vector<4x16xf32>
    %339 = arith.addf %338, %329 : vector<4x16xf32>
    %c0_153 = arith.constant 0 : index
    %c0_154 = arith.constant 0 : index
    %340 = vector.load %arg11[%c0_153, %c0_154] : memref<16x16xf32, #tpu.memory_space<vmem>>, vector<16x16xf32>
    %cst_155 = arith.constant dense<0.000000e+00> : vector<4x16xf32>
    %341 = tpu.matmul %339, %340, %cst_155 {dimension_numbers = #tpu.dot_dimension_numbers<[1], [0], [0], [1], [0, 0, 1, 1], [], []>} : vector<4x16xf32>, vector<16x16xf32>, vector<4x16xf32> -> vector<4x16xf32>
    %c0_156 = arith.constant 0 : index
    %c0_157 = arith.constant 0 : index
    %342 = vector.load %arg12[%c0_156, %c0_157] : memref<1x16xf32, #tpu.memory_space<vmem>>, vector<1x16xf32>
    %343 = vector.broadcast %342 : vector<1x16xf32> to vector<4x16xf32>
    %344 = arith.addf %341, %343 : vector<4x16xf32>
    %cst_158 = arith.constant 0.000000e+00 : f32
    %345 = vector.broadcast %cst_158 : f32 to vector<4x16xf32>
    %346 = arith.maximumf %344, %345 : vector<4x16xf32>
    %c0_159 = arith.constant 0 : index
    %c0_160 = arith.constant 0 : index
    %347 = vector.load %arg13[%c0_159, %c0_160] : memref<16x640xf32, #tpu.memory_space<vmem>>, vector<16x640xf32>
    %cst_161 = arith.constant dense<0.000000e+00> : vector<4x640xf32>
    %348 = tpu.matmul %346, %347, %cst_161 {dimension_numbers = #tpu.dot_dimension_numbers<[1], [0], [0], [1], [0, 0, 1, 1], [], []>} : vector<4x16xf32>, vector<16x640xf32>, vector<4x640xf32> -> vector<4x640xf32>
    %349 = arith.addf %320, %348 : vector<4x640xf32>
    %c0_162 = arith.constant 0 : index
    %c0_163 = arith.constant 0 : index
    %350 = vector.load %arg14[%c0_162, %c0_163] : memref<1x640xf32, #tpu.memory_space<vmem>>, vector<1x640xf32>
    %351 = vector.broadcast %350 : vector<1x640xf32> to vector<4x640xf32>
    %352 = arith.addf %349, %351 : vector<4x640xf32>
    %353 = vector.extract_strided_slice %352 {offsets = [0, 256], sizes = [4, 64], strides = [1, 1]} : vector<4x640xf32> to vector<4x64xf32>
    %cst_164 = arith.constant 0.000000e+00 : f32
    %354 = vector.broadcast %cst_164 : f32 to vector<4x64xf32>
    %355 = arith.maximumf %353, %354 : vector<4x64xf32>
    %c0_165 = arith.constant 0 : index
    %c0_166 = arith.constant 0 : index
    %356 = vector.load %arg15[%c0_165, %c0_166] : memref<64x4xf32, #tpu.memory_space<vmem>>, vector<64x4xf32>
    %cst_167 = arith.constant dense<0.000000e+00> : vector<4x4xf32>
    %357 = tpu.matmul %355, %356, %cst_167 {dimension_numbers = #tpu.dot_dimension_numbers<[1], [0], [0], [1], [0, 0, 1, 1], [], []>} : vector<4x64xf32>, vector<64x4xf32>, vector<4x4xf32> -> vector<4x4xf32>
    %c0_168 = arith.constant 0 : index
    %c0_169 = arith.constant 0 : index
    %358 = vector.load %arg16[%c0_168, %c0_169] : memref<1x4xf32, #tpu.memory_space<vmem>>, vector<1x4xf32>
    %359 = vector.broadcast %358 : vector<1x4xf32> to vector<4x4xf32>
    %360 = arith.addf %357, %359 : vector<4x4xf32>
    %361 = vector.extract_strided_slice %360 {offsets = [0, 0], sizes = [4, 2], strides = [1, 1]} : vector<4x4xf32> to vector<4x2xf32>
    %362 = vector.extract_strided_slice %360 {offsets = [0, 2], sizes = [4, 2], strides = [1, 1]} : vector<4x4xf32> to vector<4x2xf32>
    %363 = vector.extract_strided_slice %352 {offsets = [0, 384], sizes = [4, 96], strides = [1, 1]} : vector<4x640xf32> to vector<4x96xf32>
    %364 = vector.extract_strided_slice %352 {offsets = [0, 512], sizes = [4, 96], strides = [1, 1]} : vector<4x640xf32> to vector<4x96xf32>
    %365 = vector.extract_strided_slice %363 {offsets = [0, 0], sizes = [4, 32], strides = [1, 1]} : vector<4x96xf32> to vector<4x32xf32>
    %366 = vector.extract_strided_slice %364 {offsets = [0, 0], sizes = [4, 32], strides = [1, 1]} : vector<4x96xf32> to vector<4x32xf32>
    %367 = arith.addf %365, %366 : vector<4x32xf32>
    %368 = arith.negf %367 : vector<4x32xf32>
    %369 = math.exp %368 : vector<4x32xf32>
    %cst_170 = arith.constant 1.000000e+00 : f32
    %370 = vector.broadcast %cst_170 : f32 to vector<4x32xf32>
    %371 = arith.addf %370, %369 : vector<4x32xf32>
    %372 = arith.divf %370, %371 : vector<4x32xf32>
    %373 = vector.extract_strided_slice %363 {offsets = [0, 32], sizes = [4, 32], strides = [1, 1]} : vector<4x96xf32> to vector<4x32xf32>
    %374 = vector.extract_strided_slice %364 {offsets = [0, 32], sizes = [4, 32], strides = [1, 1]} : vector<4x96xf32> to vector<4x32xf32>
    %375 = arith.addf %373, %374 : vector<4x32xf32>
    %376 = arith.negf %375 : vector<4x32xf32>
    %377 = math.exp %376 : vector<4x32xf32>
    %cst_171 = arith.constant 1.000000e+00 : f32
    %378 = vector.broadcast %cst_171 : f32 to vector<4x32xf32>
    %379 = arith.addf %378, %377 : vector<4x32xf32>
    %380 = arith.divf %378, %379 : vector<4x32xf32>
    %381 = vector.extract_strided_slice %363 {offsets = [0, 64], sizes = [4, 32], strides = [1, 1]} : vector<4x96xf32> to vector<4x32xf32>
    %382 = vector.extract_strided_slice %364 {offsets = [0, 64], sizes = [4, 32], strides = [1, 1]} : vector<4x96xf32> to vector<4x32xf32>
    %383 = arith.mulf %372, %382 : vector<4x32xf32>
    %384 = arith.addf %381, %383 : vector<4x32xf32>
    %385 = math.tanh %384 : vector<4x32xf32>
    %cst_172 = arith.constant 1.000000e+00 : f32
    %386 = vector.broadcast %cst_172 : f32 to vector<4x32xf32>
    %387 = arith.subf %386, %380 : vector<4x32xf32>
    %388 = arith.mulf %387, %385 : vector<4x32xf32>
    %389 = arith.mulf %380, %291 : vector<4x32xf32>
    %390 = arith.addf %388, %389 : vector<4x32xf32>
    %391 = arith.subf %332, %330 : vector<4x16xf32>
    %392 = arith.addf %303, %391 : vector<4x16xf32>
    %393 = arith.subf %330, %332 : vector<4x16xf32>
    %394 = math.exp %393 : vector<4x16xf32>
    %395 = arith.addf %392, %394 : vector<4x16xf32>
    %396 = arith.subf %329, %331 : vector<4x16xf32>
    %397 = arith.mulf %396, %396 : vector<4x16xf32>
    %cst_173 = arith.constant 0.000000e+00 : f32
    %398 = vector.broadcast %cst_173 : f32 to vector<4x16xf32>
    %399 = arith.subf %398, %332 : vector<4x16xf32>
    %400 = math.exp %399 : vector<4x16xf32>
    %401 = arith.mulf %397, %400 : vector<4x16xf32>
    %402 = arith.addf %395, %401 : vector<4x16xf32>
    %c3_174 = arith.constant 3 : index
    %c0_175 = arith.constant 0 : index
    %c0_176 = arith.constant 0 : index
    %403 = vector.load %arg1[%c3_174, %c0_175, %c0_176] : memref<7x4x2xf32, #tpu.memory_space<vmem>>, vector<1x4x2xf32>
    %404 = vector.shape_cast %403 : vector<1x4x2xf32> to vector<4x2xf32>
    %405 = arith.subf %404, %361 : vector<4x2xf32>
    %406 = arith.mulf %405, %405 : vector<4x2xf32>
    %cst_177 = arith.constant 0.000000e+00 : f32
    %407 = vector.broadcast %cst_177 : f32 to vector<4x2xf32>
    %408 = arith.subf %407, %362 : vector<4x2xf32>
    %409 = math.exp %408 : vector<4x2xf32>
    %410 = arith.mulf %406, %409 : vector<4x2xf32>
    %411 = arith.addf %313, %410 : vector<4x2xf32>
    %412 = arith.addf %411, %362 : vector<4x2xf32>
    %c16 = arith.constant 16 : index
    %c0_178 = arith.constant 0 : index
    %413 = vector.load %arg18[%c16, %c0_178] : memref<28x640xf32, #tpu.memory_space<vmem>>, vector<4x640xf32>
    %c0_179 = arith.constant 0 : index
    %c0_180 = arith.constant 0 : index
    %414 = vector.load %arg7[%c0_179, %c0_180] : memref<32x640xf32, #tpu.memory_space<vmem>>, vector<32x640xf32>
    %cst_181 = arith.constant dense<0.000000e+00> : vector<4x640xf32>
    %415 = tpu.matmul %390, %414, %cst_181 {dimension_numbers = #tpu.dot_dimension_numbers<[1], [0], [0], [1], [0, 0, 1, 1], [], []>} : vector<4x32xf32>, vector<32x640xf32>, vector<4x640xf32> -> vector<4x640xf32>
    %416 = arith.addf %413, %415 : vector<4x640xf32>
    %c0_182 = arith.constant 0 : index
    %c0_183 = arith.constant 0 : index
    %417 = vector.load %arg8[%c0_182, %c0_183] : memref<1x640xf32, #tpu.memory_space<vmem>>, vector<1x640xf32>
    %418 = vector.broadcast %417 : vector<1x640xf32> to vector<4x640xf32>
    %419 = arith.addf %416, %418 : vector<4x640xf32>
    %420 = vector.extract_strided_slice %419 {offsets = [0, 0], sizes = [4, 256], strides = [1, 1]} : vector<4x640xf32> to vector<4x256xf32>
    %cst_184 = arith.constant 0.000000e+00 : f32
    %421 = vector.broadcast %cst_184 : f32 to vector<4x256xf32>
    %422 = arith.maximumf %420, %421 : vector<4x256xf32>
    %c0_185 = arith.constant 0 : index
    %c0_186 = arith.constant 0 : index
    %423 = vector.load %arg9[%c0_185, %c0_186] : memref<256x64xf32, #tpu.memory_space<vmem>>, vector<256x64xf32>
    %cst_187 = arith.constant dense<0.000000e+00> : vector<4x64xf32>
    %424 = tpu.matmul %422, %423, %cst_187 {dimension_numbers = #tpu.dot_dimension_numbers<[1], [0], [0], [1], [0, 0, 1, 1], [], []>} : vector<4x256xf32>, vector<256x64xf32>, vector<4x64xf32> -> vector<4x64xf32>
    %c0_188 = arith.constant 0 : index
    %c0_189 = arith.constant 0 : index
    %425 = vector.load %arg10[%c0_188, %c0_189] : memref<1x64xf32, #tpu.memory_space<vmem>>, vector<1x64xf32>
    %426 = vector.broadcast %425 : vector<1x64xf32> to vector<4x64xf32>
    %427 = arith.addf %424, %426 : vector<4x64xf32>
    %428 = vector.extract_strided_slice %427 {offsets = [0, 0], sizes = [4, 16], strides = [1, 1]} : vector<4x64xf32> to vector<4x16xf32>
    %429 = vector.extract_strided_slice %427 {offsets = [0, 16], sizes = [4, 16], strides = [1, 1]} : vector<4x64xf32> to vector<4x16xf32>
    %430 = vector.extract_strided_slice %427 {offsets = [0, 32], sizes = [4, 16], strides = [1, 1]} : vector<4x64xf32> to vector<4x16xf32>
    %431 = vector.extract_strided_slice %427 {offsets = [0, 48], sizes = [4, 16], strides = [1, 1]} : vector<4x64xf32> to vector<4x16xf32>
    %c4_190 = arith.constant 4 : index
    %c0_191 = arith.constant 0 : index
    %c0_192 = arith.constant 0 : index
    %432 = vector.load %arg2[%c4_190, %c0_191, %c0_192] : memref<7x4x16xf32, #tpu.memory_space<vmem>>, vector<1x4x16xf32>
    %433 = vector.shape_cast %432 : vector<1x4x16xf32> to vector<4x16xf32>
    %cst_193 = arith.constant 5.000000e-01 : f32
    %434 = vector.broadcast %cst_193 : f32 to vector<4x16xf32>
    %435 = arith.mulf %434, %429 : vector<4x16xf32>
    %436 = math.exp %435 : vector<4x16xf32>
    %437 = arith.mulf %433, %436 : vector<4x16xf32>
    %438 = arith.addf %437, %428 : vector<4x16xf32>
    %c0_194 = arith.constant 0 : index
    %c0_195 = arith.constant 0 : index
    %439 = vector.load %arg11[%c0_194, %c0_195] : memref<16x16xf32, #tpu.memory_space<vmem>>, vector<16x16xf32>
    %cst_196 = arith.constant dense<0.000000e+00> : vector<4x16xf32>
    %440 = tpu.matmul %438, %439, %cst_196 {dimension_numbers = #tpu.dot_dimension_numbers<[1], [0], [0], [1], [0, 0, 1, 1], [], []>} : vector<4x16xf32>, vector<16x16xf32>, vector<4x16xf32> -> vector<4x16xf32>
    %c0_197 = arith.constant 0 : index
    %c0_198 = arith.constant 0 : index
    %441 = vector.load %arg12[%c0_197, %c0_198] : memref<1x16xf32, #tpu.memory_space<vmem>>, vector<1x16xf32>
    %442 = vector.broadcast %441 : vector<1x16xf32> to vector<4x16xf32>
    %443 = arith.addf %440, %442 : vector<4x16xf32>
    %cst_199 = arith.constant 0.000000e+00 : f32
    %444 = vector.broadcast %cst_199 : f32 to vector<4x16xf32>
    %445 = arith.maximumf %443, %444 : vector<4x16xf32>
    %c0_200 = arith.constant 0 : index
    %c0_201 = arith.constant 0 : index
    %446 = vector.load %arg13[%c0_200, %c0_201] : memref<16x640xf32, #tpu.memory_space<vmem>>, vector<16x640xf32>
    %cst_202 = arith.constant dense<0.000000e+00> : vector<4x640xf32>
    %447 = tpu.matmul %445, %446, %cst_202 {dimension_numbers = #tpu.dot_dimension_numbers<[1], [0], [0], [1], [0, 0, 1, 1], [], []>} : vector<4x16xf32>, vector<16x640xf32>, vector<4x640xf32> -> vector<4x640xf32>
    %448 = arith.addf %419, %447 : vector<4x640xf32>
    %c0_203 = arith.constant 0 : index
    %c0_204 = arith.constant 0 : index
    %449 = vector.load %arg14[%c0_203, %c0_204] : memref<1x640xf32, #tpu.memory_space<vmem>>, vector<1x640xf32>
    %450 = vector.broadcast %449 : vector<1x640xf32> to vector<4x640xf32>
    %451 = arith.addf %448, %450 : vector<4x640xf32>
    %452 = vector.extract_strided_slice %451 {offsets = [0, 256], sizes = [4, 64], strides = [1, 1]} : vector<4x640xf32> to vector<4x64xf32>
    %cst_205 = arith.constant 0.000000e+00 : f32
    %453 = vector.broadcast %cst_205 : f32 to vector<4x64xf32>
    %454 = arith.maximumf %452, %453 : vector<4x64xf32>
    %c0_206 = arith.constant 0 : index
    %c0_207 = arith.constant 0 : index
    %455 = vector.load %arg15[%c0_206, %c0_207] : memref<64x4xf32, #tpu.memory_space<vmem>>, vector<64x4xf32>
    %cst_208 = arith.constant dense<0.000000e+00> : vector<4x4xf32>
    %456 = tpu.matmul %454, %455, %cst_208 {dimension_numbers = #tpu.dot_dimension_numbers<[1], [0], [0], [1], [0, 0, 1, 1], [], []>} : vector<4x64xf32>, vector<64x4xf32>, vector<4x4xf32> -> vector<4x4xf32>
    %c0_209 = arith.constant 0 : index
    %c0_210 = arith.constant 0 : index
    %457 = vector.load %arg16[%c0_209, %c0_210] : memref<1x4xf32, #tpu.memory_space<vmem>>, vector<1x4xf32>
    %458 = vector.broadcast %457 : vector<1x4xf32> to vector<4x4xf32>
    %459 = arith.addf %456, %458 : vector<4x4xf32>
    %460 = vector.extract_strided_slice %459 {offsets = [0, 0], sizes = [4, 2], strides = [1, 1]} : vector<4x4xf32> to vector<4x2xf32>
    %461 = vector.extract_strided_slice %459 {offsets = [0, 2], sizes = [4, 2], strides = [1, 1]} : vector<4x4xf32> to vector<4x2xf32>
    %462 = vector.extract_strided_slice %451 {offsets = [0, 384], sizes = [4, 96], strides = [1, 1]} : vector<4x640xf32> to vector<4x96xf32>
    %463 = vector.extract_strided_slice %451 {offsets = [0, 512], sizes = [4, 96], strides = [1, 1]} : vector<4x640xf32> to vector<4x96xf32>
    %464 = vector.extract_strided_slice %462 {offsets = [0, 0], sizes = [4, 32], strides = [1, 1]} : vector<4x96xf32> to vector<4x32xf32>
    %465 = vector.extract_strided_slice %463 {offsets = [0, 0], sizes = [4, 32], strides = [1, 1]} : vector<4x96xf32> to vector<4x32xf32>
    %466 = arith.addf %464, %465 : vector<4x32xf32>
    %467 = arith.negf %466 : vector<4x32xf32>
    %468 = math.exp %467 : vector<4x32xf32>
    %cst_211 = arith.constant 1.000000e+00 : f32
    %469 = vector.broadcast %cst_211 : f32 to vector<4x32xf32>
    %470 = arith.addf %469, %468 : vector<4x32xf32>
    %471 = arith.divf %469, %470 : vector<4x32xf32>
    %472 = vector.extract_strided_slice %462 {offsets = [0, 32], sizes = [4, 32], strides = [1, 1]} : vector<4x96xf32> to vector<4x32xf32>
    %473 = vector.extract_strided_slice %463 {offsets = [0, 32], sizes = [4, 32], strides = [1, 1]} : vector<4x96xf32> to vector<4x32xf32>
    %474 = arith.addf %472, %473 : vector<4x32xf32>
    %475 = arith.negf %474 : vector<4x32xf32>
    %476 = math.exp %475 : vector<4x32xf32>
    %cst_212 = arith.constant 1.000000e+00 : f32
    %477 = vector.broadcast %cst_212 : f32 to vector<4x32xf32>
    %478 = arith.addf %477, %476 : vector<4x32xf32>
    %479 = arith.divf %477, %478 : vector<4x32xf32>
    %480 = vector.extract_strided_slice %462 {offsets = [0, 64], sizes = [4, 32], strides = [1, 1]} : vector<4x96xf32> to vector<4x32xf32>
    %481 = vector.extract_strided_slice %463 {offsets = [0, 64], sizes = [4, 32], strides = [1, 1]} : vector<4x96xf32> to vector<4x32xf32>
    %482 = arith.mulf %471, %481 : vector<4x32xf32>
    %483 = arith.addf %480, %482 : vector<4x32xf32>
    %484 = math.tanh %483 : vector<4x32xf32>
    %cst_213 = arith.constant 1.000000e+00 : f32
    %485 = vector.broadcast %cst_213 : f32 to vector<4x32xf32>
    %486 = arith.subf %485, %479 : vector<4x32xf32>
    %487 = arith.mulf %486, %484 : vector<4x32xf32>
    %488 = arith.mulf %479, %390 : vector<4x32xf32>
    %489 = arith.addf %487, %488 : vector<4x32xf32>
    %490 = arith.subf %431, %429 : vector<4x16xf32>
    %491 = arith.addf %402, %490 : vector<4x16xf32>
    %492 = arith.subf %429, %431 : vector<4x16xf32>
    %493 = math.exp %492 : vector<4x16xf32>
    %494 = arith.addf %491, %493 : vector<4x16xf32>
    %495 = arith.subf %428, %430 : vector<4x16xf32>
    %496 = arith.mulf %495, %495 : vector<4x16xf32>
    %cst_214 = arith.constant 0.000000e+00 : f32
    %497 = vector.broadcast %cst_214 : f32 to vector<4x16xf32>
    %498 = arith.subf %497, %431 : vector<4x16xf32>
    %499 = math.exp %498 : vector<4x16xf32>
    %500 = arith.mulf %496, %499 : vector<4x16xf32>
    %501 = arith.addf %494, %500 : vector<4x16xf32>
    %c4_215 = arith.constant 4 : index
    %c0_216 = arith.constant 0 : index
    %c0_217 = arith.constant 0 : index
    %502 = vector.load %arg1[%c4_215, %c0_216, %c0_217] : memref<7x4x2xf32, #tpu.memory_space<vmem>>, vector<1x4x2xf32>
    %503 = vector.shape_cast %502 : vector<1x4x2xf32> to vector<4x2xf32>
    %504 = arith.subf %503, %460 : vector<4x2xf32>
    %505 = arith.mulf %504, %504 : vector<4x2xf32>
    %cst_218 = arith.constant 0.000000e+00 : f32
    %506 = vector.broadcast %cst_218 : f32 to vector<4x2xf32>
    %507 = arith.subf %506, %461 : vector<4x2xf32>
    %508 = math.exp %507 : vector<4x2xf32>
    %509 = arith.mulf %505, %508 : vector<4x2xf32>
    %510 = arith.addf %412, %509 : vector<4x2xf32>
    %511 = arith.addf %510, %461 : vector<4x2xf32>
    %c20 = arith.constant 20 : index
    %c0_219 = arith.constant 0 : index
    %512 = vector.load %arg18[%c20, %c0_219] : memref<28x640xf32, #tpu.memory_space<vmem>>, vector<4x640xf32>
    %c0_220 = arith.constant 0 : index
    %c0_221 = arith.constant 0 : index
    %513 = vector.load %arg7[%c0_220, %c0_221] : memref<32x640xf32, #tpu.memory_space<vmem>>, vector<32x640xf32>
    %cst_222 = arith.constant dense<0.000000e+00> : vector<4x640xf32>
    %514 = tpu.matmul %489, %513, %cst_222 {dimension_numbers = #tpu.dot_dimension_numbers<[1], [0], [0], [1], [0, 0, 1, 1], [], []>} : vector<4x32xf32>, vector<32x640xf32>, vector<4x640xf32> -> vector<4x640xf32>
    %515 = arith.addf %512, %514 : vector<4x640xf32>
    %c0_223 = arith.constant 0 : index
    %c0_224 = arith.constant 0 : index
    %516 = vector.load %arg8[%c0_223, %c0_224] : memref<1x640xf32, #tpu.memory_space<vmem>>, vector<1x640xf32>
    %517 = vector.broadcast %516 : vector<1x640xf32> to vector<4x640xf32>
    %518 = arith.addf %515, %517 : vector<4x640xf32>
    %519 = vector.extract_strided_slice %518 {offsets = [0, 0], sizes = [4, 256], strides = [1, 1]} : vector<4x640xf32> to vector<4x256xf32>
    %cst_225 = arith.constant 0.000000e+00 : f32
    %520 = vector.broadcast %cst_225 : f32 to vector<4x256xf32>
    %521 = arith.maximumf %519, %520 : vector<4x256xf32>
    %c0_226 = arith.constant 0 : index
    %c0_227 = arith.constant 0 : index
    %522 = vector.load %arg9[%c0_226, %c0_227] : memref<256x64xf32, #tpu.memory_space<vmem>>, vector<256x64xf32>
    %cst_228 = arith.constant dense<0.000000e+00> : vector<4x64xf32>
    %523 = tpu.matmul %521, %522, %cst_228 {dimension_numbers = #tpu.dot_dimension_numbers<[1], [0], [0], [1], [0, 0, 1, 1], [], []>} : vector<4x256xf32>, vector<256x64xf32>, vector<4x64xf32> -> vector<4x64xf32>
    %c0_229 = arith.constant 0 : index
    %c0_230 = arith.constant 0 : index
    %524 = vector.load %arg10[%c0_229, %c0_230] : memref<1x64xf32, #tpu.memory_space<vmem>>, vector<1x64xf32>
    %525 = vector.broadcast %524 : vector<1x64xf32> to vector<4x64xf32>
    %526 = arith.addf %523, %525 : vector<4x64xf32>
    %527 = vector.extract_strided_slice %526 {offsets = [0, 0], sizes = [4, 16], strides = [1, 1]} : vector<4x64xf32> to vector<4x16xf32>
    %528 = vector.extract_strided_slice %526 {offsets = [0, 16], sizes = [4, 16], strides = [1, 1]} : vector<4x64xf32> to vector<4x16xf32>
    %529 = vector.extract_strided_slice %526 {offsets = [0, 32], sizes = [4, 16], strides = [1, 1]} : vector<4x64xf32> to vector<4x16xf32>
    %530 = vector.extract_strided_slice %526 {offsets = [0, 48], sizes = [4, 16], strides = [1, 1]} : vector<4x64xf32> to vector<4x16xf32>
    %c5 = arith.constant 5 : index
    %c0_231 = arith.constant 0 : index
    %c0_232 = arith.constant 0 : index
    %531 = vector.load %arg2[%c5, %c0_231, %c0_232] : memref<7x4x16xf32, #tpu.memory_space<vmem>>, vector<1x4x16xf32>
    %532 = vector.shape_cast %531 : vector<1x4x16xf32> to vector<4x16xf32>
    %cst_233 = arith.constant 5.000000e-01 : f32
    %533 = vector.broadcast %cst_233 : f32 to vector<4x16xf32>
    %534 = arith.mulf %533, %528 : vector<4x16xf32>
    %535 = math.exp %534 : vector<4x16xf32>
    %536 = arith.mulf %532, %535 : vector<4x16xf32>
    %537 = arith.addf %536, %527 : vector<4x16xf32>
    %c0_234 = arith.constant 0 : index
    %c0_235 = arith.constant 0 : index
    %538 = vector.load %arg11[%c0_234, %c0_235] : memref<16x16xf32, #tpu.memory_space<vmem>>, vector<16x16xf32>
    %cst_236 = arith.constant dense<0.000000e+00> : vector<4x16xf32>
    %539 = tpu.matmul %537, %538, %cst_236 {dimension_numbers = #tpu.dot_dimension_numbers<[1], [0], [0], [1], [0, 0, 1, 1], [], []>} : vector<4x16xf32>, vector<16x16xf32>, vector<4x16xf32> -> vector<4x16xf32>
    %c0_237 = arith.constant 0 : index
    %c0_238 = arith.constant 0 : index
    %540 = vector.load %arg12[%c0_237, %c0_238] : memref<1x16xf32, #tpu.memory_space<vmem>>, vector<1x16xf32>
    %541 = vector.broadcast %540 : vector<1x16xf32> to vector<4x16xf32>
    %542 = arith.addf %539, %541 : vector<4x16xf32>
    %cst_239 = arith.constant 0.000000e+00 : f32
    %543 = vector.broadcast %cst_239 : f32 to vector<4x16xf32>
    %544 = arith.maximumf %542, %543 : vector<4x16xf32>
    %c0_240 = arith.constant 0 : index
    %c0_241 = arith.constant 0 : index
    %545 = vector.load %arg13[%c0_240, %c0_241] : memref<16x640xf32, #tpu.memory_space<vmem>>, vector<16x640xf32>
    %cst_242 = arith.constant dense<0.000000e+00> : vector<4x640xf32>
    %546 = tpu.matmul %544, %545, %cst_242 {dimension_numbers = #tpu.dot_dimension_numbers<[1], [0], [0], [1], [0, 0, 1, 1], [], []>} : vector<4x16xf32>, vector<16x640xf32>, vector<4x640xf32> -> vector<4x640xf32>
    %547 = arith.addf %518, %546 : vector<4x640xf32>
    %c0_243 = arith.constant 0 : index
    %c0_244 = arith.constant 0 : index
    %548 = vector.load %arg14[%c0_243, %c0_244] : memref<1x640xf32, #tpu.memory_space<vmem>>, vector<1x640xf32>
    %549 = vector.broadcast %548 : vector<1x640xf32> to vector<4x640xf32>
    %550 = arith.addf %547, %549 : vector<4x640xf32>
    %551 = vector.extract_strided_slice %550 {offsets = [0, 256], sizes = [4, 64], strides = [1, 1]} : vector<4x640xf32> to vector<4x64xf32>
    %cst_245 = arith.constant 0.000000e+00 : f32
    %552 = vector.broadcast %cst_245 : f32 to vector<4x64xf32>
    %553 = arith.maximumf %551, %552 : vector<4x64xf32>
    %c0_246 = arith.constant 0 : index
    %c0_247 = arith.constant 0 : index
    %554 = vector.load %arg15[%c0_246, %c0_247] : memref<64x4xf32, #tpu.memory_space<vmem>>, vector<64x4xf32>
    %cst_248 = arith.constant dense<0.000000e+00> : vector<4x4xf32>
    %555 = tpu.matmul %553, %554, %cst_248 {dimension_numbers = #tpu.dot_dimension_numbers<[1], [0], [0], [1], [0, 0, 1, 1], [], []>} : vector<4x64xf32>, vector<64x4xf32>, vector<4x4xf32> -> vector<4x4xf32>
    %c0_249 = arith.constant 0 : index
    %c0_250 = arith.constant 0 : index
    %556 = vector.load %arg16[%c0_249, %c0_250] : memref<1x4xf32, #tpu.memory_space<vmem>>, vector<1x4xf32>
    %557 = vector.broadcast %556 : vector<1x4xf32> to vector<4x4xf32>
    %558 = arith.addf %555, %557 : vector<4x4xf32>
    %559 = vector.extract_strided_slice %558 {offsets = [0, 0], sizes = [4, 2], strides = [1, 1]} : vector<4x4xf32> to vector<4x2xf32>
    %560 = vector.extract_strided_slice %558 {offsets = [0, 2], sizes = [4, 2], strides = [1, 1]} : vector<4x4xf32> to vector<4x2xf32>
    %561 = vector.extract_strided_slice %550 {offsets = [0, 384], sizes = [4, 96], strides = [1, 1]} : vector<4x640xf32> to vector<4x96xf32>
    %562 = vector.extract_strided_slice %550 {offsets = [0, 512], sizes = [4, 96], strides = [1, 1]} : vector<4x640xf32> to vector<4x96xf32>
    %563 = vector.extract_strided_slice %561 {offsets = [0, 0], sizes = [4, 32], strides = [1, 1]} : vector<4x96xf32> to vector<4x32xf32>
    %564 = vector.extract_strided_slice %562 {offsets = [0, 0], sizes = [4, 32], strides = [1, 1]} : vector<4x96xf32> to vector<4x32xf32>
    %565 = arith.addf %563, %564 : vector<4x32xf32>
    %566 = arith.negf %565 : vector<4x32xf32>
    %567 = math.exp %566 : vector<4x32xf32>
    %cst_251 = arith.constant 1.000000e+00 : f32
    %568 = vector.broadcast %cst_251 : f32 to vector<4x32xf32>
    %569 = arith.addf %568, %567 : vector<4x32xf32>
    %570 = arith.divf %568, %569 : vector<4x32xf32>
    %571 = vector.extract_strided_slice %561 {offsets = [0, 32], sizes = [4, 32], strides = [1, 1]} : vector<4x96xf32> to vector<4x32xf32>
    %572 = vector.extract_strided_slice %562 {offsets = [0, 32], sizes = [4, 32], strides = [1, 1]} : vector<4x96xf32> to vector<4x32xf32>
    %573 = arith.addf %571, %572 : vector<4x32xf32>
    %574 = arith.negf %573 : vector<4x32xf32>
    %575 = math.exp %574 : vector<4x32xf32>
    %cst_252 = arith.constant 1.000000e+00 : f32
    %576 = vector.broadcast %cst_252 : f32 to vector<4x32xf32>
    %577 = arith.addf %576, %575 : vector<4x32xf32>
    %578 = arith.divf %576, %577 : vector<4x32xf32>
    %579 = vector.extract_strided_slice %561 {offsets = [0, 64], sizes = [4, 32], strides = [1, 1]} : vector<4x96xf32> to vector<4x32xf32>
    %580 = vector.extract_strided_slice %562 {offsets = [0, 64], sizes = [4, 32], strides = [1, 1]} : vector<4x96xf32> to vector<4x32xf32>
    %581 = arith.mulf %570, %580 : vector<4x32xf32>
    %582 = arith.addf %579, %581 : vector<4x32xf32>
    %583 = math.tanh %582 : vector<4x32xf32>
    %cst_253 = arith.constant 1.000000e+00 : f32
    %584 = vector.broadcast %cst_253 : f32 to vector<4x32xf32>
    %585 = arith.subf %584, %578 : vector<4x32xf32>
    %586 = arith.mulf %585, %583 : vector<4x32xf32>
    %587 = arith.mulf %578, %489 : vector<4x32xf32>
    %588 = arith.addf %586, %587 : vector<4x32xf32>
    %589 = arith.subf %530, %528 : vector<4x16xf32>
    %590 = arith.addf %501, %589 : vector<4x16xf32>
    %591 = arith.subf %528, %530 : vector<4x16xf32>
    %592 = math.exp %591 : vector<4x16xf32>
    %593 = arith.addf %590, %592 : vector<4x16xf32>
    %594 = arith.subf %527, %529 : vector<4x16xf32>
    %595 = arith.mulf %594, %594 : vector<4x16xf32>
    %cst_254 = arith.constant 0.000000e+00 : f32
    %596 = vector.broadcast %cst_254 : f32 to vector<4x16xf32>
    %597 = arith.subf %596, %530 : vector<4x16xf32>
    %598 = math.exp %597 : vector<4x16xf32>
    %599 = arith.mulf %595, %598 : vector<4x16xf32>
    %600 = arith.addf %593, %599 : vector<4x16xf32>
    %c5_255 = arith.constant 5 : index
    %c0_256 = arith.constant 0 : index
    %c0_257 = arith.constant 0 : index
    %601 = vector.load %arg1[%c5_255, %c0_256, %c0_257] : memref<7x4x2xf32, #tpu.memory_space<vmem>>, vector<1x4x2xf32>
    %602 = vector.shape_cast %601 : vector<1x4x2xf32> to vector<4x2xf32>
    %603 = arith.subf %602, %559 : vector<4x2xf32>
    %604 = arith.mulf %603, %603 : vector<4x2xf32>
    %cst_258 = arith.constant 0.000000e+00 : f32
    %605 = vector.broadcast %cst_258 : f32 to vector<4x2xf32>
    %606 = arith.subf %605, %560 : vector<4x2xf32>
    %607 = math.exp %606 : vector<4x2xf32>
    %608 = arith.mulf %604, %607 : vector<4x2xf32>
    %609 = arith.addf %511, %608 : vector<4x2xf32>
    %610 = arith.addf %609, %560 : vector<4x2xf32>
    %c24 = arith.constant 24 : index
    %c0_259 = arith.constant 0 : index
    %611 = vector.load %arg18[%c24, %c0_259] : memref<28x640xf32, #tpu.memory_space<vmem>>, vector<4x640xf32>
    %c0_260 = arith.constant 0 : index
    %c0_261 = arith.constant 0 : index
    %612 = vector.load %arg7[%c0_260, %c0_261] : memref<32x640xf32, #tpu.memory_space<vmem>>, vector<32x640xf32>
    %cst_262 = arith.constant dense<0.000000e+00> : vector<4x640xf32>
    %613 = tpu.matmul %588, %612, %cst_262 {dimension_numbers = #tpu.dot_dimension_numbers<[1], [0], [0], [1], [0, 0, 1, 1], [], []>} : vector<4x32xf32>, vector<32x640xf32>, vector<4x640xf32> -> vector<4x640xf32>
    %614 = arith.addf %611, %613 : vector<4x640xf32>
    %c0_263 = arith.constant 0 : index
    %c0_264 = arith.constant 0 : index
    %615 = vector.load %arg8[%c0_263, %c0_264] : memref<1x640xf32, #tpu.memory_space<vmem>>, vector<1x640xf32>
    %616 = vector.broadcast %615 : vector<1x640xf32> to vector<4x640xf32>
    %617 = arith.addf %614, %616 : vector<4x640xf32>
    %618 = vector.extract_strided_slice %617 {offsets = [0, 0], sizes = [4, 256], strides = [1, 1]} : vector<4x640xf32> to vector<4x256xf32>
    %cst_265 = arith.constant 0.000000e+00 : f32
    %619 = vector.broadcast %cst_265 : f32 to vector<4x256xf32>
    %620 = arith.maximumf %618, %619 : vector<4x256xf32>
    %c0_266 = arith.constant 0 : index
    %c0_267 = arith.constant 0 : index
    %621 = vector.load %arg9[%c0_266, %c0_267] : memref<256x64xf32, #tpu.memory_space<vmem>>, vector<256x64xf32>
    %cst_268 = arith.constant dense<0.000000e+00> : vector<4x64xf32>
    %622 = tpu.matmul %620, %621, %cst_268 {dimension_numbers = #tpu.dot_dimension_numbers<[1], [0], [0], [1], [0, 0, 1, 1], [], []>} : vector<4x256xf32>, vector<256x64xf32>, vector<4x64xf32> -> vector<4x64xf32>
    %c0_269 = arith.constant 0 : index
    %c0_270 = arith.constant 0 : index
    %623 = vector.load %arg10[%c0_269, %c0_270] : memref<1x64xf32, #tpu.memory_space<vmem>>, vector<1x64xf32>
    %624 = vector.broadcast %623 : vector<1x64xf32> to vector<4x64xf32>
    %625 = arith.addf %622, %624 : vector<4x64xf32>
    %626 = vector.extract_strided_slice %625 {offsets = [0, 0], sizes = [4, 16], strides = [1, 1]} : vector<4x64xf32> to vector<4x16xf32>
    %627 = vector.extract_strided_slice %625 {offsets = [0, 16], sizes = [4, 16], strides = [1, 1]} : vector<4x64xf32> to vector<4x16xf32>
    %628 = vector.extract_strided_slice %625 {offsets = [0, 32], sizes = [4, 16], strides = [1, 1]} : vector<4x64xf32> to vector<4x16xf32>
    %629 = vector.extract_strided_slice %625 {offsets = [0, 48], sizes = [4, 16], strides = [1, 1]} : vector<4x64xf32> to vector<4x16xf32>
    %c6 = arith.constant 6 : index
    %c0_271 = arith.constant 0 : index
    %c0_272 = arith.constant 0 : index
    %630 = vector.load %arg2[%c6, %c0_271, %c0_272] : memref<7x4x16xf32, #tpu.memory_space<vmem>>, vector<1x4x16xf32>
    %631 = vector.shape_cast %630 : vector<1x4x16xf32> to vector<4x16xf32>
    %cst_273 = arith.constant 5.000000e-01 : f32
    %632 = vector.broadcast %cst_273 : f32 to vector<4x16xf32>
    %633 = arith.mulf %632, %627 : vector<4x16xf32>
    %634 = math.exp %633 : vector<4x16xf32>
    %635 = arith.mulf %631, %634 : vector<4x16xf32>
    %636 = arith.addf %635, %626 : vector<4x16xf32>
    %c0_274 = arith.constant 0 : index
    %c0_275 = arith.constant 0 : index
    %637 = vector.load %arg11[%c0_274, %c0_275] : memref<16x16xf32, #tpu.memory_space<vmem>>, vector<16x16xf32>
    %cst_276 = arith.constant dense<0.000000e+00> : vector<4x16xf32>
    %638 = tpu.matmul %636, %637, %cst_276 {dimension_numbers = #tpu.dot_dimension_numbers<[1], [0], [0], [1], [0, 0, 1, 1], [], []>} : vector<4x16xf32>, vector<16x16xf32>, vector<4x16xf32> -> vector<4x16xf32>
    %c0_277 = arith.constant 0 : index
    %c0_278 = arith.constant 0 : index
    %639 = vector.load %arg12[%c0_277, %c0_278] : memref<1x16xf32, #tpu.memory_space<vmem>>, vector<1x16xf32>
    %640 = vector.broadcast %639 : vector<1x16xf32> to vector<4x16xf32>
    %641 = arith.addf %638, %640 : vector<4x16xf32>
    %cst_279 = arith.constant 0.000000e+00 : f32
    %642 = vector.broadcast %cst_279 : f32 to vector<4x16xf32>
    %643 = arith.maximumf %641, %642 : vector<4x16xf32>
    %c0_280 = arith.constant 0 : index
    %c0_281 = arith.constant 0 : index
    %644 = vector.load %arg13[%c0_280, %c0_281] : memref<16x640xf32, #tpu.memory_space<vmem>>, vector<16x640xf32>
    %cst_282 = arith.constant dense<0.000000e+00> : vector<4x640xf32>
    %645 = tpu.matmul %643, %644, %cst_282 {dimension_numbers = #tpu.dot_dimension_numbers<[1], [0], [0], [1], [0, 0, 1, 1], [], []>} : vector<4x16xf32>, vector<16x640xf32>, vector<4x640xf32> -> vector<4x640xf32>
    %646 = arith.addf %617, %645 : vector<4x640xf32>
    %c0_283 = arith.constant 0 : index
    %c0_284 = arith.constant 0 : index
    %647 = vector.load %arg14[%c0_283, %c0_284] : memref<1x640xf32, #tpu.memory_space<vmem>>, vector<1x640xf32>
    %648 = vector.broadcast %647 : vector<1x640xf32> to vector<4x640xf32>
    %649 = arith.addf %646, %648 : vector<4x640xf32>
    %650 = vector.extract_strided_slice %649 {offsets = [0, 256], sizes = [4, 64], strides = [1, 1]} : vector<4x640xf32> to vector<4x64xf32>
    %cst_285 = arith.constant 0.000000e+00 : f32
    %651 = vector.broadcast %cst_285 : f32 to vector<4x64xf32>
    %652 = arith.maximumf %650, %651 : vector<4x64xf32>
    %c0_286 = arith.constant 0 : index
    %c0_287 = arith.constant 0 : index
    %653 = vector.load %arg15[%c0_286, %c0_287] : memref<64x4xf32, #tpu.memory_space<vmem>>, vector<64x4xf32>
    %cst_288 = arith.constant dense<0.000000e+00> : vector<4x4xf32>
    %654 = tpu.matmul %652, %653, %cst_288 {dimension_numbers = #tpu.dot_dimension_numbers<[1], [0], [0], [1], [0, 0, 1, 1], [], []>} : vector<4x64xf32>, vector<64x4xf32>, vector<4x4xf32> -> vector<4x4xf32>
    %c0_289 = arith.constant 0 : index
    %c0_290 = arith.constant 0 : index
    %655 = vector.load %arg16[%c0_289, %c0_290] : memref<1x4xf32, #tpu.memory_space<vmem>>, vector<1x4xf32>
    %656 = vector.broadcast %655 : vector<1x4xf32> to vector<4x4xf32>
    %657 = arith.addf %654, %656 : vector<4x4xf32>
    %658 = vector.extract_strided_slice %657 {offsets = [0, 0], sizes = [4, 2], strides = [1, 1]} : vector<4x4xf32> to vector<4x2xf32>
    %659 = vector.extract_strided_slice %657 {offsets = [0, 2], sizes = [4, 2], strides = [1, 1]} : vector<4x4xf32> to vector<4x2xf32>
    %660 = arith.subf %629, %627 : vector<4x16xf32>
    %661 = arith.addf %600, %660 : vector<4x16xf32>
    %662 = arith.subf %627, %629 : vector<4x16xf32>
    %663 = math.exp %662 : vector<4x16xf32>
    %664 = arith.addf %661, %663 : vector<4x16xf32>
    %665 = arith.subf %626, %628 : vector<4x16xf32>
    %666 = arith.mulf %665, %665 : vector<4x16xf32>
    %cst_291 = arith.constant 0.000000e+00 : f32
    %667 = vector.broadcast %cst_291 : f32 to vector<4x16xf32>
    %668 = arith.subf %667, %629 : vector<4x16xf32>
    %669 = math.exp %668 : vector<4x16xf32>
    %670 = arith.mulf %666, %669 : vector<4x16xf32>
    %671 = arith.addf %664, %670 : vector<4x16xf32>
    %c6_292 = arith.constant 6 : index
    %c0_293 = arith.constant 0 : index
    %c0_294 = arith.constant 0 : index
    %672 = vector.load %arg1[%c6_292, %c0_293, %c0_294] : memref<7x4x2xf32, #tpu.memory_space<vmem>>, vector<1x4x2xf32>
    %673 = vector.shape_cast %672 : vector<1x4x2xf32> to vector<4x2xf32>
    %674 = arith.subf %673, %658 : vector<4x2xf32>
    %675 = arith.mulf %674, %674 : vector<4x2xf32>
    %cst_295 = arith.constant 0.000000e+00 : f32
    %676 = vector.broadcast %cst_295 : f32 to vector<4x2xf32>
    %677 = arith.subf %676, %659 : vector<4x2xf32>
    %678 = math.exp %677 : vector<4x2xf32>
    %679 = arith.mulf %675, %678 : vector<4x2xf32>
    %680 = arith.addf %610, %679 : vector<4x2xf32>
    %681 = arith.addf %680, %659 : vector<4x2xf32>
    %682 = vector.shape_cast %671 : vector<4x16xf32> to vector<1x4x16xf32>
    %cst_296 = arith.constant dense<0.000000e+00> : vector<1xf32>
    %683 = vector.multi_reduction <add>, %682, %cst_296 [1, 2] : vector<1x4x16xf32> to vector<1xf32>
    %684 = vector.shape_cast %683 : vector<1xf32> to vector<1x1x1xf32>
    %685 = vector.extract %684[0, 0, 0] : f32 from vector<1x1x1xf32>
    %cst_297 = arith.constant 4.000000e+00 : f32
    %686 = arith.divf %685, %cst_297 : f32
    %cst_298 = arith.constant 5.000000e-01 : f32
    %687 = arith.mulf %cst_298, %686 : f32
    %cst_299 = arith.constant 5.600000e+01 : f32
    %688 = arith.subf %687, %cst_299 : f32
    %689 = vector.shape_cast %681 : vector<4x2xf32> to vector<1x4x2xf32>
    %cst_300 = arith.constant dense<0.000000e+00> : vector<1xf32>
    %690 = vector.multi_reduction <add>, %689, %cst_300 [1, 2] : vector<1x4x2xf32> to vector<1xf32>
    %691 = vector.shape_cast %690 : vector<1xf32> to vector<1x1x1xf32>
    %692 = vector.extract %691[0, 0, 0] : f32 from vector<1x1x1xf32>
    %cst_301 = arith.constant 4.000000e+00 : f32
    %693 = arith.divf %692, %cst_301 : f32
    %cst_302 = arith.constant 5.000000e-01 : f32
    %694 = arith.mulf %cst_302, %693 : f32
    %cst_303 = arith.constant 12.865139 : f32
    %695 = arith.addf %694, %cst_303 : f32
    %c0_304 = arith.constant 0 : index
    %696 = memref.load %arg17[%c0_304] : memref<2xf32, #tpu.memory_space<smem>>
    memref.store %688, %arg17[%c0_304] : memref<2xf32, #tpu.memory_space<smem>>
    %c1_305 = arith.constant 1 : index
    %697 = memref.load %arg17[%c1_305] : memref<2xf32, #tpu.memory_space<smem>>
    memref.store %695, %arg17[%c1_305] : memref<2xf32, #tpu.memory_space<smem>>
    return
  }
}

</mosaic_0001>

<llo_original>
// kernel: tpu_custom_call.1
$region0: #{tpu_custom_call.1}
  #allocation0 [shape = 'u32[]', space=smem, size = 0x4, offset = 0x4, fixed_abs, tag = 'smem constant byte address 0x4 - core index']
  #allocation1 [shape = 'u32[144,128]{1,0:T(1,128)}', space=vmem, size = 0x12000, scoped, tag = 'internal scratch']
  #allocation2 [shape = 'f32[28,640]{1,0:T(8,128)}', space=vmem, size = 0x14000, scoped, tag = 'scratch operand']
  %s0 = inlined_call_operand.vmem [shape: f32[28,6], index: 0, kind: input, shape index: {}]
  %s1 = inlined_call_operand.vmem [shape: f32[7,4,2], index: 1, kind: input, shape index: {}]
  %s2 = inlined_call_operand.vmem [shape: f32[7,4,16], index: 2, kind: input, shape index: {}]
  %s3 = inlined_call_operand.hbm [shape: f32[6,32], index: 3, kind: input, shape index: {}]
  %s4 = inlined_call_operand.hbm [shape: f32[1,32], index: 4, kind: input, shape index: {}]
  %s5 = inlined_call_operand.vmem [shape: f32[32,640], index: 5, kind: input, shape index: {}]
  %s6 = inlined_call_operand.vmem [shape: f32[1,640], index: 6, kind: input, shape index: {}]
  %s7 = inlined_call_operand.vmem [shape: f32[32,640], index: 7, kind: input, shape index: {}]
  %s8 = inlined_call_operand.hbm [shape: f32[1,640], index: 8, kind: input, shape index: {}]
  %s9 = inlined_call_operand.vmem [shape: f32[256,64], index: 9, kind: input, shape index: {}]
  %s10 = inlined_call_operand.hbm [shape: f32[1,64], index: 10, kind: input, shape index: {}]
  %s11 = inlined_call_operand.hbm [shape: f32[16,16], index: 11, kind: input, shape index: {}]
  %s12 = inlined_call_operand.vmem [shape: f32[1,16], index: 12, kind: input, shape index: {}]
  %s13 = inlined_call_operand.vmem [shape: f32[16,640], index: 13, kind: input, shape index: {}]
  %s14 = inlined_call_operand.vmem [shape: f32[1,640], index: 14, kind: input, shape index: {}]
  %s15 = inlined_call_operand.vmem [shape: f32[64,4], index: 15, kind: input, shape index: {}]
  %s16 = inlined_call_operand.vmem [shape: f32[1,4], index: 16, kind: input, shape index: {}]
  %s17 = inlined_call_operand.hbm [shape: f32[2], index: 17, kind: output, shape index: {}]
  %s18 = sld [smem:[#allocation0]]
  $region98: #{tpu_custom_call.1} parent=0
    _
  %s20 = ssub.s32 1, %s18
  %s21 = scalar_select 0, %s20, %s18
  $region1: #{tpu_custom_call.1} parent=0
    #allocation3 [shape = 'u8[4096]{0}', space=vmem, size = 0x1000, scoped, tag = 'input window, operand 3, single buffered']
    #allocation4 [shape = 's32[1]{0}', space=sflag, size = 0x4, scoped, tag = 'scoped memory for tpu_custom_call.1']
    #allocation5 [shape = 's32[1]{0}', space=sflag, size = 0x4, scoped, tag = 'scoped memory for tpu_custom_call.1']
    #allocation6 [shape = 'u8[512]{0}', space=vmem, size = 0x400, scoped, tag = 'input window, operand 4, single buffered']
    #allocation7 [shape = 's32[1]{0}', space=sflag, size = 0x4, scoped, tag = 'scoped memory for tpu_custom_call.1']
    #allocation8 [shape = 'u8[2560]{0}', space=vmem, size = 0xc00, scoped, tag = 'input window, operand 8, single buffered']
    #allocation9 [shape = 'u8[512]{0}', space=vmem, size = 0x400, scoped, tag = 'input window, operand 10, single buffered']
    #allocation10 [shape = 's32[1]{0}', space=sflag, size = 0x4, scoped, tag = 'scoped memory for tpu_custom_call.1']
    #allocation11 [shape = 'u8[8192]{0}', space=vmem, size = 0x2000, scoped, tag = 'input window, operand 11, single buffered']
    #allocation12 [shape = 'u8[512]{0}', space=smem, size = 0x200, scoped, tag = 'output window, operand 0, single buffered']
    %22 = vsyncpa [#allocation4], 0
    %23 = vsyncpa [#allocation7], 0
    %24 = vsyncpa [#allocation10], 0
    %25 = vsyncpa [#allocation5], 0
    // Predicated region
    $region2: #{tpu_custom_call.1} parent=1 // pred_check
      _
    $region3: #{tpu_custom_call.1} parent=1 // pred_check_branch
      %27 = sbr.rel (0) target = $region5
    $region4: #{tpu_custom_call.1} parent=1 // pred_region
      _
    $region5: #{tpu_custom_call.1} parent=1 // pred_fallthru
      _
    // Predicated region
    $region6: #{tpu_custom_call.1} parent=1 // pred_check
      _
    $region7: #{tpu_custom_call.1} parent=1 // pred_check_branch
      %29 = sbr.rel (0) target = $region9
    $region8: #{tpu_custom_call.1} parent=1 // pred_region
      _
    $region9: #{tpu_custom_call.1} parent=1 // pred_fallthru
      _
    // Predicated region
    $region10: #{tpu_custom_call.1} parent=1 // pred_check
      _
    $region11: #{tpu_custom_call.1} parent=1 // pred_check_branch
      %31 = sbr.rel (0) target = $region13
    $region12: #{tpu_custom_call.1} parent=1 // pred_region
      _
    $region13: #{tpu_custom_call.1} parent=1 // pred_fallthru
      _
    // Predicated region
    $region14: #{tpu_custom_call.1} parent=1 // pred_check
      _
    $region15: #{tpu_custom_call.1} parent=1 // pred_check_branch
      %33 = sbr.rel (0) target = $region17
    $region16: #{tpu_custom_call.1} parent=1 // pred_region
      %s35 = ssub.s32 128, 128
      %36 = vsyncadd [#allocation4], %s35
      %s38 = sshll.u32 [#allocation3], 4
      %s39 = int_to_ptr.vmem [resolvable:$true] %s38
      %41 = dma.hbm_to_vmem [thread:$0]  %s3, 128, %s39, [#allocation4]
    $region17: #{tpu_custom_call.1} parent=1 // pred_fallthru
      _
    // Predicated region
    $region18: #{tpu_custom_call.1} parent=1 // pred_check
      _
    $region19: #{tpu_custom_call.1} parent=1 // pred_check_branch
      %43 = sbr.rel (0) target = $region21
    $region20: #{tpu_custom_call.1} parent=1 // pred_region
      %s45 = ssub.s32 16, 16
      %46 = vsyncadd [#allocation7], %s45
      %s48 = sshll.u32 [#allocation6], 4
      %s49 = int_to_ptr.vmem [resolvable:$true] %s48
      %51 = dma.hbm_to_vmem [thread:$0]  %s4, 16, %s49, [#allocation7]
    $region21: #{tpu_custom_call.1} parent=1 // pred_fallthru
      _
    // Predicated region
    $region22: #{tpu_custom_call.1} parent=1 // pred_check
      _
    $region23: #{tpu_custom_call.1} parent=1 // pred_check_branch
      %53 = sbr.rel (0) target = $region25
    $region24: #{tpu_custom_call.1} parent=1 // pred_region
      _
    $region25: #{tpu_custom_call.1} parent=1 // pred_fallthru
      _
    // Predicated region
    $region26: #{tpu_custom_call.1} parent=1 // pred_check
      _
    $region27: #{tpu_custom_call.1} parent=1 // pred_check_branch
      %55 = sbr.rel (0) target = $region29
    $region28: #{tpu_custom_call.1} parent=1 // pred_region
      _
    $region29: #{tpu_custom_call.1} parent=1 // pred_fallthru
      _
    // Predicated region
    $region30: #{tpu_custom_call.1} parent=1 // pred_check
      _
    $region31: #{tpu_custom_call.1} parent=1 // pred_check_branch
      %57 = sbr.rel (0) target = $region33
    $region32: #{tpu_custom_call.1} parent=1 // pred_region
      _
    $region33: #{tpu_custom_call.1} parent=1 // pred_fallthru
      _
    // Predicated region
    $region34: #{tpu_custom_call.1} parent=1 // pred_check
      _
    $region35: #{tpu_custom_call.1} parent=1 // pred_check_branch
      %59 = sbr.rel (0) target = $region37
    $region36: #{tpu_custom_call.1} parent=1 // pred_region
      %s61 = ssub.s32 80, 80
      %62 = vsyncadd [#allocation7], %s61
      %s64 = sshll.u32 [#allocation8], 4
      %s65 = int_to_ptr.vmem [resolvable:$true] %s64
      %67 = dma.hbm_to_vmem [thread:$0]  %s8, 80, %s65, [#allocation7]
    $region37: #{tpu_custom_call.1} parent=1 // pred_fallthru
      _
    // Predicated region
    $region38: #{tpu_custom_call.1} parent=1 // pred_check
      _
    $region39: #{tpu_custom_call.1} parent=1 // pred_check_branch
      %69 = sbr.rel (0) target = $region41
    $region40: #{tpu_custom_call.1} parent=1 // pred_region
      _
    $region41: #{tpu_custom_call.1} parent=1 // pred_fallthru
      _
    // Predicated region
    $region42: #{tpu_custom_call.1} parent=1 // pred_check
      _
    $region43: #{tpu_custom_call.1} parent=1 // pred_check_branch
      %71 = sbr.rel (0) target = $region45
    $region44: #{tpu_custom_call.1} parent=1 // pred_region
      %s73 = ssub.s32 16, 16
      %74 = vsyncadd [#allocation10], %s73
      %s76 = sshll.u32 [#allocation9], 4
      %s77 = int_to_ptr.vmem [resolvable:$true] %s76
      %79 = dma.hbm_to_vmem [thread:$0]  %s10, 16, %s77, [#allocation10]
    $region45: #{tpu_custom_call.1} parent=1 // pred_fallthru
      _
    // Predicated region
    $region46: #{tpu_custom_call.1} parent=1 // pred_check
      _
    $region47: #{tpu_custom_call.1} parent=1 // pred_check_branch
      %81 = sbr.rel (0) target = $region49
    $region48: #{tpu_custom_call.1} parent=1 // pred_region
      %s83 = ssub.s32 256, 256
      %84 = vsyncadd [#allocation10], %s83
      %s85 = sshll.u32 [#allocation11], 4
      %s86 = int_to_ptr.vmem [resolvable:$true] %s85
      %91 = dma.hbm_to_vmem [thread:$0]  %s11, 256, %s86, [#allocation10], 128, 128, 8
    $region49: #{tpu_custom_call.1} parent=1 // pred_fallthru
      _
    // Predicated region
    $region50: #{tpu_custom_call.1} parent=1 // pred_check
      _
    $region51: #{tpu_custom_call.1} parent=1 // pred_check_branch
      %93 = sbr.rel (0) target = $region53
    $region52: #{tpu_custom_call.1} parent=1 // pred_region
      _
    $region53: #{tpu_custom_call.1} parent=1 // pred_fallthru
      _
    // Predicated region
    $region54: #{tpu_custom_call.1} parent=1 // pred_check
      _
    $region55: #{tpu_custom_call.1} parent=1 // pred_check_branch
      %95 = sbr.rel (0) target = $region57
    $region56: #{tpu_custom_call.1} parent=1 // pred_region
      _
    $region57: #{tpu_custom_call.1} parent=1 // pred_fallthru
      _
    // Predicated region
    $region58: #{tpu_custom_call.1} parent=1 // pred_check
      _
    $region59: #{tpu_custom_call.1} parent=1 // pred_check_branch
      %97 = sbr.rel (0) target = $region61
    $region60: #{tpu_custom_call.1} parent=1 // pred_region
      _
    $region61: #{tpu_custom_call.1} parent=1 // pred_fallthru
      _
    // Predicated region
    $region62: #{tpu_custom_call.1} parent=1 // pred_check
      _
    $region63: #{tpu_custom_call.1} parent=1 // pred_check_branch
      %99 = sbr.rel (0) target = $region65
    $region64: #{tpu_custom_call.1} parent=1 // pred_region
      _
    $region65: #{tpu_custom_call.1} parent=1 // pred_fallthru
      _
    // Predicated region
    $region66: #{tpu_custom_call.1} parent=1 // pred_check
      _
    $region67: #{tpu_custom_call.1} parent=1 // pred_check_branch
      %101 = sbr.rel (0) target = $region69
    $region68: #{tpu_custom_call.1} parent=1 // pred_region
      _
    $region69: #{tpu_custom_call.1} parent=1 // pred_fallthru
      _
    // Predicated region
    $region70: #{tpu_custom_call.1} parent=1 // pred_check
      _
    $region71: #{tpu_custom_call.1} parent=1 // pred_check_branch
      %103 = sbr.rel (0) target = $region73
    $region72: #{tpu_custom_call.1} parent=1 // pred_region
      %104 = dma.done [#allocation4], 128
    $region73: #{tpu_custom_call.1} parent=1 // pred_fallthru
      _
    // Predicated region
    $region74: #{tpu_custom_call.1} parent=1 // pred_check
      _
    $region75: #{tpu_custom_call.1} parent=1 // pred_check_branch
      %106 = sbr.rel (0) target = $region77
    $region76: #{tpu_custom_call.1} parent=1 // pred_region
      %107 = dma.done [#allocation7], 16
    $region77: #{tpu_custom_call.1} parent=1 // pred_fallthru
      _
    // Predicated region
    $region78: #{tpu_custom_call.1} parent=1 // pred_check
      _
    $region79: #{tpu_custom_call.1} parent=1 // pred_check_branch
      %109 = sbr.rel (0) target = $region81
    $region80: #{tpu_custom_call.1} parent=1 // pred_region
      %110 = dma.done [#allocation7], 80
    $region81: #{tpu_custom_call.1} parent=1 // pred_fallthru
      _
    // Predicated region
    $region82: #{tpu_custom_call.1} parent=1 // pred_check
      _
    $region83: #{tpu_custom_call.1} parent=1 // pred_check_branch
      %112 = sbr.rel (0) target = $region85
    $region84: #{tpu_custom_call.1} parent=1 // pred_region
      %113 = dma.done [#allocation10], 16
    $region85: #{tpu_custom_call.1} parent=1 // pred_fallthru
      _
    // Predicated region
    $region86: #{tpu_custom_call.1} parent=1 // pred_check
      _
    $region87: #{tpu_custom_call.1} parent=1 // pred_check_branch
      %115 = sbr.rel (0) target = $region89
    $region88: #{tpu_custom_call.1} parent=1 // pred_region
      %116 = dma.done [#allocation10], 256
    $region89: #{tpu_custom_call.1} parent=1 // pred_fallthru
      _
    %v117 = vld [vmem:[%s0] sm:$0xff]
    %v118 = vld [vmem:[%s0 + $0x8] sm:$0xff]
    %v119 = vld [vmem:[%s0 + $0x10] sm:$0xff]
    %v120 = vld [vmem:[%s0 + $0x18] sm:$0xf]
    %v121 = vld [vmem:[#allocation3] sm:$0x3f]
    %v122 = vld [vmem:[#allocation6] sm:$0x1]
    %v124 = vlaneseq
    %v125 = vshrl.u32 %v124, 7
    %v126 = vsub.s32 0, %v125
    %v127 = vrot.slane %v122, %v126
    %vm129 = vcmask 48128
    %v131 = vsel %vm129, %v117, 0
    %v134 = vsel %vm129, %v118, 0
    %v137 = vsel %vm129, %v119, 0
    %v140 = vsel %vm129, %v120, 0
    %vm142 = vcmask 1045504
    %v144 = vsel %vm142, %v121, 0
    %146 = vmatprep.subr.mxu0 0.0
    %147 = vmatpush1.msra.mxu0 %v144
    %148 = vmatprep.subr.mxu0 0.0
    %149 = vmatpush1.msra.mxu0 0.0
    %150 = vmatprep.subr.mxu0 0.0
    %151 = vmatpush1.msra.mxu0 0.0
    %152 = vmatprep.subr.mxu0 0.0
    %153 = vmatpush1.msra.mxu0 0.0
    %154 = vmatprep.subr.mxu0 0.0
    %155 = vmatpush1.msra.mxu0 0.0
    %156 = vmatprep.subr.mxu0 0.0
    %157 = vmatpush1.msra.mxu0 0.0
    %158 = vmatprep.subr.mxu0 0.0
    %159 = vmatpush1.msra.mxu0 0.0
    %160 = vmatprep.subr.mxu0 0.0
    %161 = vmatpush1.msra.mxu0 0.0
    %162 = vmatprep.subr.mxu0 0.0
    %163 = vmatpush1.msra.mxu0 0.0
    %164 = vmatprep.subr.mxu0 0.0
    %165 = vmatpush1.msra.mxu0 0.0
    %166 = vmatprep.subr.mxu0 0.0
    %167 = vmatpush1.msra.mxu0 0.0
    %168 = vmatprep.subr.mxu0 0.0
    %169 = vmatpush1.msra.mxu0 0.0
    %170 = vmatprep.subr.mxu0 0.0
    %171 = vmatpush1.msra.mxu0 0.0
    %172 = vmatprep.subr.mxu0 0.0
    %173 = vmatpush1.msra.mxu0 0.0
    %174 = vmatprep.subr.mxu0 0.0
    %175 = vmatpush1.msra.mxu0 0.0
    %176 = vmatprep.subr.mxu0 0.0
    %177 = vmatpush1.msra.mxu0 0.0
    %178 = vmatprep.subr.mxu0 0.0
    %179 = vmatpush1.msra.mxu0 0.0
    %180 = vmatprep.subr.mxu0 0.0
    %181 = vmatpush1.msra.mxu0 0.0
    %182 = vmatprep.subr.mxu0 0.0
    %183 = vmatpush1.msra.mxu0 0.0
    %184 = vmatprep.subr.mxu0 0.0
    %185 = vmatpush1.msra.mxu0 0.0
    %186 = vmatprep.subr.mxu0 0.0
    %187 = vmatpush1.msra.mxu0 0.0
    %188 = vmatprep.subr.mxu0 0.0
    %189 = vmatpush1.msra.mxu0 0.0
    %190 = vmatprep.subr.mxu0 0.0
    %191 = vmatpush1.msra.mxu0 0.0
    %192 = vmatprep.subr.mxu0 0.0
    %193 = vmatpush1.msra.mxu0 0.0
    %194 = vmatprep.subr.mxu0 0.0
    %195 = vmatpush1.msra.mxu0 0.0
    %196 = vmatprep.subr.mxu0 0.0
    %197 = vmatpush1.msra.mxu0 0.0
    %198 = vmatprep.subr.mxu0 0.0
    %199 = vmatpush1.msra.mxu0 0.0
    %200 = vmatprep.subr.mxu0 0.0
    %201 = vmatpush1.msra.mxu0 0.0
    %202 = vmatprep.subr.mxu0 0.0
    %203 = vmatpush1.msra.mxu0 0.0
    %204 = vmatprep.subr.mxu0 0.0
    %205 = vmatpush1.msra.mxu0 0.0
    %206 = vmatprep.subr.mxu0 0.0
    %207 = vmatpush1.msra.mxu0 0.0
    %208 = vmatprep.subr.mxu0 0.0
    %209 = vmatpush1.msra.mxu0 0.0
    %210 = vmatprep.mubr.f32.mxu0 0.0
    %211 = vmatmul.mubr.f32.gmra.mrb[0].mxu0 %v131
    %v212 = vpop.f32.mrb[0].mxu0
    %v213 = vadd.f32 %v127, %v212
    %v214 = vpop.f32.mrb[0].mxu0
    %215 = vmatprep.mubr.f32.mxu0 0.0
    %216 = vmatmul.mubr.f32.gmra.mrb[0].mxu0 %v134
    %v217 = vpop.f32.mrb[0].mxu0
    %v218 = vadd.f32 %v127, %v217
    %v219 = vpop.f32.mrb[0].mxu0
    %220 = vmatprep.mubr.f32.mxu0 0.0
    %221 = vmatmul.mubr.f32.gmra.mrb[0].mxu0 %v137
    %v222 = vpop.f32.mrb[0].mxu0
    %v223 = vadd.f32 %v127, %v222
    %v224 = vpop.f32.mrb[0].mxu0
    %225 = vmatprep.mubr.f32.mxu0 0.0
    %226 = vmatmul.mubr.f32.gmra.mrb[0].mxu0 %v140
    %v227 = vpop.f32.mrb[0].mxu0
    %v228 = vadd.f32 %v127, %v227
    %v229 = vpop.f32.mrb[0].mxu0
    %230 = vdwg.mxu0
    %v231 = vmax.f32 %v213, 0.0
    %v232 = vmax.f32 %v218, 0.0
    %v233 = vmax.f32 %v223, 0.0
    %v234 = vmax.f32 %v228, 0.0
    %v235 = vld [vmem:[%s5] sm:$0xff]
    %v236 = vld [vmem:[%s5 + $0x8] sm:$0xff]
    %v237 = vld [vmem:[%s5 + $0x10] sm:$0xff]
    %v238 = vld [vmem:[%s5 + $0x18] sm:$0xff]
    %v239 = vld [vmem:[%s5 + $0x20] sm:$0xff]
    %v240 = vld [vmem:[%s5 + $0x28] sm:$0xff]
    %v241 = vld [vmem:[%s5 + $0x30] sm:$0xff]
    %v242 = vld [vmem:[%s5 + $0x38] sm:$0xff]
    %v243 = vld [vmem:[%s5 + $0x40] sm:$0xff]
    %v244 = vld [vmem:[%s5 + $0x48] sm:$0xff]
    %v245 = vld [vmem:[%s5 + $0x50] sm:$0xff]
    %v246 = vld [vmem:[%s5 + $0x58] sm:$0xff]
    %v247 = vld [vmem:[%s5 + $0x60] sm:$0xff]
    %v248 = vld [vmem:[%s5 + $0x68] sm:$0xff]
    %v249 = vld [vmem:[%s5 + $0x70] sm:$0xff]
    %v250 = vld [vmem:[%s5 + $0x78] sm:$0xff]
    %v251 = vld [vmem:[%s5 + $0x80] sm:$0xff]
    %v252 = vld [vmem:[%s5 + $0x88] sm:$0xff]
    %v253 = vld [vmem:[%s5 + $0x90] sm:$0xff]
    %v254 = vld [vmem:[%s5 + $0x98] sm:$0xff]
    %v255 = vld [vmem:[%s6] sm:$0x1f]
    %v257 = vlaneseq
    %v258 = vshrl.u32 %v257, 7
    %v259 = vsub.s32 0, %v258
    %v260 = vrot.slane %v255, %v259
    %v261 = vlaneseq
    %v262 = vshrl.u32 %v261, 7
    %v263 = vsub.s32 1, %v262
    %v264 = vrot.slane %v255, %v263
    %v265 = vlaneseq
    %v266 = vshrl.u32 %v265, 7
    %v267 = vsub.s32 2, %v266
    %v268 = vrot.slane %v255, %v267
    %v269 = vlaneseq
    %v270 = vshrl.u32 %v269, 7
    %v271 = vsub.s32 3, %v270
    %v272 = vrot.slane %v255, %v271
    %v273 = vlaneseq
    %v274 = vshrl.u32 %v273, 7
    %v275 = vsub.s32 4, %v274
    %v276 = vrot.slane %v255, %v275
    %vm282 = vcmask 261120
    %v284 = vsel %vm282, %v231, 0
    %v287 = vsel %vm282, %v232, 0
    %v290 = vsel %vm282, %v233, 0
    %v293 = vsel %vm282, %v234, 0
    %295 = vmatprep.subr.mxu0 %v236
    %296 = vmatpush1.msra.mxu0 %v235
    %297 = vmatprep.subr.mxu0 %v241
    %298 = vmatpush1.msra.mxu0 %v240
    %299 = vmatprep.subr.mxu0 %v246
    %300 = vmatpush1.msra.mxu0 %v245
    %301 = vmatprep.subr.mxu0 %v251
    %302 = vmatpush1.msra.mxu0 %v250
    %303 = vmatprep.subr.mxu0 0.0
    %304 = vmatpush1.msra.mxu0 0.0
    %305 = vmatprep.subr.mxu0 0.0
    %306 = vmatpush1.msra.mxu0 0.0
    %307 = vmatprep.subr.mxu0 0.0
    %308 = vmatpush1.msra.mxu0 0.0
    %309 = vmatprep.subr.mxu0 0.0
    %310 = vmatpush1.msra.mxu0 0.0
    %311 = vmatprep.subr.mxu0 0.0
    %312 = vmatpush1.msra.mxu0 0.0
    %313 = vmatprep.subr.mxu0 0.0
    %314 = vmatpush1.msra.mxu0 0.0
    %315 = vmatprep.subr.mxu0 0.0
    %316 = vmatpush1.msra.mxu0 0.0
    %317 = vmatprep.subr.mxu0 0.0
    %318 = vmatpush1.msra.mxu0 0.0
    %319 = vmatprep.subr.mxu0 0.0
    %320 = vmatpush1.msra.mxu0 0.0
    %321 = vmatprep.subr.mxu0 0.0
    %322 = vmatpush1.msra.mxu0 0.0
    %323 = vmatprep.subr.mxu0 0.0
    %324 = vmatpush1.msra.mxu0 0.0
    %325 = vmatprep.subr.mxu0 0.0
    %326 = vmatpush1.msra.mxu0 0.0
    %327 = vmatprep.subr.mxu0 0.0
    %328 = vmatpush1.msra.mxu0 0.0
    %329 = vmatprep.subr.mxu0 0.0
    %330 = vmatpush1.msra.mxu0 0.0
    %331 = vmatprep.subr.mxu0 0.0
    %332 = vmatpush1.msra.mxu0 0.0
    %333 = vmatprep.subr.mxu0 0.0
    %334 = vmatpush1.msra.mxu0 0.0
    %335 = vmatprep.subr.mxu0 0.0
    %336 = vmatpush1.msra.mxu0 0.0
    %337 = vmatprep.subr.mxu0 0.0
    %338 = vmatpush1.msra.mxu0 0.0
    %339 = vmatprep.subr.mxu0 0.0
    %340 = vmatpush1.msra.mxu0 0.0
    %341 = vmatprep.subr.mxu0 0.0
    %342 = vmatpush1.msra.mxu0 0.0
    %343 = vmatprep.subr.mxu0 0.0
    %344 = vmatpush1.msra.mxu0 0.0
    %345 = vmatprep.subr.mxu0 0.0
    %346 = vmatpush1.msra.mxu0 0.0
    %347 = vmatprep.subr.mxu0 0.0
    %348 = vmatpush1.msra.mxu0 0.0
    %349 = vmatprep.subr.mxu0 0.0
    %350 = vmatpush1.msra.mxu0 0.0
    %351 = vmatprep.subr.mxu0 0.0
    %352 = vmatpush1.msra.mxu0 0.0
    %353 = vmatprep.subr.mxu0 0.0
    %354 = vmatpush1.msra.mxu0 0.0
    %355 = vmatprep.subr.mxu0 0.0
    %356 = vmatpush1.msra.mxu0 0.0
    %357 = vmatprep.subr.mxu0 0.0
    %358 = vmatpush1.msra.mxu0 0.0
    %359 = vmatprep.mubr.f32.mxu0 0.0
    %360 = vmatmul.mubr.f32.gmra.mrb[0].mxu0 %v284
    %v361 = vpop.f32.mrb[0].mxu0
    %v362 = vadd.f32 %v260, %v361
    %v363 = vpop.f32.mrb[0].mxu0
    %v364 = vadd.f32 %v264, %v363
    %365 = vmatprep.mubr.f32.mxu0 0.0
    %366 = vmatmul.mubr.f32.gmra.mrb[0].mxu0 %v287
    %v367 = vpop.f32.mrb[0].mxu0
    %v368 = vadd.f32 %v260, %v367
    %v369 = vpop.f32.mrb[0].mxu0
    %v370 = vadd.f32 %v264, %v369
    %371 = vmatprep.mubr.f32.mxu0 0.0
    %372 = vmatmul.mubr.f32.gmra.mrb[0].mxu0 %v290
    %v373 = vpop.f32.mrb[0].mxu0
    %v374 = vadd.f32 %v260, %v373
    %v375 = vpop.f32.mrb[0].mxu0
    %v376 = vadd.f32 %v264, %v375
    %377 = vmatprep.mubr.f32.mxu0 0.0
    %378 = vmatmul.mubr.f32.gmra.mrb[0].mxu0 %v293
    %v379 = vpop.f32.mrb[0].mxu0
    %v380 = vadd.f32 %v260, %v379
    %v381 = vpop.f32.mrb[0].mxu0
    %v382 = vadd.f32 %v264, %v381
    %383 = vdwg.mxu0
    %384 = vmatprep.subr.mxu0 %v238
    %385 = vmatpush1.msra.mxu0 %v237
    %386 = vmatprep.subr.mxu0 %v243
    %387 = vmatpush1.msra.mxu0 %v242
    %388 = vmatprep.subr.mxu0 %v248
    %389 = vmatpush1.msra.mxu0 %v247
    %390 = vmatprep.subr.mxu0 %v253
    %391 = vmatpush1.msra.mxu0 %v252
    %392 = vmatprep.subr.mxu0 0.0
    %393 = vmatpush1.msra.mxu0 0.0
    %394 = vmatprep.subr.mxu0 0.0
    %395 = vmatpush1.msra.mxu0 0.0
    %396 = vmatprep.subr.mxu0 0.0
    %397 = vmatpush1.msra.mxu0 0.0
    %398 = vmatprep.subr.mxu0 0.0
    %399 = vmatpush1.msra.mxu0 0.0
    %400 = vmatprep.subr.mxu0 0.0
    %401 = vmatpush1.msra.mxu0 0.0
    %402 = vmatprep.subr.mxu0 0.0
    %403 = vmatpush1.msra.mxu0 0.0
    %404 = vmatprep.subr.mxu0 0.0
    %405 = vmatpush1.msra.mxu0 0.0
    %406 = vmatprep.subr.mxu0 0.0
    %407 = vmatpush1.msra.mxu0 0.0
    %408 = vmatprep.subr.mxu0 0.0
    %409 = vmatpush1.msra.mxu0 0.0
    %410 = vmatprep.subr.mxu0 0.0
    %411 = vmatpush1.msra.mxu0 0.0
    %412 = vmatprep.subr.mxu0 0.0
    %413 = vmatpush1.msra.mxu0 0.0
    %414 = vmatprep.subr.mxu0 0.0
    %415 = vmatpush1.msra.mxu0 0.0
    %416 = vmatprep.subr.mxu0 0.0
    %417 = vmatpush1.msra.mxu0 0.0
    %418 = vmatprep.subr.mxu0 0.0
    %419 = vmatpush1.msra.mxu0 0.0
    %420 = vmatprep.subr.mxu0 0.0
    %421 = vmatpush1.msra.mxu0 0.0
    %422 = vmatprep.subr.mxu0 0.0
    %423 = vmatpush1.msra.mxu0 0.0
    %424 = vmatprep.subr.mxu0 0.0
    %425 = vmatpush1.msra.mxu0 0.0
    %426 = vmatprep.subr.mxu0 0.0
    %427 = vmatpush1.msra.mxu0 0.0
    %428 = vmatprep.subr.mxu0 0.0
    %429 = vmatpush1.msra.mxu0 0.0
    %430 = vmatprep.subr.mxu0 0.0
    %431 = vmatpush1.msra.mxu0 0.0
    %432 = vmatprep.subr.mxu0 0.0
    %433 = vmatpush1.msra.mxu0 0.0
    %434 = vmatprep.subr.mxu0 0.0
    %435 = vmatpush1.msra.mxu0 0.0
    %436 = vmatprep.subr.mxu0 0.0
    %437 = vmatpush1.msra.mxu0 0.0
    %438 = vmatprep.subr.mxu0 0.0
    %439 = vmatpush1.msra.mxu0 0.0
    %440 = vmatprep.subr.mxu0 0.0
    %441 = vmatpush1.msra.mxu0 0.0
    %442 = vmatprep.subr.mxu0 0.0
    %443 = vmatpush1.msra.mxu0 0.0
    %444 = vmatprep.subr.mxu0 0.0
    %445 = vmatpush1.msra.mxu0 0.0
    %446 = vmatprep.subr.mxu0 0.0
    %447 = vmatpush1.msra.mxu0 0.0
    %448 = vmatprep.mubr.f32.mxu0 0.0
    %449 = vmatmul.mubr.f32.gmra.mrb[0].mxu0 %v284
    %v450 = vpop.f32.mrb[0].mxu0
    %v451 = vadd.f32 %v268, %v450
    %v452 = vpop.f32.mrb[0].mxu0
    %v453 = vadd.f32 %v272, %v452
    %454 = vmatprep.mubr.f32.mxu0 0.0
    %455 = vmatmul.mubr.f32.gmra.mrb[0].mxu0 %v287
    %v456 = vpop.f32.mrb[0].mxu0
    %v457 = vadd.f32 %v268, %v456
    %v458 = vpop.f32.mrb[0].mxu0
    %v459 = vadd.f32 %v272, %v458
    %460 = vmatprep.mubr.f32.mxu0 0.0
    %461 = vmatmul.mubr.f32.gmra.mrb[0].mxu0 %v290
    %v462 = vpop.f32.mrb[0].mxu0
    %v463 = vadd.f32 %v268, %v462
    %v464 = vpop.f32.mrb[0].mxu0
    %v465 = vadd.f32 %v272, %v464
    %466 = vmatprep.mubr.f32.mxu0 0.0
    %467 = vmatmul.mubr.f32.gmra.mrb[0].mxu0 %v293
    %v468 = vpop.f32.mrb[0].mxu0
    %v469 = vadd.f32 %v268, %v468
    %v470 = vpop.f32.mrb[0].mxu0
    %v471 = vadd.f32 %v272, %v470
    %472 = vdwg.mxu0
    %473 = vmatprep.subr.mxu0 0.0
    %474 = vmatpush1.msra.mxu0 %v239
    %475 = vmatprep.subr.mxu0 0.0
    %476 = vmatpush1.msra.mxu0 %v244
    %477 = vmatprep.subr.mxu0 0.0
    %478 = vmatpush1.msra.mxu0 %v249
    %479 = vmatprep.subr.mxu0 0.0
    %480 = vmatpush1.msra.mxu0 %v254
    %481 = vmatprep.subr.mxu0 0.0
    %482 = vmatpush1.msra.mxu0 0.0
    %483 = vmatprep.subr.mxu0 0.0
    %484 = vmatpush1.msra.mxu0 0.0
    %485 = vmatprep.subr.mxu0 0.0
    %486 = vmatpush1.msra.mxu0 0.0
    %487 = vmatprep.subr.mxu0 0.0
    %488 = vmatpush1.msra.mxu0 0.0
    %489 = vmatprep.subr.mxu0 0.0
    %490 = vmatpush1.msra.mxu0 0.0
    %491 = vmatprep.subr.mxu0 0.0
    %492 = vmatpush1.msra.mxu0 0.0
    %493 = vmatprep.subr.mxu0 0.0
    %494 = vmatpush1.msra.mxu0 0.0
    %495 = vmatprep.subr.mxu0 0.0
    %496 = vmatpush1.msra.mxu0 0.0
    %497 = vmatprep.subr.mxu0 0.0
    %498 = vmatpush1.msra.mxu0 0.0
    %499 = vmatprep.subr.mxu0 0.0
    %500 = vmatpush1.msra.mxu0 0.0
    %501 = vmatprep.subr.mxu0 0.0
    %502 = vmatpush1.msra.mxu0 0.0
    %503 = vmatprep.subr.mxu0 0.0
    %504 = vmatpush1.msra.mxu0 0.0
    %505 = vmatprep.subr.mxu0 0.0
    %506 = vmatpush1.msra.mxu0 0.0
    %507 = vmatprep.subr.mxu0 0.0
    %508 = vmatpush1.msra.mxu0 0.0
    %509 = vmatprep.subr.mxu0 0.0
    %510 = vmatpush1.msra.mxu0 0.0
    %511 = vmatprep.subr.mxu0 0.0
    %512 = vmatpush1.msra.mxu0 0.0
    %513 = vmatprep.subr.mxu0 0.0
    %514 = vmatpush1.msra.mxu0 0.0
    %515 = vmatprep.subr.mxu0 0.0
    %516 = vmatpush1.msra.mxu0 0.0
    %517 = vmatprep.subr.mxu0 0.0
    %518 = vmatpush1.msra.mxu0 0.0
    %519 = vmatprep.subr.mxu0 0.0
    %520 = vmatpush1.msra.mxu0 0.0
    %521 = vmatprep.subr.mxu0 0.0
    %522 = vmatpush1.msra.mxu0 0.0
    %523 = vmatprep.subr.mxu0 0.0
    %524 = vmatpush1.msra.mxu0 0.0
    %525 = vmatprep.subr.mxu0 0.0
    %526 = vmatpush1.msra.mxu0 0.0
    %527 = vmatprep.subr.mxu0 0.0
    %528 = vmatpush1.msra.mxu0 0.0
    %529 = vmatprep.subr.mxu0 0.0
    %530 = vmatpush1.msra.mxu0 0.0
    %531 = vmatprep.subr.mxu0 0.0
    %532 = vmatpush1.msra.mxu0 0.0
    %533 = vmatprep.subr.mxu0 0.0
    %534 = vmatpush1.msra.mxu0 0.0
    %535 = vmatprep.subr.mxu0 0.0
    %536 = vmatpush1.msra.mxu0 0.0
    %537 = vmatprep.mubr.f32.mxu0 0.0
    %538 = vmatmul.mubr.f32.gmra.mrb[0].mxu0 %v284
    %v539 = vpop.f32.mrb[0].mxu0
    %v540 = vadd.f32 %v276, %v539
    %v541 = vpop.f32.mrb[0].mxu0
    %542 = vmatprep.mubr.f32.mxu0 0.0
    %543 = vmatmul.mubr.f32.gmra.mrb[0].mxu0 %v287
    %v544 = vpop.f32.mrb[0].mxu0
    %v545 = vadd.f32 %v276, %v544
    %v546 = vpop.f32.mrb[0].mxu0
    %547 = vmatprep.mubr.f32.mxu0 0.0
    %548 = vmatmul.mubr.f32.gmra.mrb[0].mxu0 %v290
    %v549 = vpop.f32.mrb[0].mxu0
    %v550 = vadd.f32 %v276, %v549
    %v551 = vpop.f32.mrb[0].mxu0
    %552 = vmatprep.mubr.f32.mxu0 0.0
    %553 = vmatmul.mubr.f32.gmra.mrb[0].mxu0 %v293
    %v554 = vpop.f32.mrb[0].mxu0
    %v555 = vadd.f32 %v276, %v554
    %v556 = vpop.f32.mrb[0].mxu0
    %557 = vdwg.mxu0
    %558 = vst [vmem:[#allocation2] sm:$0xff] %v362
    %559 = vst [vmem:[#allocation2 + $0x8] sm:$0xff] %v364
    %560 = vst [vmem:[#allocation2 + $0x10] sm:$0xff] %v451
    %561 = vst [vmem:[#allocation2 + $0x18] sm:$0xff] %v453
    %562 = vst [vmem:[#allocation2 + $0x20] sm:$0xff] %v540
    %563 = vst [vmem:[#allocation2 + $0x28] sm:$0xff] %v368
    %564 = vst [vmem:[#allocation2 + $0x30] sm:$0xff] %v370
    %565 = vst [vmem:[#allocation2 + $0x38] sm:$0xff] %v457
    %566 = vst [vmem:[#allocation2 + $0x40] sm:$0xff] %v459
    %567 = vst [vmem:[#allocation2 + $0x48] sm:$0xff] %v545
    %568 = vst [vmem:[#allocation2 + $0x50] sm:$0xff] %v374
    %569 = vst [vmem:[#allocation2 + $0x58] sm:$0xff] %v376
    %570 = vst [vmem:[#allocation2 + $0x60] sm:$0xff] %v463
    %571 = vst [vmem:[#allocation2 + $0x68] sm:$0xff] %v465
    %572 = vst [vmem:[#allocation2 + $0x70] sm:$0xff] %v550
    %573 = vst [vmem:[#allocation2 + $0x78] sm:$0xf] %v380
    %574 = vst [vmem:[#allocation2 + $0x80] sm:$0xf] %v382
    %575 = vst [vmem:[#allocation2 + $0x88] sm:$0xf] %v469
    %576 = vst [vmem:[#allocation2 + $0x90] sm:$0xf] %v471
    %577 = vst [vmem:[#allocation2 + $0x98] sm:$0xf] %v555
    %v578 = vld [vmem:[#allocation2] sm:$0xf]
    %v579 = vld [vmem:[#allocation2 + $0x8] sm:$0xf]
    %v580 = vld [vmem:[#allocation2 + $0x10] sm:$0xf]
    %v581 = vld [vmem:[#allocation2 + $0x18] sm:$0xf]
    %v582 = vld [vmem:[#allocation2 + $0x20] sm:$0xf]
    %v583 = vld [vmem:[%s7] sm:$0xff]
    %v584 = vld [vmem:[%s7 + $0x8] sm:$0xff]
    %v585 = vld [vmem:[%s7 + $0x10] sm:$0xff]
    %v586 = vld [vmem:[%s7 + $0x18] sm:$0xff]
    %v587 = vld [vmem:[%s7 + $0x20] sm:$0xff]
    %v588 = vld [vmem:[%s7 + $0x28] sm:$0xff]
    %v589 = vld [vmem:[%s7 + $0x30] sm:$0xff]
    %v590 = vld [vmem:[%s7 + $0x38] sm:$0xff]
    %v591 = vld [vmem:[%s7 + $0x40] sm:$0xff]
    %v592 = vld [vmem:[%s7 + $0x48] sm:$0xff]
    %v593 = vld [vmem:[%s7 + $0x50] sm:$0xff]
    %v594 = vld [vmem:[%s7 + $0x58] sm:$0xff]
    %v595 = vld [vmem:[%s7 + $0x60] sm:$0xff]
    %v596 = vld [vmem:[%s7 + $0x68] sm:$0xff]
    %v597 = vld [vmem:[%s7 + $0x70] sm:$0xff]
    %v598 = vld [vmem:[%s7 + $0x78] sm:$0xff]
    %v599 = vld [vmem:[%s7 + $0x80] sm:$0xff]
    %v600 = vld [vmem:[%s7 + $0x88] sm:$0xff]
    %v601 = vld [vmem:[%s7 + $0x90] sm:$0xff]
    %v602 = vld [vmem:[%s7 + $0x98] sm:$0xff]
    %v604 = vsel %vm282, 0.0, 0
    %606 = vmatprep.subr.mxu0 %v584
    %607 = vmatpush1.msra.mxu0 %v583
    %608 = vmatprep.subr.mxu0 %v589
    %609 = vmatpush1.msra.mxu0 %v588
    %610 = vmatprep.subr.mxu0 %v594
    %611 = vmatpush1.msra.mxu0 %v593
    %612 = vmatprep.subr.mxu0 %v599
    %613 = vmatpush1.msra.mxu0 %v598
    %614 = vmatprep.subr.mxu0 0.0
    %615 = vmatpush1.msra.mxu0 0.0
    %616 = vmatprep.subr.mxu0 0.0
    %617 = vmatpush1.msra.mxu0 0.0
    %618 = vmatprep.subr.mxu0 0.0
    %619 = vmatpush1.msra.mxu0 0.0
    %620 = vmatprep.subr.mxu0 0.0
    %621 = vmatpush1.msra.mxu0 0.0
    %622 = vmatprep.subr.mxu0 0.0
    %623 = vmatpush1.msra.mxu0 0.0
    %624 = vmatprep.subr.mxu0 0.0
    %625 = vmatpush1.msra.mxu0 0.0
    %626 = vmatprep.subr.mxu0 0.0
    %627 = vmatpush1.msra.mxu0 0.0
    %628 = vmatprep.subr.mxu0 0.0
    %629 = vmatpush1.msra.mxu0 0.0
    %630 = vmatprep.subr.mxu0 0.0
    %631 = vmatpush1.msra.mxu0 0.0
    %632 = vmatprep.subr.mxu0 0.0
    %633 = vmatpush1.msra.mxu0 0.0
    %634 = vmatprep.subr.mxu0 0.0
    %635 = vmatpush1.msra.mxu0 0.0
    %636 = vmatprep.subr.mxu0 0.0
    %637 = vmatpush1.msra.mxu0 0.0
    %638 = vmatprep.subr.mxu0 0.0
    %639 = vmatpush1.msra.mxu0 0.0
    %640 = vmatprep.subr.mxu0 0.0
    %641 = vmatpush1.msra.mxu0 0.0
    %642 = vmatprep.subr.mxu0 0.0
    %643 = vmatpush1.msra.mxu0 0.0
    %644 = vmatprep.subr.mxu0 0.0
    %645 = vmatpush1.msra.mxu0 0.0
    %646 = vmatprep.subr.mxu0 0.0
    %647 = vmatpush1.msra.mxu0 0.0
    %648 = vmatprep.subr.mxu0 0.0
    %649 = vmatpush1.msra.mxu0 0.0
    %650 = vmatprep.subr.mxu0 0.0
    %651 = vmatpush1.msra.mxu0 0.0
    %652 = vmatprep.subr.mxu0 0.0
    %653 = vmatpush1.msra.mxu0 0.0
    %654 = vmatprep.subr.mxu0 0.0
    %655 = vmatpush1.msra.mxu0 0.0
    %656 = vmatprep.subr.mxu0 0.0
    %657 = vmatpush1.msra.mxu0 0.0
    %658 = vmatprep.subr.mxu0 0.0
    %659 = vmatpush1.msra.mxu0 0.0
    %660 = vmatprep.subr.mxu0 0.0
    %661 = vmatpush1.msra.mxu0 0.0
    %662 = vmatprep.subr.mxu0 0.0
    %663 = vmatpush1.msra.mxu0 0.0
    %664 = vmatprep.subr.mxu0 0.0
    %665 = vmatpush1.msra.mxu0 0.0
    %666 = vmatprep.subr.mxu0 0.0
    %667 = vmatpush1.msra.mxu0 0.0
    %668 = vmatprep.subr.mxu0 0.0
    %669 = vmatpush1.msra.mxu0 0.0
    %670 = vmatprep.mubr.f32.mxu0 0.0
    %671 = vmatmul.mubr.f32.gmra.mrb[0].mxu0 %v604
    %v672 = vpop.f32.mrb[0].mxu0
    %v673 = vadd.f32 0.0, %v672
    %v674 = vpop.f32.mrb[0].mxu0
    %v675 = vadd.f32 0.0, %v674
    %676 = vdwg.mxu0
    %677 = vmatprep.subr.mxu0 %v586
    %678 = vmatpush1.msra.mxu0 %v585
    %679 = vmatprep.subr.mxu0 %v591
    %680 = vmatpush1.msra.mxu0 %v590
    %681 = vmatprep.subr.mxu0 %v596
    %682 = vmatpush1.msra.mxu0 %v595
    %683 = vmatprep.subr.mxu0 %v601
    %684 = vmatpush1.msra.mxu0 %v600
    %685 = vmatprep.subr.mxu0 0.0
    %686 = vmatpush1.msra.mxu0 0.0
    %687 = vmatprep.subr.mxu0 0.0
    %688 = vmatpush1.msra.mxu0 0.0
    %689 = vmatprep.subr.mxu0 0.0
    %690 = vmatpush1.msra.mxu0 0.0
    %691 = vmatprep.subr.mxu0 0.0
    %692 = vmatpush1.msra.mxu0 0.0
    %693 = vmatprep.subr.mxu0 0.0
    %694 = vmatpush1.msra.mxu0 0.0
    %695 = vmatprep.subr.mxu0 0.0
    %696 = vmatpush1.msra.mxu0 0.0
    %697 = vmatprep.subr.mxu0 0.0
    %698 = vmatpush1.msra.mxu0 0.0
    %699 = vmatprep.subr.mxu0 0.0
    %700 = vmatpush1.msra.mxu0 0.0
    %701 = vmatprep.subr.mxu0 0.0
    %702 = vmatpush1.msra.mxu0 0.0
    %703 = vmatprep.subr.mxu0 0.0
    %704 = vmatpush1.msra.mxu0 0.0
    %705 = vmatprep.subr.mxu0 0.0
    %706 = vmatpush1.msra.mxu0 0.0
    %707 = vmatprep.subr.mxu0 0.0
    %708 = vmatpush1.msra.mxu0 0.0
    %709 = vmatprep.subr.mxu0 0.0
    %710 = vmatpush1.msra.mxu0 0.0
    %711 = vmatprep.subr.mxu0 0.0
    %712 = vmatpush1.msra.mxu0 0.0
    %713 = vmatprep.subr.mxu0 0.0
    %714 = vmatpush1.msra.mxu0 0.0
    %715 = vmatprep.subr.mxu0 0.0
    %716 = vmatpush1.msra.mxu0 0.0
    %717 = vmatprep.subr.mxu0 0.0
    %718 = vmatpush1.msra.mxu0 0.0
    %719 = vmatprep.subr.mxu0 0.0
    %720 = vmatpush1.msra.mxu0 0.0
    %721 = vmatprep.subr.mxu0 0.0
    %722 = vmatpush1.msra.mxu0 0.0
    %723 = vmatprep.subr.mxu0 0.0
    %724 = vmatpush1.msra.mxu0 0.0
    %725 = vmatprep.subr.mxu0 0.0
    %726 = vmatpush1.msra.mxu0 0.0
    %727 = vmatprep.subr.mxu0 0.0
    %728 = vmatpush1.msra.mxu0 0.0
    %729 = vmatprep.subr.mxu0 0.0
    %730 = vmatpush1.msra.mxu0 0.0
    %731 = vmatprep.subr.mxu0 0.0
    %732 = vmatpush1.msra.mxu0 0.0
    %733 = vmatprep.subr.mxu0 0.0
    %734 = vmatpush1.msra.mxu0 0.0
    %735 = vmatprep.subr.mxu0 0.0
    %736 = vmatpush1.msra.mxu0 0.0
    %737 = vmatprep.subr.mxu0 0.0
    %738 = vmatpush1.msra.mxu0 0.0
    %739 = vmatprep.subr.mxu0 0.0
    %740 = vmatpush1.msra.mxu0 0.0
    %741 = vmatprep.mubr.f32.mxu0 0.0
    %742 = vmatmul.mubr.f32.gmra.mrb[0].mxu0 %v604
    %v743 = vpop.f32.mrb[0].mxu0
    %v744 = vadd.f32 0.0, %v743
    %v745 = vpop.f32.mrb[0].mxu0
    %v746 = vadd.f32 0.0, %v745
    %747 = vdwg.mxu0
    %748 = vmatprep.subr.mxu0 0.0
    %749 = vmatpush1.msra.mxu0 %v587
    %750 = vmatprep.subr.mxu0 0.0
    %751 = vmatpush1.msra.mxu0 %v592
    %752 = vmatprep.subr.mxu0 0.0
    %753 = vmatpush1.msra.mxu0 %v597
    %754 = vmatprep.subr.mxu0 0.0
    %755 = vmatpush1.msra.mxu0 %v602
    %756 = vmatprep.subr.mxu0 0.0
    %757 = vmatpush1.msra.mxu0 0.0
    %758 = vmatprep.subr.mxu0 0.0
    %759 = vmatpush1.msra.mxu0 0.0
    %760 = vmatprep.subr.mxu0 0.0
    %761 = vmatpush1.msra.mxu0 0.0
    %762 = vmatprep.subr.mxu0 0.0
    %763 = vmatpush1.msra.mxu0 0.0
    %764 = vmatprep.subr.mxu0 0.0
    %765 = vmatpush1.msra.mxu0 0.0
    %766 = vmatprep.subr.mxu0 0.0
    %767 = vmatpush1.msra.mxu0 0.0
    %768 = vmatprep.subr.mxu0 0.0
    %769 = vmatpush1.msra.mxu0 0.0
    %770 = vmatprep.subr.mxu0 0.0
    %771 = vmatpush1.msra.mxu0 0.0
    %772 = vmatprep.subr.mxu0 0.0
    %773 = vmatpush1.msra.mxu0 0.0
    %774 = vmatprep.subr.mxu0 0.0
    %775 = vmatpush1.msra.mxu0 0.0
    %776 = vmatprep.subr.mxu0 0.0
    %777 = vmatpush1.msra.mxu0 0.0
    %778 = vmatprep.subr.mxu0 0.0
    %779 = vmatpush1.msra.mxu0 0.0
    %780 = vmatprep.subr.mxu0 0.0
    %781 = vmatpush1.msra.mxu0 0.0
    %782 = vmatprep.subr.mxu0 0.0
    %783 = vmatpush1.msra.mxu0 0.0
    %784 = vmatprep.subr.mxu0 0.0
    %785 = vmatpush1.msra.mxu0 0.0
    %786 = vmatprep.subr.mxu0 0.0
    %787 = vmatpush1.msra.mxu0 0.0
    %788 = vmatprep.subr.mxu0 0.0
    %789 = vmatpush1.msra.mxu0 0.0
    %790 = vmatprep.subr.mxu0 0.0
    %791 = vmatpush1.msra.mxu0 0.0
    %792 = vmatprep.subr.mxu0 0.0
    %793 = vmatpush1.msra.mxu0 0.0
    %794 = vmatprep.subr.mxu0 0.0
    %795 = vmatpush1.msra.mxu0 0.0
    %796 = vmatprep.subr.mxu0 0.0
    %797 = vmatpush1.msra.mxu0 0.0
    %798 = vmatprep.subr.mxu0 0.0
    %799 = vmatpush1.msra.mxu0 0.0
    %800 = vmatprep.subr.mxu0 0.0
    %801 = vmatpush1.msra.mxu0 0.0
    %802 = vmatprep.subr.mxu0 0.0
    %803 = vmatpush1.msra.mxu0 0.0
    %804 = vmatprep.subr.mxu0 0.0
    %805 = vmatpush1.msra.mxu0 0.0
    %806 = vmatprep.subr.mxu0 0.0
    %807 = vmatpush1.msra.mxu0 0.0
    %808 = vmatprep.subr.mxu0 0.0
    %809 = vmatpush1.msra.mxu0 0.0
    %810 = vmatprep.subr.mxu0 0.0
    %811 = vmatpush1.msra.mxu0 0.0
    %812 = vmatprep.mubr.f32.mxu0 0.0
    %813 = vmatmul.mubr.f32.gmra.mrb[0].mxu0 %v604
    %v814 = vpop.f32.mrb[0].mxu0
    %v815 = vadd.f32 0.0, %v814
    %v816 = vpop.f32.mrb[0].mxu0
    %817 = vdwg.mxu0
    %v818 = vadd.f32 %v578, %v673
    %v819 = vadd.f32 %v579, %v675
    %v820 = vadd.f32 %v580, %v744
    %v821 = vadd.f32 %v581, %v746
    %v822 = vadd.f32 %v582, %v815
    %v823 = vld [vmem:[#allocation8] sm:$0x1f]
    %v825 = vlaneseq
    %v826 = vshrl.u32 %v825, 7
    %v827 = vsub.s32 0, %v826
    %v828 = vrot.slane %v823, %v827
    %v829 = vlaneseq
    %v830 = vshrl.u32 %v829, 7
    %v831 = vsub.s32 1, %v830
    %v832 = vrot.slane %v823, %v831
    %v833 = vlaneseq
    %v834 = vshrl.u32 %v833, 7
    %v835 = vsub.s32 2, %v834
    %v836 = vrot.slane %v823, %v835
    %v837 = vlaneseq
    %v838 = vshrl.u32 %v837, 7
    %v839 = vsub.s32 3, %v838
    %v840 = vrot.slane %v823, %v839
    %v841 = vlaneseq
    %v842 = vshrl.u32 %v841, 7
    %v843 = vsub.s32 4, %v842
    %v844 = vrot.slane %v823, %v843
    %v850 = vadd.f32 %v818, %v828
    %v851 = vadd.f32 %v819, %v832
    %v852 = vadd.f32 %v820, %v836
    %v853 = vadd.f32 %v821, %v840
    %v854 = vadd.f32 %v822, %v844
    %v855 = vmax.f32 %v850, 0.0
    %v856 = vmax.f32 %v851, 0.0
    %v857 = vld [vmem:[%s9] sm:$0xff]
    %v858 = vld [vmem:[%s9 + $0x8] sm:$0xff]
    %v859 = vld [vmem:[%s9 + $0x10] sm:$0xff]
    %v860 = vld [vmem:[%s9 + $0x18] sm:$0xff]
    %v861 = vld [vmem:[%s9 + $0x20] sm:$0xff]
    %v862 = vld [vmem:[%s9 + $0x28] sm:$0xff]
    %v863 = vld [vmem:[%s9 + $0x30] sm:$0xff]
    %v864 = vld [vmem:[%s9 + $0x38] sm:$0xff]
    %v865 = vld [vmem:[%s9 + $0x40] sm:$0xff]
    %v866 = vld [vmem:[%s9 + $0x48] sm:$0xff]
    %v867 = vld [vmem:[%s9 + $0x50] sm:$0xff]
    %v868 = vld [vmem:[%s9 + $0x58] sm:$0xff]
    %v869 = vld [vmem:[%s9 + $0x60] sm:$0xff]
    %v870 = vld [vmem:[%s9 + $0x68] sm:$0xff]
    %v871 = vld [vmem:[%s9 + $0x70] sm:$0xff]
    %v872 = vld [vmem:[%s9 + $0x78] sm:$0xff]
    %v873 = vld [vmem:[%s9 + $0x80] sm:$0xff]
    %v874 = vld [vmem:[%s9 + $0x88] sm:$0xff]
    %v875 = vld [vmem:[%s9 + $0x90] sm:$0xff]
    %v876 = vld [vmem:[%s9 + $0x98] sm:$0xff]
    %v877 = vld [vmem:[%s9 + $0xa0] sm:$0xff]
    %v878 = vld [vmem:[%s9 + $0xa8] sm:$0xff]
    %v879 = vld [vmem:[%s9 + $0xb0] sm:$0xff]
    %v880 = vld [vmem:[%s9 + $0xb8] sm:$0xff]
    %v881 = vld [vmem:[%s9 + $0xc0] sm:$0xff]
    %v882 = vld [vmem:[%s9 + $0xc8] sm:$0xff]
    %v883 = vld [vmem:[%s9 + $0xd0] sm:$0xff]
    %v884 = vld [vmem:[%s9 + $0xd8] sm:$0xff]
    %v885 = vld [vmem:[%s9 + $0xe0] sm:$0xff]
    %v886 = vld [vmem:[%s9 + $0xe8] sm:$0xff]
    %v887 = vld [vmem:[%s9 + $0xf0] sm:$0xff]
    %v888 = vld [vmem:[%s9 + $0xf8] sm:$0xff]
    %v889 = vld [vmem:[#allocation9] sm:$0x1]
    %v891 = vlaneseq
    %v892 = vshrl.u32 %v891, 7
    %v893 = vsub.s32 0, %v892
    %v894 = vrot.slane %v889, %v893
    %896 = vmatprep.subr.mxu0 0.0
    %897 = vmatpush1.msra.mxu0 %v857
    %898 = vmatprep.subr.mxu0 0.0
    %899 = vmatpush1.msra.mxu0 %v858
    %900 = vmatprep.subr.mxu0 0.0
    %901 = vmatpush1.msra.mxu0 %v859
    %902 = vmatprep.subr.mxu0 0.0
    %903 = vmatpush1.msra.mxu0 %v860
    %904 = vmatprep.subr.mxu0 0.0
    %905 = vmatpush1.msra.mxu0 %v861
    %906 = vmatprep.subr.mxu0 0.0
    %907 = vmatpush1.msra.mxu0 %v862
    %908 = vmatprep.subr.mxu0 0.0
    %909 = vmatpush1.msra.mxu0 %v863
    %910 = vmatprep.subr.mxu0 0.0
    %911 = vmatpush1.msra.mxu0 %v864
    %912 = vmatprep.subr.mxu0 0.0
    %913 = vmatpush1.msra.mxu0 %v865
    %914 = vmatprep.subr.mxu0 0.0
    %915 = vmatpush1.msra.mxu0 %v866
    %916 = vmatprep.subr.mxu0 0.0
    %917 = vmatpush1.msra.mxu0 %v867
    %918 = vmatprep.subr.mxu0 0.0
    %919 = vmatpush1.msra.mxu0 %v868
    %920 = vmatprep.subr.mxu0 0.0
    %921 = vmatpush1.msra.mxu0 %v869
    %922 = vmatprep.subr.mxu0 0.0
    %923 = vmatpush1.msra.mxu0 %v870
    %924 = vmatprep.subr.mxu0 0.0
    %925 = vmatpush1.msra.mxu0 %v871
    %926 = vmatprep.subr.mxu0 0.0
    %927 = vmatpush1.msra.mxu0 %v872
    %928 = vmatprep.subr.mxu0 0.0
    %929 = vmatpush1.msra.mxu0 %v873
    %930 = vmatprep.subr.mxu0 0.0
    %931 = vmatpush1.msra.mxu0 %v874
    %932 = vmatprep.subr.mxu0 0.0
    %933 = vmatpush1.msra.mxu0 %v875
    %934 = vmatprep.subr.mxu0 0.0
    %935 = vmatpush1.msra.mxu0 %v876
    %936 = vmatprep.subr.mxu0 0.0
    %937 = vmatpush1.msra.mxu0 %v877
    %938 = vmatprep.subr.mxu0 0.0
    %939 = vmatpush1.msra.mxu0 %v878
    %940 = vmatprep.subr.mxu0 0.0
    %941 = vmatpush1.msra.mxu0 %v879
    %942 = vmatprep.subr.mxu0 0.0
    %943 = vmatpush1.msra.mxu0 %v880
    %944 = vmatprep.subr.mxu0 0.0
    %945 = vmatpush1.msra.mxu0 %v881
    %946 = vmatprep.subr.mxu0 0.0
    %947 = vmatpush1.msra.mxu0 %v882
    %948 = vmatprep.subr.mxu0 0.0
    %949 = vmatpush1.msra.mxu0 %v883
    %950 = vmatprep.subr.mxu0 0.0
    %951 = vmatpush1.msra.mxu0 %v884
    %952 = vmatprep.subr.mxu0 0.0
    %953 = vmatpush1.msra.mxu0 %v885
    %954 = vmatprep.subr.mxu0 0.0
    %955 = vmatpush1.msra.mxu0 %v886
    %956 = vmatprep.subr.mxu0 0.0
    %957 = vmatpush1.msra.mxu0 %v887
    %958 = vmatprep.subr.mxu0 0.0
    %959 = vmatpush1.msra.mxu0 %v888
    %960 = vmatprep.mubr.f32.mxu0 %v856
    %961 = vmatmul.mubr.f32.gmra.mrb[0].mxu0 %v855
    %v962 = vpop.f32.mrb[0].mxu0
    %v963 = vadd.f32 %v894, %v962
    %v964 = vpop.f32.mrb[0].mxu0
    %965 = vdwg.mxu0
    %v966 = vld [vmem:[%s2] sm:$0xf]
    %v967 = vmul.f32 %v963, 0.5
    %v968 = vmul.f32 %v967, 1.442695
    %v969 = vpow.pop %v968
    %971 = vrot.lane.b32.xlu0 %v969, 112
    %v972 = vpop.permute.xlu0 %971
    %v974 = vmul.f32 %v966, %v972
    %v975 = vadd.f32 %v974, %v963
    %v976 = vld [vmem:[#allocation11] sm:$0xff]
    %v977 = vld [vmem:[#allocation11 + $0x8] sm:$0xff]
    %v978 = vld [vmem:[%s12] sm:$0x1]
    %v980 = vlaneseq
    %v981 = vshrl.u32 %v980, 7
    %v982 = vsub.s32 0, %v981
    %v983 = vrot.slane %v978, %v982
    %vm985 = vcmask 130048
    %v987 = vsel %vm985, %v975, 0
    %989 = vmatprep.subr.mxu0 0.0
    %990 = vmatpush1.msra.mxu0 %v976
    %991 = vmatprep.subr.mxu0 0.0
    %992 = vmatpush1.msra.mxu0 %v977
    %993 = vmatprep.subr.mxu0 0.0
    %994 = vmatpush1.msra.mxu0 0.0
    %995 = vmatprep.subr.mxu0 0.0
    %996 = vmatpush1.msra.mxu0 0.0
    %997 = vmatprep.subr.mxu0 0.0
    %998 = vmatpush1.msra.mxu0 0.0
    %999 = vmatprep.subr.mxu0 0.0
    %1000 = vmatpush1.msra.mxu0 0.0
    %1001 = vmatprep.subr.mxu0 0.0
    %1002 = vmatpush1.msra.mxu0 0.0
    %1003 = vmatprep.subr.mxu0 0.0
    %1004 = vmatpush1.msra.mxu0 0.0
    %1005 = vmatprep.subr.mxu0 0.0
    %1006 = vmatpush1.msra.mxu0 0.0
    %1007 = vmatprep.subr.mxu0 0.0
    %1008 = vmatpush1.msra.mxu0 0.0
    %1009 = vmatprep.subr.mxu0 0.0
    %1010 = vmatpush1.msra.mxu0 0.0
    %1011 = vmatprep.subr.mxu0 0.0
    %1012 = vmatpush1.msra.mxu0 0.0
    %1013 = vmatprep.subr.mxu0 0.0
    %1014 = vmatpush1.msra.mxu0 0.0
    %1015 = vmatprep.subr.mxu0 0.0
    %1016 = vmatpush1.msra.mxu0 0.0
    %1017 = vmatprep.subr.mxu0 0.0
    %1018 = vmatpush1.msra.mxu0 0.0
    %1019 = vmatprep.subr.mxu0 0.0
    %1020 = vmatpush1.msra.mxu0 0.0
    %1021 = vmatprep.subr.mxu0 0.0
    %1022 = vmatpush1.msra.mxu0 0.0
    %1023 = vmatprep.subr.mxu0 0.0
    %1024 = vmatpush1.msra.mxu0 0.0
    %1025 = vmatprep.subr.mxu0 0.0
    %1026 = vmatpush1.msra.mxu0 0.0
    %1027 = vmatprep.subr.mxu0 0.0
    %1028 = vmatpush1.msra.mxu0 0.0
    %1029 = vmatprep.subr.mxu0 0.0
    %1030 = vmatpush1.msra.mxu0 0.0
    %1031 = vmatprep.subr.mxu0 0.0
    %1032 = vmatpush1.msra.mxu0 0.0
    %1033 = vmatprep.subr.mxu0 0.0
    %1034 = vmatpush1.msra.mxu0 0.0
    %1035 = vmatprep.subr.mxu0 0.0
    %1036 = vmatpush1.msra.mxu0 0.0
    %1037 = vmatprep.subr.mxu0 0.0
    %1038 = vmatpush1.msra.mxu0 0.0
    %1039 = vmatprep.subr.mxu0 0.0
    %1040 = vmatpush1.msra.mxu0 0.0
    %1041 = vmatprep.subr.mxu0 0.0
    %1042 = vmatpush1.msra.mxu0 0.0
    %1043 = vmatprep.subr.mxu0 0.0
    %1044 = vmatpush1.msra.mxu0 0.0
    %1045 = vmatprep.subr.mxu0 0.0
    %1046 = vmatpush1.msra.mxu0 0.0
    %1047 = vmatprep.subr.mxu0 0.0
    %1048 = vmatpush1.msra.mxu0 0.0
    %1049 = vmatprep.subr.mxu0 0.0
    %1050 = vmatpush1.msra.mxu0 0.0
    %1051 = vmatprep.subr.mxu0 0.0
    %1052 = vmatpush1.msra.mxu0 0.0
    %1053 = vmatprep.mubr.f32.mxu0 0.0
    %1054 = vmatmul.mubr.f32.gmra.mrb[0].mxu0 %v987
    %v1055 = vpop.f32.mrb[0].mxu0
    %v1056 = vadd.f32 %v983, %v1055
    %v1057 = vpop.f32.mrb[0].mxu0
    %1058 = vdwg.mxu0
    %v1059 = vmax.f32 %v1056, 0.0
    %v1060 = vld [vmem:[%s13 + $0x10] sm:$0xff]
    %v1061 = vld [vmem:[%s13 + $0x18] sm:$0xff]
    %v1062 = vld [vmem:[%s13 + $0x20] sm:$0xff]
    %v1063 = vld [vmem:[%s13 + $0x38] sm:$0xff]
    %v1064 = vld [vmem:[%s13 + $0x40] sm:$0xff]
    %v1065 = vld [vmem:[%s13 + $0x48] sm:$0xff]
    %v1067 = vsel %vm985, %v1059, 0
    %1069 = vmatprep.subr.mxu0 %v1061
    %1070 = vmatpush1.msra.mxu0 %v1060
    %1071 = vmatprep.subr.mxu0 %v1064
    %1072 = vmatpush1.msra.mxu0 %v1063
    %1073 = vmatprep.subr.mxu0 0.0
    %1074 = vmatpush1.msra.mxu0 0.0
    %1075 = vmatprep.subr.mxu0 0.0
    %1076 = vmatpush1.msra.mxu0 0.0
    %1077 = vmatprep.subr.mxu0 0.0
    %1078 = vmatpush1.msra.mxu0 0.0
    %1079 = vmatprep.subr.mxu0 0.0
    %1080 = vmatpush1.msra.mxu0 0.0
    %1081 = vmatprep.subr.mxu0 0.0
    %1082 = vmatpush1.msra.mxu0 0.0
    %1083 = vmatprep.subr.mxu0 0.0
    %1084 = vmatpush1.msra.mxu0 0.0
    %1085 = vmatprep.subr.mxu0 0.0
    %1086 = vmatpush1.msra.mxu0 0.0
    %1087 = vmatprep.subr.mxu0 0.0
    %1088 = vmatpush1.msra.mxu0 0.0
    %1089 = vmatprep.subr.mxu0 0.0
    %1090 = vmatpush1.msra.mxu0 0.0
    %1091 = vmatprep.subr.mxu0 0.0
    %1092 = vmatpush1.msra.mxu0 0.0
    %1093 = vmatprep.subr.mxu0 0.0
    %1094 = vmatpush1.msra.mxu0 0.0
    %1095 = vmatprep.subr.mxu0 0.0
    %1096 = vmatpush1.msra.mxu0 0.0
    %1097 = vmatprep.subr.mxu0 0.0
    %1098 = vmatpush1.msra.mxu0 0.0
    %1099 = vmatprep.subr.mxu0 0.0
    %1100 = vmatpush1.msra.mxu0 0.0
    %1101 = vmatprep.subr.mxu0 0.0
    %1102 = vmatpush1.msra.mxu0 0.0
    %1103 = vmatprep.subr.mxu0 0.0
    %1104 = vmatpush1.msra.mxu0 0.0
    %1105 = vmatprep.subr.mxu0 0.0
    %1106 = vmatpush1.msra.mxu0 0.0
    %1107 = vmatprep.subr.mxu0 0.0
    %1108 = vmatpush1.msra.mxu0 0.0
    %1109 = vmatprep.subr.mxu0 0.0
    %1110 = vmatpush1.msra.mxu0 0.0
    %1111 = vmatprep.subr.mxu0 0.0
    %1112 = vmatpush1.msra.mxu0 0.0
    %1113 = vmatprep.subr.mxu0 0.0
    %1114 = vmatpush1.msra.mxu0 0.0
    %1115 = vmatprep.subr.mxu0 0.0
    %1116 = vmatpush1.msra.mxu0 0.0
    %1117 = vmatprep.subr.mxu0 0.0
    %1118 = vmatpush1.msra.mxu0 0.0
    %1119 = vmatprep.subr.mxu0 0.0
    %1120 = vmatpush1.msra.mxu0 0.0
    %1121 = vmatprep.subr.mxu0 0.0
    %1122 = vmatpush1.msra.mxu0 0.0
    %1123 = vmatprep.subr.mxu0 0.0
    %1124 = vmatpush1.msra.mxu0 0.0
    %1125 = vmatprep.subr.mxu0 0.0
    %1126 = vmatpush1.msra.mxu0 0.0
    %1127 = vmatprep.subr.mxu0 0.0
    %1128 = vmatpush1.msra.mxu0 0.0
    %1129 = vmatprep.subr.mxu0 0.0
    %1130 = vmatpush1.msra.mxu0 0.0
    %1131 = vmatprep.subr.mxu0 0.0
    %1132 = vmatpush1.msra.mxu0 0.0
    %1133 = vmatprep.mubr.f32.mxu0 0.0
    %1134 = vmatmul.mubr.f32.gmra.mrb[0].mxu0 %v1067
    %v1135 = vpop.f32.mrb[0].mxu0
    %v1136 = vadd.f32 0.0, %v1135
    %v1137 = vpop.f32.mrb[0].mxu0
    %v1138 = vadd.f32 0.0, %v1137
    %1139 = vdwg.mxu0
    %1140 = vmatprep.subr.mxu0 0.0
    %1141 = vmatpush1.msra.mxu0 %v1062
    %1142 = vmatprep.subr.mxu0 0.0
    %1143 = vmatpush1.msra.mxu0 %v1065
    %1144 = vmatprep.subr.mxu0 0.0
    %1145 = vmatpush1.msra.mxu0 0.0
    %1146 = vmatprep.subr.mxu0 0.0
    %1147 = vmatpush1.msra.mxu0 0.0
    %1148 = vmatprep.subr.mxu0 0.0
    %1149 = vmatpush1.msra.mxu0 0.0
    %1150 = vmatprep.subr.mxu0 0.0
    %1151 = vmatpush1.msra.mxu0 0.0
    %1152 = vmatprep.subr.mxu0 0.0
    %1153 = vmatpush1.msra.mxu0 0.0
    %1154 = vmatprep.subr.mxu0 0.0
    %1155 = vmatpush1.msra.mxu0 0.0
    %1156 = vmatprep.subr.mxu0 0.0
    %1157 = vmatpush1.msra.mxu0 0.0
    %1158 = vmatprep.subr.mxu0 0.0
    %1159 = vmatpush1.msra.mxu0 0.0
    %1160 = vmatprep.subr.mxu0 0.0
    %1161 = vmatpush1.msra.mxu0 0.0
    %1162 = vmatprep.subr.mxu0 0.0
    %1163 = vmatpush1.msra.mxu0 0.0
    %1164 = vmatprep.subr.mxu0 0.0
    %1165 = vmatpush1.msra.mxu0 0.0
    %1166 = vmatprep.subr.mxu0 0.0
    %1167 = vmatpush1.msra.mxu0 0.0
    %1168 = vmatprep.subr.mxu0 0.0
    %1169 = vmatpush1.msra.mxu0 0.0
    %1170 = vmatprep.subr.mxu0 0.0
    %1171 = vmatpush1.msra.mxu0 0.0
    %1172 = vmatprep.subr.mxu0 0.0
    %1173 = vmatpush1.msra.mxu0 0.0
    %1174 = vmatprep.subr.mxu0 0.0
    %1175 = vmatpush1.msra.mxu0 0.0
    %1176 = vmatprep.subr.mxu0 0.0
    %1177 = vmatpush1.msra.mxu0 0.0
    %1178 = vmatprep.subr.mxu0 0.0
    %1179 = vmatpush1.msra.mxu0 0.0
    %1180 = vmatprep.subr.mxu0 0.0
    %1181 = vmatpush1.msra.mxu0 0.0
    %1182 = vmatprep.subr.mxu0 0.0
    %1183 = vmatpush1.msra.mxu0 0.0
    %1184 = vmatprep.subr.mxu0 0.0
    %1185 = vmatpush1.msra.mxu0 0.0
    %1186 = vmatprep.subr.mxu0 0.0
    %1187 = vmatpush1.msra.mxu0 0.0
    %1188 = vmatprep.subr.mxu0 0.0
    %1189 = vmatpush1.msra.mxu0 0.0
    %1190 = vmatprep.subr.mxu0 0.0
    %1191 = vmatpush1.msra.mxu0 0.0
    %1192 = vmatprep.subr.mxu0 0.0
    %1193 = vmatpush1.msra.mxu0 0.0
    %1194 = vmatprep.subr.mxu0 0.0
    %1195 = vmatpush1.msra.mxu0 0.0
    %1196 = vmatprep.subr.mxu0 0.0
    %1197 = vmatpush1.msra.mxu0 0.0
    %1198 = vmatprep.subr.mxu0 0.0
    %1199 = vmatpush1.msra.mxu0 0.0
    %1200 = vmatprep.subr.mxu0 0.0
    %1201 = vmatpush1.msra.mxu0 0.0
    %1202 = vmatprep.subr.mxu0 0.0
    %1203 = vmatpush1.msra.mxu0 0.0
    %1204 = vmatprep.mubr.f32.mxu0 0.0
    %1205 = vmatmul.mubr.f32.gmra.mrb[0].mxu0 %v1067
    %v1206 = vpop.f32.mrb[0].mxu0
    %v1207 = vadd.f32 0.0, %v1206
    %v1208 = vpop.f32.mrb[0].mxu0
    %1209 = vdwg.mxu0
    %v1210 = vadd.f32 %v852, %v1136
    %v1211 = vadd.f32 %v853, %v1138
    %v1212 = vadd.f32 %v854, %v1207
    %v1213 = vld [vmem:[%s14] sm:$0x1f]
    %v1215 = vlaneseq
    %v1216 = vshrl.u32 %v1215, 7
    %v1217 = vsub.s32 2, %v1216
    %v1218 = vrot.slane %v1213, %v1217
    %v1219 = vlaneseq
    %v1220 = vshrl.u32 %v1219, 7
    %v1221 = vsub.s32 3, %v1220
    %v1222 = vrot.slane %v1213, %v1221
    %v1223 = vlaneseq
    %v1224 = vshrl.u32 %v1223, 7
    %v1225 = vsub.s32 4, %v1224
    %v1226 = vrot.slane %v1213, %v1225
    %v1230 = vadd.f32 %v1210, %v1218
    %v1231 = vadd.f32 %v1211, %v1222
    %v1232 = vadd.f32 %v1212, %v1226
    %v1233 = vmax.f32 %v1230, 0.0
    %v1234 = vld [vmem:[%s15] sm:$0xff]
    %v1235 = vld [vmem:[%s15 + $0x8] sm:$0xff]
    %v1236 = vld [vmem:[%s15 + $0x10] sm:$0xff]
    %v1237 = vld [vmem:[%s15 + $0x18] sm:$0xff]
    %v1238 = vld [vmem:[%s15 + $0x20] sm:$0xff]
    %v1239 = vld [vmem:[%s15 + $0x28] sm:$0xff]
    %v1240 = vld [vmem:[%s15 + $0x30] sm:$0xff]
    %v1241 = vld [vmem:[%s15 + $0x38] sm:$0xff]
    %v1242 = vld [vmem:[%s16] sm:$0x1]
    %v1244 = vlaneseq
    %v1245 = vshrl.u32 %v1244, 7
    %v1246 = vsub.s32 0, %v1245
    %v1247 = vrot.slane %v1242, %v1246
    %vm1249 = vcmask 523264
    %v1251 = vsel %vm1249, %v1233, 0
    %1253 = vmatprep.subr.mxu0 0.0
    %1254 = vmatpush1.msra.mxu0 %v1234
    %1255 = vmatprep.subr.mxu0 0.0
    %1256 = vmatpush1.msra.mxu0 %v1235
    %1257 = vmatprep.subr.mxu0 0.0
    %1258 = vmatpush1.msra.mxu0 %v1236
    %1259 = vmatprep.subr.mxu0 0.0
    %1260 = vmatpush1.msra.mxu0 %v1237
    %1261 = vmatprep.subr.mxu0 0.0
    %1262 = vmatpush1.msra.mxu0 %v1238
    %1263 = vmatprep.subr.mxu0 0.0
    %1264 = vmatpush1.msra.mxu0 %v1239
    %1265 = vmatprep.subr.mxu0 0.0
    %1266 = vmatpush1.msra.mxu0 %v1240
    %1267 = vmatprep.subr.mxu0 0.0
    %1268 = vmatpush1.msra.mxu0 %v1241
    %1269 = vmatprep.subr.mxu0 0.0
    %1270 = vmatpush1.msra.mxu0 0.0
    %1271 = vmatprep.subr.mxu0 0.0
    %1272 = vmatpush1.msra.mxu0 0.0
    %1273 = vmatprep.subr.mxu0 0.0
    %1274 = vmatpush1.msra.mxu0 0.0
    %1275 = vmatprep.subr.mxu0 0.0
    %1276 = vmatpush1.msra.mxu0 0.0
    %1277 = vmatprep.subr.mxu0 0.0
    %1278 = vmatpush1.msra.mxu0 0.0
    %1279 = vmatprep.subr.mxu0 0.0
    %1280 = vmatpush1.msra.mxu0 0.0
    %1281 = vmatprep.subr.mxu0 0.0
    %1282 = vmatpush1.msra.mxu0 0.0
    %1283 = vmatprep.subr.mxu0 0.0
    %1284 = vmatpush1.msra.mxu0 0.0
    %1285 = vmatprep.subr.mxu0 0.0
    %1286 = vmatpush1.msra.mxu0 0.0
    %1287 = vmatprep.subr.mxu0 0.0
    %1288 = vmatpush1.msra.mxu0 0.0
    %1289 = vmatprep.subr.mxu0 0.0
    %1290 = vmatpush1.msra.mxu0 0.0
    %1291 = vmatprep.subr.mxu0 0.0
    %1292 = vmatpush1.msra.mxu0 0.0
    %1293 = vmatprep.subr.mxu0 0.0
    %1294 = vmatpush1.msra.mxu0 0.0
    %1295 = vmatprep.subr.mxu0 0.0
    %1296 = vmatpush1.msra.mxu0 0.0
    %1297 = vmatprep.subr.mxu0 0.0
    %1298 = vmatpush1.msra.mxu0 0.0
    %1299 = vmatprep.subr.mxu0 0.0
    %1300 = vmatpush1.msra.mxu0 0.0
    %1301 = vmatprep.subr.mxu0 0.0
    %1302 = vmatpush1.msra.mxu0 0.0
    %1303 = vmatprep.subr.mxu0 0.0
    %1304 = vmatpush1.msra.mxu0 0.0
    %1305 = vmatprep.subr.mxu0 0.0
    %1306 = vmatpush1.msra.mxu0 0.0
    %1307 = vmatprep.subr.mxu0 0.0
    %1308 = vmatpush1.msra.mxu0 0.0
    %1309 = vmatprep.subr.mxu0 0.0
    %1310 = vmatpush1.msra.mxu0 0.0
    %1311 = vmatprep.subr.mxu0 0.0
    %1312 = vmatpush1.msra.mxu0 0.0
    %1313 = vmatprep.subr.mxu0 0.0
    %1314 = vmatpush1.msra.mxu0 0.0
    %1315 = vmatprep.subr.mxu0 0.0
    %1316 = vmatpush1.msra.mxu0 0.0
    %1317 = vmatprep.mubr.f32.mxu0 0.0
    %1318 = vmatmul.mubr.f32.gmra.mrb[0].mxu0 %v1251
    %v1319 = vpop.f32.mrb[0].mxu0
    %v1320 = vadd.f32 %v1247, %v1319
    %v1321 = vpop.f32.mrb[0].mxu0
    %1322 = vdwg.mxu0
    %v1323 = vadd.f32 %v1231, %v1232
    %v1324 = vxor.u32 %v1323, 2147483648
    %v1325 = vmul.f32 %v1324, 1.442695
    %v1326 = vpow.pop %v1325
    %v1327 = vadd.f32 %v1326, 1.0
    %v1328 = vrcp.pop %v1327
    %v1329 = vmul.f32 1.0, %v1328
    %1331 = vrot.lane.b32.xlu0 %v1232, 64
    %v1332 = vpop.permute.xlu0 %1331
    %v1334 = vmul.f32 %v1329, %v1332
    %1336 = vrot.lane.b32.xlu0 %v1334, 64
    %v1337 = vpop.permute.xlu0 %1336
    %v1339 = vadd.f32 %v1231, %v1337
    %v1340 = vtanh.pop %v1339
    %v1341 = vsub.f32 1.0, %v1329
    %1343 = vrot.lane.b32.xlu0 %v1340, 96
    %v1344 = vpop.permute.xlu0 %1343
    %v1346 = vmul.f32 %v1341, %v1344
    %v1347 = vmul.f32 %v1329, 0.0
    %v1348 = vadd.f32 %v1346, %v1347
    %1350 = vrot.lane.b32.xlu0 %v963, 32
    %v1351 = vpop.permute.xlu0 %1350
    %v1353 = vsub.f32 %v963, %v1351
    %v1354 = vadd.f32 %v1353, 0.0
    %1355 = vrot.lane.b32.xlu0 %v963, 96
    %v1356 = vpop.permute.xlu0 %1355
    %v1358 = vsub.f32 %v963, %v1356
    %v1359 = vmul.f32 %v1358, 1.442695
    %v1360 = vpow.pop %v1359
    %1362 = vrot.lane.b32.xlu0 %v1360, 32
    %v1363 = vpop.permute.xlu0 %1362
    %v1365 = vadd.f32 %v1354, %v1363
    %v1366 = vmul.f32 %v1358, %v1358
    %v1367 = vsub.f32 0.0, %v963
    %v1368 = vmul.f32 %v1367, 1.442695
    %v1369 = vpow.pop %v1368
    %1371 = vrot.lane.b32.xlu0 %v1369, 80
    %v1372 = vpop.permute.xlu0 %1371
    %v1374 = vmul.f32 %v1366, %v1372
    %1376 = vrot.lane.b32.xlu0 %v1374, 48
    %v1377 = vpop.permute.xlu0 %1376
    %v1379 = vadd.f32 %v1365, %v1377
    %v1380 = vld [vmem:[%s1] sm:$0xf]
    %v1381 = vsub.f32 %v1380, %v1320
    %v1382 = vmul.f32 %v1381, %v1381
    %v1383 = vsub.f32 0.0, %v1320
    %v1384 = vmul.f32 %v1383, 1.442695
    %v1385 = vpow.pop %v1384
    %1387 = vrot.lane.b32.xlu0 %v1385, 126
    %v1388 = vpop.permute.xlu0 %1387
    %v1390 = vmul.f32 %v1382, %v1388
    %v1391 = vadd.f32 %v1390, 0.0
    %1393 = vrot.lane.b32.xlu0 %v1320, 126
    %v1394 = vpop.permute.xlu0 %1393
    %v1396 = vadd.f32 %v1391, %v1394
    %v1397 = vld [vmem:[#allocation2] sm:$0xf0]
    %v1398 = vld [vmem:[#allocation2 + $0x8] sm:$0xf0]
    %v1399 = vld [vmem:[#allocation2 + $0x10] sm:$0xf0]
    %v1400 = vld [vmem:[#allocation2 + $0x18] sm:$0xf0]
    %v1401 = vld [vmem:[#allocation2 + $0x20] sm:$0xf0]
    %1403 = vrot.lane.b32.xlu0 %v1348, 96
    %v1404 = vpop.permute.xlu0 %1403
    %v1405 = vsel %vm282, %v1404, 0
    %1407 = vmatprep.subr.mxu0 %v584
    %1408 = vmatpush1.msra.mxu0 %v583
    %1409 = vmatprep.subr.mxu0 %v589
    %1410 = vmatpush1.msra.mxu0 %v588
    %1411 = vmatprep.subr.mxu0 %v594
    %1412 = vmatpush1.msra.mxu0 %v593
    %1413 = vmatprep.subr.mxu0 %v599
    %1414 = vmatpush1.msra.mxu0 %v598
    %1415 = vmatprep.subr.mxu0 0.0
    %1416 = vmatpush1.msra.mxu0 0.0
    %1417 = vmatprep.subr.mxu0 0.0
    %1418 = vmatpush1.msra.mxu0 0.0
    %1419 = vmatprep.subr.mxu0 0.0
    %1420 = vmatpush1.msra.mxu0 0.0
    %1421 = vmatprep.subr.mxu0 0.0
    %1422 = vmatpush1.msra.mxu0 0.0
    %1423 = vmatprep.subr.mxu0 0.0
    %1424 = vmatpush1.msra.mxu0 0.0
    %1425 = vmatprep.subr.mxu0 0.0
    %1426 = vmatpush1.msra.mxu0 0.0
    %1427 = vmatprep.subr.mxu0 0.0
    %1428 = vmatpush1.msra.mxu0 0.0
    %1429 = vmatprep.subr.mxu0 0.0
    %1430 = vmatpush1.msra.mxu0 0.0
    %1431 = vmatprep.subr.mxu0 0.0
    %1432 = vmatpush1.msra.mxu0 0.0
    %1433 = vmatprep.subr.mxu0 0.0
    %1434 = vmatpush1.msra.mxu0 0.0
    %1435 = vmatprep.subr.mxu0 0.0
    %1436 = vmatpush1.msra.mxu0 0.0
    %1437 = vmatprep.subr.mxu0 0.0
    %1438 = vmatpush1.msra.mxu0 0.0
    %1439 = vmatprep.subr.mxu0 0.0
    %1440 = vmatpush1.msra.mxu0 0.0
    %1441 = vmatprep.subr.mxu0 0.0
    %1442 = vmatpush1.msra.mxu0 0.0
    %1443 = vmatprep.subr.mxu0 0.0
    %1444 = vmatpush1.msra.mxu0 0.0
    %1445 = vmatprep.subr.mxu0 0.0
    %1446 = vmatpush1.msra.mxu0 0.0
    %1447 = vmatprep.subr.mxu0 0.0
    %1448 = vmatpush1.msra.mxu0 0.0
    %1449 = vmatprep.subr.mxu0 0.0
    %1450 = vmatpush1.msra.mxu0 0.0
    %1451 = vmatprep.subr.mxu0 0.0
    %1452 = vmatpush1.msra.mxu0 0.0
    %1453 = vmatprep.subr.mxu0 0.0
    %1454 = vmatpush1.msra.mxu0 0.0
    %1455 = vmatprep.subr.mxu0 0.0
    %1456 = vmatpush1.msra.mxu0 0.0
    %1457 = vmatprep.subr.mxu0 0.0
    %1458 = vmatpush1.msra.mxu0 0.0
    %1459 = vmatprep.subr.mxu0 0.0
    %1460 = vmatpush1.msra.mxu0 0.0
    %1461 = vmatprep.subr.mxu0 0.0
    %1462 = vmatpush1.msra.mxu0 0.0
    %1463 = vmatprep.subr.mxu0 0.0
    %1464 = vmatpush1.msra.mxu0 0.0
    %1465 = vmatprep.subr.mxu0 0.0
    %1466 = vmatpush1.msra.mxu0 0.0
    %1467 = vmatprep.subr.mxu0 0.0
    %1468 = vmatpush1.msra.mxu0 0.0
    %1469 = vmatprep.subr.mxu0 0.0
    %1470 = vmatpush1.msra.mxu0 0.0
    %1471 = vmatprep.mubr.f32.mxu0 0.0
    %1472 = vmatmul.mubr.f32.gmra.mrb[0].mxu0 %v1405
    %v1473 = vpop.f32.mrb[0].mxu0
    %v1474 = vadd.f32 0.0, %v1473
    %v1475 = vpop.f32.mrb[0].mxu0
    %v1476 = vadd.f32 0.0, %v1475
    %1477 = vdwg.mxu0
    %1478 = vmatprep.subr.mxu0 %v586
    %1479 = vmatpush1.msra.mxu0 %v585
    %1480 = vmatprep.subr.mxu0 %v591
    %1481 = vmatpush1.msra.mxu0 %v590
    %1482 = vmatprep.subr.mxu0 %v596
    %1483 = vmatpush1.msra.mxu0 %v595
    %1484 = vmatprep.subr.mxu0 %v601
    %1485 = vmatpush1.msra.mxu0 %v600
    %1486 = vmatprep.subr.mxu0 0.0
    %1487 = vmatpush1.msra.mxu0 0.0
    %1488 = vmatprep.subr.mxu0 0.0
    %1489 = vmatpush1.msra.mxu0 0.0
    %1490 = vmatprep.subr.mxu0 0.0
    %1491 = vmatpush1.msra.mxu0 0.0
    %1492 = vmatprep.subr.mxu0 0.0
    %1493 = vmatpush1.msra.mxu0 0.0
    %1494 = vmatprep.subr.mxu0 0.0
    %1495 = vmatpush1.msra.mxu0 0.0
    %1496 = vmatprep.subr.mxu0 0.0
    %1497 = vmatpush1.msra.mxu0 0.0
    %1498 = vmatprep.subr.mxu0 0.0
    %1499 = vmatpush1.msra.mxu0 0.0
    %1500 = vmatprep.subr.mxu0 0.0
    %1501 = vmatpush1.msra.mxu0 0.0
    %1502 = vmatprep.subr.mxu0 0.0
    %1503 = vmatpush1.msra.mxu0 0.0
    %1504 = vmatprep.subr.mxu0 0.0
    %1505 = vmatpush1.msra.mxu0 0.0
    %1506 = vmatprep.subr.mxu0 0.0
    %1507 = vmatpush1.msra.mxu0 0.0
    %1508 = vmatprep.subr.mxu0 0.0
    %1509 = vmatpush1.msra.mxu0 0.0
    %1510 = vmatprep.subr.mxu0 0.0
    %1511 = vmatpush1.msra.mxu0 0.0
    %1512 = vmatprep.subr.mxu0 0.0
    %1513 = vmatpush1.msra.mxu0 0.0
    %1514 = vmatprep.subr.mxu0 0.0
    %1515 = vmatpush1.msra.mxu0 0.0
    %1516 = vmatprep.subr.mxu0 0.0
    %1517 = vmatpush1.msra.mxu0 0.0
    %1518 = vmatprep.subr.mxu0 0.0
    %1519 = vmatpush1.msra.mxu0 0.0
    %1520 = vmatprep.subr.mxu0 0.0
    %1521 = vmatpush1.msra.mxu0 0.0
    %1522 = vmatprep.subr.mxu0 0.0
    %1523 = vmatpush1.msra.mxu0 0.0
    %1524 = vmatprep.subr.mxu0 0.0
    %1525 = vmatpush1.msra.mxu0 0.0
    %1526 = vmatprep.subr.mxu0 0.0
    %1527 = vmatpush1.msra.mxu0 0.0
    %1528 = vmatprep.subr.mxu0 0.0
    %1529 = vmatpush1.msra.mxu0 0.0
    %1530 = vmatprep.subr.mxu0 0.0
    %1531 = vmatpush1.msra.mxu0 0.0
    %1532 = vmatprep.subr.mxu0 0.0
    %1533 = vmatpush1.msra.mxu0 0.0
    %1534 = vmatprep.subr.mxu0 0.0
    %1535 = vmatpush1.msra.mxu0 0.0
    %1536 = vmatprep.subr.mxu0 0.0
    %1537 = vmatpush1.msra.mxu0 0.0
    %1538 = vmatprep.subr.mxu0 0.0
    %1539 = vmatpush1.msra.mxu0 0.0
    %1540 = vmatprep.subr.mxu0 0.0
    %1541 = vmatpush1.msra.mxu0 0.0
    %1542 = vmatprep.mubr.f32.mxu0 0.0
    %1543 = vmatmul.mubr.f32.gmra.mrb[0].mxu0 %v1405
    %v1544 = vpop.f32.mrb[0].mxu0
    %v1545 = vadd.f32 0.0, %v1544
    %v1546 = vpop.f32.mrb[0].mxu0
    %v1547 = vadd.f32 0.0, %v1546
    %1548 = vdwg.mxu0
    %1549 = vmatprep.subr.mxu0 0.0
    %1550 = vmatpush1.msra.mxu0 %v587
    %1551 = vmatprep.subr.mxu0 0.0
    %1552 = vmatpush1.msra.mxu0 %v592
    %1553 = vmatprep.subr.mxu0 0.0
    %1554 = vmatpush1.msra.mxu0 %v597
    %1555 = vmatprep.subr.mxu0 0.0
    %1556 = vmatpush1.msra.mxu0 %v602
    %1557 = vmatprep.subr.mxu0 0.0
    %1558 = vmatpush1.msra.mxu0 0.0
    %1559 = vmatprep.subr.mxu0 0.0
    %1560 = vmatpush1.msra.mxu0 0.0
    %1561 = vmatprep.subr.mxu0 0.0
    %1562 = vmatpush1.msra.mxu0 0.0
    %1563 = vmatprep.subr.mxu0 0.0
    %1564 = vmatpush1.msra.mxu0 0.0
    %1565 = vmatprep.subr.mxu0 0.0
    %1566 = vmatpush1.msra.mxu0 0.0
    %1567 = vmatprep.subr.mxu0 0.0
    %1568 = vmatpush1.msra.mxu0 0.0
    %1569 = vmatprep.subr.mxu0 0.0
    %1570 = vmatpush1.msra.mxu0 0.0
    %1571 = vmatprep.subr.mxu0 0.0
    %1572 = vmatpush1.msra.mxu0 0.0
    %1573 = vmatprep.subr.mxu0 0.0
    %1574 = vmatpush1.msra.mxu0 0.0
    %1575 = vmatprep.subr.mxu0 0.0
    %1576 = vmatpush1.msra.mxu0 0.0
    %1577 = vmatprep.subr.mxu0 0.0
    %1578 = vmatpush1.msra.mxu0 0.0
    %1579 = vmatprep.subr.mxu0 0.0
    %1580 = vmatpush1.msra.mxu0 0.0
    %1581 = vmatprep.subr.mxu0 0.0
    %1582 = vmatpush1.msra.mxu0 0.0
    %1583 = vmatprep.subr.mxu0 0.0
    %1584 = vmatpush1.msra.mxu0 0.0
    %1585 = vmatprep.subr.mxu0 0.0
    %1586 = vmatpush1.msra.mxu0 0.0
    %1587 = vmatprep.subr.mxu0 0.0
    %1588 = vmatpush1.msra.mxu0 0.0
    %1589 = vmatprep.subr.mxu0 0.0
    %1590 = vmatpush1.msra.mxu0 0.0
    %1591 = vmatprep.subr.mxu0 0.0
    %1592 = vmatpush1.msra.mxu0 0.0
    %1593 = vmatprep.subr.mxu0 0.0
    %1594 = vmatpush1.msra.mxu0 0.0
    %1595 = vmatprep.subr.mxu0 0.0
    %1596 = vmatpush1.msra.mxu0 0.0
    %1597 = vmatprep.subr.mxu0 0.0
    %1598 = vmatpush1.msra.mxu0 0.0
    %1599 = vmatprep.subr.mxu0 0.0
    %1600 = vmatpush1.msra.mxu0 0.0
    %1601 = vmatprep.subr.mxu0 0.0
    %1602 = vmatpush1.msra.mxu0 0.0
    %1603 = vmatprep.subr.mxu0 0.0
    %1604 = vmatpush1.msra.mxu0 0.0
    %1605 = vmatprep.subr.mxu0 0.0
    %1606 = vmatpush1.msra.mxu0 0.0
    %1607 = vmatprep.subr.mxu0 0.0
    %1608 = vmatpush1.msra.mxu0 0.0
    %1609 = vmatprep.subr.mxu0 0.0
    %1610 = vmatpush1.msra.mxu0 0.0
    %1611 = vmatprep.subr.mxu0 0.0
    %1612 = vmatpush1.msra.mxu0 0.0
    %1613 = vmatprep.mubr.f32.mxu0 0.0
    %1614 = vmatmul.mubr.f32.gmra.mrb[0].mxu0 %v1405
    %v1615 = vpop.f32.mrb[0].mxu0
    %v1616 = vadd.f32 0.0, %v1615
    %v1617 = vpop.f32.mrb[0].mxu0
    %1618 = vdwg.mxu0
    %v1624 = vrot.slane %v1474, 4
    %v1625 = vrot.slane %v1476, 4
    %v1626 = vrot.slane %v1545, 4
    %v1627 = vrot.slane %v1547, 4
    %v1628 = vrot.slane %v1616, 4
    %v1634 = vadd.f32 %v1397, %v1624
    %v1635 = vadd.f32 %v1398, %v1625
    %v1636 = vadd.f32 %v1399, %v1626
    %v1637 = vadd.f32 %v1400, %v1627
    %v1638 = vadd.f32 %v1401, %v1628
    %v1639 = vadd.f32 %v1634, %v828
    %v1640 = vadd.f32 %v1635, %v832
    %v1641 = vadd.f32 %v1636, %v836
    %v1642 = vadd.f32 %v1637, %v840
    %v1643 = vadd.f32 %v1638, %v844
    %v1644 = vmax.f32 %v1639, 0.0
    %v1645 = vmax.f32 %v1640, 0.0
    %v1648 = vrot.slane %v1644, 4
    %v1649 = vrot.slane %v1645, 4
    %1652 = vmatprep.subr.mxu0 0.0
    %1653 = vmatpush1.msra.mxu0 %v857
    %1654 = vmatprep.subr.mxu0 0.0
    %1655 = vmatpush1.msra.mxu0 %v858
    %1656 = vmatprep.subr.mxu0 0.0
    %1657 = vmatpush1.msra.mxu0 %v859
    %1658 = vmatprep.subr.mxu0 0.0
    %1659 = vmatpush1.msra.mxu0 %v860
    %1660 = vmatprep.subr.mxu0 0.0
    %1661 = vmatpush1.msra.mxu0 %v861
    %1662 = vmatprep.subr.mxu0 0.0
    %1663 = vmatpush1.msra.mxu0 %v862
    %1664 = vmatprep.subr.mxu0 0.0
    %1665 = vmatpush1.msra.mxu0 %v863
    %1666 = vmatprep.subr.mxu0 0.0
    %1667 = vmatpush1.msra.mxu0 %v864
    %1668 = vmatprep.subr.mxu0 0.0
    %1669 = vmatpush1.msra.mxu0 %v865
    %1670 = vmatprep.subr.mxu0 0.0
    %1671 = vmatpush1.msra.mxu0 %v866
    %1672 = vmatprep.subr.mxu0 0.0
    %1673 = vmatpush1.msra.mxu0 %v867
    %1674 = vmatprep.subr.mxu0 0.0
    %1675 = vmatpush1.msra.mxu0 %v868
    %1676 = vmatprep.subr.mxu0 0.0
    %1677 = vmatpush1.msra.mxu0 %v869
    %1678 = vmatprep.subr.mxu0 0.0
    %1679 = vmatpush1.msra.mxu0 %v870
    %1680 = vmatprep.subr.mxu0 0.0
    %1681 = vmatpush1.msra.mxu0 %v871
    %1682 = vmatprep.subr.mxu0 0.0
    %1683 = vmatpush1.msra.mxu0 %v872
    %1684 = vmatprep.subr.mxu0 0.0
    %1685 = vmatpush1.msra.mxu0 %v873
    %1686 = vmatprep.subr.mxu0 0.0
    %1687 = vmatpush1.msra.mxu0 %v874
    %1688 = vmatprep.subr.mxu0 0.0
    %1689 = vmatpush1.msra.mxu0 %v875
    %1690 = vmatprep.subr.mxu0 0.0
    %1691 = vmatpush1.msra.mxu0 %v876
    %1692 = vmatprep.subr.mxu0 0.0
    %1693 = vmatpush1.msra.mxu0 %v877
    %1694 = vmatprep.subr.mxu0 0.0
    %1695 = vmatpush1.msra.mxu0 %v878
    %1696 = vmatprep.subr.mxu0 0.0
    %1697 = vmatpush1.msra.mxu0 %v879
    %1698 = vmatprep.subr.mxu0 0.0
    %1699 = vmatpush1.msra.mxu0 %v880
    %1700 = vmatprep.subr.mxu0 0.0
    %1701 = vmatpush1.msra.mxu0 %v881
    %1702 = vmatprep.subr.mxu0 0.0
    %1703 = vmatpush1.msra.mxu0 %v882
    %1704 = vmatprep.subr.mxu0 0.0
    %1705 = vmatpush1.msra.mxu0 %v883
    %1706 = vmatprep.subr.mxu0 0.0
    %1707 = vmatpush1.msra.mxu0 %v884
    %1708 = vmatprep.subr.mxu0 0.0
    %1709 = vmatpush1.msra.mxu0 %v885
    %1710 = vmatprep.subr.mxu0 0.0
    %1711 = vmatpush1.msra.mxu0 %v886
    %1712 = vmatprep.subr.mxu0 0.0
    %1713 = vmatpush1.msra.mxu0 %v887
    %1714 = vmatprep.subr.mxu0 0.0
    %1715 = vmatpush1.msra.mxu0 %v888
    %1716 = vmatprep.mubr.f32.mxu0 %v1649
    %1717 = vmatmul.mubr.f32.gmra.mrb[0].mxu0 %v1648
    %v1718 = vpop.f32.mrb[0].mxu0
    %v1719 = vadd.f32 %v894, %v1718
    %v1720 = vpop.f32.mrb[0].mxu0
    %1721 = vdwg.mxu0
    %s1722 = scalar_lea.vmem %s2, 4
    %v1723 = vld [vmem:[%s1722] sm:$0xf]
    %v1724 = vmul.f32 %v1719, 0.5
    %v1725 = vmul.f32 %v1724, 1.442695
    %v1726 = vpow.pop %v1725
    %1728 = vrot.lane.b32.xlu0 %v1726, 112
    %v1729 = vpop.permute.xlu0 %1728
    %v1731 = vmul.f32 %v1723, %v1729
    %v1732 = vadd.f32 %v1731, %v1719
    %v1734 = vsel %vm985, %v1732, 0
    %1736 = vmatprep.subr.mxu0 0.0
    %1737 = vmatpush1.msra.mxu0 %v976
    %1738 = vmatprep.subr.mxu0 0.0
    %1739 = vmatpush1.msra.mxu0 %v977
    %1740 = vmatprep.subr.mxu0 0.0
    %1741 = vmatpush1.msra.mxu0 0.0
    %1742 = vmatprep.subr.mxu0 0.0
    %1743 = vmatpush1.msra.mxu0 0.0
    %1744 = vmatprep.subr.mxu0 0.0
    %1745 = vmatpush1.msra.mxu0 0.0
    %1746 = vmatprep.subr.mxu0 0.0
    %1747 = vmatpush1.msra.mxu0 0.0
    %1748 = vmatprep.subr.mxu0 0.0
    %1749 = vmatpush1.msra.mxu0 0.0
    %1750 = vmatprep.subr.mxu0 0.0
    %1751 = vmatpush1.msra.mxu0 0.0
    %1752 = vmatprep.subr.mxu0 0.0
    %1753 = vmatpush1.msra.mxu0 0.0
    %1754 = vmatprep.subr.mxu0 0.0
    %1755 = vmatpush1.msra.mxu0 0.0
    %1756 = vmatprep.subr.mxu0 0.0
    %1757 = vmatpush1.msra.mxu0 0.0
    %1758 = vmatprep.subr.mxu0 0.0
    %1759 = vmatpush1.msra.mxu0 0.0
    %1760 = vmatprep.subr.mxu0 0.0
    %1761 = vmatpush1.msra.mxu0 0.0
    %1762 = vmatprep.subr.mxu0 0.0
    %1763 = vmatpush1.msra.mxu0 0.0
    %1764 = vmatprep.subr.mxu0 0.0
    %1765 = vmatpush1.msra.mxu0 0.0
    %1766 = vmatprep.subr.mxu0 0.0
    %1767 = vmatpush1.msra.mxu0 0.0
    %1768 = vmatprep.subr.mxu0 0.0
    %1769 = vmatpush1.msra.mxu0 0.0
    %1770 = vmatprep.subr.mxu0 0.0
    %1771 = vmatpush1.msra.mxu0 0.0
    %1772 = vmatprep.subr.mxu0 0.0
    %1773 = vmatpush1.msra.mxu0 0.0
    %1774 = vmatprep.subr.mxu0 0.0
    %1775 = vmatpush1.msra.mxu0 0.0
    %1776 = vmatprep.subr.mxu0 0.0
    %1777 = vmatpush1.msra.mxu0 0.0
    %1778 = vmatprep.subr.mxu0 0.0
    %1779 = vmatpush1.msra.mxu0 0.0
    %1780 = vmatprep.subr.mxu0 0.0
    %1781 = vmatpush1.msra.mxu0 0.0
    %1782 = vmatprep.subr.mxu0 0.0
    %1783 = vmatpush1.msra.mxu0 0.0
    %1784 = vmatprep.subr.mxu0 0.0
    %1785 = vmatpush1.msra.mxu0 0.0
    %1786 = vmatprep.subr.mxu0 0.0
    %1787 = vmatpush1.msra.mxu0 0.0
    %1788 = vmatprep.subr.mxu0 0.0
    %1789 = vmatpush1.msra.mxu0 0.0
    %1790 = vmatprep.subr.mxu0 0.0
    %1791 = vmatpush1.msra.mxu0 0.0
    %1792 = vmatprep.subr.mxu0 0.0
    %1793 = vmatpush1.msra.mxu0 0.0
    %1794 = vmatprep.subr.mxu0 0.0
    %1795 = vmatpush1.msra.mxu0 0.0
    %1796 = vmatprep.subr.mxu0 0.0
    %1797 = vmatpush1.msra.mxu0 0.0
    %1798 = vmatprep.subr.mxu0 0.0
    %1799 = vmatpush1.msra.mxu0 0.0
    %1800 = vmatprep.mubr.f32.mxu0 0.0
    %1801 = vmatmul.mubr.f32.gmra.mrb[0].mxu0 %v1734
    %v1802 = vpop.f32.mrb[0].mxu0
    %v1803 = vadd.f32 %v983, %v1802
    %v1804 = vpop.f32.mrb[0].mxu0
    %1805 = vdwg.mxu0
    %v1806 = vmax.f32 %v1803, 0.0
    %v1808 = vsel %vm985, %v1806, 0
    %1810 = vmatprep.subr.mxu0 %v1061
    %1811 = vmatpush1.msra.mxu0 %v1060
    %1812 = vmatprep.subr.mxu0 %v1064
    %1813 = vmatpush1.msra.mxu0 %v1063
    %1814 = vmatprep.subr.mxu0 0.0
    %1815 = vmatpush1.msra.mxu0 0.0
    %1816 = vmatprep.subr.mxu0 0.0
    %1817 = vmatpush1.msra.mxu0 0.0
    %1818 = vmatprep.subr.mxu0 0.0
    %1819 = vmatpush1.msra.mxu0 0.0
    %1820 = vmatprep.subr.mxu0 0.0
    %1821 = vmatpush1.msra.mxu0 0.0
    %1822 = vmatprep.subr.mxu0 0.0
    %1823 = vmatpush1.msra.mxu0 0.0
    %1824 = vmatprep.subr.mxu0 0.0
    %1825 = vmatpush1.msra.mxu0 0.0
    %1826 = vmatprep.subr.mxu0 0.0
    %1827 = vmatpush1.msra.mxu0 0.0
    %1828 = vmatprep.subr.mxu0 0.0
    %1829 = vmatpush1.msra.mxu0 0.0
    %1830 = vmatprep.subr.mxu0 0.0
    %1831 = vmatpush1.msra.mxu0 0.0
    %1832 = vmatprep.subr.mxu0 0.0
    %1833 = vmatpush1.msra.mxu0 0.0
    %1834 = vmatprep.subr.mxu0 0.0
    %1835 = vmatpush1.msra.mxu0 0.0
    %1836 = vmatprep.subr.mxu0 0.0
    %1837 = vmatpush1.msra.mxu0 0.0
    %1838 = vmatprep.subr.mxu0 0.0
    %1839 = vmatpush1.msra.mxu0 0.0
    %1840 = vmatprep.subr.mxu0 0.0
    %1841 = vmatpush1.msra.mxu0 0.0
    %1842 = vmatprep.subr.mxu0 0.0
    %1843 = vmatpush1.msra.mxu0 0.0
    %1844 = vmatprep.subr.mxu0 0.0
    %1845 = vmatpush1.msra.mxu0 0.0
    %1846 = vmatprep.subr.mxu0 0.0
    %1847 = vmatpush1.msra.mxu0 0.0
    %1848 = vmatprep.subr.mxu0 0.0
    %1849 = vmatpush1.msra.mxu0 0.0
    %1850 = vmatprep.subr.mxu0 0.0
    %1851 = vmatpush1.msra.mxu0 0.0
    %1852 = vmatprep.subr.mxu0 0.0
    %1853 = vmatpush1.msra.mxu0 0.0
    %1854 = vmatprep.subr.mxu0 0.0
    %1855 = vmatpush1.msra.mxu0 0.0
    %1856 = vmatprep.subr.mxu0 0.0
    %1857 = vmatpush1.msra.mxu0 0.0
    %1858 = vmatprep.subr.mxu0 0.0
    %1859 = vmatpush1.msra.mxu0 0.0
    %1860 = vmatprep.subr.mxu0 0.0
    %1861 = vmatpush1.msra.mxu0 0.0
    %1862 = vmatprep.subr.mxu0 0.0
    %1863 = vmatpush1.msra.mxu0 0.0
    %1864 = vmatprep.subr.mxu0 0.0
    %1865 = vmatpush1.msra.mxu0 0.0
    %1866 = vmatprep.subr.mxu0 0.0
    %1867 = vmatpush1.msra.mxu0 0.0
    %1868 = vmatprep.subr.mxu0 0.0
    %1869 = vmatpush1.msra.mxu0 0.0
    %1870 = vmatprep.subr.mxu0 0.0
    %1871 = vmatpush1.msra.mxu0 0.0
    %1872 = vmatprep.subr.mxu0 0.0
    %1873 = vmatpush1.msra.mxu0 0.0
    %1874 = vmatprep.mubr.f32.mxu0 0.0
    %1875 = vmatmul.mubr.f32.gmra.mrb[0].mxu0 %v1808
    %v1876 = vpop.f32.mrb[0].mxu0
    %v1877 = vadd.f32 0.0, %v1876
    %v1878 = vpop.f32.mrb[0].mxu0
    %v1879 = vadd.f32 0.0, %v1878
    %1880 = vdwg.mxu0
    %1881 = vmatprep.subr.mxu0 0.0
    %1882 = vmatpush1.msra.mxu0 %v1062
    %1883 = vmatprep.subr.mxu0 0.0
    %1884 = vmatpush1.msra.mxu0 %v1065
    %1885 = vmatprep.subr.mxu0 0.0
    %1886 = vmatpush1.msra.mxu0 0.0
    %1887 = vmatprep.subr.mxu0 0.0
    %1888 = vmatpush1.msra.mxu0 0.0
    %1889 = vmatprep.subr.mxu0 0.0
    %1890 = vmatpush1.msra.mxu0 0.0
    %1891 = vmatprep.subr.mxu0 0.0
    %1892 = vmatpush1.msra.mxu0 0.0
    %1893 = vmatprep.subr.mxu0 0.0
    %1894 = vmatpush1.msra.mxu0 0.0
    %1895 = vmatprep.subr.mxu0 0.0
    %1896 = vmatpush1.msra.mxu0 0.0
    %1897 = vmatprep.subr.mxu0 0.0
    %1898 = vmatpush1.msra.mxu0 0.0
    %1899 = vmatprep.subr.mxu0 0.0
    %1900 = vmatpush1.msra.mxu0 0.0
    %1901 = vmatprep.subr.mxu0 0.0
    %1902 = vmatpush1.msra.mxu0 0.0
    %1903 = vmatprep.subr.mxu0 0.0
    %1904 = vmatpush1.msra.mxu0 0.0
    %1905 = vmatprep.subr.mxu0 0.0
    %1906 = vmatpush1.msra.mxu0 0.0
    %1907 = vmatprep.subr.mxu0 0.0
    %1908 = vmatpush1.msra.mxu0 0.0
    %1909 = vmatprep.subr.mxu0 0.0
    %1910 = vmatpush1.msra.mxu0 0.0
    %1911 = vmatprep.subr.mxu0 0.0
    %1912 = vmatpush1.msra.mxu0 0.0
    %1913 = vmatprep.subr.mxu0 0.0
    %1914 = vmatpush1.msra.mxu0 0.0
    %1915 = vmatprep.subr.mxu0 0.0
    %1916 = vmatpush1.msra.mxu0 0.0
    %1917 = vmatprep.subr.mxu0 0.0
    %1918 = vmatpush1.msra.mxu0 0.0
    %1919 = vmatprep.subr.mxu0 0.0
    %1920 = vmatpush1.msra.mxu0 0.0
    %1921 = vmatprep.subr.mxu0 0.0
    %1922 = vmatpush1.msra.mxu0 0.0
    %1923 = vmatprep.subr.mxu0 0.0
    %1924 = vmatpush1.msra.mxu0 0.0
    %1925 = vmatprep.subr.mxu0 0.0
    %1926 = vmatpush1.msra.mxu0 0.0
    %1927 = vmatprep.subr.mxu0 0.0
    %1928 = vmatpush1.msra.mxu0 0.0
    %1929 = vmatprep.subr.mxu0 0.0
    %1930 = vmatpush1.msra.mxu0 0.0
    %1931 = vmatprep.subr.mxu0 0.0
    %1932 = vmatpush1.msra.mxu0 0.0
    %1933 = vmatprep.subr.mxu0 0.0
    %1934 = vmatpush1.msra.mxu0 0.0
    %1935 = vmatprep.subr.mxu0 0.0
    %1936 = vmatpush1.msra.mxu0 0.0
    %1937 = vmatprep.subr.mxu0 0.0
    %1938 = vmatpush1.msra.mxu0 0.0
    %1939 = vmatprep.subr.mxu0 0.0
    %1940 = vmatpush1.msra.mxu0 0.0
    %1941 = vmatprep.subr.mxu0 0.0
    %1942 = vmatpush1.msra.mxu0 0.0
    %1943 = vmatprep.subr.mxu0 0.0
    %1944 = vmatpush1.msra.mxu0 0.0
    %1945 = vmatprep.mubr.f32.mxu0 0.0
    %1946 = vmatmul.mubr.f32.gmra.mrb[0].mxu0 %v1808
    %v1947 = vpop.f32.mrb[0].mxu0
    %v1948 = vadd.f32 0.0, %v1947
    %v1949 = vpop.f32.mrb[0].mxu0
    %1950 = vdwg.mxu0
    %v1954 = vrot.slane %v1877, 4
    %v1955 = vrot.slane %v1879, 4
    %v1956 = vrot.slane %v1948, 4
    %v1960 = vadd.f32 %v1641, %v1954
    %v1961 = vadd.f32 %v1642, %v1955
    %v1962 = vadd.f32 %v1643, %v1956
    %v1963 = vadd.f32 %v1960, %v1218
    %v1964 = vadd.f32 %v1961, %v1222
    %v1965 = vadd.f32 %v1962, %v1226
    %v1966 = vmax.f32 %v1963, 0.0
    %v1968 = vrot.slane %v1966, 4
    %v1969 = vsel %vm1249, %v1968, 0
    %1971 = vmatprep.subr.mxu0 0.0
    %1972 = vmatpush1.msra.mxu0 %v1234
    %1973 = vmatprep.subr.mxu0 0.0
    %1974 = vmatpush1.msra.mxu0 %v1235
    %1975 = vmatprep.subr.mxu0 0.0
    %1976 = vmatpush1.msra.mxu0 %v1236
    %1977 = vmatprep.subr.mxu0 0.0
    %1978 = vmatpush1.msra.mxu0 %v1237
    %1979 = vmatprep.subr.mxu0 0.0
    %1980 = vmatpush1.msra.mxu0 %v1238
    %1981 = vmatprep.subr.mxu0 0.0
    %1982 = vmatpush1.msra.mxu0 %v1239
    %1983 = vmatprep.subr.mxu0 0.0
    %1984 = vmatpush1.msra.mxu0 %v1240
    %1985 = vmatprep.subr.mxu0 0.0
    %1986 = vmatpush1.msra.mxu0 %v1241
    %1987 = vmatprep.subr.mxu0 0.0
    %1988 = vmatpush1.msra.mxu0 0.0
    %1989 = vmatprep.subr.mxu0 0.0
    %1990 = vmatpush1.msra.mxu0 0.0
    %1991 = vmatprep.subr.mxu0 0.0
    %1992 = vmatpush1.msra.mxu0 0.0
    %1993 = vmatprep.subr.mxu0 0.0
    %1994 = vmatpush1.msra.mxu0 0.0
    %1995 = vmatprep.subr.mxu0 0.0
    %1996 = vmatpush1.msra.mxu0 0.0
    %1997 = vmatprep.subr.mxu0 0.0
    %1998 = vmatpush1.msra.mxu0 0.0
    %1999 = vmatprep.subr.mxu0 0.0
    %2000 = vmatpush1.msra.mxu0 0.0
    %2001 = vmatprep.subr.mxu0 0.0
    %2002 = vmatpush1.msra.mxu0 0.0
    %2003 = vmatprep.subr.mxu0 0.0
    %2004 = vmatpush1.msra.mxu0 0.0
    %2005 = vmatprep.subr.mxu0 0.0
    %2006 = vmatpush1.msra.mxu0 0.0
    %2007 = vmatprep.subr.mxu0 0.0
    %2008 = vmatpush1.msra.mxu0 0.0
    %2009 = vmatprep.subr.mxu0 0.0
    %2010 = vmatpush1.msra.mxu0 0.0
    %2011 = vmatprep.subr.mxu0 0.0
    %2012 = vmatpush1.msra.mxu0 0.0
    %2013 = vmatprep.subr.mxu0 0.0
    %2014 = vmatpush1.msra.mxu0 0.0
    %2015 = vmatprep.subr.mxu0 0.0
    %2016 = vmatpush1.msra.mxu0 0.0
    %2017 = vmatprep.subr.mxu0 0.0
    %2018 = vmatpush1.msra.mxu0 0.0
    %2019 = vmatprep.subr.mxu0 0.0
    %2020 = vmatpush1.msra.mxu0 0.0
    %2021 = vmatprep.subr.mxu0 0.0
    %2022 = vmatpush1.msra.mxu0 0.0
    %2023 = vmatprep.subr.mxu0 0.0
    %2024 = vmatpush1.msra.mxu0 0.0
    %2025 = vmatprep.subr.mxu0 0.0
    %2026 = vmatpush1.msra.mxu0 0.0
    %2027 = vmatprep.subr.mxu0 0.0
    %2028 = vmatpush1.msra.mxu0 0.0
    %2029 = vmatprep.subr.mxu0 0.0
    %2030 = vmatpush1.msra.mxu0 0.0
    %2031 = vmatprep.subr.mxu0 0.0
    %2032 = vmatpush1.msra.mxu0 0.0
    %2033 = vmatprep.subr.mxu0 0.0
    %2034 = vmatpush1.msra.mxu0 0.0
    %2035 = vmatprep.mubr.f32.mxu0 0.0
    %2036 = vmatmul.mubr.f32.gmra.mrb[0].mxu0 %v1969
    %v2037 = vpop.f32.mrb[0].mxu0
    %v2038 = vadd.f32 %v1247, %v2037
    %v2039 = vpop.f32.mrb[0].mxu0
    %2040 = vdwg.mxu0
    %v2041 = vadd.f32 %v1964, %v1965
    %v2042 = vxor.u32 %v2041, 2147483648
    %v2043 = vmul.f32 %v2042, 1.442695
    %v2044 = vpow.pop %v2043
    %v2045 = vadd.f32 %v2044, 1.0
    %v2046 = vrcp.pop %v2045
    %v2047 = vmul.f32 1.0, %v2046
    %2049 = vrot.lane.b32.xlu0 %v1965, 64
    %v2050 = vpop.permute.xlu0 %2049
    %v2052 = vmul.f32 %v2047, %v2050
    %2054 = vrot.lane.b32.xlu0 %v2052, 64
    %v2055 = vpop.permute.xlu0 %2054
    %v2057 = vadd.f32 %v1964, %v2055
    %v2058 = vtanh.pop %v2057
    %v2059 = vsub.f32 1.0, %v2047
    %2061 = vrot.lane.b32.xlu0 %v2058, 96
    %v2062 = vpop.permute.xlu0 %2061
    %v2064 = vmul.f32 %v2059, %v2062
    %v2065 = vrot.slane %v1348, 4
    %v2067 = vmul.f32 %v2047, %v2065
    %v2068 = vadd.f32 %v2064, %v2067
    %2070 = vrot.lane.b32.xlu0 %v1719, 32
    %v2071 = vpop.permute.xlu0 %2070
    %v2073 = vsub.f32 %v1719, %v2071
    %v2074 = vadd.f32 %v1379, %v2073
    %2075 = vrot.lane.b32.xlu0 %v1719, 96
    %v2076 = vpop.permute.xlu0 %2075
    %v2078 = vsub.f32 %v1719, %v2076
    %v2079 = vmul.f32 %v2078, 1.442695
    %v2080 = vpow.pop %v2079
    %2082 = vrot.lane.b32.xlu0 %v2080, 32
    %v2083 = vpop.permute.xlu0 %2082
    %v2085 = vadd.f32 %v2074, %v2083
    %v2086 = vmul.f32 %v2078, %v2078
    %v2087 = vsub.f32 0.0, %v1719
    %v2088 = vmul.f32 %v2087, 1.442695
    %v2089 = vpow.pop %v2088
    %2091 = vrot.lane.b32.xlu0 %v2089, 80
    %v2092 = vpop.permute.xlu0 %2091
    %v2094 = vmul.f32 %v2086, %v2092
    %2096 = vrot.lane.b32.xlu0 %v2094, 48
    %v2097 = vpop.permute.xlu0 %2096
    %v2099 = vadd.f32 %v2085, %v2097
    %s2100 = scalar_lea.vmem %s1, 4
    %v2101 = vld [vmem:[%s2100] sm:$0xf]
    %v2102 = vsub.f32 %v2101, %v2038
    %v2103 = vmul.f32 %v2102, %v2102
    %v2104 = vsub.f32 0.0, %v2038
    %v2105 = vmul.f32 %v2104, 1.442695
    %v2106 = vpow.pop %v2105
    %2108 = vrot.lane.b32.xlu0 %v2106, 126
    %v2109 = vpop.permute.xlu0 %2108
    %v2111 = vmul.f32 %v2103, %v2109
    %v2112 = vadd.f32 %v1396, %v2111
    %2114 = vrot.lane.b32.xlu0 %v2038, 126
    %v2115 = vpop.permute.xlu0 %2114
    %v2117 = vadd.f32 %v2112, %v2115
    %v2118 = vld [vmem:[#allocation2 + $0x28] sm:$0xf]
    %v2119 = vld [vmem:[#allocation2 + $0x30] sm:$0xf]
    %v2120 = vld [vmem:[#allocation2 + $0x38] sm:$0xf]
    %v2121 = vld [vmem:[#allocation2 + $0x40] sm:$0xf]
    %v2122 = vld [vmem:[#allocation2 + $0x48] sm:$0xf]
    %v2124 = vrot.slane %v2068, 4
    %2125 = vrot.lane.b32.xlu0 %v2124, 96
    %v2126 = vpop.permute.xlu0 %2125
    %v2127 = vsel %vm282, %v2126, 0
    %2129 = vmatprep.subr.mxu0 %v584
    %2130 = vmatpush1.msra.mxu0 %v583
    %2131 = vmatprep.subr.mxu0 %v589
    %2132 = vmatpush1.msra.mxu0 %v588
    %2133 = vmatprep.subr.mxu0 %v594
    %2134 = vmatpush1.msra.mxu0 %v593
    %2135 = vmatprep.subr.mxu0 %v599
    %2136 = vmatpush1.msra.mxu0 %v598
    %2137 = vmatprep.subr.mxu0 0.0
    %2138 = vmatpush1.msra.mxu0 0.0
    %2139 = vmatprep.subr.mxu0 0.0
    %2140 = vmatpush1.msra.mxu0 0.0
    %2141 = vmatprep.subr.mxu0 0.0
    %2142 = vmatpush1.msra.mxu0 0.0
    %2143 = vmatprep.subr.mxu0 0.0
    %2144 = vmatpush1.msra.mxu0 0.0
    %2145 = vmatprep.subr.mxu0 0.0
    %2146 = vmatpush1.msra.mxu0 0.0
    %2147 = vmatprep.subr.mxu0 0.0
    %2148 = vmatpush1.msra.mxu0 0.0
    %2149 = vmatprep.subr.mxu0 0.0
    %2150 = vmatpush1.msra.mxu0 0.0
    %2151 = vmatprep.subr.mxu0 0.0
    %2152 = vmatpush1.msra.mxu0 0.0
    %2153 = vmatprep.subr.mxu0 0.0
    %2154 = vmatpush1.msra.mxu0 0.0
    %2155 = vmatprep.subr.mxu0 0.0
    %2156 = vmatpush1.msra.mxu0 0.0
    %2157 = vmatprep.subr.mxu0 0.0
    %2158 = vmatpush1.msra.mxu0 0.0
    %2159 = vmatprep.subr.mxu0 0.0
    %2160 = vmatpush1.msra.mxu0 0.0
    %2161 = vmatprep.subr.mxu0 0.0
    %2162 = vmatpush1.msra.mxu0 0.0
    %2163 = vmatprep.subr.mxu0 0.0
    %2164 = vmatpush1.msra.mxu0 0.0
    %2165 = vmatprep.subr.mxu0 0.0
    %2166 = vmatpush1.msra.mxu0 0.0
    %2167 = vmatprep.subr.mxu0 0.0
    %2168 = vmatpush1.msra.mxu0 0.0
    %2169 = vmatprep.subr.mxu0 0.0
    %2170 = vmatpush1.msra.mxu0 0.0
    %2171 = vmatprep.subr.mxu0 0.0
    %2172 = vmatpush1.msra.mxu0 0.0
    %2173 = vmatprep.subr.mxu0 0.0
    %2174 = vmatpush1.msra.mxu0 0.0
    %2175 = vmatprep.subr.mxu0 0.0
    %2176 = vmatpush1.msra.mxu0 0.0
    %2177 = vmatprep.subr.mxu0 0.0
    %2178 = vmatpush1.msra.mxu0 0.0
    %2179 = vmatprep.subr.mxu0 0.0
    %2180 = vmatpush1.msra.mxu0 0.0
    %2181 = vmatprep.subr.mxu0 0.0
    %2182 = vmatpush1.msra.mxu0 0.0
    %2183 = vmatprep.subr.mxu0 0.0
    %2184 = vmatpush1.msra.mxu0 0.0
    %2185 = vmatprep.subr.mxu0 0.0
    %2186 = vmatpush1.msra.mxu0 0.0
    %2187 = vmatprep.subr.mxu0 0.0
    %2188 = vmatpush1.msra.mxu0 0.0
    %2189 = vmatprep.subr.mxu0 0.0
    %2190 = vmatpush1.msra.mxu0 0.0
    %2191 = vmatprep.subr.mxu0 0.0
    %2192 = vmatpush1.msra.mxu0 0.0
    %2193 = vmatprep.mubr.f32.mxu0 0.0
    %2194 = vmatmul.mubr.f32.gmra.mrb[0].mxu0 %v2127
    %v2195 = vpop.f32.mrb[0].mxu0
    %v2196 = vadd.f32 0.0, %v2195
    %v2197 = vpop.f32.mrb[0].mxu0
    %v2198 = vadd.f32 0.0, %v2197
    %2199 = vdwg.mxu0
    %2200 = vmatprep.subr.mxu0 %v586
    %2201 = vmatpush1.msra.mxu0 %v585
    %2202 = vmatprep.subr.mxu0 %v591
    %2203 = vmatpush1.msra.mxu0 %v590
    %2204 = vmatprep.subr.mxu0 %v596
    %2205 = vmatpush1.msra.mxu0 %v595
    %2206 = vmatprep.subr.mxu0 %v601
    %2207 = vmatpush1.msra.mxu0 %v600
    %2208 = vmatprep.subr.mxu0 0.0
    %2209 = vmatpush1.msra.mxu0 0.0
    %2210 = vmatprep.subr.mxu0 0.0
    %2211 = vmatpush1.msra.mxu0 0.0
    %2212 = vmatprep.subr.mxu0 0.0
    %2213 = vmatpush1.msra.mxu0 0.0
    %2214 = vmatprep.subr.mxu0 0.0
    %2215 = vmatpush1.msra.mxu0 0.0
    %2216 = vmatprep.subr.mxu0 0.0
    %2217 = vmatpush1.msra.mxu0 0.0
    %2218 = vmatprep.subr.mxu0 0.0
    %2219 = vmatpush1.msra.mxu0 0.0
    %2220 = vmatprep.subr.mxu0 0.0
    %2221 = vmatpush1.msra.mxu0 0.0
    %2222 = vmatprep.subr.mxu0 0.0
    %2223 = vmatpush1.msra.mxu0 0.0
    %2224 = vmatprep.subr.mxu0 0.0
    %2225 = vmatpush1.msra.mxu0 0.0
    %2226 = vmatprep.subr.mxu0 0.0
    %2227 = vmatpush1.msra.mxu0 0.0
    %2228 = vmatprep.subr.mxu0 0.0
    %2229 = vmatpush1.msra.mxu0 0.0
    %2230 = vmatprep.subr.mxu0 0.0
    %2231 = vmatpush1.msra.mxu0 0.0
    %2232 = vmatprep.subr.mxu0 0.0
    %2233 = vmatpush1.msra.mxu0 0.0
    %2234 = vmatprep.subr.mxu0 0.0
    %2235 = vmatpush1.msra.mxu0 0.0
    %2236 = vmatprep.subr.mxu0 0.0
    %2237 = vmatpush1.msra.mxu0 0.0
    %2238 = vmatprep.subr.mxu0 0.0
    %2239 = vmatpush1.msra.mxu0 0.0
    %2240 = vmatprep.subr.mxu0 0.0
    %2241 = vmatpush1.msra.mxu0 0.0
    %2242 = vmatprep.subr.mxu0 0.0
    %2243 = vmatpush1.msra.mxu0 0.0
    %2244 = vmatprep.subr.mxu0 0.0
    %2245 = vmatpush1.msra.mxu0 0.0
    %2246 = vmatprep.subr.mxu0 0.0
    %2247 = vmatpush1.msra.mxu0 0.0
    %2248 = vmatprep.subr.mxu0 0.0
    %2249 = vmatpush1.msra.mxu0 0.0
    %2250 = vmatprep.subr.mxu0 0.0
    %2251 = vmatpush1.msra.mxu0 0.0
    %2252 = vmatprep.subr.mxu0 0.0
    %2253 = vmatpush1.msra.mxu0 0.0
    %2254 = vmatprep.subr.mxu0 0.0
    %2255 = vmatpush1.msra.mxu0 0.0
    %2256 = vmatprep.subr.mxu0 0.0
    %2257 = vmatpush1.msra.mxu0 0.0
    %2258 = vmatprep.subr.mxu0 0.0
    %2259 = vmatpush1.msra.mxu0 0.0
    %2260 = vmatprep.subr.mxu0 0.0
    %2261 = vmatpush1.msra.mxu0 0.0
    %2262 = vmatprep.subr.mxu0 0.0
    %2263 = vmatpush1.msra.mxu0 0.0
    %2264 = vmatprep.mubr.f32.mxu0 0.0
    %2265 = vmatmul.mubr.f32.gmra.mrb[0].mxu0 %v2127
    %v2266 = vpop.f32.mrb[0].mxu0
    %v2267 = vadd.f32 0.0, %v2266
    %v2268 = vpop.f32.mrb[0].mxu0
    %v2269 = vadd.f32 0.0, %v2268
    %2270 = vdwg.mxu0
    %2271 = vmatprep.subr.mxu0 0.0
    %2272 = vmatpush1.msra.mxu0 %v587
    %2273 = vmatprep.subr.mxu0 0.0
    %2274 = vmatpush1.msra.mxu0 %v592
    %2275 = vmatprep.subr.mxu0 0.0
    %2276 = vmatpush1.msra.mxu0 %v597
    %2277 = vmatprep.subr.mxu0 0.0
    %2278 = vmatpush1.msra.mxu0 %v602
    %2279 = vmatprep.subr.mxu0 0.0
    %2280 = vmatpush1.msra.mxu0 0.0
    %2281 = vmatprep.subr.mxu0 0.0
    %2282 = vmatpush1.msra.mxu0 0.0
    %2283 = vmatprep.subr.mxu0 0.0
    %2284 = vmatpush1.msra.mxu0 0.0
    %2285 = vmatprep.subr.mxu0 0.0
    %2286 = vmatpush1.msra.mxu0 0.0
    %2287 = vmatprep.subr.mxu0 0.0
    %2288 = vmatpush1.msra.mxu0 0.0
    %2289 = vmatprep.subr.mxu0 0.0
    %2290 = vmatpush1.msra.mxu0 0.0
    %2291 = vmatprep.subr.mxu0 0.0
    %2292 = vmatpush1.msra.mxu0 0.0
    %2293 = vmatprep.subr.mxu0 0.0
    %2294 = vmatpush1.msra.mxu0 0.0
    %2295 = vmatprep.subr.mxu0 0.0
    %2296 = vmatpush1.msra.mxu0 0.0
    %2297 = vmatprep.subr.mxu0 0.0
    %2298 = vmatpush1.msra.mxu0 0.0
    %2299 = vmatprep.subr.mxu0 0.0
    %2300 = vmatpush1.msra.mxu0 0.0
    %2301 = vmatprep.subr.mxu0 0.0
    %2302 = vmatpush1.msra.mxu0 0.0
    %2303 = vmatprep.subr.mxu0 0.0
    %2304 = vmatpush1.msra.mxu0 0.0
    %2305 = vmatprep.subr.mxu0 0.0
    %2306 = vmatpush1.msra.mxu0 0.0
    %2307 = vmatprep.subr.mxu0 0.0
    %2308 = vmatpush1.msra.mxu0 0.0
    %2309 = vmatprep.subr.mxu0 0.0
    %2310 = vmatpush1.msra.mxu0 0.0
    %2311 = vmatprep.subr.mxu0 0.0
    %2312 = vmatpush1.msra.mxu0 0.0
    %2313 = vmatprep.subr.mxu0 0.0
    %2314 = vmatpush1.msra.mxu0 0.0
    %2315 = vmatprep.subr.mxu0 0.0
    %2316 = vmatpush1.msra.mxu0 0.0
    %2317 = vmatprep.subr.mxu0 0.0
    %2318 = vmatpush1.msra.mxu0 0.0
    %2319 = vmatprep.subr.mxu0 0.0
    %2320 = vmatpush1.msra.mxu0 0.0
    %2321 = vmatprep.subr.mxu0 0.0
    %2322 = vmatpush1.msra.mxu0 0.0
    %2323 = vmatprep.subr.mxu0 0.0
    %2324 = vmatpush1.msra.mxu0 0.0
    %2325 = vmatprep.subr.mxu0 0.0
    %2326 = vmatpush1.msra.mxu0 0.0
    %2327 = vmatprep.subr.mxu0 0.0
    %2328 = vmatpush1.msra.mxu0 0.0
    %2329 = vmatprep.subr.mxu0 0.0
    %2330 = vmatpush1.msra.mxu0 0.0
    %2331 = vmatprep.subr.mxu0 0.0
    %2332 = vmatpush1.msra.mxu0 0.0
    %2333 = vmatprep.subr.mxu0 0.0
    %2334 = vmatpush1.msra.mxu0 0.0
    %2335 = vmatprep.mubr.f32.mxu0 0.0
    %2336 = vmatmul.mubr.f32.gmra.mrb[0].mxu0 %v2127
    %v2337 = vpop.f32.mrb[0].mxu0
    %v2338 = vadd.f32 0.0, %v2337
    %v2339 = vpop.f32.mrb[0].mxu0
    %2340 = vdwg.mxu0
    %v2341 = vadd.f32 %v2118, %v2196
    %v2342 = vadd.f32 %v2119, %v2198
    %v2343 = vadd.f32 %v2120, %v2267
    %v2344 = vadd.f32 %v2121, %v2269
    %v2345 = vadd.f32 %v2122, %v2338
    %v2346 = vadd.f32 %v2341, %v828
    %v2347 = vadd.f32 %v2342, %v832
    %v2348 = vadd.f32 %v2343, %v836
    %v2349 = vadd.f32 %v2344, %v840
    %v2350 = vadd.f32 %v2345, %v844
    %v2351 = vmax.f32 %v2346, 0.0
    %v2352 = vmax.f32 %v2347, 0.0
    %2353 = vmatprep.subr.mxu0 0.0
    %2354 = vmatpush1.msra.mxu0 %v857
    %2355 = vmatprep.subr.mxu0 0.0
    %2356 = vmatpush1.msra.mxu0 %v858
    %2357 = vmatprep.subr.mxu0 0.0
    %2358 = vmatpush1.msra.mxu0 %v859
    %2359 = vmatprep.subr.mxu0 0.0
    %2360 = vmatpush1.msra.mxu0 %v860
    %2361 = vmatprep.subr.mxu0 0.0
    %2362 = vmatpush1.msra.mxu0 %v861
    %2363 = vmatprep.subr.mxu0 0.0
    %2364 = vmatpush1.msra.mxu0 %v862
    %2365 = vmatprep.subr.mxu0 0.0
    %2366 = vmatpush1.msra.mxu0 %v863
    %2367 = vmatprep.subr.mxu0 0.0
    %2368 = vmatpush1.msra.mxu0 %v864
    %2369 = vmatprep.subr.mxu0 0.0
    %2370 = vmatpush1.msra.mxu0 %v865
    %2371 = vmatprep.subr.mxu0 0.0
    %2372 = vmatpush1.msra.mxu0 %v866
    %2373 = vmatprep.subr.mxu0 0.0
    %2374 = vmatpush1.msra.mxu0 %v867
    %2375 = vmatprep.subr.mxu0 0.0
    %2376 = vmatpush1.msra.mxu0 %v868
    %2377 = vmatprep.subr.mxu0 0.0
    %2378 = vmatpush1.msra.mxu0 %v869
    %2379 = vmatprep.subr.mxu0 0.0
    %2380 = vmatpush1.msra.mxu0 %v870
    %2381 = vmatprep.subr.mxu0 0.0
    %2382 = vmatpush1.msra.mxu0 %v871
    %2383 = vmatprep.subr.mxu0 0.0
    %2384 = vmatpush1.msra.mxu0 %v872
    %2385 = vmatprep.subr.mxu0 0.0
    %2386 = vmatpush1.msra.mxu0 %v873
    %2387 = vmatprep.subr.mxu0 0.0
    %2388 = vmatpush1.msra.mxu0 %v874
    %2389 = vmatprep.subr.mxu0 0.0
    %2390 = vmatpush1.msra.mxu0 %v875
    %2391 = vmatprep.subr.mxu0 0.0
    %2392 = vmatpush1.msra.mxu0 %v876
    %2393 = vmatprep.subr.mxu0 0.0
    %2394 = vmatpush1.msra.mxu0 %v877
    %2395 = vmatprep.subr.mxu0 0.0
    %2396 = vmatpush1.msra.mxu0 %v878
    %2397 = vmatprep.subr.mxu0 0.0
    %2398 = vmatpush1.msra.mxu0 %v879
    %2399 = vmatprep.subr.mxu0 0.0
    %2400 = vmatpush1.msra.mxu0 %v880
    %2401 = vmatprep.subr.mxu0 0.0
    %2402 = vmatpush1.msra.mxu0 %v881
    %2403 = vmatprep.subr.mxu0 0.0
    %2404 = vmatpush1.msra.mxu0 %v882
    %2405 = vmatprep.subr.mxu0 0.0
    %2406 = vmatpush1.msra.mxu0 %v883
    %2407 = vmatprep.subr.mxu0 0.0
    %2408 = vmatpush1.msra.mxu0 %v884
    %2409 = vmatprep.subr.mxu0 0.0
    %2410 = vmatpush1.msra.mxu0 %v885
    %2411 = vmatprep.subr.mxu0 0.0
    %2412 = vmatpush1.msra.mxu0 %v886
    %2413 = vmatprep.subr.mxu0 0.0
    %2414 = vmatpush1.msra.mxu0 %v887
    %2415 = vmatprep.subr.mxu0 0.0
    %2416 = vmatpush1.msra.mxu0 %v888
    %2417 = vmatprep.mubr.f32.mxu0 %v2352
    %2418 = vmatmul.mubr.f32.gmra.mrb[0].mxu0 %v2351
    %v2419 = vpop.f32.mrb[0].mxu0
    %v2420 = vadd.f32 %v894, %v2419
    %v2421 = vpop.f32.mrb[0].mxu0
    %2422 = vdwg.mxu0
    %s2423 = scalar_lea.vmem %s2, 8
    %v2424 = vld [vmem:[%s2423] sm:$0xf]
    %v2425 = vmul.f32 %v2420, 0.5
    %v2426 = vmul.f32 %v2425, 1.442695
    %v2427 = vpow.pop %v2426
    %2429 = vrot.lane.b32.xlu0 %v2427, 112
    %v2430 = vpop.permute.xlu0 %2429
    %v2432 = vmul.f32 %v2424, %v2430
    %v2433 = vadd.f32 %v2432, %v2420
    %v2435 = vsel %vm985, %v2433, 0
    %2437 = vmatprep.subr.mxu0 0.0
    %2438 = vmatpush1.msra.mxu0 %v976
    %2439 = vmatprep.subr.mxu0 0.0
    %2440 = vmatpush1.msra.mxu0 %v977
    %2441 = vmatprep.subr.mxu0 0.0
    %2442 = vmatpush1.msra.mxu0 0.0
    %2443 = vmatprep.subr.mxu0 0.0
    %2444 = vmatpush1.msra.mxu0 0.0
    %2445 = vmatprep.subr.mxu0 0.0
    %2446 = vmatpush1.msra.mxu0 0.0
    %2447 = vmatprep.subr.mxu0 0.0
    %2448 = vmatpush1.msra.mxu0 0.0
    %2449 = vmatprep.subr.mxu0 0.0
    %2450 = vmatpush1.msra.mxu0 0.0
    %2451 = vmatprep.subr.mxu0 0.0
    %2452 = vmatpush1.msra.mxu0 0.0
    %2453 = vmatprep.subr.mxu0 0.0
    %2454 = vmatpush1.msra.mxu0 0.0
    %2455 = vmatprep.subr.mxu0 0.0
    %2456 = vmatpush1.msra.mxu0 0.0
    %2457 = vmatprep.subr.mxu0 0.0
    %2458 = vmatpush1.msra.mxu0 0.0
    %2459 = vmatprep.subr.mxu0 0.0
    %2460 = vmatpush1.msra.mxu0 0.0
    %2461 = vmatprep.subr.mxu0 0.0
    %2462 = vmatpush1.msra.mxu0 0.0
    %2463 = vmatprep.subr.mxu0 0.0
    %2464 = vmatpush1.msra.mxu0 0.0
    %2465 = vmatprep.subr.mxu0 0.0
    %2466 = vmatpush1.msra.mxu0 0.0
    %2467 = vmatprep.subr.mxu0 0.0
    %2468 = vmatpush1.msra.mxu0 0.0
    %2469 = vmatprep.subr.mxu0 0.0
    %2470 = vmatpush1.msra.mxu0 0.0
    %2471 = vmatprep.subr.mxu0 0.0
    %2472 = vmatpush1.msra.mxu0 0.0
    %2473 = vmatprep.subr.mxu0 0.0
    %2474 = vmatpush1.msra.mxu0 0.0
    %2475 = vmatprep.subr.mxu0 0.0
    %2476 = vmatpush1.msra.mxu0 0.0
    %2477 = vmatprep.subr.mxu0 0.0
    %2478 = vmatpush1.msra.mxu0 0.0
    %2479 = vmatprep.subr.mxu0 0.0
    %2480 = vmatpush1.msra.mxu0 0.0
    %2481 = vmatprep.subr.mxu0 0.0
    %2482 = vmatpush1.msra.mxu0 0.0
    %2483 = vmatprep.subr.mxu0 0.0
    %2484 = vmatpush1.msra.mxu0 0.0
    %2485 = vmatprep.subr.mxu0 0.0
    %2486 = vmatpush1.msra.mxu0 0.0
    %2487 = vmatprep.subr.mxu0 0.0
    %2488 = vmatpush1.msra.mxu0 0.0
    %2489 = vmatprep.subr.mxu0 0.0
    %2490 = vmatpush1.msra.mxu0 0.0
    %2491 = vmatprep.subr.mxu0 0.0
    %2492 = vmatpush1.msra.mxu0 0.0
    %2493 = vmatprep.subr.mxu0 0.0
    %2494 = vmatpush1.msra.mxu0 0.0
    %2495 = vmatprep.subr.mxu0 0.0
    %2496 = vmatpush1.msra.mxu0 0.0
    %2497 = vmatprep.subr.mxu0 0.0
    %2498 = vmatpush1.msra.mxu0 0.0
    %2499 = vmatprep.subr.mxu0 0.0
    %2500 = vmatpush1.msra.mxu0 0.0
    %2501 = vmatprep.mubr.f32.mxu0 0.0
    %2502 = vmatmul.mubr.f32.gmra.mrb[0].mxu0 %v2435
    %v2503 = vpop.f32.mrb[0].mxu0
    %v2504 = vadd.f32 %v983, %v2503
    %v2505 = vpop.f32.mrb[0].mxu0
    %2506 = vdwg.mxu0
    %v2507 = vmax.f32 %v2504, 0.0
    %v2509 = vsel %vm985, %v2507, 0
    %2511 = vmatprep.subr.mxu0 %v1061
    %2512 = vmatpush1.msra.mxu0 %v1060
    %2513 = vmatprep.subr.mxu0 %v1064
    %2514 = vmatpush1.msra.mxu0 %v1063
    %2515 = vmatprep.subr.mxu0 0.0
    %2516 = vmatpush1.msra.mxu0 0.0
    %2517 = vmatprep.subr.mxu0 0.0
    %2518 = vmatpush1.msra.mxu0 0.0
    %2519 = vmatprep.subr.mxu0 0.0
    %2520 = vmatpush1.msra.mxu0 0.0
    %2521 = vmatprep.subr.mxu0 0.0
    %2522 = vmatpush1.msra.mxu0 0.0
    %2523 = vmatprep.subr.mxu0 0.0
    %2524 = vmatpush1.msra.mxu0 0.0
    %2525 = vmatprep.subr.mxu0 0.0
    %2526 = vmatpush1.msra.mxu0 0.0
    %2527 = vmatprep.subr.mxu0 0.0
    %2528 = vmatpush1.msra.mxu0 0.0
    %2529 = vmatprep.subr.mxu0 0.0
    %2530 = vmatpush1.msra.mxu0 0.0
    %2531 = vmatprep.subr.mxu0 0.0
    %2532 = vmatpush1.msra.mxu0 0.0
    %2533 = vmatprep.subr.mxu0 0.0
    %2534 = vmatpush1.msra.mxu0 0.0
    %2535 = vmatprep.subr.mxu0 0.0
    %2536 = vmatpush1.msra.mxu0 0.0
    %2537 = vmatprep.subr.mxu0 0.0
    %2538 = vmatpush1.msra.mxu0 0.0
    %2539 = vmatprep.subr.mxu0 0.0
    %2540 = vmatpush1.msra.mxu0 0.0
    %2541 = vmatprep.subr.mxu0 0.0
    %2542 = vmatpush1.msra.mxu0 0.0
    %2543 = vmatprep.subr.mxu0 0.0
    %2544 = vmatpush1.msra.mxu0 0.0
    %2545 = vmatprep.subr.mxu0 0.0
    %2546 = vmatpush1.msra.mxu0 0.0
    %2547 = vmatprep.subr.mxu0 0.0
    %2548 = vmatpush1.msra.mxu0 0.0
    %2549 = vmatprep.subr.mxu0 0.0
    %2550 = vmatpush1.msra.mxu0 0.0
    %2551 = vmatprep.subr.mxu0 0.0
    %2552 = vmatpush1.msra.mxu0 0.0
    %2553 = vmatprep.subr.mxu0 0.0
    %2554 = vmatpush1.msra.mxu0 0.0
    %2555 = vmatprep.subr.mxu0 0.0
    %2556 = vmatpush1.msra.mxu0 0.0
    %2557 = vmatprep.subr.mxu0 0.0
    %2558 = vmatpush1.msra.mxu0 0.0
    %2559 = vmatprep.subr.mxu0 0.0
    %2560 = vmatpush1.msra.mxu0 0.0
    %2561 = vmatprep.subr.mxu0 0.0
    %2562 = vmatpush1.msra.mxu0 0.0
    %2563 = vmatprep.subr.mxu0 0.0
    %2564 = vmatpush1.msra.mxu0 0.0
    %2565 = vmatprep.subr.mxu0 0.0
    %2566 = vmatpush1.msra.mxu0 0.0
    %2567 = vmatprep.subr.mxu0 0.0
    %2568 = vmatpush1.msra.mxu0 0.0
    %2569 = vmatprep.subr.mxu0 0.0
    %2570 = vmatpush1.msra.mxu0 0.0
    %2571 = vmatprep.subr.mxu0 0.0
    %2572 = vmatpush1.msra.mxu0 0.0
    %2573 = vmatprep.subr.mxu0 0.0
    %2574 = vmatpush1.msra.mxu0 0.0
    %2575 = vmatprep.mubr.f32.mxu0 0.0
    %2576 = vmatmul.mubr.f32.gmra.mrb[0].mxu0 %v2509
    %v2577 = vpop.f32.mrb[0].mxu0
    %v2578 = vadd.f32 0.0, %v2577
    %v2579 = vpop.f32.mrb[0].mxu0
    %v2580 = vadd.f32 0.0, %v2579
    %2581 = vdwg.mxu0
    %2582 = vmatprep.subr.mxu0 0.0
    %2583 = vmatpush1.msra.mxu0 %v1062
    %2584 = vmatprep.subr.mxu0 0.0
    %2585 = vmatpush1.msra.mxu0 %v1065
    %2586 = vmatprep.subr.mxu0 0.0
    %2587 = vmatpush1.msra.mxu0 0.0
    %2588 = vmatprep.subr.mxu0 0.0
    %2589 = vmatpush1.msra.mxu0 0.0
    %2590 = vmatprep.subr.mxu0 0.0
    %2591 = vmatpush1.msra.mxu0 0.0
    %2592 = vmatprep.subr.mxu0 0.0
    %2593 = vmatpush1.msra.mxu0 0.0
    %2594 = vmatprep.subr.mxu0 0.0
    %2595 = vmatpush1.msra.mxu0 0.0
    %2596 = vmatprep.subr.mxu0 0.0
    %2597 = vmatpush1.msra.mxu0 0.0
    %2598 = vmatprep.subr.mxu0 0.0
    %2599 = vmatpush1.msra.mxu0 0.0
    %2600 = vmatprep.subr.mxu0 0.0
    %2601 = vmatpush1.msra.mxu0 0.0
    %2602 = vmatprep.subr.mxu0 0.0
    %2603 = vmatpush1.msra.mxu0 0.0
    %2604 = vmatprep.subr.mxu0 0.0
    %2605 = vmatpush1.msra.mxu0 0.0
    %2606 = vmatprep.subr.mxu0 0.0
    %2607 = vmatpush1.msra.mxu0 0.0
    %2608 = vmatprep.subr.mxu0 0.0
    %2609 = vmatpush1.msra.mxu0 0.0
    %2610 = vmatprep.subr.mxu0 0.0
    %2611 = vmatpush1.msra.mxu0 0.0
    %2612 = vmatprep.subr.mxu0 0.0
    %2613 = vmatpush1.msra.mxu0 0.0
    %2614 = vmatprep.subr.mxu0 0.0
    %2615 = vmatpush1.msra.mxu0 0.0
    %2616 = vmatprep.subr.mxu0 0.0
    %2617 = vmatpush1.msra.mxu0 0.0
    %2618 = vmatprep.subr.mxu0 0.0
    %2619 = vmatpush1.msra.mxu0 0.0
    %2620 = vmatprep.subr.mxu0 0.0
    %2621 = vmatpush1.msra.mxu0 0.0
    %2622 = vmatprep.subr.mxu0 0.0
    %2623 = vmatpush1.msra.mxu0 0.0
    %2624 = vmatprep.subr.mxu0 0.0
    %2625 = vmatpush1.msra.mxu0 0.0
    %2626 = vmatprep.subr.mxu0 0.0
    %2627 = vmatpush1.msra.mxu0 0.0
    %2628 = vmatprep.subr.mxu0 0.0
    %2629 = vmatpush1.msra.mxu0 0.0
    %2630 = vmatprep.subr.mxu0 0.0
    %2631 = vmatpush1.msra.mxu0 0.0
    %2632 = vmatprep.subr.mxu0 0.0
    %2633 = vmatpush1.msra.mxu0 0.0
    %2634 = vmatprep.subr.mxu0 0.0
    %2635 = vmatpush1.msra.mxu0 0.0
    %2636 = vmatprep.subr.mxu0 0.0
    %2637 = vmatpush1.msra.mxu0 0.0
    %2638 = vmatprep.subr.mxu0 0.0
    %2639 = vmatpush1.msra.mxu0 0.0
    %2640 = vmatprep.subr.mxu0 0.0
    %2641 = vmatpush1.msra.mxu0 0.0
    %2642 = vmatprep.subr.mxu0 0.0
    %2643 = vmatpush1.msra.mxu0 0.0
    %2644 = vmatprep.subr.mxu0 0.0
    %2645 = vmatpush1.msra.mxu0 0.0
    %2646 = vmatprep.mubr.f32.mxu0 0.0
    %2647 = vmatmul.mubr.f32.gmra.mrb[0].mxu0 %v2509
    %v2648 = vpop.f32.mrb[0].mxu0
    %v2649 = vadd.f32 0.0, %v2648
    %v2650 = vpop.f32.mrb[0].mxu0
    %2651 = vdwg.mxu0
    %v2652 = vadd.f32 %v2348, %v2578
    %v2653 = vadd.f32 %v2349, %v2580
    %v2654 = vadd.f32 %v2350, %v2649
    %v2655 = vadd.f32 %v2652, %v1218
    %v2656 = vadd.f32 %v2653, %v1222
    %v2657 = vadd.f32 %v2654, %v1226
    %v2658 = vmax.f32 %v2655, 0.0
    %v2660 = vsel %vm1249, %v2658, 0
    %2662 = vmatprep.subr.mxu0 0.0
    %2663 = vmatpush1.msra.mxu0 %v1234
    %2664 = vmatprep.subr.mxu0 0.0
    %2665 = vmatpush1.msra.mxu0 %v1235
    %2666 = vmatprep.subr.mxu0 0.0
    %2667 = vmatpush1.msra.mxu0 %v1236
    %2668 = vmatprep.subr.mxu0 0.0
    %2669 = vmatpush1.msra.mxu0 %v1237
    %2670 = vmatprep.subr.mxu0 0.0
    %2671 = vmatpush1.msra.mxu0 %v1238
    %2672 = vmatprep.subr.mxu0 0.0
    %2673 = vmatpush1.msra.mxu0 %v1239
    %2674 = vmatprep.subr.mxu0 0.0
    %2675 = vmatpush1.msra.mxu0 %v1240
    %2676 = vmatprep.subr.mxu0 0.0
    %2677 = vmatpush1.msra.mxu0 %v1241
    %2678 = vmatprep.subr.mxu0 0.0
    %2679 = vmatpush1.msra.mxu0 0.0
    %2680 = vmatprep.subr.mxu0 0.0
    %2681 = vmatpush1.msra.mxu0 0.0
    %2682 = vmatprep.subr.mxu0 0.0
    %2683 = vmatpush1.msra.mxu0 0.0
    %2684 = vmatprep.subr.mxu0 0.0
    %2685 = vmatpush1.msra.mxu0 0.0
    %2686 = vmatprep.subr.mxu0 0.0
    %2687 = vmatpush1.msra.mxu0 0.0
    %2688 = vmatprep.subr.mxu0 0.0
    %2689 = vmatpush1.msra.mxu0 0.0
    %2690 = vmatprep.subr.mxu0 0.0
    %2691 = vmatpush1.msra.mxu0 0.0
    %2692 = vmatprep.subr.mxu0 0.0
    %2693 = vmatpush1.msra.mxu0 0.0
    %2694 = vmatprep.subr.mxu0 0.0
    %2695 = vmatpush1.msra.mxu0 0.0
    %2696 = vmatprep.subr.mxu0 0.0
    %2697 = vmatpush1.msra.mxu0 0.0
    %2698 = vmatprep.subr.mxu0 0.0
    %2699 = vmatpush1.msra.mxu0 0.0
    %2700 = vmatprep.subr.mxu0 0.0
    %2701 = vmatpush1.msra.mxu0 0.0
    %2702 = vmatprep.subr.mxu0 0.0
    %2703 = vmatpush1.msra.mxu0 0.0
    %2704 = vmatprep.subr.mxu0 0.0
    %2705 = vmatpush1.msra.mxu0 0.0
    %2706 = vmatprep.subr.mxu0 0.0
    %2707 = vmatpush1.msra.mxu0 0.0
    %2708 = vmatprep.subr.mxu0 0.0
    %2709 = vmatpush1.msra.mxu0 0.0
    %2710 = vmatprep.subr.mxu0 0.0
    %2711 = vmatpush1.msra.mxu0 0.0
    %2712 = vmatprep.subr.mxu0 0.0
    %2713 = vmatpush1.msra.mxu0 0.0
    %2714 = vmatprep.subr.mxu0 0.0
    %2715 = vmatpush1.msra.mxu0 0.0
    %2716 = vmatprep.subr.mxu0 0.0
    %2717 = vmatpush1.msra.mxu0 0.0
    %2718 = vmatprep.subr.mxu0 0.0
    %2719 = vmatpush1.msra.mxu0 0.0
    %2720 = vmatprep.subr.mxu0 0.0
    %2721 = vmatpush1.msra.mxu0 0.0
    %2722 = vmatprep.subr.mxu0 0.0
    %2723 = vmatpush1.msra.mxu0 0.0
    %2724 = vmatprep.subr.mxu0 0.0
    %2725 = vmatpush1.msra.mxu0 0.0
    %2726 = vmatprep.mubr.f32.mxu0 0.0
    %2727 = vmatmul.mubr.f32.gmra.mrb[0].mxu0 %v2660
    %v2728 = vpop.f32.mrb[0].mxu0
    %v2729 = vadd.f32 %v1247, %v2728
    %v2730 = vpop.f32.mrb[0].mxu0
    %2731 = vdwg.mxu0
    %v2732 = vadd.f32 %v2656, %v2657
    %v2733 = vxor.u32 %v2732, 2147483648
    %v2734 = vmul.f32 %v2733, 1.442695
    %v2735 = vpow.pop %v2734
    %v2736 = vadd.f32 %v2735, 1.0
    %v2737 = vrcp.pop %v2736
    %v2738 = vmul.f32 1.0, %v2737
    %2740 = vrot.lane.b32.xlu0 %v2657, 64
    %v2741 = vpop.permute.xlu0 %2740
    %v2743 = vmul.f32 %v2738, %v2741
    %2745 = vrot.lane.b32.xlu0 %v2743, 64
    %v2746 = vpop.permute.xlu0 %2745
    %v2748 = vadd.f32 %v2656, %v2746
    %v2749 = vtanh.pop %v2748
    %v2750 = vsub.f32 1.0, %v2738
    %2752 = vrot.lane.b32.xlu0 %v2749, 96
    %v2753 = vpop.permute.xlu0 %2752
    %v2755 = vmul.f32 %v2750, %v2753
    %v2757 = vmul.f32 %v2738, %v2124
    %v2758 = vadd.f32 %v2755, %v2757
    %2760 = vrot.lane.b32.xlu0 %v2420, 32
    %v2761 = vpop.permute.xlu0 %2760
    %v2763 = vsub.f32 %v2420, %v2761
    %v2764 = vadd.f32 %v2099, %v2763
    %2765 = vrot.lane.b32.xlu0 %v2420, 96
    %v2766 = vpop.permute.xlu0 %2765
    %v2768 = vsub.f32 %v2420, %v2766
    %v2769 = vmul.f32 %v2768, 1.442695
    %v2770 = vpow.pop %v2769
    %2772 = vrot.lane.b32.xlu0 %v2770, 32
    %v2773 = vpop.permute.xlu0 %2772
    %v2775 = vadd.f32 %v2764, %v2773
    %v2776 = vmul.f32 %v2768, %v2768
    %v2777 = vsub.f32 0.0, %v2420
    %v2778 = vmul.f32 %v2777, 1.442695
    %v2779 = vpow.pop %v2778
    %2781 = vrot.lane.b32.xlu0 %v2779, 80
    %v2782 = vpop.permute.xlu0 %2781
    %v2784 = vmul.f32 %v2776, %v2782
    %2786 = vrot.lane.b32.xlu0 %v2784, 48
    %v2787 = vpop.permute.xlu0 %2786
    %v2789 = vadd.f32 %v2775, %v2787
    %s2790 = scalar_lea.vmem %s1, 8
    %v2791 = vld [vmem:[%s2790] sm:$0xf]
    %v2792 = vsub.f32 %v2791, %v2729
    %v2793 = vmul.f32 %v2792, %v2792
    %v2794 = vsub.f32 0.0, %v2729
    %v2795 = vmul.f32 %v2794, 1.442695
    %v2796 = vpow.pop %v2795
    %2798 = vrot.lane.b32.xlu0 %v2796, 126
    %v2799 = vpop.permute.xlu0 %2798
    %v2801 = vmul.f32 %v2793, %v2799
    %v2802 = vadd.f32 %v2117, %v2801
    %2804 = vrot.lane.b32.xlu0 %v2729, 126
    %v2805 = vpop.permute.xlu0 %2804
    %v2807 = vadd.f32 %v2802, %v2805
    %v2808 = vld [vmem:[#allocation2 + $0x28] sm:$0xf0]
    %v2809 = vld [vmem:[#allocation2 + $0x30] sm:$0xf0]
    %v2810 = vld [vmem:[#allocation2 + $0x38] sm:$0xf0]
    %v2811 = vld [vmem:[#allocation2 + $0x40] sm:$0xf0]
    %v2812 = vld [vmem:[#allocation2 + $0x48] sm:$0xf0]
    %2814 = vrot.lane.b32.xlu0 %v2758, 96
    %v2815 = vpop.permute.xlu0 %2814
    %v2816 = vsel %vm282, %v2815, 0
    %2818 = vmatprep.subr.mxu0 %v584
    %2819 = vmatpush1.msra.mxu0 %v583
    %2820 = vmatprep.subr.mxu0 %v589
    %2821 = vmatpush1.msra.mxu0 %v588
    %2822 = vmatprep.subr.mxu0 %v594
    %2823 = vmatpush1.msra.mxu0 %v593
    %2824 = vmatprep.subr.mxu0 %v599
    %2825 = vmatpush1.msra.mxu0 %v598
    %2826 = vmatprep.subr.mxu0 0.0
    %2827 = vmatpush1.msra.mxu0 0.0
    %2828 = vmatprep.subr.mxu0 0.0
    %2829 = vmatpush1.msra.mxu0 0.0
    %2830 = vmatprep.subr.mxu0 0.0
    %2831 = vmatpush1.msra.mxu0 0.0
    %2832 = vmatprep.subr.mxu0 0.0
    %2833 = vmatpush1.msra.mxu0 0.0
    %2834 = vmatprep.subr.mxu0 0.0
    %2835 = vmatpush1.msra.mxu0 0.0
    %2836 = vmatprep.subr.mxu0 0.0
    %2837 = vmatpush1.msra.mxu0 0.0
    %2838 = vmatprep.subr.mxu0 0.0
    %2839 = vmatpush1.msra.mxu0 0.0
    %2840 = vmatprep.subr.mxu0 0.0
    %2841 = vmatpush1.msra.mxu0 0.0
    %2842 = vmatprep.subr.mxu0 0.0
    %2843 = vmatpush1.msra.mxu0 0.0
    %2844 = vmatprep.subr.mxu0 0.0
    %2845 = vmatpush1.msra.mxu0 0.0
    %2846 = vmatprep.subr.mxu0 0.0
    %2847 = vmatpush1.msra.mxu0 0.0
    %2848 = vmatprep.subr.mxu0 0.0
    %2849 = vmatpush1.msra.mxu0 0.0
    %2850 = vmatprep.subr.mxu0 0.0
    %2851 = vmatpush1.msra.mxu0 0.0
    %2852 = vmatprep.subr.mxu0 0.0
    %2853 = vmatpush1.msra.mxu0 0.0
    %2854 = vmatprep.subr.mxu0 0.0
    %2855 = vmatpush1.msra.mxu0 0.0
    %2856 = vmatprep.subr.mxu0 0.0
    %2857 = vmatpush1.msra.mxu0 0.0
    %2858 = vmatprep.subr.mxu0 0.0
    %2859 = vmatpush1.msra.mxu0 0.0
    %2860 = vmatprep.subr.mxu0 0.0
    %2861 = vmatpush1.msra.mxu0 0.0
    %2862 = vmatprep.subr.mxu0 0.0
    %2863 = vmatpush1.msra.mxu0 0.0
    %2864 = vmatprep.subr.mxu0 0.0
    %2865 = vmatpush1.msra.mxu0 0.0
    %2866 = vmatprep.subr.mxu0 0.0
    %2867 = vmatpush1.msra.mxu0 0.0
    %2868 = vmatprep.subr.mxu0 0.0
    %2869 = vmatpush1.msra.mxu0 0.0
    %2870 = vmatprep.subr.mxu0 0.0
    %2871 = vmatpush1.msra.mxu0 0.0
    %2872 = vmatprep.subr.mxu0 0.0
    %2873 = vmatpush1.msra.mxu0 0.0
    %2874 = vmatprep.subr.mxu0 0.0
    %2875 = vmatpush1.msra.mxu0 0.0
    %2876 = vmatprep.subr.mxu0 0.0
    %2877 = vmatpush1.msra.mxu0 0.0
    %2878 = vmatprep.subr.mxu0 0.0
    %2879 = vmatpush1.msra.mxu0 0.0
    %2880 = vmatprep.subr.mxu0 0.0
    %2881 = vmatpush1.msra.mxu0 0.0
    %2882 = vmatprep.mubr.f32.mxu0 0.0
    %2883 = vmatmul.mubr.f32.gmra.mrb[0].mxu0 %v2816
    %v2884 = vpop.f32.mrb[0].mxu0
    %v2885 = vadd.f32 0.0, %v2884
    %v2886 = vpop.f32.mrb[0].mxu0
    %v2887 = vadd.f32 0.0, %v2886
    %2888 = vdwg.mxu0
    %2889 = vmatprep.subr.mxu0 %v586
    %2890 = vmatpush1.msra.mxu0 %v585
    %2891 = vmatprep.subr.mxu0 %v591
    %2892 = vmatpush1.msra.mxu0 %v590
    %2893 = vmatprep.subr.mxu0 %v596
    %2894 = vmatpush1.msra.mxu0 %v595
    %2895 = vmatprep.subr.mxu0 %v601
    %2896 = vmatpush1.msra.mxu0 %v600
    %2897 = vmatprep.subr.mxu0 0.0
    %2898 = vmatpush1.msra.mxu0 0.0
    %2899 = vmatprep.subr.mxu0 0.0
    %2900 = vmatpush1.msra.mxu0 0.0
    %2901 = vmatprep.subr.mxu0 0.0
    %2902 = vmatpush1.msra.mxu0 0.0
    %2903 = vmatprep.subr.mxu0 0.0
    %2904 = vmatpush1.msra.mxu0 0.0
    %2905 = vmatprep.subr.mxu0 0.0
    %2906 = vmatpush1.msra.mxu0 0.0
    %2907 = vmatprep.subr.mxu0 0.0
    %2908 = vmatpush1.msra.mxu0 0.0
    %2909 = vmatprep.subr.mxu0 0.0
    %2910 = vmatpush1.msra.mxu0 0.0
    %2911 = vmatprep.subr.mxu0 0.0
    %2912 = vmatpush1.msra.mxu0 0.0
    %2913 = vmatprep.subr.mxu0 0.0
    %2914 = vmatpush1.msra.mxu0 0.0
    %2915 = vmatprep.subr.mxu0 0.0
    %2916 = vmatpush1.msra.mxu0 0.0
    %2917 = vmatprep.subr.mxu0 0.0
    %2918 = vmatpush1.msra.mxu0 0.0
    %2919 = vmatprep.subr.mxu0 0.0
    %2920 = vmatpush1.msra.mxu0 0.0
    %2921 = vmatprep.subr.mxu0 0.0
    %2922 = vmatpush1.msra.mxu0 0.0
    %2923 = vmatprep.subr.mxu0 0.0
    %2924 = vmatpush1.msra.mxu0 0.0
    %2925 = vmatprep.subr.mxu0 0.0
    %2926 = vmatpush1.msra.mxu0 0.0
    %2927 = vmatprep.subr.mxu0 0.0
    %2928 = vmatpush1.msra.mxu0 0.0
    %2929 = vmatprep.subr.mxu0 0.0
    %2930 = vmatpush1.msra.mxu0 0.0
    %2931 = vmatprep.subr.mxu0 0.0
    %2932 = vmatpush1.msra.mxu0 0.0
    %2933 = vmatprep.subr.mxu0 0.0
    %2934 = vmatpush1.msra.mxu0 0.0
    %2935 = vmatprep.subr.mxu0 0.0
    %2936 = vmatpush1.msra.mxu0 0.0
    %2937 = vmatprep.subr.mxu0 0.0
    %2938 = vmatpush1.msra.mxu0 0.0
    %2939 = vmatprep.subr.mxu0 0.0
    %2940 = vmatpush1.msra.mxu0 0.0
    %2941 = vmatprep.subr.mxu0 0.0
    %2942 = vmatpush1.msra.mxu0 0.0
    %2943 = vmatprep.subr.mxu0 0.0
    %2944 = vmatpush1.msra.mxu0 0.0
    %2945 = vmatprep.subr.mxu0 0.0
    %2946 = vmatpush1.msra.mxu0 0.0
    %2947 = vmatprep.subr.mxu0 0.0
    %2948 = vmatpush1.msra.mxu0 0.0
    %2949 = vmatprep.subr.mxu0 0.0
    %2950 = vmatpush1.msra.mxu0 0.0
    %2951 = vmatprep.subr.mxu0 0.0
    %2952 = vmatpush1.msra.mxu0 0.0
    %2953 = vmatprep.mubr.f32.mxu0 0.0
    %2954 = vmatmul.mubr.f32.gmra.mrb[0].mxu0 %v2816
    %v2955 = vpop.f32.mrb[0].mxu0
    %v2956 = vadd.f32 0.0, %v2955
    %v2957 = vpop.f32.mrb[0].mxu0
    %v2958 = vadd.f32 0.0, %v2957
    %2959 = vdwg.mxu0
    %2960 = vmatprep.subr.mxu0 0.0
    %2961 = vmatpush1.msra.mxu0 %v587
    %2962 = vmatprep.subr.mxu0 0.0
    %2963 = vmatpush1.msra.mxu0 %v592
    %2964 = vmatprep.subr.mxu0 0.0
    %2965 = vmatpush1.msra.mxu0 %v597
    %2966 = vmatprep.subr.mxu0 0.0
    %2967 = vmatpush1.msra.mxu0 %v602
    %2968 = vmatprep.subr.mxu0 0.0
    %2969 = vmatpush1.msra.mxu0 0.0
    %2970 = vmatprep.subr.mxu0 0.0
    %2971 = vmatpush1.msra.mxu0 0.0
    %2972 = vmatprep.subr.mxu0 0.0
    %2973 = vmatpush1.msra.mxu0 0.0
    %2974 = vmatprep.subr.mxu0 0.0
    %2975 = vmatpush1.msra.mxu0 0.0
    %2976 = vmatprep.subr.mxu0 0.0
    %2977 = vmatpush1.msra.mxu0 0.0
    %2978 = vmatprep.subr.mxu0 0.0
    %2979 = vmatpush1.msra.mxu0 0.0
    %2980 = vmatprep.subr.mxu0 0.0
    %2981 = vmatpush1.msra.mxu0 0.0
    %2982 = vmatprep.subr.mxu0 0.0
    %2983 = vmatpush1.msra.mxu0 0.0
    %2984 = vmatprep.subr.mxu0 0.0
    %2985 = vmatpush1.msra.mxu0 0.0
    %2986 = vmatprep.subr.mxu0 0.0
    %2987 = vmatpush1.msra.mxu0 0.0
    %2988 = vmatprep.subr.mxu0 0.0
    %2989 = vmatpush1.msra.mxu0 0.0
    %2990 = vmatprep.subr.mxu0 0.0
    %2991 = vmatpush1.msra.mxu0 0.0
    %2992 = vmatprep.subr.mxu0 0.0
    %2993 = vmatpush1.msra.mxu0 0.0
    %2994 = vmatprep.subr.mxu0 0.0
    %2995 = vmatpush1.msra.mxu0 0.0
    %2996 = vmatprep.subr.mxu0 0.0
    %2997 = vmatpush1.msra.mxu0 0.0
    %2998 = vmatprep.subr.mxu0 0.0
    %2999 = vmatpush1.msra.mxu0 0.0
    %3000 = vmatprep.subr.mxu0 0.0
    %3001 = vmatpush1.msra.mxu0 0.0
    %3002 = vmatprep.subr.mxu0 0.0
    %3003 = vmatpush1.msra.mxu0 0.0
    %3004 = vmatprep.subr.mxu0 0.0
    %3005 = vmatpush1.msra.mxu0 0.0
    %3006 = vmatprep.subr.mxu0 0.0
    %3007 = vmatpush1.msra.mxu0 0.0
    %3008 = vmatprep.subr.mxu0 0.0
    %3009 = vmatpush1.msra.mxu0 0.0
    %3010 = vmatprep.subr.mxu0 0.0
    %3011 = vmatpush1.msra.mxu0 0.0
    %3012 = vmatprep.subr.mxu0 0.0
    %3013 = vmatpush1.msra.mxu0 0.0
    %3014 = vmatprep.subr.mxu0 0.0
    %3015 = vmatpush1.msra.mxu0 0.0
    %3016 = vmatprep.subr.mxu0 0.0
    %3017 = vmatpush1.msra.mxu0 0.0
    %3018 = vmatprep.subr.mxu0 0.0
    %3019 = vmatpush1.msra.mxu0 0.0
    %3020 = vmatprep.subr.mxu0 0.0
    %3021 = vmatpush1.msra.mxu0 0.0
    %3022 = vmatprep.subr.mxu0 0.0
    %3023 = vmatpush1.msra.mxu0 0.0
    %3024 = vmatprep.mubr.f32.mxu0 0.0
    %3025 = vmatmul.mubr.f32.gmra.mrb[0].mxu0 %v2816
    %v3026 = vpop.f32.mrb[0].mxu0
    %v3027 = vadd.f32 0.0, %v3026
    %v3028 = vpop.f32.mrb[0].mxu0
    %3029 = vdwg.mxu0
    %v3035 = vrot.slane %v2885, 4
    %v3036 = vrot.slane %v2887, 4
    %v3037 = vrot.slane %v2956, 4
    %v3038 = vrot.slane %v2958, 4
    %v3039 = vrot.slane %v3027, 4
    %v3045 = vadd.f32 %v2808, %v3035
    %v3046 = vadd.f32 %v2809, %v3036
    %v3047 = vadd.f32 %v2810, %v3037
    %v3048 = vadd.f32 %v2811, %v3038
    %v3049 = vadd.f32 %v2812, %v3039
    %v3050 = vadd.f32 %v3045, %v828
    %v3051 = vadd.f32 %v3046, %v832
    %v3052 = vadd.f32 %v3047, %v836
    %v3053 = vadd.f32 %v3048, %v840
    %v3054 = vadd.f32 %v3049, %v844
    %v3055 = vmax.f32 %v3050, 0.0
    %v3056 = vmax.f32 %v3051, 0.0
    %v3059 = vrot.slane %v3055, 4
    %v3060 = vrot.slane %v3056, 4
    %3063 = vmatprep.subr.mxu0 0.0
    %3064 = vmatpush1.msra.mxu0 %v857
    %3065 = vmatprep.subr.mxu0 0.0
    %3066 = vmatpush1.msra.mxu0 %v858
    %3067 = vmatprep.subr.mxu0 0.0
    %3068 = vmatpush1.msra.mxu0 %v859
    %3069 = vmatprep.subr.mxu0 0.0
    %3070 = vmatpush1.msra.mxu0 %v860
    %3071 = vmatprep.subr.mxu0 0.0
    %3072 = vmatpush1.msra.mxu0 %v861
    %3073 = vmatprep.subr.mxu0 0.0
    %3074 = vmatpush1.msra.mxu0 %v862
    %3075 = vmatprep.subr.mxu0 0.0
    %3076 = vmatpush1.msra.mxu0 %v863
    %3077 = vmatprep.subr.mxu0 0.0
    %3078 = vmatpush1.msra.mxu0 %v864
    %3079 = vmatprep.subr.mxu0 0.0
    %3080 = vmatpush1.msra.mxu0 %v865
    %3081 = vmatprep.subr.mxu0 0.0
    %3082 = vmatpush1.msra.mxu0 %v866
    %3083 = vmatprep.subr.mxu0 0.0
    %3084 = vmatpush1.msra.mxu0 %v867
    %3085 = vmatprep.subr.mxu0 0.0
    %3086 = vmatpush1.msra.mxu0 %v868
    %3087 = vmatprep.subr.mxu0 0.0
    %3088 = vmatpush1.msra.mxu0 %v869
    %3089 = vmatprep.subr.mxu0 0.0
    %3090 = vmatpush1.msra.mxu0 %v870
    %3091 = vmatprep.subr.mxu0 0.0
    %3092 = vmatpush1.msra.mxu0 %v871
    %3093 = vmatprep.subr.mxu0 0.0
    %3094 = vmatpush1.msra.mxu0 %v872
    %3095 = vmatprep.subr.mxu0 0.0
    %3096 = vmatpush1.msra.mxu0 %v873
    %3097 = vmatprep.subr.mxu0 0.0
    %3098 = vmatpush1.msra.mxu0 %v874
    %3099 = vmatprep.subr.mxu0 0.0
    %3100 = vmatpush1.msra.mxu0 %v875
    %3101 = vmatprep.subr.mxu0 0.0
    %3102 = vmatpush1.msra.mxu0 %v876
    %3103 = vmatprep.subr.mxu0 0.0
    %3104 = vmatpush1.msra.mxu0 %v877
    %3105 = vmatprep.subr.mxu0 0.0
    %3106 = vmatpush1.msra.mxu0 %v878
    %3107 = vmatprep.subr.mxu0 0.0
    %3108 = vmatpush1.msra.mxu0 %v879
    %3109 = vmatprep.subr.mxu0 0.0
    %3110 = vmatpush1.msra.mxu0 %v880
    %3111 = vmatprep.subr.mxu0 0.0
    %3112 = vmatpush1.msra.mxu0 %v881
    %3113 = vmatprep.subr.mxu0 0.0
    %3114 = vmatpush1.msra.mxu0 %v882
    %3115 = vmatprep.subr.mxu0 0.0
    %3116 = vmatpush1.msra.mxu0 %v883
    %3117 = vmatprep.subr.mxu0 0.0
    %3118 = vmatpush1.msra.mxu0 %v884
    %3119 = vmatprep.subr.mxu0 0.0
    %3120 = vmatpush1.msra.mxu0 %v885
    %3121 = vmatprep.subr.mxu0 0.0
    %3122 = vmatpush1.msra.mxu0 %v886
    %3123 = vmatprep.subr.mxu0 0.0
    %3124 = vmatpush1.msra.mxu0 %v887
    %3125 = vmatprep.subr.mxu0 0.0
    %3126 = vmatpush1.msra.mxu0 %v888
    %3127 = vmatprep.mubr.f32.mxu0 %v3060
    %3128 = vmatmul.mubr.f32.gmra.mrb[0].mxu0 %v3059
    %v3129 = vpop.f32.mrb[0].mxu0
    %v3130 = vadd.f32 %v894, %v3129
    %v3131 = vpop.f32.mrb[0].mxu0
    %3132 = vdwg.mxu0
    %s3133 = scalar_lea.vmem %s2, 12
    %v3134 = vld [vmem:[%s3133] sm:$0xf]
    %v3135 = vmul.f32 %v3130, 0.5
    %v3136 = vmul.f32 %v3135, 1.442695
    %v3137 = vpow.pop %v3136
    %3139 = vrot.lane.b32.xlu0 %v3137, 112
    %v3140 = vpop.permute.xlu0 %3139
    %v3142 = vmul.f32 %v3134, %v3140
    %v3143 = vadd.f32 %v3142, %v3130
    %v3145 = vsel %vm985, %v3143, 0
    %3147 = vmatprep.subr.mxu0 0.0
    %3148 = vmatpush1.msra.mxu0 %v976
    %3149 = vmatprep.subr.mxu0 0.0
    %3150 = vmatpush1.msra.mxu0 %v977
    %3151 = vmatprep.subr.mxu0 0.0
    %3152 = vmatpush1.msra.mxu0 0.0
    %3153 = vmatprep.subr.mxu0 0.0
    %3154 = vmatpush1.msra.mxu0 0.0
    %3155 = vmatprep.subr.mxu0 0.0
    %3156 = vmatpush1.msra.mxu0 0.0
    %3157 = vmatprep.subr.mxu0 0.0
    %3158 = vmatpush1.msra.mxu0 0.0
    %3159 = vmatprep.subr.mxu0 0.0
    %3160 = vmatpush1.msra.mxu0 0.0
    %3161 = vmatprep.subr.mxu0 0.0
    %3162 = vmatpush1.msra.mxu0 0.0
    %3163 = vmatprep.subr.mxu0 0.0
    %3164 = vmatpush1.msra.mxu0 0.0
    %3165 = vmatprep.subr.mxu0 0.0
    %3166 = vmatpush1.msra.mxu0 0.0
    %3167 = vmatprep.subr.mxu0 0.0
    %3168 = vmatpush1.msra.mxu0 0.0
    %3169 = vmatprep.subr.mxu0 0.0
    %3170 = vmatpush1.msra.mxu0 0.0
    %3171 = vmatprep.subr.mxu0 0.0
    %3172 = vmatpush1.msra.mxu0 0.0
    %3173 = vmatprep.subr.mxu0 0.0
    %3174 = vmatpush1.msra.mxu0 0.0
    %3175 = vmatprep.subr.mxu0 0.0
    %3176 = vmatpush1.msra.mxu0 0.0
    %3177 = vmatprep.subr.mxu0 0.0
    %3178 = vmatpush1.msra.mxu0 0.0
    %3179 = vmatprep.subr.mxu0 0.0
    %3180 = vmatpush1.msra.mxu0 0.0
    %3181 = vmatprep.subr.mxu0 0.0
    %3182 = vmatpush1.msra.mxu0 0.0
    %3183 = vmatprep.subr.mxu0 0.0
    %3184 = vmatpush1.msra.mxu0 0.0
    %3185 = vmatprep.subr.mxu0 0.0
    %3186 = vmatpush1.msra.mxu0 0.0
    %3187 = vmatprep.subr.mxu0 0.0
    %3188 = vmatpush1.msra.mxu0 0.0
    %3189 = vmatprep.subr.mxu0 0.0
    %3190 = vmatpush1.msra.mxu0 0.0
    %3191 = vmatprep.subr.mxu0 0.0
    %3192 = vmatpush1.msra.mxu0 0.0
    %3193 = vmatprep.subr.mxu0 0.0
    %3194 = vmatpush1.msra.mxu0 0.0
    %3195 = vmatprep.subr.mxu0 0.0
    %3196 = vmatpush1.msra.mxu0 0.0
    %3197 = vmatprep.subr.mxu0 0.0
    %3198 = vmatpush1.msra.mxu0 0.0
    %3199 = vmatprep.subr.mxu0 0.0
    %3200 = vmatpush1.msra.mxu0 0.0
    %3201 = vmatprep.subr.mxu0 0.0
    %3202 = vmatpush1.msra.mxu0 0.0
    %3203 = vmatprep.subr.mxu0 0.0
    %3204 = vmatpush1.msra.mxu0 0.0
    %3205 = vmatprep.subr.mxu0 0.0
    %3206 = vmatpush1.msra.mxu0 0.0
    %3207 = vmatprep.subr.mxu0 0.0
    %3208 = vmatpush1.msra.mxu0 0.0
    %3209 = vmatprep.subr.mxu0 0.0
    %3210 = vmatpush1.msra.mxu0 0.0
    %3211 = vmatprep.mubr.f32.mxu0 0.0
    %3212 = vmatmul.mubr.f32.gmra.mrb[0].mxu0 %v3145
    %v3213 = vpop.f32.mrb[0].mxu0
    %v3214 = vadd.f32 %v983, %v3213
    %v3215 = vpop.f32.mrb[0].mxu0
    %3216 = vdwg.mxu0
    %v3217 = vmax.f32 %v3214, 0.0
    %v3219 = vsel %vm985, %v3217, 0
    %3221 = vmatprep.subr.mxu0 %v1061
    %3222 = vmatpush1.msra.mxu0 %v1060
    %3223 = vmatprep.subr.mxu0 %v1064
    %3224 = vmatpush1.msra.mxu0 %v1063
    %3225 = vmatprep.subr.mxu0 0.0
    %3226 = vmatpush1.msra.mxu0 0.0
    %3227 = vmatprep.subr.mxu0 0.0
    %3228 = vmatpush1.msra.mxu0 0.0
    %3229 = vmatprep.subr.mxu0 0.0
    %3230 = vmatpush1.msra.mxu0 0.0
    %3231 = vmatprep.subr.mxu0 0.0
    %3232 = vmatpush1.msra.mxu0 0.0
    %3233 = vmatprep.subr.mxu0 0.0
    %3234 = vmatpush1.msra.mxu0 0.0
    %3235 = vmatprep.subr.mxu0 0.0
    %3236 = vmatpush1.msra.mxu0 0.0
    %3237 = vmatprep.subr.mxu0 0.0
    %3238 = vmatpush1.msra.mxu0 0.0
    %3239 = vmatprep.subr.mxu0 0.0
    %3240 = vmatpush1.msra.mxu0 0.0
    %3241 = vmatprep.subr.mxu0 0.0
    %3242 = vmatpush1.msra.mxu0 0.0
    %3243 = vmatprep.subr.mxu0 0.0
    %3244 = vmatpush1.msra.mxu0 0.0
    %3245 = vmatprep.subr.mxu0 0.0
    %3246 = vmatpush1.msra.mxu0 0.0
    %3247 = vmatprep.subr.mxu0 0.0
    %3248 = vmatpush1.msra.mxu0 0.0
    %3249 = vmatprep.subr.mxu0 0.0
    %3250 = vmatpush1.msra.mxu0 0.0
    %3251 = vmatprep.subr.mxu0 0.0
    %3252 = vmatpush1.msra.mxu0 0.0
    %3253 = vmatprep.subr.mxu0 0.0
    %3254 = vmatpush1.msra.mxu0 0.0
    %3255 = vmatprep.subr.mxu0 0.0
    %3256 = vmatpush1.msra.mxu0 0.0
    %3257 = vmatprep.subr.mxu0 0.0
    %3258 = vmatpush1.msra.mxu0 0.0
    %3259 = vmatprep.subr.mxu0 0.0
    %3260 = vmatpush1.msra.mxu0 0.0
    %3261 = vmatprep.subr.mxu0 0.0
    %3262 = vmatpush1.msra.mxu0 0.0
    %3263 = vmatprep.subr.mxu0 0.0
    %3264 = vmatpush1.msra.mxu0 0.0
    %3265 = vmatprep.subr.mxu0 0.0
    %3266 = vmatpush1.msra.mxu0 0.0
    %3267 = vmatprep.subr.mxu0 0.0
    %3268 = vmatpush1.msra.mxu0 0.0
    %3269 = vmatprep.subr.mxu0 0.0
    %3270 = vmatpush1.msra.mxu0 0.0
    %3271 = vmatprep.subr.mxu0 0.0
    %3272 = vmatpush1.msra.mxu0 0.0
    %3273 = vmatprep.subr.mxu0 0.0
    %3274 = vmatpush1.msra.mxu0 0.0
    %3275 = vmatprep.subr.mxu0 0.0
    %3276 = vmatpush1.msra.mxu0 0.0
    %3277 = vmatprep.subr.mxu0 0.0
    %3278 = vmatpush1.msra.mxu0 0.0
    %3279 = vmatprep.subr.mxu0 0.0
    %3280 = vmatpush1.msra.mxu0 0.0
    %3281 = vmatprep.subr.mxu0 0.0
    %3282 = vmatpush1.msra.mxu0 0.0
    %3283 = vmatprep.subr.mxu0 0.0
    %3284 = vmatpush1.msra.mxu0 0.0
    %3285 = vmatprep.mubr.f32.mxu0 0.0
    %3286 = vmatmul.mubr.f32.gmra.mrb[0].mxu0 %v3219
    %v3287 = vpop.f32.mrb[0].mxu0
    %v3288 = vadd.f32 0.0, %v3287
    %v3289 = vpop.f32.mrb[0].mxu0
    %v3290 = vadd.f32 0.0, %v3289
    %3291 = vdwg.mxu0
    %3292 = vmatprep.subr.mxu0 0.0
    %3293 = vmatpush1.msra.mxu0 %v1062
    %3294 = vmatprep.subr.mxu0 0.0
    %3295 = vmatpush1.msra.mxu0 %v1065
    %3296 = vmatprep.subr.mxu0 0.0
    %3297 = vmatpush1.msra.mxu0 0.0
    %3298 = vmatprep.subr.mxu0 0.0
    %3299 = vmatpush1.msra.mxu0 0.0
    %3300 = vmatprep.subr.mxu0 0.0
    %3301 = vmatpush1.msra.mxu0 0.0
    %3302 = vmatprep.subr.mxu0 0.0
    %3303 = vmatpush1.msra.mxu0 0.0
    %3304 = vmatprep.subr.mxu0 0.0
    %3305 = vmatpush1.msra.mxu0 0.0
    %3306 = vmatprep.subr.mxu0 0.0
    %3307 = vmatpush1.msra.mxu0 0.0
    %3308 = vmatprep.subr.mxu0 0.0
    %3309 = vmatpush1.msra.mxu0 0.0
    %3310 = vmatprep.subr.mxu0 0.0
    %3311 = vmatpush1.msra.mxu0 0.0
    %3312 = vmatprep.subr.mxu0 0.0
    %3313 = vmatpush1.msra.mxu0 0.0
    %3314 = vmatprep.subr.mxu0 0.0
    %3315 = vmatpush1.msra.mxu0 0.0
    %3316 = vmatprep.subr.mxu0 0.0
    %3317 = vmatpush1.msra.mxu0 0.0
    %3318 = vmatprep.subr.mxu0 0.0
    %3319 = vmatpush1.msra.mxu0 0.0
    %3320 = vmatprep.subr.mxu0 0.0
    %3321 = vmatpush1.msra.mxu0 0.0
    %3322 = vmatprep.subr.mxu0 0.0
    %3323 = vmatpush1.msra.mxu0 0.0
    %3324 = vmatprep.subr.mxu0 0.0
    %3325 = vmatpush1.msra.mxu0 0.0
    %3326 = vmatprep.subr.mxu0 0.0
    %3327 = vmatpush1.msra.mxu0 0.0
    %3328 = vmatprep.subr.mxu0 0.0
    %3329 = vmatpush1.msra.mxu0 0.0
    %3330 = vmatprep.subr.mxu0 0.0
    %3331 = vmatpush1.msra.mxu0 0.0
    %3332 = vmatprep.subr.mxu0 0.0
    %3333 = vmatpush1.msra.mxu0 0.0
    %3334 = vmatprep.subr.mxu0 0.0
    %3335 = vmatpush1.msra.mxu0 0.0
    %3336 = vmatprep.subr.mxu0 0.0
    %3337 = vmatpush1.msra.mxu0 0.0
    %3338 = vmatprep.subr.mxu0 0.0
    %3339 = vmatpush1.msra.mxu0 0.0
    %3340 = vmatprep.subr.mxu0 0.0
    %3341 = vmatpush1.msra.mxu0 0.0
    %3342 = vmatprep.subr.mxu0 0.0
    %3343 = vmatpush1.msra.mxu0 0.0
    %3344 = vmatprep.subr.mxu0 0.0
    %3345 = vmatpush1.msra.mxu0 0.0
    %3346 = vmatprep.subr.mxu0 0.0
    %3347 = vmatpush1.msra.mxu0 0.0
    %3348 = vmatprep.subr.mxu0 0.0
    %3349 = vmatpush1.msra.mxu0 0.0
    %3350 = vmatprep.subr.mxu0 0.0
    %3351 = vmatpush1.msra.mxu0 0.0
    %3352 = vmatprep.subr.mxu0 0.0
    %3353 = vmatpush1.msra.mxu0 0.0
    %3354 = vmatprep.subr.mxu0 0.0
    %3355 = vmatpush1.msra.mxu0 0.0
    %3356 = vmatprep.mubr.f32.mxu0 0.0
    %3357 = vmatmul.mubr.f32.gmra.mrb[0].mxu0 %v3219
    %v3358 = vpop.f32.mrb[0].mxu0
    %v3359 = vadd.f32 0.0, %v3358
    %v3360 = vpop.f32.mrb[0].mxu0
    %3361 = vdwg.mxu0
    %v3365 = vrot.slane %v3288, 4
    %v3366 = vrot.slane %v3290, 4
    %v3367 = vrot.slane %v3359, 4
    %v3371 = vadd.f32 %v3052, %v3365
    %v3372 = vadd.f32 %v3053, %v3366
    %v3373 = vadd.f32 %v3054, %v3367
    %v3374 = vadd.f32 %v3371, %v1218
    %v3375 = vadd.f32 %v3372, %v1222
    %v3376 = vadd.f32 %v3373, %v1226
    %v3377 = vmax.f32 %v3374, 0.0
    %v3379 = vrot.slane %v3377, 4
    %v3380 = vsel %vm1249, %v3379, 0
    %3382 = vmatprep.subr.mxu0 0.0
    %3383 = vmatpush1.msra.mxu0 %v1234
    %3384 = vmatprep.subr.mxu0 0.0
    %3385 = vmatpush1.msra.mxu0 %v1235
    %3386 = vmatprep.subr.mxu0 0.0
    %3387 = vmatpush1.msra.mxu0 %v1236
    %3388 = vmatprep.subr.mxu0 0.0
    %3389 = vmatpush1.msra.mxu0 %v1237
    %3390 = vmatprep.subr.mxu0 0.0
    %3391 = vmatpush1.msra.mxu0 %v1238
    %3392 = vmatprep.subr.mxu0 0.0
    %3393 = vmatpush1.msra.mxu0 %v1239
    %3394 = vmatprep.subr.mxu0 0.0
    %3395 = vmatpush1.msra.mxu0 %v1240
    %3396 = vmatprep.subr.mxu0 0.0
    %3397 = vmatpush1.msra.mxu0 %v1241
    %3398 = vmatprep.subr.mxu0 0.0
    %3399 = vmatpush1.msra.mxu0 0.0
    %3400 = vmatprep.subr.mxu0 0.0
    %3401 = vmatpush1.msra.mxu0 0.0
    %3402 = vmatprep.subr.mxu0 0.0
    %3403 = vmatpush1.msra.mxu0 0.0
    %3404 = vmatprep.subr.mxu0 0.0
    %3405 = vmatpush1.msra.mxu0 0.0
    %3406 = vmatprep.subr.mxu0 0.0
    %3407 = vmatpush1.msra.mxu0 0.0
    %3408 = vmatprep.subr.mxu0 0.0
    %3409 = vmatpush1.msra.mxu0 0.0
    %3410 = vmatprep.subr.mxu0 0.0
    %3411 = vmatpush1.msra.mxu0 0.0
    %3412 = vmatprep.subr.mxu0 0.0
    %3413 = vmatpush1.msra.mxu0 0.0
    %3414 = vmatprep.subr.mxu0 0.0
    %3415 = vmatpush1.msra.mxu0 0.0
    %3416 = vmatprep.subr.mxu0 0.0
    %3417 = vmatpush1.msra.mxu0 0.0
    %3418 = vmatprep.subr.mxu0 0.0
    %3419 = vmatpush1.msra.mxu0 0.0
    %3420 = vmatprep.subr.mxu0 0.0
    %3421 = vmatpush1.msra.mxu0 0.0
    %3422 = vmatprep.subr.mxu0 0.0
    %3423 = vmatpush1.msra.mxu0 0.0
    %3424 = vmatprep.subr.mxu0 0.0
    %3425 = vmatpush1.msra.mxu0 0.0
    %3426 = vmatprep.subr.mxu0 0.0
    %3427 = vmatpush1.msra.mxu0 0.0
    %3428 = vmatprep.subr.mxu0 0.0
    %3429 = vmatpush1.msra.mxu0 0.0
    %3430 = vmatprep.subr.mxu0 0.0
    %3431 = vmatpush1.msra.mxu0 0.0
    %3432 = vmatprep.subr.mxu0 0.0
    %3433 = vmatpush1.msra.mxu0 0.0
    %3434 = vmatprep.subr.mxu0 0.0
    %3435 = vmatpush1.msra.mxu0 0.0
    %3436 = vmatprep.subr.mxu0 0.0
    %3437 = vmatpush1.msra.mxu0 0.0
    %3438 = vmatprep.subr.mxu0 0.0
    %3439 = vmatpush1.msra.mxu0 0.0
    %3440 = vmatprep.subr.mxu0 0.0
    %3441 = vmatpush1.msra.mxu0 0.0
    %3442 = vmatprep.subr.mxu0 0.0
    %3443 = vmatpush1.msra.mxu0 0.0
    %3444 = vmatprep.subr.mxu0 0.0
    %3445 = vmatpush1.msra.mxu0 0.0
    %3446 = vmatprep.mubr.f32.mxu0 0.0
    %3447 = vmatmul.mubr.f32.gmra.mrb[0].mxu0 %v3380
    %v3448 = vpop.f32.mrb[0].mxu0
    %v3449 = vadd.f32 %v1247, %v3448
    %v3450 = vpop.f32.mrb[0].mxu0
    %3451 = vdwg.mxu0
    %v3452 = vadd.f32 %v3375, %v3376
    %v3453 = vxor.u32 %v3452, 2147483648
    %v3454 = vmul.f32 %v3453, 1.442695
    %v3455 = vpow.pop %v3454
    %v3456 = vadd.f32 %v3455, 1.0
    %v3457 = vrcp.pop %v3456
    %v3458 = vmul.f32 1.0, %v3457
    %3460 = vrot.lane.b32.xlu0 %v3376, 64
    %v3461 = vpop.permute.xlu0 %3460
    %v3463 = vmul.f32 %v3458, %v3461
    %3465 = vrot.lane.b32.xlu0 %v3463, 64
    %v3466 = vpop.permute.xlu0 %3465
    %v3468 = vadd.f32 %v3375, %v3466
    %v3469 = vtanh.pop %v3468
    %v3470 = vsub.f32 1.0, %v3458
    %3472 = vrot.lane.b32.xlu0 %v3469, 96
    %v3473 = vpop.permute.xlu0 %3472
    %v3475 = vmul.f32 %v3470, %v3473
    %v3476 = vrot.slane %v2758, 4
    %v3478 = vmul.f32 %v3458, %v3476
    %v3479 = vadd.f32 %v3475, %v3478
    %3481 = vrot.lane.b32.xlu0 %v3130, 32
    %v3482 = vpop.permute.xlu0 %3481
    %v3484 = vsub.f32 %v3130, %v3482
    %v3485 = vadd.f32 %v2789, %v3484
    %3486 = vrot.lane.b32.xlu0 %v3130, 96
    %v3487 = vpop.permute.xlu0 %3486
    %v3489 = vsub.f32 %v3130, %v3487
    %v3490 = vmul.f32 %v3489, 1.442695
    %v3491 = vpow.pop %v3490
    %3493 = vrot.lane.b32.xlu0 %v3491, 32
    %v3494 = vpop.permute.xlu0 %3493
    %v3496 = vadd.f32 %v3485, %v3494
    %v3497 = vmul.f32 %v3489, %v3489
    %v3498 = vsub.f32 0.0, %v3130
    %v3499 = vmul.f32 %v3498, 1.442695
    %v3500 = vpow.pop %v3499
    %3502 = vrot.lane.b32.xlu0 %v3500, 80
    %v3503 = vpop.permute.xlu0 %3502
    %v3505 = vmul.f32 %v3497, %v3503
    %3507 = vrot.lane.b32.xlu0 %v3505, 48
    %v3508 = vpop.permute.xlu0 %3507
    %v3510 = vadd.f32 %v3496, %v3508
    %s3511 = scalar_lea.vmem %s1, 12
    %v3512 = vld [vmem:[%s3511] sm:$0xf]
    %v3513 = vsub.f32 %v3512, %v3449
    %v3514 = vmul.f32 %v3513, %v3513
    %v3515 = vsub.f32 0.0, %v3449
    %v3516 = vmul.f32 %v3515, 1.442695
    %v3517 = vpow.pop %v3516
    %3519 = vrot.lane.b32.xlu0 %v3517, 126
    %v3520 = vpop.permute.xlu0 %3519
    %v3522 = vmul.f32 %v3514, %v3520
    %v3523 = vadd.f32 %v2807, %v3522
    %3525 = vrot.lane.b32.xlu0 %v3449, 126
    %v3526 = vpop.permute.xlu0 %3525
    %v3528 = vadd.f32 %v3523, %v3526
    %v3529 = vld [vmem:[#allocation2 + $0x50] sm:$0xf]
    %v3530 = vld [vmem:[#allocation2 + $0x58] sm:$0xf]
    %v3531 = vld [vmem:[#allocation2 + $0x60] sm:$0xf]
    %v3532 = vld [vmem:[#allocation2 + $0x68] sm:$0xf]
    %v3533 = vld [vmem:[#allocation2 + $0x70] sm:$0xf]
    %v3535 = vrot.slane %v3479, 4
    %3536 = vrot.lane.b32.xlu0 %v3535, 96
    %v3537 = vpop.permute.xlu0 %3536
    %v3538 = vsel %vm282, %v3537, 0
    %3540 = vmatprep.subr.mxu0 %v584
    %3541 = vmatpush1.msra.mxu0 %v583
    %3542 = vmatprep.subr.mxu0 %v589
    %3543 = vmatpush1.msra.mxu0 %v588
    %3544 = vmatprep.subr.mxu0 %v594
    %3545 = vmatpush1.msra.mxu0 %v593
    %3546 = vmatprep.subr.mxu0 %v599
    %3547 = vmatpush1.msra.mxu0 %v598
    %3548 = vmatprep.subr.mxu0 0.0
    %3549 = vmatpush1.msra.mxu0 0.0
    %3550 = vmatprep.subr.mxu0 0.0
    %3551 = vmatpush1.msra.mxu0 0.0
    %3552 = vmatprep.subr.mxu0 0.0
    %3553 = vmatpush1.msra.mxu0 0.0
    %3554 = vmatprep.subr.mxu0 0.0
    %3555 = vmatpush1.msra.mxu0 0.0
    %3556 = vmatprep.subr.mxu0 0.0
    %3557 = vmatpush1.msra.mxu0 0.0
    %3558 = vmatprep.subr.mxu0 0.0
    %3559 = vmatpush1.msra.mxu0 0.0
    %3560 = vmatprep.subr.mxu0 0.0
    %3561 = vmatpush1.msra.mxu0 0.0
    %3562 = vmatprep.subr.mxu0 0.0
    %3563 = vmatpush1.msra.mxu0 0.0
    %3564 = vmatprep.subr.mxu0 0.0
    %3565 = vmatpush1.msra.mxu0 0.0
    %3566 = vmatprep.subr.mxu0 0.0
    %3567 = vmatpush1.msra.mxu0 0.0
    %3568 = vmatprep.subr.mxu0 0.0
    %3569 = vmatpush1.msra.mxu0 0.0
    %3570 = vmatprep.subr.mxu0 0.0
    %3571 = vmatpush1.msra.mxu0 0.0
    %3572 = vmatprep.subr.mxu0 0.0
    %3573 = vmatpush1.msra.mxu0 0.0
    %3574 = vmatprep.subr.mxu0 0.0
    %3575 = vmatpush1.msra.mxu0 0.0
    %3576 = vmatprep.subr.mxu0 0.0
    %3577 = vmatpush1.msra.mxu0 0.0
    %3578 = vmatprep.subr.mxu0 0.0
    %3579 = vmatpush1.msra.mxu0 0.0
    %3580 = vmatprep.subr.mxu0 0.0
    %3581 = vmatpush1.msra.mxu0 0.0
    %3582 = vmatprep.subr.mxu0 0.0
    %3583 = vmatpush1.msra.mxu0 0.0
    %3584 = vmatprep.subr.mxu0 0.0
    %3585 = vmatpush1.msra.mxu0 0.0
    %3586 = vmatprep.subr.mxu0 0.0
    %3587 = vmatpush1.msra.mxu0 0.0
    %3588 = vmatprep.subr.mxu0 0.0
    %3589 = vmatpush1.msra.mxu0 0.0
    %3590 = vmatprep.subr.mxu0 0.0
    %3591 = vmatpush1.msra.mxu0 0.0
    %3592 = vmatprep.subr.mxu0 0.0
    %3593 = vmatpush1.msra.mxu0 0.0
    %3594 = vmatprep.subr.mxu0 0.0
    %3595 = vmatpush1.msra.mxu0 0.0
    %3596 = vmatprep.subr.mxu0 0.0
    %3597 = vmatpush1.msra.mxu0 0.0
    %3598 = vmatprep.subr.mxu0 0.0
    %3599 = vmatpush1.msra.mxu0 0.0
    %3600 = vmatprep.subr.mxu0 0.0
    %3601 = vmatpush1.msra.mxu0 0.0
    %3602 = vmatprep.subr.mxu0 0.0
    %3603 = vmatpush1.msra.mxu0 0.0
    %3604 = vmatprep.mubr.f32.mxu0 0.0
    %3605 = vmatmul.mubr.f32.gmra.mrb[0].mxu0 %v3538
    %v3606 = vpop.f32.mrb[0].mxu0
    %v3607 = vadd.f32 0.0, %v3606
    %v3608 = vpop.f32.mrb[0].mxu0
    %v3609 = vadd.f32 0.0, %v3608
    %3610 = vdwg.mxu0
    %3611 = vmatprep.subr.mxu0 %v586
    %3612 = vmatpush1.msra.mxu0 %v585
    %3613 = vmatprep.subr.mxu0 %v591
    %3614 = vmatpush1.msra.mxu0 %v590
    %3615 = vmatprep.subr.mxu0 %v596
    %3616 = vmatpush1.msra.mxu0 %v595
    %3617 = vmatprep.subr.mxu0 %v601
    %3618 = vmatpush1.msra.mxu0 %v600
    %3619 = vmatprep.subr.mxu0 0.0
    %3620 = vmatpush1.msra.mxu0 0.0
    %3621 = vmatprep.subr.mxu0 0.0
    %3622 = vmatpush1.msra.mxu0 0.0
    %3623 = vmatprep.subr.mxu0 0.0
    %3624 = vmatpush1.msra.mxu0 0.0
    %3625 = vmatprep.subr.mxu0 0.0
    %3626 = vmatpush1.msra.mxu0 0.0
    %3627 = vmatprep.subr.mxu0 0.0
    %3628 = vmatpush1.msra.mxu0 0.0
    %3629 = vmatprep.subr.mxu0 0.0
    %3630 = vmatpush1.msra.mxu0 0.0
    %3631 = vmatprep.subr.mxu0 0.0
    %3632 = vmatpush1.msra.mxu0 0.0
    %3633 = vmatprep.subr.mxu0 0.0
    %3634 = vmatpush1.msra.mxu0 0.0
    %3635 = vmatprep.subr.mxu0 0.0
    %3636 = vmatpush1.msra.mxu0 0.0
    %3637 = vmatprep.subr.mxu0 0.0
    %3638 = vmatpush1.msra.mxu0 0.0
    %3639 = vmatprep.subr.mxu0 0.0
    %3640 = vmatpush1.msra.mxu0 0.0
    %3641 = vmatprep.subr.mxu0 0.0
    %3642 = vmatpush1.msra.mxu0 0.0
    %3643 = vmatprep.subr.mxu0 0.0
    %3644 = vmatpush1.msra.mxu0 0.0
    %3645 = vmatprep.subr.mxu0 0.0
    %3646 = vmatpush1.msra.mxu0 0.0
    %3647 = vmatprep.subr.mxu0 0.0
    %3648 = vmatpush1.msra.mxu0 0.0
    %3649 = vmatprep.subr.mxu0 0.0
    %3650 = vmatpush1.msra.mxu0 0.0
    %3651 = vmatprep.subr.mxu0 0.0
    %3652 = vmatpush1.msra.mxu0 0.0
    %3653 = vmatprep.subr.mxu0 0.0
    %3654 = vmatpush1.msra.mxu0 0.0
    %3655 = vmatprep.subr.mxu0 0.0
    %3656 = vmatpush1.msra.mxu0 0.0
    %3657 = vmatprep.subr.mxu0 0.0
    %3658 = vmatpush1.msra.mxu0 0.0
    %3659 = vmatprep.subr.mxu0 0.0
    %3660 = vmatpush1.msra.mxu0 0.0
    %3661 = vmatprep.subr.mxu0 0.0
    %3662 = vmatpush1.msra.mxu0 0.0
    %3663 = vmatprep.subr.mxu0 0.0
    %3664 = vmatpush1.msra.mxu0 0.0
    %3665 = vmatprep.subr.mxu0 0.0
    %3666 = vmatpush1.msra.mxu0 0.0
    %3667 = vmatprep.subr.mxu0 0.0
    %3668 = vmatpush1.msra.mxu0 0.0
    %3669 = vmatprep.subr.mxu0 0.0
    %3670 = vmatpush1.msra.mxu0 0.0
    %3671 = vmatprep.subr.mxu0 0.0
    %3672 = vmatpush1.msra.mxu0 0.0
    %3673 = vmatprep.subr.mxu0 0.0
    %3674 = vmatpush1.msra.mxu0 0.0
    %3675 = vmatprep.mubr.f32.mxu0 0.0
    %3676 = vmatmul.mubr.f32.gmra.mrb[0].mxu0 %v3538
    %v3677 = vpop.f32.mrb[0].mxu0
    %v3678 = vadd.f32 0.0, %v3677
    %v3679 = vpop.f32.mrb[0].mxu0
    %v3680 = vadd.f32 0.0, %v3679
    %3681 = vdwg.mxu0
    %3682 = vmatprep.subr.mxu0 0.0
    %3683 = vmatpush1.msra.mxu0 %v587
    %3684 = vmatprep.subr.mxu0 0.0
    %3685 = vmatpush1.msra.mxu0 %v592
    %3686 = vmatprep.subr.mxu0 0.0
    %3687 = vmatpush1.msra.mxu0 %v597
    %3688 = vmatprep.subr.mxu0 0.0
    %3689 = vmatpush1.msra.mxu0 %v602
    %3690 = vmatprep.subr.mxu0 0.0
    %3691 = vmatpush1.msra.mxu0 0.0
    %3692 = vmatprep.subr.mxu0 0.0
    %3693 = vmatpush1.msra.mxu0 0.0
    %3694 = vmatprep.subr.mxu0 0.0
    %3695 = vmatpush1.msra.mxu0 0.0
    %3696 = vmatprep.subr.mxu0 0.0
    %3697 = vmatpush1.msra.mxu0 0.0
    %3698 = vmatprep.subr.mxu0 0.0
    %3699 = vmatpush1.msra.mxu0 0.0
    %3700 = vmatprep.subr.mxu0 0.0
    %3701 = vmatpush1.msra.mxu0 0.0
    %3702 = vmatprep.subr.mxu0 0.0
    %3703 = vmatpush1.msra.mxu0 0.0
    %3704 = vmatprep.subr.mxu0 0.0
    %3705 = vmatpush1.msra.mxu0 0.0
    %3706 = vmatprep.subr.mxu0 0.0
    %3707 = vmatpush1.msra.mxu0 0.0
    %3708 = vmatprep.subr.mxu0 0.0
    %3709 = vmatpush1.msra.mxu0 0.0
    %3710 = vmatprep.subr.mxu0 0.0
    %3711 = vmatpush1.msra.mxu0 0.0
    %3712 = vmatprep.subr.mxu0 0.0
    %3713 = vmatpush1.msra.mxu0 0.0
    %3714 = vmatprep.subr.mxu0 0.0
    %3715 = vmatpush1.msra.mxu0 0.0
    %3716 = vmatprep.subr.mxu0 0.0
    %3717 = vmatpush1.msra.mxu0 0.0
    %3718 = vmatprep.subr.mxu0 0.0
    %3719 = vmatpush1.msra.mxu0 0.0
    %3720 = vmatprep.subr.mxu0 0.0
    %3721 = vmatpush1.msra.mxu0 0.0
    %3722 = vmatprep.subr.mxu0 0.0
    %3723 = vmatpush1.msra.mxu0 0.0
    %3724 = vmatprep.subr.mxu0 0.0
    %3725 = vmatpush1.msra.mxu0 0.0
    %3726 = vmatprep.subr.mxu0 0.0
    %3727 = vmatpush1.msra.mxu0 0.0
    %3728 = vmatprep.subr.mxu0 0.0
    %3729 = vmatpush1.msra.mxu0 0.0
    %3730 = vmatprep.subr.mxu0 0.0
    %3731 = vmatpush1.msra.mxu0 0.0
    %3732 = vmatprep.subr.mxu0 0.0
    %3733 = vmatpush1.msra.mxu0 0.0
    %3734 = vmatprep.subr.mxu0 0.0
    %3735 = vmatpush1.msra.mxu0 0.0
    %3736 = vmatprep.subr.mxu0 0.0
    %3737 = vmatpush1.msra.mxu0 0.0
    %3738 = vmatprep.subr.mxu0 0.0
    %3739 = vmatpush1.msra.mxu0 0.0
    %3740 = vmatprep.subr.mxu0 0.0
    %3741 = vmatpush1.msra.mxu0 0.0
    %3742 = vmatprep.subr.mxu0 0.0
    %3743 = vmatpush1.msra.mxu0 0.0
    %3744 = vmatprep.subr.mxu0 0.0
    %3745 = vmatpush1.msra.mxu0 0.0
    %3746 = vmatprep.mubr.f32.mxu0 0.0
    %3747 = vmatmul.mubr.f32.gmra.mrb[0].mxu0 %v3538
    %v3748 = vpop.f32.mrb[0].mxu0
    %v3749 = vadd.f32 0.0, %v3748
    %v3750 = vpop.f32.mrb[0].mxu0
    %3751 = vdwg.mxu0
    %v3752 = vadd.f32 %v3529, %v3607
    %v3753 = vadd.f32 %v3530, %v3609
    %v3754 = vadd.f32 %v3531, %v3678
    %v3755 = vadd.f32 %v3532, %v3680
    %v3756 = vadd.f32 %v3533, %v3749
    %v3757 = vadd.f32 %v3752, %v828
    %v3758 = vadd.f32 %v3753, %v832
    %v3759 = vadd.f32 %v3754, %v836
    %v3760 = vadd.f32 %v3755, %v840
    %v3761 = vadd.f32 %v3756, %v844
    %v3762 = vmax.f32 %v3757, 0.0
    %v3763 = vmax.f32 %v3758, 0.0
    %3764 = vmatprep.subr.mxu0 0.0
    %3765 = vmatpush1.msra.mxu0 %v857
    %3766 = vmatprep.subr.mxu0 0.0
    %3767 = vmatpush1.msra.mxu0 %v858
    %3768 = vmatprep.subr.mxu0 0.0
    %3769 = vmatpush1.msra.mxu0 %v859
    %3770 = vmatprep.subr.mxu0 0.0
    %3771 = vmatpush1.msra.mxu0 %v860
    %3772 = vmatprep.subr.mxu0 0.0
    %3773 = vmatpush1.msra.mxu0 %v861
    %3774 = vmatprep.subr.mxu0 0.0
    %3775 = vmatpush1.msra.mxu0 %v862
    %3776 = vmatprep.subr.mxu0 0.0
    %3777 = vmatpush1.msra.mxu0 %v863
    %3778 = vmatprep.subr.mxu0 0.0
    %3779 = vmatpush1.msra.mxu0 %v864
    %3780 = vmatprep.subr.mxu0 0.0
    %3781 = vmatpush1.msra.mxu0 %v865
    %3782 = vmatprep.subr.mxu0 0.0
    %3783 = vmatpush1.msra.mxu0 %v866
    %3784 = vmatprep.subr.mxu0 0.0
    %3785 = vmatpush1.msra.mxu0 %v867
    %3786 = vmatprep.subr.mxu0 0.0
    %3787 = vmatpush1.msra.mxu0 %v868
    %3788 = vmatprep.subr.mxu0 0.0
    %3789 = vmatpush1.msra.mxu0 %v869
    %3790 = vmatprep.subr.mxu0 0.0
    %3791 = vmatpush1.msra.mxu0 %v870
    %3792 = vmatprep.subr.mxu0 0.0
    %3793 = vmatpush1.msra.mxu0 %v871
    %3794 = vmatprep.subr.mxu0 0.0
    %3795 = vmatpush1.msra.mxu0 %v872
    %3796 = vmatprep.subr.mxu0 0.0
    %3797 = vmatpush1.msra.mxu0 %v873
    %3798 = vmatprep.subr.mxu0 0.0
    %3799 = vmatpush1.msra.mxu0 %v874
    %3800 = vmatprep.subr.mxu0 0.0
    %3801 = vmatpush1.msra.mxu0 %v875
    %3802 = vmatprep.subr.mxu0 0.0
    %3803 = vmatpush1.msra.mxu0 %v876
    %3804 = vmatprep.subr.mxu0 0.0
    %3805 = vmatpush1.msra.mxu0 %v877
    %3806 = vmatprep.subr.mxu0 0.0
    %3807 = vmatpush1.msra.mxu0 %v878
    %3808 = vmatprep.subr.mxu0 0.0
    %3809 = vmatpush1.msra.mxu0 %v879
    %3810 = vmatprep.subr.mxu0 0.0
    %3811 = vmatpush1.msra.mxu0 %v880
    %3812 = vmatprep.subr.mxu0 0.0
    %3813 = vmatpush1.msra.mxu0 %v881
    %3814 = vmatprep.subr.mxu0 0.0
    %3815 = vmatpush1.msra.mxu0 %v882
    %3816 = vmatprep.subr.mxu0 0.0
    %3817 = vmatpush1.msra.mxu0 %v883
    %3818 = vmatprep.subr.mxu0 0.0
    %3819 = vmatpush1.msra.mxu0 %v884
    %3820 = vmatprep.subr.mxu0 0.0
    %3821 = vmatpush1.msra.mxu0 %v885
    %3822 = vmatprep.subr.mxu0 0.0
    %3823 = vmatpush1.msra.mxu0 %v886
    %3824 = vmatprep.subr.mxu0 0.0
    %3825 = vmatpush1.msra.mxu0 %v887
    %3826 = vmatprep.subr.mxu0 0.0
    %3827 = vmatpush1.msra.mxu0 %v888
    %3828 = vmatprep.mubr.f32.mxu0 %v3763
    %3829 = vmatmul.mubr.f32.gmra.mrb[0].mxu0 %v3762
    %v3830 = vpop.f32.mrb[0].mxu0
    %v3831 = vadd.f32 %v894, %v3830
    %v3832 = vpop.f32.mrb[0].mxu0
    %3833 = vdwg.mxu0
    %s3834 = scalar_lea.vmem %s2, 16
    %v3835 = vld [vmem:[%s3834] sm:$0xf]
    %v3836 = vmul.f32 %v3831, 0.5
    %v3837 = vmul.f32 %v3836, 1.442695
    %v3838 = vpow.pop %v3837
    %3840 = vrot.lane.b32.xlu0 %v3838, 112
    %v3841 = vpop.permute.xlu0 %3840
    %v3843 = vmul.f32 %v3835, %v3841
    %v3844 = vadd.f32 %v3843, %v3831
    %v3846 = vsel %vm985, %v3844, 0
    %3848 = vmatprep.subr.mxu0 0.0
    %3849 = vmatpush1.msra.mxu0 %v976
    %3850 = vmatprep.subr.mxu0 0.0
    %3851 = vmatpush1.msra.mxu0 %v977
    %3852 = vmatprep.subr.mxu0 0.0
    %3853 = vmatpush1.msra.mxu0 0.0
    %3854 = vmatprep.subr.mxu0 0.0
    %3855 = vmatpush1.msra.mxu0 0.0
    %3856 = vmatprep.subr.mxu0 0.0
    %3857 = vmatpush1.msra.mxu0 0.0
    %3858 = vmatprep.subr.mxu0 0.0
    %3859 = vmatpush1.msra.mxu0 0.0
    %3860 = vmatprep.subr.mxu0 0.0
    %3861 = vmatpush1.msra.mxu0 0.0
    %3862 = vmatprep.subr.mxu0 0.0
    %3863 = vmatpush1.msra.mxu0 0.0
    %3864 = vmatprep.subr.mxu0 0.0
    %3865 = vmatpush1.msra.mxu0 0.0
    %3866 = vmatprep.subr.mxu0 0.0
    %3867 = vmatpush1.msra.mxu0 0.0
    %3868 = vmatprep.subr.mxu0 0.0
    %3869 = vmatpush1.msra.mxu0 0.0
    %3870 = vmatprep.subr.mxu0 0.0
    %3871 = vmatpush1.msra.mxu0 0.0
    %3872 = vmatprep.subr.mxu0 0.0
    %3873 = vmatpush1.msra.mxu0 0.0
    %3874 = vmatprep.subr.mxu0 0.0
    %3875 = vmatpush1.msra.mxu0 0.0
    %3876 = vmatprep.subr.mxu0 0.0
    %3877 = vmatpush1.msra.mxu0 0.0
    %3878 = vmatprep.subr.mxu0 0.0
    %3879 = vmatpush1.msra.mxu0 0.0
    %3880 = vmatprep.subr.mxu0 0.0
    %3881 = vmatpush1.msra.mxu0 0.0
    %3882 = vmatprep.subr.mxu0 0.0
    %3883 = vmatpush1.msra.mxu0 0.0
    %3884 = vmatprep.subr.mxu0 0.0
    %3885 = vmatpush1.msra.mxu0 0.0
    %3886 = vmatprep.subr.mxu0 0.0
    %3887 = vmatpush1.msra.mxu0 0.0
    %3888 = vmatprep.subr.mxu0 0.0
    %3889 = vmatpush1.msra.mxu0 0.0
    %3890 = vmatprep.subr.mxu0 0.0
    %3891 = vmatpush1.msra.mxu0 0.0
    %3892 = vmatprep.subr.mxu0 0.0
    %3893 = vmatpush1.msra.mxu0 0.0
    %3894 = vmatprep.subr.mxu0 0.0
    %3895 = vmatpush1.msra.mxu0 0.0
    %3896 = vmatprep.subr.mxu0 0.0
    %3897 = vmatpush1.msra.mxu0 0.0
    %3898 = vmatprep.subr.mxu0 0.0
    %3899 = vmatpush1.msra.mxu0 0.0
    %3900 = vmatprep.subr.mxu0 0.0
    %3901 = vmatpush1.msra.mxu0 0.0
    %3902 = vmatprep.subr.mxu0 0.0
    %3903 = vmatpush1.msra.mxu0 0.0
    %3904 = vmatprep.subr.mxu0 0.0
    %3905 = vmatpush1.msra.mxu0 0.0
    %3906 = vmatprep.subr.mxu0 0.0
    %3907 = vmatpush1.msra.mxu0 0.0
    %3908 = vmatprep.subr.mxu0 0.0
    %3909 = vmatpush1.msra.mxu0 0.0
    %3910 = vmatprep.subr.mxu0 0.0
    %3911 = vmatpush1.msra.mxu0 0.0
    %3912 = vmatprep.mubr.f32.mxu0 0.0
    %3913 = vmatmul.mubr.f32.gmra.mrb[0].mxu0 %v3846
    %v3914 = vpop.f32.mrb[0].mxu0
    %v3915 = vadd.f32 %v983, %v3914
    %v3916 = vpop.f32.mrb[0].mxu0
    %3917 = vdwg.mxu0
    %v3918 = vmax.f32 %v3915, 0.0
    %v3920 = vsel %vm985, %v3918, 0
    %3922 = vmatprep.subr.mxu0 %v1061
    %3923 = vmatpush1.msra.mxu0 %v1060
    %3924 = vmatprep.subr.mxu0 %v1064
    %3925 = vmatpush1.msra.mxu0 %v1063
    %3926 = vmatprep.subr.mxu0 0.0
    %3927 = vmatpush1.msra.mxu0 0.0
    %3928 = vmatprep.subr.mxu0 0.0
    %3929 = vmatpush1.msra.mxu0 0.0
    %3930 = vmatprep.subr.mxu0 0.0
    %3931 = vmatpush1.msra.mxu0 0.0
    %3932 = vmatprep.subr.mxu0 0.0
    %3933 = vmatpush1.msra.mxu0 0.0
    %3934 = vmatprep.subr.mxu0 0.0
    %3935 = vmatpush1.msra.mxu0 0.0
    %3936 = vmatprep.subr.mxu0 0.0
    %3937 = vmatpush1.msra.mxu0 0.0
    %3938 = vmatprep.subr.mxu0 0.0
    %3939 = vmatpush1.msra.mxu0 0.0
    %3940 = vmatprep.subr.mxu0 0.0
    %3941 = vmatpush1.msra.mxu0 0.0
    %3942 = vmatprep.subr.mxu0 0.0
    %3943 = vmatpush1.msra.mxu0 0.0
    %3944 = vmatprep.subr.mxu0 0.0
    %3945 = vmatpush1.msra.mxu0 0.0
    %3946 = vmatprep.subr.mxu0 0.0
    %3947 = vmatpush1.msra.mxu0 0.0
    %3948 = vmatprep.subr.mxu0 0.0
    %3949 = vmatpush1.msra.mxu0 0.0
    %3950 = vmatprep.subr.mxu0 0.0
    %3951 = vmatpush1.msra.mxu0 0.0
    %3952 = vmatprep.subr.mxu0 0.0
    %3953 = vmatpush1.msra.mxu0 0.0
    %3954 = vmatprep.subr.mxu0 0.0
    %3955 = vmatpush1.msra.mxu0 0.0
    %3956 = vmatprep.subr.mxu0 0.0
    %3957 = vmatpush1.msra.mxu0 0.0
    %3958 = vmatprep.subr.mxu0 0.0
    %3959 = vmatpush1.msra.mxu0 0.0
    %3960 = vmatprep.subr.mxu0 0.0
    %3961 = vmatpush1.msra.mxu0 0.0
    %3962 = vmatprep.subr.mxu0 0.0
    %3963 = vmatpush1.msra.mxu0 0.0
    %3964 = vmatprep.subr.mxu0 0.0
    %3965 = vmatpush1.msra.mxu0 0.0
    %3966 = vmatprep.subr.mxu0 0.0
    %3967 = vmatpush1.msra.mxu0 0.0
    %3968 = vmatprep.subr.mxu0 0.0
    %3969 = vmatpush1.msra.mxu0 0.0
    %3970 = vmatprep.subr.mxu0 0.0
    %3971 = vmatpush1.msra.mxu0 0.0
    %3972 = vmatprep.subr.mxu0 0.0
    %3973 = vmatpush1.msra.mxu0 0.0
    %3974 = vmatprep.subr.mxu0 0.0
    %3975 = vmatpush1.msra.mxu0 0.0
    %3976 = vmatprep.subr.mxu0 0.0
    %3977 = vmatpush1.msra.mxu0 0.0
    %3978 = vmatprep.subr.mxu0 0.0
    %3979 = vmatpush1.msra.mxu0 0.0
    %3980 = vmatprep.subr.mxu0 0.0
    %3981 = vmatpush1.msra.mxu0 0.0
    %3982 = vmatprep.subr.mxu0 0.0
    %3983 = vmatpush1.msra.mxu0 0.0
    %3984 = vmatprep.subr.mxu0 0.0
    %3985 = vmatpush1.msra.mxu0 0.0
    %3986 = vmatprep.mubr.f32.mxu0 0.0
    %3987 = vmatmul.mubr.f32.gmra.mrb[0].mxu0 %v3920
    %v3988 = vpop.f32.mrb[0].mxu0
    %v3989 = vadd.f32 0.0, %v3988
    %v3990 = vpop.f32.mrb[0].mxu0
    %v3991 = vadd.f32 0.0, %v3990
    %3992 = vdwg.mxu0
    %3993 = vmatprep.subr.mxu0 0.0
    %3994 = vmatpush1.msra.mxu0 %v1062
    %3995 = vmatprep.subr.mxu0 0.0
    %3996 = vmatpush1.msra.mxu0 %v1065
    %3997 = vmatprep.subr.mxu0 0.0
    %3998 = vmatpush1.msra.mxu0 0.0
    %3999 = vmatprep.subr.mxu0 0.0
    %4000 = vmatpush1.msra.mxu0 0.0
    %4001 = vmatprep.subr.mxu0 0.0
    %4002 = vmatpush1.msra.mxu0 0.0
    %4003 = vmatprep.subr.mxu0 0.0
    %4004 = vmatpush1.msra.mxu0 0.0
    %4005 = vmatprep.subr.mxu0 0.0
    %4006 = vmatpush1.msra.mxu0 0.0
    %4007 = vmatprep.subr.mxu0 0.0
    %4008 = vmatpush1.msra.mxu0 0.0
    %4009 = vmatprep.subr.mxu0 0.0
    %4010 = vmatpush1.msra.mxu0 0.0
    %4011 = vmatprep.subr.mxu0 0.0
    %4012 = vmatpush1.msra.mxu0 0.0
    %4013 = vmatprep.subr.mxu0 0.0
    %4014 = vmatpush1.msra.mxu0 0.0
    %4015 = vmatprep.subr.mxu0 0.0
    %4016 = vmatpush1.msra.mxu0 0.0
    %4017 = vmatprep.subr.mxu0 0.0
    %4018 = vmatpush1.msra.mxu0 0.0
    %4019 = vmatprep.subr.mxu0 0.0
    %4020 = vmatpush1.msra.mxu0 0.0
    %4021 = vmatprep.subr.mxu0 0.0
    %4022 = vmatpush1.msra.mxu0 0.0
    %4023 = vmatprep.subr.mxu0 0.0
    %4024 = vmatpush1.msra.mxu0 0.0
    %4025 = vmatprep.subr.mxu0 0.0
    %4026 = vmatpush1.msra.mxu0 0.0
    %4027 = vmatprep.subr.mxu0 0.0
    %4028 = vmatpush1.msra.mxu0 0.0
    %4029 = vmatprep.subr.mxu0 0.0
    %4030 = vmatpush1.msra.mxu0 0.0
    %4031 = vmatprep.subr.mxu0 0.0
    %4032 = vmatpush1.msra.mxu0 0.0
    %4033 = vmatprep.subr.mxu0 0.0
    %4034 = vmatpush1.msra.mxu0 0.0
    %4035 = vmatprep.subr.mxu0 0.0
    %4036 = vmatpush1.msra.mxu0 0.0
    %4037 = vmatprep.subr.mxu0 0.0
    %4038 = vmatpush1.msra.mxu0 0.0
    %4039 = vmatprep.subr.mxu0 0.0
    %4040 = vmatpush1.msra.mxu0 0.0
    %4041 = vmatprep.subr.mxu0 0.0
    %4042 = vmatpush1.msra.mxu0 0.0
    %4043 = vmatprep.subr.mxu0 0.0
    %4044 = vmatpush1.msra.mxu0 0.0
    %4045 = vmatprep.subr.mxu0 0.0
    %4046 = vmatpush1.msra.mxu0 0.0
    %4047 = vmatprep.subr.mxu0 0.0
    %4048 = vmatpush1.msra.mxu0 0.0
    %4049 = vmatprep.subr.mxu0 0.0
    %4050 = vmatpush1.msra.mxu0 0.0
    %4051 = vmatprep.subr.mxu0 0.0
    %4052 = vmatpush1.msra.mxu0 0.0
    %4053 = vmatprep.subr.mxu0 0.0
    %4054 = vmatpush1.msra.mxu0 0.0
    %4055 = vmatprep.subr.mxu0 0.0
    %4056 = vmatpush1.msra.mxu0 0.0
    %4057 = vmatprep.mubr.f32.mxu0 0.0
    %4058 = vmatmul.mubr.f32.gmra.mrb[0].mxu0 %v3920
    %v4059 = vpop.f32.mrb[0].mxu0
    %v4060 = vadd.f32 0.0, %v4059
    %v4061 = vpop.f32.mrb[0].mxu0
    %4062 = vdwg.mxu0
    %v4063 = vadd.f32 %v3759, %v3989
    %v4064 = vadd.f32 %v3760, %v3991
    %v4065 = vadd.f32 %v3761, %v4060
    %v4066 = vadd.f32 %v4063, %v1218
    %v4067 = vadd.f32 %v4064, %v1222
    %v4068 = vadd.f32 %v4065, %v1226
    %v4069 = vmax.f32 %v4066, 0.0
    %v4071 = vsel %vm1249, %v4069, 0
    %4073 = vmatprep.subr.mxu0 0.0
    %4074 = vmatpush1.msra.mxu0 %v1234
    %4075 = vmatprep.subr.mxu0 0.0
    %4076 = vmatpush1.msra.mxu0 %v1235
    %4077 = vmatprep.subr.mxu0 0.0
    %4078 = vmatpush1.msra.mxu0 %v1236
    %4079 = vmatprep.subr.mxu0 0.0
    %4080 = vmatpush1.msra.mxu0 %v1237
    %4081 = vmatprep.subr.mxu0 0.0
    %4082 = vmatpush1.msra.mxu0 %v1238
    %4083 = vmatprep.subr.mxu0 0.0
    %4084 = vmatpush1.msra.mxu0 %v1239
    %4085 = vmatprep.subr.mxu0 0.0
    %4086 = vmatpush1.msra.mxu0 %v1240
    %4087 = vmatprep.subr.mxu0 0.0
    %4088 = vmatpush1.msra.mxu0 %v1241
    %4089 = vmatprep.subr.mxu0 0.0
    %4090 = vmatpush1.msra.mxu0 0.0
    %4091 = vmatprep.subr.mxu0 0.0
    %4092 = vmatpush1.msra.mxu0 0.0
    %4093 = vmatprep.subr.mxu0 0.0
    %4094 = vmatpush1.msra.mxu0 0.0
    %4095 = vmatprep.subr.mxu0 0.0
    %4096 = vmatpush1.msra.mxu0 0.0
    %4097 = vmatprep.subr.mxu0 0.0
    %4098 = vmatpush1.msra.mxu0 0.0
    %4099 = vmatprep.subr.mxu0 0.0
    %4100 = vmatpush1.msra.mxu0 0.0
    %4101 = vmatprep.subr.mxu0 0.0
    %4102 = vmatpush1.msra.mxu0 0.0
    %4103 = vmatprep.subr.mxu0 0.0
    %4104 = vmatpush1.msra.mxu0 0.0
    %4105 = vmatprep.subr.mxu0 0.0
    %4106 = vmatpush1.msra.mxu0 0.0
    %4107 = vmatprep.subr.mxu0 0.0
    %4108 = vmatpush1.msra.mxu0 0.0
    %4109 = vmatprep.subr.mxu0 0.0
    %4110 = vmatpush1.msra.mxu0 0.0
    %4111 = vmatprep.subr.mxu0 0.0
    %4112 = vmatpush1.msra.mxu0 0.0
    %4113 = vmatprep.subr.mxu0 0.0
    %4114 = vmatpush1.msra.mxu0 0.0
    %4115 = vmatprep.subr.mxu0 0.0
    %4116 = vmatpush1.msra.mxu0 0.0
    %4117 = vmatprep.subr.mxu0 0.0
    %4118 = vmatpush1.msra.mxu0 0.0
    %4119 = vmatprep.subr.mxu0 0.0
    %4120 = vmatpush1.msra.mxu0 0.0
    %4121 = vmatprep.subr.mxu0 0.0
    %4122 = vmatpush1.msra.mxu0 0.0
    %4123 = vmatprep.subr.mxu0 0.0
    %4124 = vmatpush1.msra.mxu0 0.0
    %4125 = vmatprep.subr.mxu0 0.0
    %4126 = vmatpush1.msra.mxu0 0.0
    %4127 = vmatprep.subr.mxu0 0.0
    %4128 = vmatpush1.msra.mxu0 0.0
    %4129 = vmatprep.subr.mxu0 0.0
    %4130 = vmatpush1.msra.mxu0 0.0
    %4131 = vmatprep.subr.mxu0 0.0
    %4132 = vmatpush1.msra.mxu0 0.0
    %4133 = vmatprep.subr.mxu0 0.0
    %4134 = vmatpush1.msra.mxu0 0.0
    %4135 = vmatprep.subr.mxu0 0.0
    %4136 = vmatpush1.msra.mxu0 0.0
    %4137 = vmatprep.mubr.f32.mxu0 0.0
    %4138 = vmatmul.mubr.f32.gmra.mrb[0].mxu0 %v4071
    %v4139 = vpop.f32.mrb[0].mxu0
    %v4140 = vadd.f32 %v1247, %v4139
    %v4141 = vpop.f32.mrb[0].mxu0
    %4142 = vdwg.mxu0
    %v4143 = vadd.f32 %v4067, %v4068
    %v4144 = vxor.u32 %v4143, 2147483648
    %v4145 = vmul.f32 %v4144, 1.442695
    %v4146 = vpow.pop %v4145
    %v4147 = vadd.f32 %v4146, 1.0
    %v4148 = vrcp.pop %v4147
    %v4149 = vmul.f32 1.0, %v4148
    %4151 = vrot.lane.b32.xlu0 %v4068, 64
    %v4152 = vpop.permute.xlu0 %4151
    %v4154 = vmul.f32 %v4149, %v4152
    %4156 = vrot.lane.b32.xlu0 %v4154, 64
    %v4157 = vpop.permute.xlu0 %4156
    %v4159 = vadd.f32 %v4067, %v4157
    %v4160 = vtanh.pop %v4159
    %v4161 = vsub.f32 1.0, %v4149
    %4163 = vrot.lane.b32.xlu0 %v4160, 96
    %v4164 = vpop.permute.xlu0 %4163
    %v4166 = vmul.f32 %v4161, %v4164
    %v4168 = vmul.f32 %v4149, %v3535
    %v4169 = vadd.f32 %v4166, %v4168
    %4171 = vrot.lane.b32.xlu0 %v3831, 32
    %v4172 = vpop.permute.xlu0 %4171
    %v4174 = vsub.f32 %v3831, %v4172
    %v4175 = vadd.f32 %v3510, %v4174
    %4176 = vrot.lane.b32.xlu0 %v3831, 96
    %v4177 = vpop.permute.xlu0 %4176
    %v4179 = vsub.f32 %v3831, %v4177
    %v4180 = vmul.f32 %v4179, 1.442695
    %v4181 = vpow.pop %v4180
    %4183 = vrot.lane.b32.xlu0 %v4181, 32
    %v4184 = vpop.permute.xlu0 %4183
    %v4186 = vadd.f32 %v4175, %v4184
    %v4187 = vmul.f32 %v4179, %v4179
    %v4188 = vsub.f32 0.0, %v3831
    %v4189 = vmul.f32 %v4188, 1.442695
    %v4190 = vpow.pop %v4189
    %4192 = vrot.lane.b32.xlu0 %v4190, 80
    %v4193 = vpop.permute.xlu0 %4192
    %v4195 = vmul.f32 %v4187, %v4193
    %4197 = vrot.lane.b32.xlu0 %v4195, 48
    %v4198 = vpop.permute.xlu0 %4197
    %v4200 = vadd.f32 %v4186, %v4198
    %s4201 = scalar_lea.vmem %s1, 16
    %v4202 = vld [vmem:[%s4201] sm:$0xf]
    %v4203 = vsub.f32 %v4202, %v4140
    %v4204 = vmul.f32 %v4203, %v4203
    %v4205 = vsub.f32 0.0, %v4140
    %v4206 = vmul.f32 %v4205, 1.442695
    %v4207 = vpow.pop %v4206
    %4209 = vrot.lane.b32.xlu0 %v4207, 126
    %v4210 = vpop.permute.xlu0 %4209
    %v4212 = vmul.f32 %v4204, %v4210
    %v4213 = vadd.f32 %v3528, %v4212
    %4215 = vrot.lane.b32.xlu0 %v4140, 126
    %v4216 = vpop.permute.xlu0 %4215
    %v4218 = vadd.f32 %v4213, %v4216
    %v4219 = vld [vmem:[#allocation2 + $0x50] sm:$0xf0]
    %v4220 = vld [vmem:[#allocation2 + $0x58] sm:$0xf0]
    %v4221 = vld [vmem:[#allocation2 + $0x60] sm:$0xf0]
    %v4222 = vld [vmem:[#allocation2 + $0x68] sm:$0xf0]
    %v4223 = vld [vmem:[#allocation2 + $0x70] sm:$0xf0]
    %4225 = vrot.lane.b32.xlu0 %v4169, 96
    %v4226 = vpop.permute.xlu0 %4225
    %v4227 = vsel %vm282, %v4226, 0
    %4229 = vmatprep.subr.mxu0 %v584
    %4230 = vmatpush1.msra.mxu0 %v583
    %4231 = vmatprep.subr.mxu0 %v589
    %4232 = vmatpush1.msra.mxu0 %v588
    %4233 = vmatprep.subr.mxu0 %v594
    %4234 = vmatpush1.msra.mxu0 %v593
    %4235 = vmatprep.subr.mxu0 %v599
    %4236 = vmatpush1.msra.mxu0 %v598
    %4237 = vmatprep.subr.mxu0 0.0
    %4238 = vmatpush1.msra.mxu0 0.0
    %4239 = vmatprep.subr.mxu0 0.0
    %4240 = vmatpush1.msra.mxu0 0.0
    %4241 = vmatprep.subr.mxu0 0.0
    %4242 = vmatpush1.msra.mxu0 0.0
    %4243 = vmatprep.subr.mxu0 0.0
    %4244 = vmatpush1.msra.mxu0 0.0
    %4245 = vmatprep.subr.mxu0 0.0
    %4246 = vmatpush1.msra.mxu0 0.0
    %4247 = vmatprep.subr.mxu0 0.0
    %4248 = vmatpush1.msra.mxu0 0.0
    %4249 = vmatprep.subr.mxu0 0.0
    %4250 = vmatpush1.msra.mxu0 0.0
    %4251 = vmatprep.subr.mxu0 0.0
    %4252 = vmatpush1.msra.mxu0 0.0
    %4253 = vmatprep.subr.mxu0 0.0
    %4254 = vmatpush1.msra.mxu0 0.0
    %4255 = vmatprep.subr.mxu0 0.0
    %4256 = vmatpush1.msra.mxu0 0.0
    %4257 = vmatprep.subr.mxu0 0.0
    %4258 = vmatpush1.msra.mxu0 0.0
    %4259 = vmatprep.subr.mxu0 0.0
    %4260 = vmatpush1.msra.mxu0 0.0
    %4261 = vmatprep.subr.mxu0 0.0
    %4262 = vmatpush1.msra.mxu0 0.0
    %4263 = vmatprep.subr.mxu0 0.0
    %4264 = vmatpush1.msra.mxu0 0.0
    %4265 = vmatprep.subr.mxu0 0.0
    %4266 = vmatpush1.msra.mxu0 0.0
    %4267 = vmatprep.subr.mxu0 0.0
    %4268 = vmatpush1.msra.mxu0 0.0
    %4269 = vmatprep.subr.mxu0 0.0
    %4270 = vmatpush1.msra.mxu0 0.0
    %4271 = vmatprep.subr.mxu0 0.0
    %4272 = vmatpush1.msra.mxu0 0.0
    %4273 = vmatprep.subr.mxu0 0.0
    %4274 = vmatpush1.msra.mxu0 0.0
    %4275 = vmatprep.subr.mxu0 0.0
    %4276 = vmatpush1.msra.mxu0 0.0
    %4277 = vmatprep.subr.mxu0 0.0
    %4278 = vmatpush1.msra.mxu0 0.0
    %4279 = vmatprep.subr.mxu0 0.0
    %4280 = vmatpush1.msra.mxu0 0.0
    %4281 = vmatprep.subr.mxu0 0.0
    %4282 = vmatpush1.msra.mxu0 0.0
    %4283 = vmatprep.subr.mxu0 0.0
    %4284 = vmatpush1.msra.mxu0 0.0
    %4285 = vmatprep.subr.mxu0 0.0
    %4286 = vmatpush1.msra.mxu0 0.0
    %4287 = vmatprep.subr.mxu0 0.0
    %4288 = vmatpush1.msra.mxu0 0.0
    %4289 = vmatprep.subr.mxu0 0.0
    %4290 = vmatpush1.msra.mxu0 0.0
    %4291 = vmatprep.subr.mxu0 0.0
    %4292 = vmatpush1.msra.mxu0 0.0
    %4293 = vmatprep.mubr.f32.mxu0 0.0
    %4294 = vmatmul.mubr.f32.gmra.mrb[0].mxu0 %v4227
    %v4295 = vpop.f32.mrb[0].mxu0
    %v4296 = vadd.f32 0.0, %v4295
    %v4297 = vpop.f32.mrb[0].mxu0
    %v4298 = vadd.f32 0.0, %v4297
    %4299 = vdwg.mxu0
    %4300 = vmatprep.subr.mxu0 %v586
    %4301 = vmatpush1.msra.mxu0 %v585
    %4302 = vmatprep.subr.mxu0 %v591
    %4303 = vmatpush1.msra.mxu0 %v590
    %4304 = vmatprep.subr.mxu0 %v596
    %4305 = vmatpush1.msra.mxu0 %v595
    %4306 = vmatprep.subr.mxu0 %v601
    %4307 = vmatpush1.msra.mxu0 %v600
    %4308 = vmatprep.subr.mxu0 0.0
    %4309 = vmatpush1.msra.mxu0 0.0
    %4310 = vmatprep.subr.mxu0 0.0
    %4311 = vmatpush1.msra.mxu0 0.0
    %4312 = vmatprep.subr.mxu0 0.0
    %4313 = vmatpush1.msra.mxu0 0.0
    %4314 = vmatprep.subr.mxu0 0.0
    %4315 = vmatpush1.msra.mxu0 0.0
    %4316 = vmatprep.subr.mxu0 0.0
    %4317 = vmatpush1.msra.mxu0 0.0
    %4318 = vmatprep.subr.mxu0 0.0
    %4319 = vmatpush1.msra.mxu0 0.0
    %4320 = vmatprep.subr.mxu0 0.0
    %4321 = vmatpush1.msra.mxu0 0.0
    %4322 = vmatprep.subr.mxu0 0.0
    %4323 = vmatpush1.msra.mxu0 0.0
    %4324 = vmatprep.subr.mxu0 0.0
    %4325 = vmatpush1.msra.mxu0 0.0
    %4326 = vmatprep.subr.mxu0 0.0
    %4327 = vmatpush1.msra.mxu0 0.0
    %4328 = vmatprep.subr.mxu0 0.0
    %4329 = vmatpush1.msra.mxu0 0.0
    %4330 = vmatprep.subr.mxu0 0.0
    %4331 = vmatpush1.msra.mxu0 0.0
    %4332 = vmatprep.subr.mxu0 0.0
    %4333 = vmatpush1.msra.mxu0 0.0
    %4334 = vmatprep.subr.mxu0 0.0
    %4335 = vmatpush1.msra.mxu0 0.0
    %4336 = vmatprep.subr.mxu0 0.0
    %4337 = vmatpush1.msra.mxu0 0.0
    %4338 = vmatprep.subr.mxu0 0.0
    %4339 = vmatpush1.msra.mxu0 0.0
    %4340 = vmatprep.subr.mxu0 0.0
    %4341 = vmatpush1.msra.mxu0 0.0
    %4342 = vmatprep.subr.mxu0 0.0
    %4343 = vmatpush1.msra.mxu0 0.0
    %4344 = vmatprep.subr.mxu0 0.0
    %4345 = vmatpush1.msra.mxu0 0.0
    %4346 = vmatprep.subr.mxu0 0.0
    %4347 = vmatpush1.msra.mxu0 0.0
    %4348 = vmatprep.subr.mxu0 0.0
    %4349 = vmatpush1.msra.mxu0 0.0
    %4350 = vmatprep.subr.mxu0 0.0
    %4351 = vmatpush1.msra.mxu0 0.0
    %4352 = vmatprep.subr.mxu0 0.0
    %4353 = vmatpush1.msra.mxu0 0.0
    %4354 = vmatprep.subr.mxu0 0.0
    %4355 = vmatpush1.msra.mxu0 0.0
    %4356 = vmatprep.subr.mxu0 0.0
    %4357 = vmatpush1.msra.mxu0 0.0
    %4358 = vmatprep.subr.mxu0 0.0
    %4359 = vmatpush1.msra.mxu0 0.0
    %4360 = vmatprep.subr.mxu0 0.0
    %4361 = vmatpush1.msra.mxu0 0.0
    %4362 = vmatprep.subr.mxu0 0.0
    %4363 = vmatpush1.msra.mxu0 0.0
    %4364 = vmatprep.mubr.f32.mxu0 0.0
    %4365 = vmatmul.mubr.f32.gmra.mrb[0].mxu0 %v4227
    %v4366 = vpop.f32.mrb[0].mxu0
    %v4367 = vadd.f32 0.0, %v4366
    %v4368 = vpop.f32.mrb[0].mxu0
    %v4369 = vadd.f32 0.0, %v4368
    %4370 = vdwg.mxu0
    %4371 = vmatprep.subr.mxu0 0.0
    %4372 = vmatpush1.msra.mxu0 %v587
    %4373 = vmatprep.subr.mxu0 0.0
    %4374 = vmatpush1.msra.mxu0 %v592
    %4375 = vmatprep.subr.mxu0 0.0
    %4376 = vmatpush1.msra.mxu0 %v597
    %4377 = vmatprep.subr.mxu0 0.0
    %4378 = vmatpush1.msra.mxu0 %v602
    %4379 = vmatprep.subr.mxu0 0.0
    %4380 = vmatpush1.msra.mxu0 0.0
    %4381 = vmatprep.subr.mxu0 0.0
    %4382 = vmatpush1.msra.mxu0 0.0
    %4383 = vmatprep.subr.mxu0 0.0
    %4384 = vmatpush1.msra.mxu0 0.0
    %4385 = vmatprep.subr.mxu0 0.0
    %4386 = vmatpush1.msra.mxu0 0.0
    %4387 = vmatprep.subr.mxu0 0.0
    %4388 = vmatpush1.msra.mxu0 0.0
    %4389 = vmatprep.subr.mxu0 0.0
    %4390 = vmatpush1.msra.mxu0 0.0
    %4391 = vmatprep.subr.mxu0 0.0
    %4392 = vmatpush1.msra.mxu0 0.0
    %4393 = vmatprep.subr.mxu0 0.0
    %4394 = vmatpush1.msra.mxu0 0.0
    %4395 = vmatprep.subr.mxu0 0.0
    %4396 = vmatpush1.msra.mxu0 0.0
    %4397 = vmatprep.subr.mxu0 0.0
    %4398 = vmatpush1.msra.mxu0 0.0
    %4399 = vmatprep.subr.mxu0 0.0
    %4400 = vmatpush1.msra.mxu0 0.0
    %4401 = vmatprep.subr.mxu0 0.0
    %4402 = vmatpush1.msra.mxu0 0.0
    %4403 = vmatprep.subr.mxu0 0.0
    %4404 = vmatpush1.msra.mxu0 0.0
    %4405 = vmatprep.subr.mxu0 0.0
    %4406 = vmatpush1.msra.mxu0 0.0
    %4407 = vmatprep.subr.mxu0 0.0
    %4408 = vmatpush1.msra.mxu0 0.0
    %4409 = vmatprep.subr.mxu0 0.0
    %4410 = vmatpush1.msra.mxu0 0.0
    %4411 = vmatprep.subr.mxu0 0.0
    %4412 = vmatpush1.msra.mxu0 0.0
    %4413 = vmatprep.subr.mxu0 0.0
    %4414 = vmatpush1.msra.mxu0 0.0
    %4415 = vmatprep.subr.mxu0 0.0
    %4416 = vmatpush1.msra.mxu0 0.0
    %4417 = vmatprep.subr.mxu0 0.0
    %4418 = vmatpush1.msra.mxu0 0.0
    %4419 = vmatprep.subr.mxu0 0.0
    %4420 = vmatpush1.msra.mxu0 0.0
    %4421 = vmatprep.subr.mxu0 0.0
    %4422 = vmatpush1.msra.mxu0 0.0
    %4423 = vmatprep.subr.mxu0 0.0
    %4424 = vmatpush1.msra.mxu0 0.0
    %4425 = vmatprep.subr.mxu0 0.0
    %4426 = vmatpush1.msra.mxu0 0.0
    %4427 = vmatprep.subr.mxu0 0.0
    %4428 = vmatpush1.msra.mxu0 0.0
    %4429 = vmatprep.subr.mxu0 0.0
    %4430 = vmatpush1.msra.mxu0 0.0
    %4431 = vmatprep.subr.mxu0 0.0
    %4432 = vmatpush1.msra.mxu0 0.0
    %4433 = vmatprep.subr.mxu0 0.0
    %4434 = vmatpush1.msra.mxu0 0.0
    %4435 = vmatprep.mubr.f32.mxu0 0.0
    %4436 = vmatmul.mubr.f32.gmra.mrb[0].mxu0 %v4227
    %v4437 = vpop.f32.mrb[0].mxu0
    %v4438 = vadd.f32 0.0, %v4437
    %v4439 = vpop.f32.mrb[0].mxu0
    %4440 = vdwg.mxu0
    %v4446 = vrot.slane %v4296, 4
    %v4447 = vrot.slane %v4298, 4
    %v4448 = vrot.slane %v4367, 4
    %v4449 = vrot.slane %v4369, 4
    %v4450 = vrot.slane %v4438, 4
    %v4456 = vadd.f32 %v4219, %v4446
    %v4457 = vadd.f32 %v4220, %v4447
    %v4458 = vadd.f32 %v4221, %v4448
    %v4459 = vadd.f32 %v4222, %v4449
    %v4460 = vadd.f32 %v4223, %v4450
    %v4461 = vadd.f32 %v4456, %v828
    %v4462 = vadd.f32 %v4457, %v832
    %v4463 = vadd.f32 %v4458, %v836
    %v4464 = vadd.f32 %v4459, %v840
    %v4465 = vadd.f32 %v4460, %v844
    %v4466 = vmax.f32 %v4461, 0.0
    %v4467 = vmax.f32 %v4462, 0.0
    %v4470 = vrot.slane %v4466, 4
    %v4471 = vrot.slane %v4467, 4
    %4474 = vmatprep.subr.mxu0 0.0
    %4475 = vmatpush1.msra.mxu0 %v857
    %4476 = vmatprep.subr.mxu0 0.0
    %4477 = vmatpush1.msra.mxu0 %v858
    %4478 = vmatprep.subr.mxu0 0.0
    %4479 = vmatpush1.msra.mxu0 %v859
    %4480 = vmatprep.subr.mxu0 0.0
    %4481 = vmatpush1.msra.mxu0 %v860
    %4482 = vmatprep.subr.mxu0 0.0
    %4483 = vmatpush1.msra.mxu0 %v861
    %4484 = vmatprep.subr.mxu0 0.0
    %4485 = vmatpush1.msra.mxu0 %v862
    %4486 = vmatprep.subr.mxu0 0.0
    %4487 = vmatpush1.msra.mxu0 %v863
    %4488 = vmatprep.subr.mxu0 0.0
    %4489 = vmatpush1.msra.mxu0 %v864
    %4490 = vmatprep.subr.mxu0 0.0
    %4491 = vmatpush1.msra.mxu0 %v865
    %4492 = vmatprep.subr.mxu0 0.0
    %4493 = vmatpush1.msra.mxu0 %v866
    %4494 = vmatprep.subr.mxu0 0.0
    %4495 = vmatpush1.msra.mxu0 %v867
    %4496 = vmatprep.subr.mxu0 0.0
    %4497 = vmatpush1.msra.mxu0 %v868
    %4498 = vmatprep.subr.mxu0 0.0
    %4499 = vmatpush1.msra.mxu0 %v869
    %4500 = vmatprep.subr.mxu0 0.0
    %4501 = vmatpush1.msra.mxu0 %v870
    %4502 = vmatprep.subr.mxu0 0.0
    %4503 = vmatpush1.msra.mxu0 %v871
    %4504 = vmatprep.subr.mxu0 0.0
    %4505 = vmatpush1.msra.mxu0 %v872
    %4506 = vmatprep.subr.mxu0 0.0
    %4507 = vmatpush1.msra.mxu0 %v873
    %4508 = vmatprep.subr.mxu0 0.0
    %4509 = vmatpush1.msra.mxu0 %v874
    %4510 = vmatprep.subr.mxu0 0.0
    %4511 = vmatpush1.msra.mxu0 %v875
    %4512 = vmatprep.subr.mxu0 0.0
    %4513 = vmatpush1.msra.mxu0 %v876
    %4514 = vmatprep.subr.mxu0 0.0
    %4515 = vmatpush1.msra.mxu0 %v877
    %4516 = vmatprep.subr.mxu0 0.0
    %4517 = vmatpush1.msra.mxu0 %v878
    %4518 = vmatprep.subr.mxu0 0.0
    %4519 = vmatpush1.msra.mxu0 %v879
    %4520 = vmatprep.subr.mxu0 0.0
    %4521 = vmatpush1.msra.mxu0 %v880
    %4522 = vmatprep.subr.mxu0 0.0
    %4523 = vmatpush1.msra.mxu0 %v881
    %4524 = vmatprep.subr.mxu0 0.0
    %4525 = vmatpush1.msra.mxu0 %v882
    %4526 = vmatprep.subr.mxu0 0.0
    %4527 = vmatpush1.msra.mxu0 %v883
    %4528 = vmatprep.subr.mxu0 0.0
    %4529 = vmatpush1.msra.mxu0 %v884
    %4530 = vmatprep.subr.mxu0 0.0
    %4531 = vmatpush1.msra.mxu0 %v885
    %4532 = vmatprep.subr.mxu0 0.0
    %4533 = vmatpush1.msra.mxu0 %v886
    %4534 = vmatprep.subr.mxu0 0.0
    %4535 = vmatpush1.msra.mxu0 %v887
    %4536 = vmatprep.subr.mxu0 0.0
    %4537 = vmatpush1.msra.mxu0 %v888
    %4538 = vmatprep.mubr.f32.mxu0 %v4471
    %4539 = vmatmul.mubr.f32.gmra.mrb[0].mxu0 %v4470
    %v4540 = vpop.f32.mrb[0].mxu0
    %v4541 = vadd.f32 %v894, %v4540
    %v4542 = vpop.f32.mrb[0].mxu0
    %4543 = vdwg.mxu0
    %s4544 = scalar_lea.vmem %s2, 20
    %v4545 = vld [vmem:[%s4544] sm:$0xf]
    %v4546 = vmul.f32 %v4541, 0.5
    %v4547 = vmul.f32 %v4546, 1.442695
    %v4548 = vpow.pop %v4547
    %4550 = vrot.lane.b32.xlu0 %v4548, 112
    %v4551 = vpop.permute.xlu0 %4550
    %v4553 = vmul.f32 %v4545, %v4551
    %v4554 = vadd.f32 %v4553, %v4541
    %v4556 = vsel %vm985, %v4554, 0
    %4558 = vmatprep.subr.mxu0 0.0
    %4559 = vmatpush1.msra.mxu0 %v976
    %4560 = vmatprep.subr.mxu0 0.0
    %4561 = vmatpush1.msra.mxu0 %v977
    %4562 = vmatprep.subr.mxu0 0.0
    %4563 = vmatpush1.msra.mxu0 0.0
    %4564 = vmatprep.subr.mxu0 0.0
    %4565 = vmatpush1.msra.mxu0 0.0
    %4566 = vmatprep.subr.mxu0 0.0
    %4567 = vmatpush1.msra.mxu0 0.0
    %4568 = vmatprep.subr.mxu0 0.0
    %4569 = vmatpush1.msra.mxu0 0.0
    %4570 = vmatprep.subr.mxu0 0.0
    %4571 = vmatpush1.msra.mxu0 0.0
    %4572 = vmatprep.subr.mxu0 0.0
    %4573 = vmatpush1.msra.mxu0 0.0
    %4574 = vmatprep.subr.mxu0 0.0
    %4575 = vmatpush1.msra.mxu0 0.0
    %4576 = vmatprep.subr.mxu0 0.0
    %4577 = vmatpush1.msra.mxu0 0.0
    %4578 = vmatprep.subr.mxu0 0.0
    %4579 = vmatpush1.msra.mxu0 0.0
    %4580 = vmatprep.subr.mxu0 0.0
    %4581 = vmatpush1.msra.mxu0 0.0
    %4582 = vmatprep.subr.mxu0 0.0
    %4583 = vmatpush1.msra.mxu0 0.0
    %4584 = vmatprep.subr.mxu0 0.0
    %4585 = vmatpush1.msra.mxu0 0.0
    %4586 = vmatprep.subr.mxu0 0.0
    %4587 = vmatpush1.msra.mxu0 0.0
    %4588 = vmatprep.subr.mxu0 0.0
    %4589 = vmatpush1.msra.mxu0 0.0
    %4590 = vmatprep.subr.mxu0 0.0
    %4591 = vmatpush1.msra.mxu0 0.0
    %4592 = vmatprep.subr.mxu0 0.0
    %4593 = vmatpush1.msra.mxu0 0.0
    %4594 = vmatprep.subr.mxu0 0.0
    %4595 = vmatpush1.msra.mxu0 0.0
    %4596 = vmatprep.subr.mxu0 0.0
    %4597 = vmatpush1.msra.mxu0 0.0
    %4598 = vmatprep.subr.mxu0 0.0
    %4599 = vmatpush1.msra.mxu0 0.0
    %4600 = vmatprep.subr.mxu0 0.0
    %4601 = vmatpush1.msra.mxu0 0.0
    %4602 = vmatprep.subr.mxu0 0.0
    %4603 = vmatpush1.msra.mxu0 0.0
    %4604 = vmatprep.subr.mxu0 0.0
    %4605 = vmatpush1.msra.mxu0 0.0
    %4606 = vmatprep.subr.mxu0 0.0
    %4607 = vmatpush1.msra.mxu0 0.0
    %4608 = vmatprep.subr.mxu0 0.0
    %4609 = vmatpush1.msra.mxu0 0.0
    %4610 = vmatprep.subr.mxu0 0.0
    %4611 = vmatpush1.msra.mxu0 0.0
    %4612 = vmatprep.subr.mxu0 0.0
    %4613 = vmatpush1.msra.mxu0 0.0
    %4614 = vmatprep.subr.mxu0 0.0
    %4615 = vmatpush1.msra.mxu0 0.0
    %4616 = vmatprep.subr.mxu0 0.0
    %4617 = vmatpush1.msra.mxu0 0.0
    %4618 = vmatprep.subr.mxu0 0.0
    %4619 = vmatpush1.msra.mxu0 0.0
    %4620 = vmatprep.subr.mxu0 0.0
    %4621 = vmatpush1.msra.mxu0 0.0
    %4622 = vmatprep.mubr.f32.mxu0 0.0
    %4623 = vmatmul.mubr.f32.gmra.mrb[0].mxu0 %v4556
    %v4624 = vpop.f32.mrb[0].mxu0
    %v4625 = vadd.f32 %v983, %v4624
    %v4626 = vpop.f32.mrb[0].mxu0
    %4627 = vdwg.mxu0
    %v4628 = vmax.f32 %v4625, 0.0
    %v4630 = vsel %vm985, %v4628, 0
    %4632 = vmatprep.subr.mxu0 %v1061
    %4633 = vmatpush1.msra.mxu0 %v1060
    %4634 = vmatprep.subr.mxu0 %v1064
    %4635 = vmatpush1.msra.mxu0 %v1063
    %4636 = vmatprep.subr.mxu0 0.0
    %4637 = vmatpush1.msra.mxu0 0.0
    %4638 = vmatprep.subr.mxu0 0.0
    %4639 = vmatpush1.msra.mxu0 0.0
    %4640 = vmatprep.subr.mxu0 0.0
    %4641 = vmatpush1.msra.mxu0 0.0
    %4642 = vmatprep.subr.mxu0 0.0
    %4643 = vmatpush1.msra.mxu0 0.0
    %4644 = vmatprep.subr.mxu0 0.0
    %4645 = vmatpush1.msra.mxu0 0.0
    %4646 = vmatprep.subr.mxu0 0.0
    %4647 = vmatpush1.msra.mxu0 0.0
    %4648 = vmatprep.subr.mxu0 0.0
    %4649 = vmatpush1.msra.mxu0 0.0
    %4650 = vmatprep.subr.mxu0 0.0
    %4651 = vmatpush1.msra.mxu0 0.0
    %4652 = vmatprep.subr.mxu0 0.0
    %4653 = vmatpush1.msra.mxu0 0.0
    %4654 = vmatprep.subr.mxu0 0.0
    %4655 = vmatpush1.msra.mxu0 0.0
    %4656 = vmatprep.subr.mxu0 0.0
    %4657 = vmatpush1.msra.mxu0 0.0
    %4658 = vmatprep.subr.mxu0 0.0
    %4659 = vmatpush1.msra.mxu0 0.0
    %4660 = vmatprep.subr.mxu0 0.0
    %4661 = vmatpush1.msra.mxu0 0.0
    %4662 = vmatprep.subr.mxu0 0.0
    %4663 = vmatpush1.msra.mxu0 0.0
    %4664 = vmatprep.subr.mxu0 0.0
    %4665 = vmatpush1.msra.mxu0 0.0
    %4666 = vmatprep.subr.mxu0 0.0
    %4667 = vmatpush1.msra.mxu0 0.0
    %4668 = vmatprep.subr.mxu0 0.0
    %4669 = vmatpush1.msra.mxu0 0.0
    %4670 = vmatprep.subr.mxu0 0.0
    %4671 = vmatpush1.msra.mxu0 0.0
    %4672 = vmatprep.subr.mxu0 0.0
    %4673 = vmatpush1.msra.mxu0 0.0
    %4674 = vmatprep.subr.mxu0 0.0
    %4675 = vmatpush1.msra.mxu0 0.0
    %4676 = vmatprep.subr.mxu0 0.0
    %4677 = vmatpush1.msra.mxu0 0.0
    %4678 = vmatprep.subr.mxu0 0.0
    %4679 = vmatpush1.msra.mxu0 0.0
    %4680 = vmatprep.subr.mxu0 0.0
    %4681 = vmatpush1.msra.mxu0 0.0
    %4682 = vmatprep.subr.mxu0 0.0
    %4683 = vmatpush1.msra.mxu0 0.0
    %4684 = vmatprep.subr.mxu0 0.0
    %4685 = vmatpush1.msra.mxu0 0.0
    %4686 = vmatprep.subr.mxu0 0.0
    %4687 = vmatpush1.msra.mxu0 0.0
    %4688 = vmatprep.subr.mxu0 0.0
    %4689 = vmatpush1.msra.mxu0 0.0
    %4690 = vmatprep.subr.mxu0 0.0
    %4691 = vmatpush1.msra.mxu0 0.0
    %4692 = vmatprep.subr.mxu0 0.0
    %4693 = vmatpush1.msra.mxu0 0.0
    %4694 = vmatprep.subr.mxu0 0.0
    %4695 = vmatpush1.msra.mxu0 0.0
    %4696 = vmatprep.mubr.f32.mxu0 0.0
    %4697 = vmatmul.mubr.f32.gmra.mrb[0].mxu0 %v4630
    %v4698 = vpop.f32.mrb[0].mxu0
    %v4699 = vadd.f32 0.0, %v4698
    %v4700 = vpop.f32.mrb[0].mxu0
    %v4701 = vadd.f32 0.0, %v4700
    %4702 = vdwg.mxu0
    %4703 = vmatprep.subr.mxu0 0.0
    %4704 = vmatpush1.msra.mxu0 %v1062
    %4705 = vmatprep.subr.mxu0 0.0
    %4706 = vmatpush1.msra.mxu0 %v1065
    %4707 = vmatprep.subr.mxu0 0.0
    %4708 = vmatpush1.msra.mxu0 0.0
    %4709 = vmatprep.subr.mxu0 0.0
    %4710 = vmatpush1.msra.mxu0 0.0
    %4711 = vmatprep.subr.mxu0 0.0
    %4712 = vmatpush1.msra.mxu0 0.0
    %4713 = vmatprep.subr.mxu0 0.0
    %4714 = vmatpush1.msra.mxu0 0.0
    %4715 = vmatprep.subr.mxu0 0.0
    %4716 = vmatpush1.msra.mxu0 0.0
    %4717 = vmatprep.subr.mxu0 0.0
    %4718 = vmatpush1.msra.mxu0 0.0
    %4719 = vmatprep.subr.mxu0 0.0
    %4720 = vmatpush1.msra.mxu0 0.0
    %4721 = vmatprep.subr.mxu0 0.0
    %4722 = vmatpush1.msra.mxu0 0.0
    %4723 = vmatprep.subr.mxu0 0.0
    %4724 = vmatpush1.msra.mxu0 0.0
    %4725 = vmatprep.subr.mxu0 0.0
    %4726 = vmatpush1.msra.mxu0 0.0
    %4727 = vmatprep.subr.mxu0 0.0
    %4728 = vmatpush1.msra.mxu0 0.0
    %4729 = vmatprep.subr.mxu0 0.0
    %4730 = vmatpush1.msra.mxu0 0.0
    %4731 = vmatprep.subr.mxu0 0.0
    %4732 = vmatpush1.msra.mxu0 0.0
    %4733 = vmatprep.subr.mxu0 0.0
    %4734 = vmatpush1.msra.mxu0 0.0
    %4735 = vmatprep.subr.mxu0 0.0
    %4736 = vmatpush1.msra.mxu0 0.0
    %4737 = vmatprep.subr.mxu0 0.0
    %4738 = vmatpush1.msra.mxu0 0.0
    %4739 = vmatprep.subr.mxu0 0.0
    %4740 = vmatpush1.msra.mxu0 0.0
    %4741 = vmatprep.subr.mxu0 0.0
    %4742 = vmatpush1.msra.mxu0 0.0
    %4743 = vmatprep.subr.mxu0 0.0
    %4744 = vmatpush1.msra.mxu0 0.0
    %4745 = vmatprep.subr.mxu0 0.0
    %4746 = vmatpush1.msra.mxu0 0.0
    %4747 = vmatprep.subr.mxu0 0.0
    %4748 = vmatpush1.msra.mxu0 0.0
    %4749 = vmatprep.subr.mxu0 0.0
    %4750 = vmatpush1.msra.mxu0 0.0
    %4751 = vmatprep.subr.mxu0 0.0
    %4752 = vmatpush1.msra.mxu0 0.0
    %4753 = vmatprep.subr.mxu0 0.0
    %4754 = vmatpush1.msra.mxu0 0.0
    %4755 = vmatprep.subr.mxu0 0.0
    %4756 = vmatpush1.msra.mxu0 0.0
    %4757 = vmatprep.subr.mxu0 0.0
    %4758 = vmatpush1.msra.mxu0 0.0
    %4759 = vmatprep.subr.mxu0 0.0
    %4760 = vmatpush1.msra.mxu0 0.0
    %4761 = vmatprep.subr.mxu0 0.0
    %4762 = vmatpush1.msra.mxu0 0.0
    %4763 = vmatprep.subr.mxu0 0.0
    %4764 = vmatpush1.msra.mxu0 0.0
    %4765 = vmatprep.subr.mxu0 0.0
    %4766 = vmatpush1.msra.mxu0 0.0
    %4767 = vmatprep.mubr.f32.mxu0 0.0
    %4768 = vmatmul.mubr.f32.gmra.mrb[0].mxu0 %v4630
    %v4769 = vpop.f32.mrb[0].mxu0
    %v4770 = vadd.f32 0.0, %v4769
    %v4771 = vpop.f32.mrb[0].mxu0
    %4772 = vdwg.mxu0
    %v4776 = vrot.slane %v4699, 4
    %v4777 = vrot.slane %v4701, 4
    %v4778 = vrot.slane %v4770, 4
    %v4782 = vadd.f32 %v4463, %v4776
    %v4783 = vadd.f32 %v4464, %v4777
    %v4784 = vadd.f32 %v4465, %v4778
    %v4785 = vadd.f32 %v4782, %v1218
    %v4786 = vadd.f32 %v4783, %v1222
    %v4787 = vadd.f32 %v4784, %v1226
    %v4788 = vmax.f32 %v4785, 0.0
    %v4790 = vrot.slane %v4788, 4
    %v4791 = vsel %vm1249, %v4790, 0
    %4793 = vmatprep.subr.mxu0 0.0
    %4794 = vmatpush1.msra.mxu0 %v1234
    %4795 = vmatprep.subr.mxu0 0.0
    %4796 = vmatpush1.msra.mxu0 %v1235
    %4797 = vmatprep.subr.mxu0 0.0
    %4798 = vmatpush1.msra.mxu0 %v1236
    %4799 = vmatprep.subr.mxu0 0.0
    %4800 = vmatpush1.msra.mxu0 %v1237
    %4801 = vmatprep.subr.mxu0 0.0
    %4802 = vmatpush1.msra.mxu0 %v1238
    %4803 = vmatprep.subr.mxu0 0.0
    %4804 = vmatpush1.msra.mxu0 %v1239
    %4805 = vmatprep.subr.mxu0 0.0
    %4806 = vmatpush1.msra.mxu0 %v1240
    %4807 = vmatprep.subr.mxu0 0.0
    %4808 = vmatpush1.msra.mxu0 %v1241
    %4809 = vmatprep.subr.mxu0 0.0
    %4810 = vmatpush1.msra.mxu0 0.0
    %4811 = vmatprep.subr.mxu0 0.0
    %4812 = vmatpush1.msra.mxu0 0.0
    %4813 = vmatprep.subr.mxu0 0.0
    %4814 = vmatpush1.msra.mxu0 0.0
    %4815 = vmatprep.subr.mxu0 0.0
    %4816 = vmatpush1.msra.mxu0 0.0
    %4817 = vmatprep.subr.mxu0 0.0
    %4818 = vmatpush1.msra.mxu0 0.0
    %4819 = vmatprep.subr.mxu0 0.0
    %4820 = vmatpush1.msra.mxu0 0.0
    %4821 = vmatprep.subr.mxu0 0.0
    %4822 = vmatpush1.msra.mxu0 0.0
    %4823 = vmatprep.subr.mxu0 0.0
    %4824 = vmatpush1.msra.mxu0 0.0
    %4825 = vmatprep.subr.mxu0 0.0
    %4826 = vmatpush1.msra.mxu0 0.0
    %4827 = vmatprep.subr.mxu0 0.0
    %4828 = vmatpush1.msra.mxu0 0.0
    %4829 = vmatprep.subr.mxu0 0.0
    %4830 = vmatpush1.msra.mxu0 0.0
    %4831 = vmatprep.subr.mxu0 0.0
    %4832 = vmatpush1.msra.mxu0 0.0
    %4833 = vmatprep.subr.mxu0 0.0
    %4834 = vmatpush1.msra.mxu0 0.0
    %4835 = vmatprep.subr.mxu0 0.0
    %4836 = vmatpush1.msra.mxu0 0.0
    %4837 = vmatprep.subr.mxu0 0.0
    %4838 = vmatpush1.msra.mxu0 0.0
    %4839 = vmatprep.subr.mxu0 0.0
    %4840 = vmatpush1.msra.mxu0 0.0
    %4841 = vmatprep.subr.mxu0 0.0
    %4842 = vmatpush1.msra.mxu0 0.0
    %4843 = vmatprep.subr.mxu0 0.0
    %4844 = vmatpush1.msra.mxu0 0.0
    %4845 = vmatprep.subr.mxu0 0.0
    %4846 = vmatpush1.msra.mxu0 0.0
    %4847 = vmatprep.subr.mxu0 0.0
    %4848 = vmatpush1.msra.mxu0 0.0
    %4849 = vmatprep.subr.mxu0 0.0
    %4850 = vmatpush1.msra.mxu0 0.0
    %4851 = vmatprep.subr.mxu0 0.0
    %4852 = vmatpush1.msra.mxu0 0.0
    %4853 = vmatprep.subr.mxu0 0.0
    %4854 = vmatpush1.msra.mxu0 0.0
    %4855 = vmatprep.subr.mxu0 0.0
    %4856 = vmatpush1.msra.mxu0 0.0
    %4857 = vmatprep.mubr.f32.mxu0 0.0
    %4858 = vmatmul.mubr.f32.gmra.mrb[0].mxu0 %v4791
    %v4859 = vpop.f32.mrb[0].mxu0
    %v4860 = vadd.f32 %v1247, %v4859
    %v4861 = vpop.f32.mrb[0].mxu0
    %4862 = vdwg.mxu0
    %v4863 = vadd.f32 %v4786, %v4787
    %v4864 = vxor.u32 %v4863, 2147483648
    %v4865 = vmul.f32 %v4864, 1.442695
    %v4866 = vpow.pop %v4865
    %v4867 = vadd.f32 %v4866, 1.0
    %v4868 = vrcp.pop %v4867
    %v4869 = vmul.f32 1.0, %v4868
    %4871 = vrot.lane.b32.xlu0 %v4787, 64
    %v4872 = vpop.permute.xlu0 %4871
    %v4874 = vmul.f32 %v4869, %v4872
    %4876 = vrot.lane.b32.xlu0 %v4874, 64
    %v4877 = vpop.permute.xlu0 %4876
    %v4879 = vadd.f32 %v4786, %v4877
    %v4880 = vtanh.pop %v4879
    %v4881 = vsub.f32 1.0, %v4869
    %4883 = vrot.lane.b32.xlu0 %v4880, 96
    %v4884 = vpop.permute.xlu0 %4883
    %v4886 = vmul.f32 %v4881, %v4884
    %v4887 = vrot.slane %v4169, 4
    %v4889 = vmul.f32 %v4869, %v4887
    %v4890 = vadd.f32 %v4886, %v4889
    %4892 = vrot.lane.b32.xlu0 %v4541, 32
    %v4893 = vpop.permute.xlu0 %4892
    %v4895 = vsub.f32 %v4541, %v4893
    %v4896 = vadd.f32 %v4200, %v4895
    %4897 = vrot.lane.b32.xlu0 %v4541, 96
    %v4898 = vpop.permute.xlu0 %4897
    %v4900 = vsub.f32 %v4541, %v4898
    %v4901 = vmul.f32 %v4900, 1.442695
    %v4902 = vpow.pop %v4901
    %4904 = vrot.lane.b32.xlu0 %v4902, 32
    %v4905 = vpop.permute.xlu0 %4904
    %v4907 = vadd.f32 %v4896, %v4905
    %v4908 = vmul.f32 %v4900, %v4900
    %v4909 = vsub.f32 0.0, %v4541
    %v4910 = vmul.f32 %v4909, 1.442695
    %v4911 = vpow.pop %v4910
    %4913 = vrot.lane.b32.xlu0 %v4911, 80
    %v4914 = vpop.permute.xlu0 %4913
    %v4916 = vmul.f32 %v4908, %v4914
    %4918 = vrot.lane.b32.xlu0 %v4916, 48
    %v4919 = vpop.permute.xlu0 %4918
    %v4921 = vadd.f32 %v4907, %v4919
    %s4922 = scalar_lea.vmem %s1, 20
    %v4923 = vld [vmem:[%s4922] sm:$0xf]
    %v4924 = vsub.f32 %v4923, %v4860
    %v4925 = vmul.f32 %v4924, %v4924
    %v4926 = vsub.f32 0.0, %v4860
    %v4927 = vmul.f32 %v4926, 1.442695
    %v4928 = vpow.pop %v4927
    %4930 = vrot.lane.b32.xlu0 %v4928, 126
    %v4931 = vpop.permute.xlu0 %4930
    %v4933 = vmul.f32 %v4925, %v4931
    %v4934 = vadd.f32 %v4218, %v4933
    %4936 = vrot.lane.b32.xlu0 %v4860, 126
    %v4937 = vpop.permute.xlu0 %4936
    %v4939 = vadd.f32 %v4934, %v4937
    %v4940 = vld [vmem:[#allocation2 + $0x78] sm:$0xf]
    %v4941 = vld [vmem:[#allocation2 + $0x80] sm:$0xf]
    %v4942 = vld [vmem:[#allocation2 + $0x88] sm:$0xf]
    %v4944 = vrot.slane %v4890, 4
    %4945 = vrot.lane.b32.xlu0 %v4944, 96
    %v4946 = vpop.permute.xlu0 %4945
    %v4947 = vsel %vm282, %v4946, 0
    %4949 = vmatprep.subr.mxu0 %v584
    %4950 = vmatpush1.msra.mxu0 %v583
    %4951 = vmatprep.subr.mxu0 %v589
    %4952 = vmatpush1.msra.mxu0 %v588
    %4953 = vmatprep.subr.mxu0 %v594
    %4954 = vmatpush1.msra.mxu0 %v593
    %4955 = vmatprep.subr.mxu0 %v599
    %4956 = vmatpush1.msra.mxu0 %v598
    %4957 = vmatprep.subr.mxu0 0.0
    %4958 = vmatpush1.msra.mxu0 0.0
    %4959 = vmatprep.subr.mxu0 0.0
    %4960 = vmatpush1.msra.mxu0 0.0
    %4961 = vmatprep.subr.mxu0 0.0
    %4962 = vmatpush1.msra.mxu0 0.0
    %4963 = vmatprep.subr.mxu0 0.0
    %4964 = vmatpush1.msra.mxu0 0.0
    %4965 = vmatprep.subr.mxu0 0.0
    %4966 = vmatpush1.msra.mxu0 0.0
    %4967 = vmatprep.subr.mxu0 0.0
    %4968 = vmatpush1.msra.mxu0 0.0
    %4969 = vmatprep.subr.mxu0 0.0
    %4970 = vmatpush1.msra.mxu0 0.0
    %4971 = vmatprep.subr.mxu0 0.0
    %4972 = vmatpush1.msra.mxu0 0.0
    %4973 = vmatprep.subr.mxu0 0.0
    %4974 = vmatpush1.msra.mxu0 0.0
    %4975 = vmatprep.subr.mxu0 0.0
    %4976 = vmatpush1.msra.mxu0 0.0
    %4977 = vmatprep.subr.mxu0 0.0
    %4978 = vmatpush1.msra.mxu0 0.0
    %4979 = vmatprep.subr.mxu0 0.0
    %4980 = vmatpush1.msra.mxu0 0.0
    %4981 = vmatprep.subr.mxu0 0.0
    %4982 = vmatpush1.msra.mxu0 0.0
    %4983 = vmatprep.subr.mxu0 0.0
    %4984 = vmatpush1.msra.mxu0 0.0
    %4985 = vmatprep.subr.mxu0 0.0
    %4986 = vmatpush1.msra.mxu0 0.0
    %4987 = vmatprep.subr.mxu0 0.0
    %4988 = vmatpush1.msra.mxu0 0.0
    %4989 = vmatprep.subr.mxu0 0.0
    %4990 = vmatpush1.msra.mxu0 0.0
    %4991 = vmatprep.subr.mxu0 0.0
    %4992 = vmatpush1.msra.mxu0 0.0
    %4993 = vmatprep.subr.mxu0 0.0
    %4994 = vmatpush1.msra.mxu0 0.0
    %4995 = vmatprep.subr.mxu0 0.0
    %4996 = vmatpush1.msra.mxu0 0.0
    %4997 = vmatprep.subr.mxu0 0.0
    %4998 = vmatpush1.msra.mxu0 0.0
    %4999 = vmatprep.subr.mxu0 0.0
    %5000 = vmatpush1.msra.mxu0 0.0
    %5001 = vmatprep.subr.mxu0 0.0
    %5002 = vmatpush1.msra.mxu0 0.0
    %5003 = vmatprep.subr.mxu0 0.0
    %5004 = vmatpush1.msra.mxu0 0.0
    %5005 = vmatprep.subr.mxu0 0.0
    %5006 = vmatpush1.msra.mxu0 0.0
    %5007 = vmatprep.subr.mxu0 0.0
    %5008 = vmatpush1.msra.mxu0 0.0
    %5009 = vmatprep.subr.mxu0 0.0
    %5010 = vmatpush1.msra.mxu0 0.0
    %5011 = vmatprep.subr.mxu0 0.0
    %5012 = vmatpush1.msra.mxu0 0.0
    %5013 = vmatprep.mubr.f32.mxu0 0.0
    %5014 = vmatmul.mubr.f32.gmra.mrb[0].mxu0 %v4947
    %v5015 = vpop.f32.mrb[0].mxu0
    %v5016 = vadd.f32 0.0, %v5015
    %v5017 = vpop.f32.mrb[0].mxu0
    %v5018 = vadd.f32 0.0, %v5017
    %5019 = vdwg.mxu0
    %5020 = vmatprep.subr.mxu0 %v586
    %5021 = vmatpush1.msra.mxu0 %v585
    %5022 = vmatprep.subr.mxu0 %v591
    %5023 = vmatpush1.msra.mxu0 %v590
    %5024 = vmatprep.subr.mxu0 %v596
    %5025 = vmatpush1.msra.mxu0 %v595
    %5026 = vmatprep.subr.mxu0 %v601
    %5027 = vmatpush1.msra.mxu0 %v600
    %5028 = vmatprep.subr.mxu0 0.0
    %5029 = vmatpush1.msra.mxu0 0.0
    %5030 = vmatprep.subr.mxu0 0.0
    %5031 = vmatpush1.msra.mxu0 0.0
    %5032 = vmatprep.subr.mxu0 0.0
    %5033 = vmatpush1.msra.mxu0 0.0
    %5034 = vmatprep.subr.mxu0 0.0
    %5035 = vmatpush1.msra.mxu0 0.0
    %5036 = vmatprep.subr.mxu0 0.0
    %5037 = vmatpush1.msra.mxu0 0.0
    %5038 = vmatprep.subr.mxu0 0.0
    %5039 = vmatpush1.msra.mxu0 0.0
    %5040 = vmatprep.subr.mxu0 0.0
    %5041 = vmatpush1.msra.mxu0 0.0
    %5042 = vmatprep.subr.mxu0 0.0
    %5043 = vmatpush1.msra.mxu0 0.0
    %5044 = vmatprep.subr.mxu0 0.0
    %5045 = vmatpush1.msra.mxu0 0.0
    %5046 = vmatprep.subr.mxu0 0.0
    %5047 = vmatpush1.msra.mxu0 0.0
    %5048 = vmatprep.subr.mxu0 0.0
    %5049 = vmatpush1.msra.mxu0 0.0
    %5050 = vmatprep.subr.mxu0 0.0
    %5051 = vmatpush1.msra.mxu0 0.0
    %5052 = vmatprep.subr.mxu0 0.0
    %5053 = vmatpush1.msra.mxu0 0.0
    %5054 = vmatprep.subr.mxu0 0.0
    %5055 = vmatpush1.msra.mxu0 0.0
    %5056 = vmatprep.subr.mxu0 0.0
    %5057 = vmatpush1.msra.mxu0 0.0
    %5058 = vmatprep.subr.mxu0 0.0
    %5059 = vmatpush1.msra.mxu0 0.0
    %5060 = vmatprep.subr.mxu0 0.0
    %5061 = vmatpush1.msra.mxu0 0.0
    %5062 = vmatprep.subr.mxu0 0.0
    %5063 = vmatpush1.msra.mxu0 0.0
    %5064 = vmatprep.subr.mxu0 0.0
    %5065 = vmatpush1.msra.mxu0 0.0
    %5066 = vmatprep.subr.mxu0 0.0
    %5067 = vmatpush1.msra.mxu0 0.0
    %5068 = vmatprep.subr.mxu0 0.0
    %5069 = vmatpush1.msra.mxu0 0.0
    %5070 = vmatprep.subr.mxu0 0.0
    %5071 = vmatpush1.msra.mxu0 0.0
    %5072 = vmatprep.subr.mxu0 0.0
    %5073 = vmatpush1.msra.mxu0 0.0
    %5074 = vmatprep.subr.mxu0 0.0
    %5075 = vmatpush1.msra.mxu0 0.0
    %5076 = vmatprep.subr.mxu0 0.0
    %5077 = vmatpush1.msra.mxu0 0.0
    %5078 = vmatprep.subr.mxu0 0.0
    %5079 = vmatpush1.msra.mxu0 0.0
    %5080 = vmatprep.subr.mxu0 0.0
    %5081 = vmatpush1.msra.mxu0 0.0
    %5082 = vmatprep.subr.mxu0 0.0
    %5083 = vmatpush1.msra.mxu0 0.0
    %5084 = vmatprep.mubr.f32.mxu0 0.0
    %5085 = vmatmul.mubr.f32.gmra.mrb[0].mxu0 %v4947
    %v5086 = vpop.f32.mrb[0].mxu0
    %v5087 = vadd.f32 0.0, %v5086
    %v5088 = vpop.f32.mrb[0].mxu0
    %5089 = vdwg.mxu0
    %v5090 = vadd.f32 %v4940, %v5016
    %v5091 = vadd.f32 %v4941, %v5018
    %v5092 = vadd.f32 %v4942, %v5087
    %v5093 = vadd.f32 %v5090, %v828
    %v5094 = vadd.f32 %v5091, %v832
    %v5095 = vadd.f32 %v5092, %v836
    %v5096 = vmax.f32 %v5093, 0.0
    %v5097 = vmax.f32 %v5094, 0.0
    %5098 = vmatprep.subr.mxu0 0.0
    %5099 = vmatpush1.msra.mxu0 %v857
    %5100 = vmatprep.subr.mxu0 0.0
    %5101 = vmatpush1.msra.mxu0 %v858
    %5102 = vmatprep.subr.mxu0 0.0
    %5103 = vmatpush1.msra.mxu0 %v859
    %5104 = vmatprep.subr.mxu0 0.0
    %5105 = vmatpush1.msra.mxu0 %v860
    %5106 = vmatprep.subr.mxu0 0.0
    %5107 = vmatpush1.msra.mxu0 %v861
    %5108 = vmatprep.subr.mxu0 0.0
    %5109 = vmatpush1.msra.mxu0 %v862
    %5110 = vmatprep.subr.mxu0 0.0
    %5111 = vmatpush1.msra.mxu0 %v863
    %5112 = vmatprep.subr.mxu0 0.0
    %5113 = vmatpush1.msra.mxu0 %v864
    %5114 = vmatprep.subr.mxu0 0.0
    %5115 = vmatpush1.msra.mxu0 %v865
    %5116 = vmatprep.subr.mxu0 0.0
    %5117 = vmatpush1.msra.mxu0 %v866
    %5118 = vmatprep.subr.mxu0 0.0
    %5119 = vmatpush1.msra.mxu0 %v867
    %5120 = vmatprep.subr.mxu0 0.0
    %5121 = vmatpush1.msra.mxu0 %v868
    %5122 = vmatprep.subr.mxu0 0.0
    %5123 = vmatpush1.msra.mxu0 %v869
    %5124 = vmatprep.subr.mxu0 0.0
    %5125 = vmatpush1.msra.mxu0 %v870
    %5126 = vmatprep.subr.mxu0 0.0
    %5127 = vmatpush1.msra.mxu0 %v871
    %5128 = vmatprep.subr.mxu0 0.0
    %5129 = vmatpush1.msra.mxu0 %v872
    %5130 = vmatprep.subr.mxu0 0.0
    %5131 = vmatpush1.msra.mxu0 %v873
    %5132 = vmatprep.subr.mxu0 0.0
    %5133 = vmatpush1.msra.mxu0 %v874
    %5134 = vmatprep.subr.mxu0 0.0
    %5135 = vmatpush1.msra.mxu0 %v875
    %5136 = vmatprep.subr.mxu0 0.0
    %5137 = vmatpush1.msra.mxu0 %v876
    %5138 = vmatprep.subr.mxu0 0.0
    %5139 = vmatpush1.msra.mxu0 %v877
    %5140 = vmatprep.subr.mxu0 0.0
    %5141 = vmatpush1.msra.mxu0 %v878
    %5142 = vmatprep.subr.mxu0 0.0
    %5143 = vmatpush1.msra.mxu0 %v879
    %5144 = vmatprep.subr.mxu0 0.0
    %5145 = vmatpush1.msra.mxu0 %v880
    %5146 = vmatprep.subr.mxu0 0.0
    %5147 = vmatpush1.msra.mxu0 %v881
    %5148 = vmatprep.subr.mxu0 0.0
    %5149 = vmatpush1.msra.mxu0 %v882
    %5150 = vmatprep.subr.mxu0 0.0
    %5151 = vmatpush1.msra.mxu0 %v883
    %5152 = vmatprep.subr.mxu0 0.0
    %5153 = vmatpush1.msra.mxu0 %v884
    %5154 = vmatprep.subr.mxu0 0.0
    %5155 = vmatpush1.msra.mxu0 %v885
    %5156 = vmatprep.subr.mxu0 0.0
    %5157 = vmatpush1.msra.mxu0 %v886
    %5158 = vmatprep.subr.mxu0 0.0
    %5159 = vmatpush1.msra.mxu0 %v887
    %5160 = vmatprep.subr.mxu0 0.0
    %5161 = vmatpush1.msra.mxu0 %v888
    %5162 = vmatprep.mubr.f32.mxu0 %v5097
    %5163 = vmatmul.mubr.f32.gmra.mrb[0].mxu0 %v5096
    %v5164 = vpop.f32.mrb[0].mxu0
    %v5165 = vadd.f32 %v894, %v5164
    %v5166 = vpop.f32.mrb[0].mxu0
    %5167 = vdwg.mxu0
    %s5168 = scalar_lea.vmem %s2, 24
    %v5169 = vld [vmem:[%s5168] sm:$0xf]
    %v5170 = vmul.f32 %v5165, 0.5
    %v5171 = vmul.f32 %v5170, 1.442695
    %v5172 = vpow.pop %v5171
    %5174 = vrot.lane.b32.xlu0 %v5172, 112
    %v5175 = vpop.permute.xlu0 %5174
    %v5177 = vmul.f32 %v5169, %v5175
    %v5178 = vadd.f32 %v5177, %v5165
    %v5180 = vsel %vm985, %v5178, 0
    %5182 = vmatprep.subr.mxu0 0.0
    %5183 = vmatpush1.msra.mxu0 %v976
    %5184 = vmatprep.subr.mxu0 0.0
    %5185 = vmatpush1.msra.mxu0 %v977
    %5186 = vmatprep.subr.mxu0 0.0
    %5187 = vmatpush1.msra.mxu0 0.0
    %5188 = vmatprep.subr.mxu0 0.0
    %5189 = vmatpush1.msra.mxu0 0.0
    %5190 = vmatprep.subr.mxu0 0.0
    %5191 = vmatpush1.msra.mxu0 0.0
    %5192 = vmatprep.subr.mxu0 0.0
    %5193 = vmatpush1.msra.mxu0 0.0
    %5194 = vmatprep.subr.mxu0 0.0
    %5195 = vmatpush1.msra.mxu0 0.0
    %5196 = vmatprep.subr.mxu0 0.0
    %5197 = vmatpush1.msra.mxu0 0.0
    %5198 = vmatprep.subr.mxu0 0.0
    %5199 = vmatpush1.msra.mxu0 0.0
    %5200 = vmatprep.subr.mxu0 0.0
    %5201 = vmatpush1.msra.mxu0 0.0
    %5202 = vmatprep.subr.mxu0 0.0
    %5203 = vmatpush1.msra.mxu0 0.0
    %5204 = vmatprep.subr.mxu0 0.0
    %5205 = vmatpush1.msra.mxu0 0.0
    %5206 = vmatprep.subr.mxu0 0.0
    %5207 = vmatpush1.msra.mxu0 0.0
    %5208 = vmatprep.subr.mxu0 0.0
    %5209 = vmatpush1.msra.mxu0 0.0
    %5210 = vmatprep.subr.mxu0 0.0
    %5211 = vmatpush1.msra.mxu0 0.0
    %5212 = vmatprep.subr.mxu0 0.0
    %5213 = vmatpush1.msra.mxu0 0.0
    %5214 = vmatprep.subr.mxu0 0.0
    %5215 = vmatpush1.msra.mxu0 0.0
    %5216 = vmatprep.subr.mxu0 0.0
    %5217 = vmatpush1.msra.mxu0 0.0
    %5218 = vmatprep.subr.mxu0 0.0
    %5219 = vmatpush1.msra.mxu0 0.0
    %5220 = vmatprep.subr.mxu0 0.0
    %5221 = vmatpush1.msra.mxu0 0.0
    %5222 = vmatprep.subr.mxu0 0.0
    %5223 = vmatpush1.msra.mxu0 0.0
    %5224 = vmatprep.subr.mxu0 0.0
    %5225 = vmatpush1.msra.mxu0 0.0
    %5226 = vmatprep.subr.mxu0 0.0
    %5227 = vmatpush1.msra.mxu0 0.0
    %5228 = vmatprep.subr.mxu0 0.0
    %5229 = vmatpush1.msra.mxu0 0.0
    %5230 = vmatprep.subr.mxu0 0.0
    %5231 = vmatpush1.msra.mxu0 0.0
    %5232 = vmatprep.subr.mxu0 0.0
    %5233 = vmatpush1.msra.mxu0 0.0
    %5234 = vmatprep.subr.mxu0 0.0
    %5235 = vmatpush1.msra.mxu0 0.0
    %5236 = vmatprep.subr.mxu0 0.0
    %5237 = vmatpush1.msra.mxu0 0.0
    %5238 = vmatprep.subr.mxu0 0.0
    %5239 = vmatpush1.msra.mxu0 0.0
    %5240 = vmatprep.subr.mxu0 0.0
    %5241 = vmatpush1.msra.mxu0 0.0
    %5242 = vmatprep.subr.mxu0 0.0
    %5243 = vmatpush1.msra.mxu0 0.0
    %5244 = vmatprep.subr.mxu0 0.0
    %5245 = vmatpush1.msra.mxu0 0.0
    %5246 = vmatprep.mubr.f32.mxu0 0.0
    %5247 = vmatmul.mubr.f32.gmra.mrb[0].mxu0 %v5180
    %v5248 = vpop.f32.mrb[0].mxu0
    %v5249 = vadd.f32 %v983, %v5248
    %v5250 = vpop.f32.mrb[0].mxu0
    %5251 = vdwg.mxu0
    %v5252 = vmax.f32 %v5249, 0.0
    %v5254 = vsel %vm985, %v5252, 0
    %5256 = vmatprep.subr.mxu0 %v1061
    %5257 = vmatpush1.msra.mxu0 %v1060
    %5258 = vmatprep.subr.mxu0 %v1064
    %5259 = vmatpush1.msra.mxu0 %v1063
    %5260 = vmatprep.subr.mxu0 0.0
    %5261 = vmatpush1.msra.mxu0 0.0
    %5262 = vmatprep.subr.mxu0 0.0
    %5263 = vmatpush1.msra.mxu0 0.0
    %5264 = vmatprep.subr.mxu0 0.0
    %5265 = vmatpush1.msra.mxu0 0.0
    %5266 = vmatprep.subr.mxu0 0.0
    %5267 = vmatpush1.msra.mxu0 0.0
    %5268 = vmatprep.subr.mxu0 0.0
    %5269 = vmatpush1.msra.mxu0 0.0
    %5270 = vmatprep.subr.mxu0 0.0
    %5271 = vmatpush1.msra.mxu0 0.0
    %5272 = vmatprep.subr.mxu0 0.0
    %5273 = vmatpush1.msra.mxu0 0.0
    %5274 = vmatprep.subr.mxu0 0.0
    %5275 = vmatpush1.msra.mxu0 0.0
    %5276 = vmatprep.subr.mxu0 0.0
    %5277 = vmatpush1.msra.mxu0 0.0
    %5278 = vmatprep.subr.mxu0 0.0
    %5279 = vmatpush1.msra.mxu0 0.0
    %5280 = vmatprep.subr.mxu0 0.0
    %5281 = vmatpush1.msra.mxu0 0.0
    %5282 = vmatprep.subr.mxu0 0.0
    %5283 = vmatpush1.msra.mxu0 0.0
    %5284 = vmatprep.subr.mxu0 0.0
    %5285 = vmatpush1.msra.mxu0 0.0
    %5286 = vmatprep.subr.mxu0 0.0
    %5287 = vmatpush1.msra.mxu0 0.0
    %5288 = vmatprep.subr.mxu0 0.0
    %5289 = vmatpush1.msra.mxu0 0.0
    %5290 = vmatprep.subr.mxu0 0.0
    %5291 = vmatpush1.msra.mxu0 0.0
    %5292 = vmatprep.subr.mxu0 0.0
    %5293 = vmatpush1.msra.mxu0 0.0
    %5294 = vmatprep.subr.mxu0 0.0
    %5295 = vmatpush1.msra.mxu0 0.0
    %5296 = vmatprep.subr.mxu0 0.0
    %5297 = vmatpush1.msra.mxu0 0.0
    %5298 = vmatprep.subr.mxu0 0.0
    %5299 = vmatpush1.msra.mxu0 0.0
    %5300 = vmatprep.subr.mxu0 0.0
    %5301 = vmatpush1.msra.mxu0 0.0
    %5302 = vmatprep.subr.mxu0 0.0
    %5303 = vmatpush1.msra.mxu0 0.0
    %5304 = vmatprep.subr.mxu0 0.0
    %5305 = vmatpush1.msra.mxu0 0.0
    %5306 = vmatprep.subr.mxu0 0.0
    %5307 = vmatpush1.msra.mxu0 0.0
    %5308 = vmatprep.subr.mxu0 0.0
    %5309 = vmatpush1.msra.mxu0 0.0
    %5310 = vmatprep.subr.mxu0 0.0
    %5311 = vmatpush1.msra.mxu0 0.0
    %5312 = vmatprep.subr.mxu0 0.0
    %5313 = vmatpush1.msra.mxu0 0.0
    %5314 = vmatprep.subr.mxu0 0.0
    %5315 = vmatpush1.msra.mxu0 0.0
    %5316 = vmatprep.subr.mxu0 0.0
    %5317 = vmatpush1.msra.mxu0 0.0
    %5318 = vmatprep.subr.mxu0 0.0
    %5319 = vmatpush1.msra.mxu0 0.0
    %5320 = vmatprep.mubr.f32.mxu0 0.0
    %5321 = vmatmul.mubr.f32.gmra.mrb[0].mxu0 %v5254
    %v5322 = vpop.f32.mrb[0].mxu0
    %v5323 = vadd.f32 0.0, %v5322
    %v5324 = vpop.f32.mrb[0].mxu0
    %5325 = vdwg.mxu0
    %v5326 = vadd.f32 %v5095, %v5323
    %v5327 = vadd.f32 %v5326, %v1218
    %v5328 = vmax.f32 %v5327, 0.0
    %v5330 = vsel %vm1249, %v5328, 0
    %5332 = vmatprep.subr.mxu0 0.0
    %5333 = vmatpush1.msra.mxu0 %v1234
    %5334 = vmatprep.subr.mxu0 0.0
    %5335 = vmatpush1.msra.mxu0 %v1235
    %5336 = vmatprep.subr.mxu0 0.0
    %5337 = vmatpush1.msra.mxu0 %v1236
    %5338 = vmatprep.subr.mxu0 0.0
    %5339 = vmatpush1.msra.mxu0 %v1237
    %5340 = vmatprep.subr.mxu0 0.0
    %5341 = vmatpush1.msra.mxu0 %v1238
    %5342 = vmatprep.subr.mxu0 0.0
    %5343 = vmatpush1.msra.mxu0 %v1239
    %5344 = vmatprep.subr.mxu0 0.0
    %5345 = vmatpush1.msra.mxu0 %v1240
    %5346 = vmatprep.subr.mxu0 0.0
    %5347 = vmatpush1.msra.mxu0 %v1241
    %5348 = vmatprep.subr.mxu0 0.0
    %5349 = vmatpush1.msra.mxu0 0.0
    %5350 = vmatprep.subr.mxu0 0.0
    %5351 = vmatpush1.msra.mxu0 0.0
    %5352 = vmatprep.subr.mxu0 0.0
    %5353 = vmatpush1.msra.mxu0 0.0
    %5354 = vmatprep.subr.mxu0 0.0
    %5355 = vmatpush1.msra.mxu0 0.0
    %5356 = vmatprep.subr.mxu0 0.0
    %5357 = vmatpush1.msra.mxu0 0.0
    %5358 = vmatprep.subr.mxu0 0.0
    %5359 = vmatpush1.msra.mxu0 0.0
    %5360 = vmatprep.subr.mxu0 0.0
    %5361 = vmatpush1.msra.mxu0 0.0
    %5362 = vmatprep.subr.mxu0 0.0
    %5363 = vmatpush1.msra.mxu0 0.0
    %5364 = vmatprep.subr.mxu0 0.0
    %5365 = vmatpush1.msra.mxu0 0.0
    %5366 = vmatprep.subr.mxu0 0.0
    %5367 = vmatpush1.msra.mxu0 0.0
    %5368 = vmatprep.subr.mxu0 0.0
    %5369 = vmatpush1.msra.mxu0 0.0
    %5370 = vmatprep.subr.mxu0 0.0
    %5371 = vmatpush1.msra.mxu0 0.0
    %5372 = vmatprep.subr.mxu0 0.0
    %5373 = vmatpush1.msra.mxu0 0.0
    %5374 = vmatprep.subr.mxu0 0.0
    %5375 = vmatpush1.msra.mxu0 0.0
    %5376 = vmatprep.subr.mxu0 0.0
    %5377 = vmatpush1.msra.mxu0 0.0
    %5378 = vmatprep.subr.mxu0 0.0
    %5379 = vmatpush1.msra.mxu0 0.0
    %5380 = vmatprep.subr.mxu0 0.0
    %5381 = vmatpush1.msra.mxu0 0.0
    %5382 = vmatprep.subr.mxu0 0.0
    %5383 = vmatpush1.msra.mxu0 0.0
    %5384 = vmatprep.subr.mxu0 0.0
    %5385 = vmatpush1.msra.mxu0 0.0
    %5386 = vmatprep.subr.mxu0 0.0
    %5387 = vmatpush1.msra.mxu0 0.0
    %5388 = vmatprep.subr.mxu0 0.0
    %5389 = vmatpush1.msra.mxu0 0.0
    %5390 = vmatprep.subr.mxu0 0.0
    %5391 = vmatpush1.msra.mxu0 0.0
    %5392 = vmatprep.subr.mxu0 0.0
    %5393 = vmatpush1.msra.mxu0 0.0
    %5394 = vmatprep.subr.mxu0 0.0
    %5395 = vmatpush1.msra.mxu0 0.0
    %5396 = vmatprep.mubr.f32.mxu0 0.0
    %5397 = vmatmul.mubr.f32.gmra.mrb[0].mxu0 %v5330
    %v5398 = vpop.f32.mrb[0].mxu0
    %v5399 = vadd.f32 %v1247, %v5398
    %v5400 = vpop.f32.mrb[0].mxu0
    %5401 = vdwg.mxu0
    %5403 = vrot.lane.b32.xlu0 %v5165, 32
    %v5404 = vpop.permute.xlu0 %5403
    %v5406 = vsub.f32 %v5165, %v5404
    %v5407 = vadd.f32 %v4921, %v5406
    %5408 = vrot.lane.b32.xlu0 %v5165, 96
    %v5409 = vpop.permute.xlu0 %5408
    %v5411 = vsub.f32 %v5165, %v5409
    %v5412 = vmul.f32 %v5411, 1.442695
    %v5413 = vpow.pop %v5412
    %5415 = vrot.lane.b32.xlu0 %v5413, 32
    %v5416 = vpop.permute.xlu0 %5415
    %v5418 = vadd.f32 %v5407, %v5416
    %v5419 = vmul.f32 %v5411, %v5411
    %v5420 = vsub.f32 0.0, %v5165
    %v5421 = vmul.f32 %v5420, 1.442695
    %v5422 = vpow.pop %v5421
    %5424 = vrot.lane.b32.xlu0 %v5422, 80
    %v5425 = vpop.permute.xlu0 %5424
    %v5427 = vmul.f32 %v5419, %v5425
    %5429 = vrot.lane.b32.xlu0 %v5427, 48
    %v5430 = vpop.permute.xlu0 %5429
    %v5432 = vadd.f32 %v5418, %v5430
    %s5433 = scalar_lea.vmem %s1, 24
    %v5434 = vld [vmem:[%s5433] sm:$0xf]
    %v5435 = vsub.f32 %v5434, %v5399
    %v5436 = vmul.f32 %v5435, %v5435
    %v5437 = vsub.f32 0.0, %v5399
    %v5438 = vmul.f32 %v5437, 1.442695
    %v5439 = vpow.pop %v5438
    %5441 = vrot.lane.b32.xlu0 %v5439, 126
    %v5442 = vpop.permute.xlu0 %5441
    %v5444 = vmul.f32 %v5436, %v5442
    %v5445 = vadd.f32 %v4939, %v5444
    %5447 = vrot.lane.b32.xlu0 %v5399, 126
    %v5448 = vpop.permute.xlu0 %5447
    %v5450 = vadd.f32 %v5445, %v5448
    %5452 = vrot.lane.b32.xlu0 %v5432, 80
    %v5453 = vpop.permute.xlu0 %5452
    %vm5455 = vcmask 125952
    %v5456 = vsel %vm5455, %v5453, 0.0
    %5457 = vadd.xlane.f32.xlu0 %v5456
    %v5458 = vpop.xlane.xlu0 %5457
    %v5459 = vrot.slane %v5458, 4
    %v5460 = vadd.f32 %v5458, %v5459
    %v5461 = vrot.slane %v5460, 2
    %v5462 = vadd.f32 %v5460, %v5461
    %v5463 = vrot.slane %v5462, 1
    %v5464 = vadd.f32 %v5462, %v5463
    %s5465 = vtos %v5464
    %v5466 = vrcp.pop 4.0
    %s5467 = vtos %v5466
    %s5468 = smul.f32 %s5465, %s5467
    %s5469 = smul.f32 %s5468, 0.5
    %s5470 = ssub.f32 %s5469, 56.0
    %vm5471 = vcmask 11264
    %v5472 = vsel %vm5471, %v5450, 0.0
    %5473 = vadd.xlane.f32.xlu0 %v5472
    %v5474 = vpop.xlane.xlu0 %5473
    %v5475 = vrot.slane %v5474, 4
    %v5476 = vadd.f32 %v5474, %v5475
    %v5477 = vrot.slane %v5476, 2
    %v5478 = vadd.f32 %v5476, %v5477
    %v5479 = vrot.slane %v5478, 1
    %v5480 = vadd.f32 %v5478, %v5479
    %s5481 = vtos %v5480
    %v5482 = vrcp.pop 4.0
    %s5483 = vtos %v5482
    %s5484 = smul.f32 %s5481, %s5483
    %s5485 = smul.f32 %s5484, 0.5
    %s5486 = sadd.f32 %s5485, 12.865139
    %s5487 = scalar_lea.smem [#allocation12], 0
    %5488 = sst [smem:[%s5487]] %s5470
    %s5489 = scalar_lea.smem [#allocation12], 1
    %5490 = sst [smem:[%s5489]] %s5486
    // Predicated region
    $region90: #{tpu_custom_call.1} parent=1 // pred_check
      _
    $region91: #{tpu_custom_call.1} parent=1 // pred_check_branch
      %5492 = sbr.rel (0) target = $region93
    $region92: #{tpu_custom_call.1} parent=1 // pred_region
      %s5494 = ssub.s32 16, 16
      %5495 = vsyncadd [#allocation5], %s5494
      %5498 = dma.smem_to_hbm [#allocation12], 16, %s17, [#allocation5]
    $region93: #{tpu_custom_call.1} parent=1 // pred_fallthru
      _
    // Predicated region
    $region94: #{tpu_custom_call.1} parent=1 // pred_check
      _
    $region95: #{tpu_custom_call.1} parent=1 // pred_check_branch
      %5500 = sbr.rel (0) target = $region97
    $region96: #{tpu_custom_call.1} parent=1 // pred_region
      %5501 = dma.done [#allocation5], 16
    $region97: #{tpu_custom_call.1} parent=1 // pred_fallthru
      _
    %5502 = sfence
    %5503 = vsyncpa [#allocation4], 1
    %5504 = vsyncpa [#allocation7], 1
    %5505 = vsyncpa [#allocation10], 1
    %5506 = vsyncpa [#allocation5], 1

</llo_original>
